<compile_context>
chip_gen: v7x
topology: tpu7x:2x2x1
jax: 0.10.0
libtpu: 0.0.40
codegen_flags: <defaults>
</compile_context>

<pallas_src>
import jax
import jax.numpy as jnp
import numpy as np
from jax.experimental import pallas as pl
from jax.experimental.pallas import tpu as pltpu

# Layer geometry: (KH, KW, Cin, Cout, W_in) for convblocks 1..7.
_CONV_CFGS = [
    (3, 3, 1, 14, 16),   # convblock1: 16 -> 14
    (3, 3, 14, 28, 14),  # convblock2: 14 -> 12
    (3, 3, 28, 20, 12),  # convblock3: 12 -> 10
    (1, 1, 20, 10, 5),   # convblock4 (after 2x2 maxpool): 5 -> 5
    (3, 3, 10, 20, 5),   # convblock5: 5 -> 3
    (3, 3, 20, 20, 3),   # convblock6: 3 -> 1
    (1, 1, 20, 10, 1),   # convblock7: 1 -> 1 (no BN, no bias, ReLU only)
]

# Samples packed into one grid step.  16 -> matmul M = 256 rows (v6e/v7x MXU
# height); use 8 on v5e if tuning for its 128-row MXU.
_SAMPLES_PER_STEP = 16


# ---------------------------------------------------------------------------
# Fused Pallas kernel: one grid step == _SAMPLES_PER_STEP samples, all layers
# stay in VMEM.  Activations are channel-minor [rows, W*C] slabs stacked with a
# constant per-sample row stride.
# ---------------------------------------------------------------------------
def _netv2_kernel(
        x_ref,                                        # [B*16, 16] f32 input slab
        t1, b1, t2, b2, t3, b3, t4, b4,               # banded bf16 weights + f32 biases
        t5, b5, t6, b6, t7, fcw, fcb,                 # conv5..7 + fused fc head
        out_ref,                                      # [B, 10] log-probs
        xb, a1, a2, cm, a4, a5):                      # VMEM activation scratch
    f32, bf16 = jnp.float32, jnp.bfloat16
    r1 = x_ref.shape[0]        # B*16 rows (16-row stride per sample, pre-pool)
    r2 = r1 // 2               # B*8  rows (8-row stride per sample, post-pool)
    nb = out_ref.shape[0]      # B samples in this grid step

    def banded(src_ref, t_ref, rows):
        """Valid stride-1 conv on a channel-minor slab: sum_kh src[kh:kh+rows] @ T[kh]."""
        acc = None
        for kh in range(t_ref.shape[0]):
            part = jnp.dot(src_ref[kh:kh + rows, :], t_ref[kh],
                           preferred_element_type=f32)
            acc = part if acc is None else acc + part
        return acc

    # Zero the +8 padding rows (they only ever feed garbage output rows; this
    # just keeps every value finite/deterministic).
    for ref, rows in ((xb, r1), (a1, r1), (a2, r1), (a4, r2)):
        ref[rows:, :] = jnp.zeros((ref.shape[0] - rows, ref.shape[1]), jnp.bfloat16)

    # Stage the input in bf16 once (single cast, reused by all kh shifts).
    xb[0:r1, :] = x_ref[...].astype(bf16)

    # convblock1..2: Conv(+folded BN) + ReLU  (Dropout = identity in eval).
    a1[0:r1, :] = jnp.maximum(banded(xb, t1, r1) + b1[...], 0.0).astype(bf16)  # 14x14x14
    a2[0:r1, :] = jnp.maximum(banded(a1, t2, r1) + b2[...], 0.0).astype(bf16)  # 12x12x28

    # convblock3 + column half of MaxPool2d(2,2): t3/b3 columns are permuted
    # offline so even output-width positions occupy lanes [0,100) and odd ones
    # occupy lanes [128,228) -> the column pool is one lane-aligned max.
    y3 = jnp.maximum(banded(a2, t3, r1) + b3[...], 0.0)           # [r1, 256] f32
    cm[...] = jnp.maximum(y3[:, :128], y3[:, 128:])               # [r1, 128] f32

    # Row half of MaxPool2d(2,2): pair rows (2r, 2r+1) via two stride-2 loads.
    p3 = jnp.maximum(cm[pl.ds(0, r2, 2), :], cm[pl.ds(1, r2, 2), :])   # [r2, 128]

    # convblock4: 1x1 conv (block-diagonal weights, K padded to 128) + BN + ReLU.
    y4 = jnp.dot(p3.astype(bf16), t4[...], preferred_element_type=f32) + b4[...]
    a4[0:r2, :] = jnp.maximum(y4, 0.0).astype(bf16)               # [r2, 50]  (5x5x10)

    # convblock5.
    a5[0:r2, :] = jnp.maximum(banded(a4, t5, r2) + b5[...], 0.0)  # [r2, 60]  (3x3x20)

    # convblock6: the only valid output row per sample is row s*8 -> gather the
    # three shifted LHS rows with stride-8 loads (one M=B matmul per shift).
    acc6 = None
    for kh in range(t6.shape[0]):
        lhs = a5[pl.ds(kh, nb, 8), :].astype(bf16)                # [B, 60]
        part = jnp.dot(lhs, t6[kh], preferred_element_type=f32)
        acc6 = part if acc6 is None else acc6 + part
    x6 = jnp.maximum(acc6 + b6[...], 0.0)                         # [B, 20]

    # convblock7: 1x1 conv, no BN / no bias, ReLU.
    x7 = jnp.maximum(jnp.dot(x6.astype(bf16), t7[...],
                             preferred_element_type=f32), 0.0)    # [B, 10]

    # AdaptiveAvgPool2d(1) over a 1x1 map is the identity; fc1 and fc2 have no
    # nonlinearity between them, so they are precomposed into one matmul.
    z = jnp.dot(x7, fcw[...], preferred_element_type=f32) + fcb[...]   # [B, 10]

    # log_softmax (f32, on-chip).
    m = jnp.max(z, axis=-1, keepdims=True)
    lse = jnp.log(jnp.sum(jnp.exp(z - m), axis=-1, keepdims=True)) + m
    out_ref[...] = z - lse


# ---------------------------------------------------------------------------
# Forward wrapper: one pallas_call, grid over batches of _SAMPLES_PER_STEP.
# ---------------------------------------------------------------------------
@jax.jit
def netv2_forward(x_nchw, wp):
    n, c, h, w = x_nchw.shape
    bsz = _SAMPLES_PER_STEP
    n_pad = ((n + bsz - 1) // bsz) * bsz

    # NCHW -> per-sample channel-minor [H, W*C] slabs, stacked along rows.
    x_rows = jnp.transpose(x_nchw, (0, 2, 3, 1)).reshape(n, h, w * c)
    if n_pad != n:
        x_rows = jnp.concatenate(
            [x_rows, jnp.zeros((n_pad - n, h, w * c), x_rows.dtype)], axis=0)
    x2d = x_rows.reshape(n_pad * h, w * c)

    order = ("t1", "b1", "t2", "b2", "t3", "b3", "t4", "b4",
             "t5", "b5", "t6", "b6", "t7", "fcw", "fcb")
    weights = [wp[k] for k in order]

    def full_spec(a):
        zeros = (0,) * a.ndim
        return pl.BlockSpec(a.shape, lambda i: zeros)   # resident across grid steps

    in_specs = [pl.BlockSpec((bsz * h, w * c), lambda i: (i, 0))]
    in_specs += [full_spec(a) for a in weights]

    r1, r2 = bsz * h, bsz * h // 2
    scratch = [
        pltpu.VMEM((r1 + 8, w * c), jnp.bfloat16),   # xb : staged bf16 input
        pltpu.VMEM((r1 + 8, 196), jnp.bfloat16),     # a1 : conv1 out (14x14x14 / sample)
        pltpu.VMEM((r1 + 8, 336), jnp.bfloat16),     # a2 : conv2 out (12x12x28 / sample)
        pltpu.VMEM((r1, 128), jnp.float32),          # cm : column-pooled conv3 out
        pltpu.VMEM((r2 + 8, 50), jnp.bfloat16),      # a4 : conv4 out (5x5x10 / sample)
        pltpu.VMEM((r2, 60), jnp.float32),           # a5 : conv5 out (3x3x20 / sample)
    ]

    bytes_accessed = int(x2d.size * x2d.dtype.itemsize + n_pad * 10 * 4 +
                         sum(int(a.size) * a.dtype.itemsize for a in weights))

    out = pl.pallas_call(
        _netv2_kernel,
        grid=(n_pad // bsz,),
        out_shape=jax.ShapeDtypeStruct((n_pad, 10), jnp.float32),
        in_specs=in_specs,
        out_specs=pl.BlockSpec((bsz, 10), lambda i: (i, 0)),
        scratch_shapes=scratch,
        compiler_params=pltpu.CompilerParams(
            dimension_semantics=("parallel",)),
        cost_estimate=pl.CostEstimate(
            flops=int(n_pad * 16_000_000),
            transcendentals=int(n_pad * 16),
            bytes_accessed=bytes_accessed),
    )(x2d, *weights)
    return out[:n]


# ---------------------------------------------------------------------------
# Deterministic parameter construction (BN folded, banded conv matrices).
# ---------------------------------------------------------------------------
def _fold_bn(gamma, beta, mean, var, eps=1e-5):
    scale = gamma / np.sqrt(var + eps)
    return scale, beta - mean * scale


def _banded_conv_matrix(w, w_in):
    """[KH,KW,Cin,Cout] conv weights -> banded matrices [KH, W_in*Cin, OW*Cout].

    With activations stored as channel-minor [rows, W*Cin] slabs, a VALID
    stride-1 conv is:   out_slab = sum_kh  act_slab[kh:kh+rows, :] @ T[kh].
    """
    kh_, kw_, cin, cout = w.shape
    ow = w_in - kw_ + 1
    t = np.zeros((kh_, w_in * cin, ow * cout), np.float32)
    for kh in range(kh_):
        for o in range(ow):
            for kw in range(kw_):
                wpos = o + kw
                t[kh, wpos * cin:(wpos + 1) * cin, o * cout:(o + 1) * cout] = w[kh, kw]
    return t


def make_params(key):
    """Returns (kernel_params, ref_params).

    kernel_params: BN-folded banded bf16 conv matrices + tiled f32 biases,
                   with conv3 columns permuted for the fused maxpool, conv4's K
                   padded to 128, and fc1∘fc2 precomposed.
    ref_params:    the same (bf16-representable) folded weights in plain
                   [KH,KW,Cin,Cout] form for the pure-JAX reference.
    """
    keys = jax.random.split(key, 24)
    kp, rp, folded = {}, {}, {}
    for i, (kh, kw, cin, cout, w_in) in enumerate(_CONV_CFGS, start=1):
        w = np.asarray(0.1 * jax.random.normal(keys[i], (kh, kw, cin, cout), jnp.float32))
        if i < 7:   # convblocks 1..6 have BatchNorm (eval mode, folded into conv)
            k1, k2, k3, k4 = jax.random.split(keys[7 + i], 4)
            gamma = np.asarray(jax.random.uniform(k1, (cout,), jnp.float32, 0.5, 1.5))
            beta = np.asarray(0.1 * jax.random.normal(k2, (cout,), jnp.float32))
            mean = np.asarray(0.1 * jax.random.normal(k3, (cout,), jnp.float32))
            var = np.asarray(jax.random.uniform(k4, (cout,), jnp.float32, 0.5, 1.5))
            scale, bias = _fold_bn(gamma, beta, mean, var)
            w = w * scale[None, None, None, :]
        else:       # convblock7: no BatchNorm, bias=False
            bias = None
        # Round weights to bf16-representable values (what the MXU will see).
        w = np.asarray(jnp.asarray(w, jnp.bfloat16).astype(jnp.float32))
        rp[f"w{i}"] = jnp.asarray(w, jnp.float32)
        if bias is not None:
            rp[f"bias{i}"] = jnp.asarray(bias, jnp.float32)
        folded[i] = (w, bias, kh, kw, cin, cout, w_in)

    # Plain banded layers 1, 2, 5, 6.
    for i in (1, 2, 5, 6):
        w, bias, kh, kw, cin, cout, w_in = folded[i]
        ow = w_in - kw + 1
        kp[f"t{i}"] = jnp.asarray(_banded_conv_matrix(w, w_in), jnp.bfloat16)
        kp[f"b{i}"] = jnp.asarray(np.tile(bias, ow)[None, :], jnp.float32)

    # Layer 3: permute output columns so even ow -> lanes [0,100), odd ow ->
    # lanes [128,228) (padded to 256) to vectorize the maxpool column step.
    w, bias, kh, kw, cin, cout, w_in = folded[3]
    ow = w_in - kw + 1                                   # 10
    t = _banded_conv_matrix(w, w_in)                     # [3, 336, 200]
    t3r = np.zeros((kh, w_in * cin, 256), np.float32)
    b3r = np.zeros((256,), np.float32)
    for o in range(ow):
        base = (o // 2) * cout + (128 if (o % 2) else 0)
        t3r[:, :, base:base + cout] = t[:, :, o * cout:(o + 1) * cout]
        b3r[base:base + cout] = bias
    kp["t3"] = jnp.asarray(t3r, jnp.bfloat16)
    kp["b3"] = jnp.asarray(b3r[None, :], jnp.float32)

    # Layer 4: 1x1 conv -> block-diagonal matrix, K padded 100 -> 128.
    w, bias, kh, kw, cin, cout, w_in = folded[4]
    t = _banded_conv_matrix(w, w_in)[0]                  # [100, 50]
    t4p = np.zeros((128, t.shape[1]), np.float32)
    t4p[:t.shape[0]] = t
    kp["t4"] = jnp.asarray(t4p, jnp.bfloat16)
    kp["b4"] = jnp.asarray(np.tile(bias, w_in)[None, :], jnp.float32)

    # Layer 7: 1x1 conv, single [Cin, Cout] matrix, no bias.
    w = folded[7][0]
    kp["t7"] = jnp.asarray(w[0, 0], jnp.bfloat16)        # [20, 10]

    # fc head: fc1 (10->20) then fc2 (20->10), no nonlinearity between ->
    # precompose exactly into one [10,10] matmul + bias.
    fc1_w = 0.1 * jax.random.normal(keys[20], (10, 20), jnp.float32)
    fc1_b = 0.1 * jax.random.normal(keys[21], (20,), jnp.float32)
    fc2_w = 0.1 * jax.random.normal(keys[22], (20, 10), jnp.float32)
    fc2_b = 0.1 * jax.random.normal(keys[23], (10,), jnp.float32)
    kp["fcw"] = jnp.asarray(fc1_w @ fc2_w, jnp.float32)
    kp["fcb"] = jnp.asarray((fc1_b @ fc2_w + fc2_b)[None, :], jnp.float32)
    rp["fc1_w"], rp["fc1_b"] = fc1_w, fc1_b
    rp["fc2_w"], rp["fc2_b"] = fc2_w, fc2_b
    return kp, rp


# ---------------------------------------------------------------------------
# Pure-JAX f32 reference of NetV2.forward (eval mode) for correctness checking.
# ---------------------------------------------------------------------------
@jax.jit
def netv2_reference(x_nchw, rp):
    x = jnp.transpose(x_nchw, (0, 2, 3, 1))  # NHWC

    def conv(x, w, b):
        y = jax.lax.conv_general_dilated(
            x, w, window_strides=(1, 1), padding="VALID",
            dimension_numbers=("NHWC", "HWIO", "NHWC"))
        if b is not None:
            y = y + b
        return jnp.maximum(y, 0.0)

    x = conv(x, rp["w1"], rp["bias1"])
    x = conv(x, rp["w2"], rp["bias2"])
    x = conv(x, rp["w3"], rp["bias3"])
    n, hh, ww, cc = x.shape
    x = x.reshape(n, hh // 2, 2, ww // 2, 2, cc).max(axis=(2, 4))   # MaxPool2d(2,2)
    x = conv(x, rp["w4"], rp["bias4"])
    x = conv(x, rp["w5"], rp["bias5"])
    x = conv(x, rp["w6"], rp["bias6"])
    x = conv(x, rp["w7"], None)
    x = jnp.mean(x, axis=(1, 2))                                    # AdaptiveAvgPool2d(1)
    x = x @ rp["fc1_w"] + rp["fc1_b"]
    x = x @ rp["fc2_w"] + rp["fc2_b"]
    return jax.nn.log_softmax(x, axis=-1)


if __name__ == "__main__":
    key = jax.random.PRNGKey(0)
    k_x, k_p = jax.random.split(key)
    # Input: NCHW, single channel, 16x16 spatial (as the conv stack requires).
    # 32 samples -> two batched grid steps of 16 (keeps both v7x TCs busy).
    x = jax.random.normal(k_x, (32, 1, 16, 16), jnp.float32)
    kernel_params, ref_params = make_params(k_p)

    out = jax.block_until_ready(netv2_forward(x, kernel_params))

    assert out.shape == (32, 10)
    # log_softmax rows must exponentiate-sum to ~1
    assert jnp.allclose(jnp.sum(jnp.exp(out), axis=-1), 1.0, atol=1e-4)
    # match the pure-JAX f32 reference (kernel feeds the MXU bf16 operands)
    ref = jax.block_until_ready(netv2_reference(x, ref_params))
    assert jnp.allclose(out, ref, atol=5e-2), (out, ref)
    print("KERNEL_OK")
</pallas_src>

<mosaic_0001>
module attributes {stable_mosaic.version = 11 : i64} {
  func.func @_netv2_kernel(%arg0: i32, %arg1: memref<256x16xf32, #tpu.memory_space<vmem>>, %arg2: memref<3x16x196xbf16, #tpu.memory_space<vmem>>, %arg3: memref<1x196xf32, #tpu.memory_space<vmem>>, %arg4: memref<3x196x336xbf16, #tpu.memory_space<vmem>>, %arg5: memref<1x336xf32, #tpu.memory_space<vmem>>, %arg6: memref<3x336x256xbf16, #tpu.memory_space<vmem>>, %arg7: memref<1x256xf32, #tpu.memory_space<vmem>>, %arg8: memref<128x50xbf16, #tpu.memory_space<vmem>>, %arg9: memref<1x50xf32, #tpu.memory_space<vmem>>, %arg10: memref<3x50x60xbf16, #tpu.memory_space<vmem>>, %arg11: memref<1x60xf32, #tpu.memory_space<vmem>>, %arg12: memref<3x60x20xbf16, #tpu.memory_space<vmem>>, %arg13: memref<1x20xf32, #tpu.memory_space<vmem>>, %arg14: memref<20x10xbf16, #tpu.memory_space<vmem>>, %arg15: memref<10x10xf32, #tpu.memory_space<vmem>>, %arg16: memref<1x10xf32, #tpu.memory_space<vmem>>, %arg17: memref<16x10xf32, #tpu.memory_space<vmem>>, %arg18: memref<264x16xbf16, #tpu.memory_space<vmem>>, %arg19: memref<264x196xbf16, #tpu.memory_space<vmem>>, %arg20: memref<264x336xbf16, #tpu.memory_space<vmem>>, %arg21: memref<256x128xf32, #tpu.memory_space<vmem>>, %arg22: memref<136x50xbf16, #tpu.memory_space<vmem>>, %arg23: memref<128x60xf32, #tpu.memory_space<vmem>>) attributes {dimension_semantics = [#tpu.dimension_semantics<parallel>], iteration_bounds = array<i64: 2>, scalar_prefetch = 0 : i64, scratch_operands = 6 : i64, tpu.core_type = #tpu.core_type<tc>, window_params = [{transform_indices = @transform_0, window_bounds = array<i64: 256, 16>}, {pipeline_mode = #tpu.pipeline_mode<synchronous>, transform_indices = @transform_1, window_bounds = array<i64: 3, 16, 196>}, {pipeline_mode = #tpu.pipeline_mode<synchronous>, transform_indices = @transform_2, window_bounds = array<i64: 1, 196>}, {pipeline_mode = #tpu.pipeline_mode<synchronous>, transform_indices = @transform_3, window_bounds = array<i64: 3, 196, 336>}, {pipeline_mode = #tpu.pipeline_mode<synchronous>, transform_indices = @transform_4, window_bounds = array<i64: 1, 336>}, {pipeline_mode = #tpu.pipeline_mode<synchronous>, transform_indices = @transform_5, window_bounds = array<i64: 3, 336, 256>}, {pipeline_mode = #tpu.pipeline_mode<synchronous>, transform_indices = @transform_6, window_bounds = array<i64: 1, 256>}, {pipeline_mode = #tpu.pipeline_mode<synchronous>, transform_indices = @transform_7, window_bounds = array<i64: 128, 50>}, {pipeline_mode = #tpu.pipeline_mode<synchronous>, transform_indices = @transform_8, window_bounds = array<i64: 1, 50>}, {pipeline_mode = #tpu.pipeline_mode<synchronous>, transform_indices = @transform_9, window_bounds = array<i64: 3, 50, 60>}, {pipeline_mode = #tpu.pipeline_mode<synchronous>, transform_indices = @transform_10, window_bounds = array<i64: 1, 60>}, {pipeline_mode = #tpu.pipeline_mode<synchronous>, transform_indices = @transform_11, window_bounds = array<i64: 3, 60, 20>}, {pipeline_mode = #tpu.pipeline_mode<synchronous>, transform_indices = @transform_12, window_bounds = array<i64: 1, 20>}, {pipeline_mode = #tpu.pipeline_mode<synchronous>, transform_indices = @transform_13, window_bounds = array<i64: 20, 10>}, {pipeline_mode = #tpu.pipeline_mode<synchronous>, transform_indices = @transform_14, window_bounds = array<i64: 10, 10>}, {pipeline_mode = #tpu.pipeline_mode<synchronous>, transform_indices = @transform_15, window_bounds = array<i64: 1, 10>}, {transform_indices = @transform_16, window_bounds = array<i64: 16, 10>}]} {
    %cst = arith.constant 0.000000e+00 : bf16
    %0 = vector.broadcast %cst : bf16 to vector<8x16xbf16>
    %c256 = arith.constant 256 : index
    %c0 = arith.constant 0 : index
    %1 = vector.load %arg18[%c256, %c0] : memref<264x16xbf16, #tpu.memory_space<vmem>>, vector<8x16xbf16>
    tpu.vector_store %arg18[%c256, %c0], %0 {strides = array<i32>} : memref<264x16xbf16, #tpu.memory_space<vmem>>, vector<8x16xbf16>,
    %cst_0 = arith.constant 0.000000e+00 : bf16
    %2 = vector.broadcast %cst_0 : bf16 to vector<8x196xbf16>
    %c256_1 = arith.constant 256 : index
    %c0_2 = arith.constant 0 : index
    %3 = vector.load %arg19[%c256_1, %c0_2] : memref<264x196xbf16, #tpu.memory_space<vmem>>, vector<8x196xbf16>
    tpu.vector_store %arg19[%c256_1, %c0_2], %2 {strides = array<i32>} : memref<264x196xbf16, #tpu.memory_space<vmem>>, vector<8x196xbf16>,
    %cst_3 = arith.constant 0.000000e+00 : bf16
    %4 = vector.broadcast %cst_3 : bf16 to vector<8x336xbf16>
    %c256_4 = arith.constant 256 : index
    %c0_5 = arith.constant 0 : index
    %5 = vector.load %arg20[%c256_4, %c0_5] : memref<264x336xbf16, #tpu.memory_space<vmem>>, vector<8x336xbf16>
    tpu.vector_store %arg20[%c256_4, %c0_5], %4 {strides = array<i32>} : memref<264x336xbf16, #tpu.memory_space<vmem>>, vector<8x336xbf16>,
    %cst_6 = arith.constant 0.000000e+00 : bf16
    %6 = vector.broadcast %cst_6 : bf16 to vector<8x50xbf16>
    %c128 = arith.constant 128 : index
    %c0_7 = arith.constant 0 : index
    %7 = vector.load %arg22[%c128, %c0_7] : memref<136x50xbf16, #tpu.memory_space<vmem>>, vector<8x50xbf16>
    tpu.vector_store %arg22[%c128, %c0_7], %6 {strides = array<i32>} : memref<136x50xbf16, #tpu.memory_space<vmem>>, vector<8x50xbf16>,
    %c0_8 = arith.constant 0 : index
    %c0_9 = arith.constant 0 : index
    %8 = vector.load %arg1[%c0_8, %c0_9] : memref<256x16xf32, #tpu.memory_space<vmem>>, vector<256x16xf32>
    %9 = arith.truncf %8 : vector<256x16xf32> to vector<256x16xbf16>
    %c0_10 = arith.constant 0 : index
    %c0_11 = arith.constant 0 : index
    %10 = vector.load %arg18[%c0_10, %c0_11] : memref<264x16xbf16, #tpu.memory_space<vmem>>, vector<256x16xbf16>
    tpu.vector_store %arg18[%c0_10, %c0_11], %9 {strides = array<i32>} : memref<264x16xbf16, #tpu.memory_space<vmem>>, vector<256x16xbf16>,
    %c0_12 = arith.constant 0 : index
    %c0_13 = arith.constant 0 : index
    %11 = vector.load %arg18[%c0_12, %c0_13] : memref<264x16xbf16, #tpu.memory_space<vmem>>, vector<256x16xbf16>
    %c0_14 = arith.constant 0 : index
    %c0_15 = arith.constant 0 : index
    %c0_16 = arith.constant 0 : index
    %12 = vector.load %arg2[%c0_14, %c0_15, %c0_16] : memref<3x16x196xbf16, #tpu.memory_space<vmem>>, vector<1x16x196xbf16>
    %13 = vector.shape_cast %12 : vector<1x16x196xbf16> to vector<16x196xbf16>
    %cst_17 = arith.constant dense<0.000000e+00> : vector<256x196xf32>
    %14 = tpu.matmul %11, %13, %cst_17 {dimension_numbers = #tpu.dot_dimension_numbers<[1], [0], [0], [1], [0, 0, 1, 1], [], []>} : vector<256x16xbf16>, vector<16x196xbf16>, vector<256x196xf32> -> vector<256x196xf32>
    %c1 = arith.constant 1 : index
    %c0_18 = arith.constant 0 : index
    %15 = vector.load %arg18[%c1, %c0_18] : memref<264x16xbf16, #tpu.memory_space<vmem>>, vector<256x16xbf16>
    %c1_19 = arith.constant 1 : index
    %c0_20 = arith.constant 0 : index
    %c0_21 = arith.constant 0 : index
    %16 = vector.load %arg2[%c1_19, %c0_20, %c0_21] : memref<3x16x196xbf16, #tpu.memory_space<vmem>>, vector<1x16x196xbf16>
    %17 = vector.shape_cast %16 : vector<1x16x196xbf16> to vector<16x196xbf16>
    %cst_22 = arith.constant dense<0.000000e+00> : vector<256x196xf32>
    %18 = tpu.matmul %15, %17, %cst_22 {dimension_numbers = #tpu.dot_dimension_numbers<[1], [0], [0], [1], [0, 0, 1, 1], [], []>} : vector<256x16xbf16>, vector<16x196xbf16>, vector<256x196xf32> -> vector<256x196xf32>
    %19 = arith.addf %14, %18 : vector<256x196xf32>
    %c2 = arith.constant 2 : index
    %c0_23 = arith.constant 0 : index
    %20 = vector.load %arg18[%c2, %c0_23] : memref<264x16xbf16, #tpu.memory_space<vmem>>, vector<256x16xbf16>
    %c2_24 = arith.constant 2 : index
    %c0_25 = arith.constant 0 : index
    %c0_26 = arith.constant 0 : index
    %21 = vector.load %arg2[%c2_24, %c0_25, %c0_26] : memref<3x16x196xbf16, #tpu.memory_space<vmem>>, vector<1x16x196xbf16>
    %22 = vector.shape_cast %21 : vector<1x16x196xbf16> to vector<16x196xbf16>
    %cst_27 = arith.constant dense<0.000000e+00> : vector<256x196xf32>
    %23 = tpu.matmul %20, %22, %cst_27 {dimension_numbers = #tpu.dot_dimension_numbers<[1], [0], [0], [1], [0, 0, 1, 1], [], []>} : vector<256x16xbf16>, vector<16x196xbf16>, vector<256x196xf32> -> vector<256x196xf32>
    %24 = arith.addf %19, %23 : vector<256x196xf32>
    %c0_28 = arith.constant 0 : index
    %c0_29 = arith.constant 0 : index
    %25 = vector.load %arg3[%c0_28, %c0_29] : memref<1x196xf32, #tpu.memory_space<vmem>>, vector<1x196xf32>
    %26 = vector.broadcast %25 : vector<1x196xf32> to vector<256x196xf32>
    %27 = arith.addf %24, %26 : vector<256x196xf32>
    %cst_30 = arith.constant 0.000000e+00 : f32
    %28 = vector.broadcast %cst_30 : f32 to vector<256x196xf32>
    %29 = arith.maximumf %27, %28 : vector<256x196xf32>
    %30 = arith.truncf %29 : vector<256x196xf32> to vector<256x196xbf16>
    %c0_31 = arith.constant 0 : index
    %c0_32 = arith.constant 0 : index
    %31 = vector.load %arg19[%c0_31, %c0_32] : memref<264x196xbf16, #tpu.memory_space<vmem>>, vector<256x196xbf16>
    tpu.vector_store %arg19[%c0_31, %c0_32], %30 {strides = array<i32>} : memref<264x196xbf16, #tpu.memory_space<vmem>>, vector<256x196xbf16>,
    %c0_33 = arith.constant 0 : index
    %c0_34 = arith.constant 0 : index
    %32 = vector.load %arg19[%c0_33, %c0_34] : memref<264x196xbf16, #tpu.memory_space<vmem>>, vector<256x196xbf16>
    %c0_35 = arith.constant 0 : index
    %c0_36 = arith.constant 0 : index
    %c0_37 = arith.constant 0 : index
    %33 = vector.load %arg4[%c0_35, %c0_36, %c0_37] : memref<3x196x336xbf16, #tpu.memory_space<vmem>>, vector<1x196x336xbf16>
    %34 = vector.shape_cast %33 : vector<1x196x336xbf16> to vector<196x336xbf16>
    %cst_38 = arith.constant dense<0.000000e+00> : vector<256x336xf32>
    %35 = tpu.matmul %32, %34, %cst_38 {dimension_numbers = #tpu.dot_dimension_numbers<[1], [0], [0], [1], [0, 0, 1, 1], [], []>} : vector<256x196xbf16>, vector<196x336xbf16>, vector<256x336xf32> -> vector<256x336xf32>
    %c1_39 = arith.constant 1 : index
    %c0_40 = arith.constant 0 : index
    %36 = vector.load %arg19[%c1_39, %c0_40] : memref<264x196xbf16, #tpu.memory_space<vmem>>, vector<256x196xbf16>
    %c1_41 = arith.constant 1 : index
    %c0_42 = arith.constant 0 : index
    %c0_43 = arith.constant 0 : index
    %37 = vector.load %arg4[%c1_41, %c0_42, %c0_43] : memref<3x196x336xbf16, #tpu.memory_space<vmem>>, vector<1x196x336xbf16>
    %38 = vector.shape_cast %37 : vector<1x196x336xbf16> to vector<196x336xbf16>
    %cst_44 = arith.constant dense<0.000000e+00> : vector<256x336xf32>
    %39 = tpu.matmul %36, %38, %cst_44 {dimension_numbers = #tpu.dot_dimension_numbers<[1], [0], [0], [1], [0, 0, 1, 1], [], []>} : vector<256x196xbf16>, vector<196x336xbf16>, vector<256x336xf32> -> vector<256x336xf32>
    %40 = arith.addf %35, %39 : vector<256x336xf32>
    %c2_45 = arith.constant 2 : index
    %c0_46 = arith.constant 0 : index
    %41 = vector.load %arg19[%c2_45, %c0_46] : memref<264x196xbf16, #tpu.memory_space<vmem>>, vector<256x196xbf16>
    %c2_47 = arith.constant 2 : index
    %c0_48 = arith.constant 0 : index
    %c0_49 = arith.constant 0 : index
    %42 = vector.load %arg4[%c2_47, %c0_48, %c0_49] : memref<3x196x336xbf16, #tpu.memory_space<vmem>>, vector<1x196x336xbf16>
    %43 = vector.shape_cast %42 : vector<1x196x336xbf16> to vector<196x336xbf16>
    %cst_50 = arith.constant dense<0.000000e+00> : vector<256x336xf32>
    %44 = tpu.matmul %41, %43, %cst_50 {dimension_numbers = #tpu.dot_dimension_numbers<[1], [0], [0], [1], [0, 0, 1, 1], [], []>} : vector<256x196xbf16>, vector<196x336xbf16>, vector<256x336xf32> -> vector<256x336xf32>
    %45 = arith.addf %40, %44 : vector<256x336xf32>
    %c0_51 = arith.constant 0 : index
    %c0_52 = arith.constant 0 : index
    %46 = vector.load %arg5[%c0_51, %c0_52] : memref<1x336xf32, #tpu.memory_space<vmem>>, vector<1x336xf32>
    %47 = vector.broadcast %46 : vector<1x336xf32> to vector<256x336xf32>
    %48 = arith.addf %45, %47 : vector<256x336xf32>
    %cst_53 = arith.constant 0.000000e+00 : f32
    %49 = vector.broadcast %cst_53 : f32 to vector<256x336xf32>
    %50 = arith.maximumf %48, %49 : vector<256x336xf32>
    %51 = arith.truncf %50 : vector<256x336xf32> to vector<256x336xbf16>
    %c0_54 = arith.constant 0 : index
    %c0_55 = arith.constant 0 : index
    %52 = vector.load %arg20[%c0_54, %c0_55] : memref<264x336xbf16, #tpu.memory_space<vmem>>, vector<256x336xbf16>
    tpu.vector_store %arg20[%c0_54, %c0_55], %51 {strides = array<i32>} : memref<264x336xbf16, #tpu.memory_space<vmem>>, vector<256x336xbf16>,
    %c0_56 = arith.constant 0 : index
    %c0_57 = arith.constant 0 : index
    %53 = vector.load %arg20[%c0_56, %c0_57] : memref<264x336xbf16, #tpu.memory_space<vmem>>, vector<256x336xbf16>
    %c0_58 = arith.constant 0 : index
    %c0_59 = arith.constant 0 : index
    %c0_60 = arith.constant 0 : index
    %54 = vector.load %arg6[%c0_58, %c0_59, %c0_60] : memref<3x336x256xbf16, #tpu.memory_space<vmem>>, vector<1x336x256xbf16>
    %55 = vector.shape_cast %54 : vector<1x336x256xbf16> to vector<336x256xbf16>
    %cst_61 = arith.constant dense<0.000000e+00> : vector<256x256xf32>
    %56 = tpu.matmul %53, %55, %cst_61 {dimension_numbers = #tpu.dot_dimension_numbers<[1], [0], [0], [1], [0, 0, 1, 1], [], []>} : vector<256x336xbf16>, vector<336x256xbf16>, vector<256x256xf32> -> vector<256x256xf32>
    %c1_62 = arith.constant 1 : index
    %c0_63 = arith.constant 0 : index
    %57 = vector.load %arg20[%c1_62, %c0_63] : memref<264x336xbf16, #tpu.memory_space<vmem>>, vector<256x336xbf16>
    %c1_64 = arith.constant 1 : index
    %c0_65 = arith.constant 0 : index
    %c0_66 = arith.constant 0 : index
    %58 = vector.load %arg6[%c1_64, %c0_65, %c0_66] : memref<3x336x256xbf16, #tpu.memory_space<vmem>>, vector<1x336x256xbf16>
    %59 = vector.shape_cast %58 : vector<1x336x256xbf16> to vector<336x256xbf16>
    %cst_67 = arith.constant dense<0.000000e+00> : vector<256x256xf32>
    %60 = tpu.matmul %57, %59, %cst_67 {dimension_numbers = #tpu.dot_dimension_numbers<[1], [0], [0], [1], [0, 0, 1, 1], [], []>} : vector<256x336xbf16>, vector<336x256xbf16>, vector<256x256xf32> -> vector<256x256xf32>
    %61 = arith.addf %56, %60 : vector<256x256xf32>
    %c2_68 = arith.constant 2 : index
    %c0_69 = arith.constant 0 : index
    %62 = vector.load %arg20[%c2_68, %c0_69] : memref<264x336xbf16, #tpu.memory_space<vmem>>, vector<256x336xbf16>
    %c2_70 = arith.constant 2 : index
    %c0_71 = arith.constant 0 : index
    %c0_72 = arith.constant 0 : index
    %63 = vector.load %arg6[%c2_70, %c0_71, %c0_72] : memref<3x336x256xbf16, #tpu.memory_space<vmem>>, vector<1x336x256xbf16>
    %64 = vector.shape_cast %63 : vector<1x336x256xbf16> to vector<336x256xbf16>
    %cst_73 = arith.constant dense<0.000000e+00> : vector<256x256xf32>
    %65 = tpu.matmul %62, %64, %cst_73 {dimension_numbers = #tpu.dot_dimension_numbers<[1], [0], [0], [1], [0, 0, 1, 1], [], []>} : vector<256x336xbf16>, vector<336x256xbf16>, vector<256x256xf32> -> vector<256x256xf32>
    %66 = arith.addf %61, %65 : vector<256x256xf32>
    %c0_74 = arith.constant 0 : index
    %c0_75 = arith.constant 0 : index
    %67 = vector.load %arg7[%c0_74, %c0_75] : memref<1x256xf32, #tpu.memory_space<vmem>>, vector<1x256xf32>
    %68 = vector.broadcast %67 : vector<1x256xf32> to vector<256x256xf32>
    %69 = arith.addf %66, %68 : vector<256x256xf32>
    %cst_76 = arith.constant 0.000000e+00 : f32
    %70 = vector.broadcast %cst_76 : f32 to vector<256x256xf32>
    %71 = arith.maximumf %69, %70 : vector<256x256xf32>
    %72 = vector.extract_strided_slice %71 {offsets = [0, 0], sizes = [256, 128], strides = [1, 1]} : vector<256x256xf32> to vector<256x128xf32>
    %73 = vector.extract_strided_slice %71 {offsets = [0, 128], sizes = [256, 128], strides = [1, 1]} : vector<256x256xf32> to vector<256x128xf32>
    %74 = arith.maximumf %72, %73 : vector<256x128xf32>
    %c0_77 = arith.constant 0 : index
    %c0_78 = arith.constant 0 : index
    %75 = vector.load %arg21[%c0_77, %c0_78] : memref<256x128xf32, #tpu.memory_space<vmem>>, vector<256x128xf32>
    tpu.vector_store %arg21[%c0_77, %c0_78], %74 {strides = array<i32>} : memref<256x128xf32, #tpu.memory_space<vmem>>, vector<256x128xf32>,
    %c0_79 = arith.constant 0 : index
    %c0_80 = arith.constant 0 : index
    %76 = tpu.strided_load %arg21[%c0_79, %c0_80] {strides = array<i32: 2, 1>} : memref<256x128xf32, #tpu.memory_space<vmem>>, vector<128x128xf32>
    %c1_81 = arith.constant 1 : index
    %c0_82 = arith.constant 0 : index
    %77 = tpu.strided_load %arg21[%c1_81, %c0_82] {strides = array<i32: 2, 1>} : memref<256x128xf32, #tpu.memory_space<vmem>>, vector<128x128xf32>
    %78 = arith.maximumf %76, %77 : vector<128x128xf32>
    %79 = arith.truncf %78 : vector<128x128xf32> to vector<128x128xbf16>
    %c0_83 = arith.constant 0 : index
    %c0_84 = arith.constant 0 : index
    %80 = vector.load %arg8[%c0_83, %c0_84] : memref<128x50xbf16, #tpu.memory_space<vmem>>, vector<128x50xbf16>
    %cst_85 = arith.constant dense<0.000000e+00> : vector<128x50xf32>
    %81 = tpu.matmul %79, %80, %cst_85 {dimension_numbers = #tpu.dot_dimension_numbers<[1], [0], [0], [1], [0, 0, 1, 1], [], []>} : vector<128x128xbf16>, vector<128x50xbf16>, vector<128x50xf32> -> vector<128x50xf32>
    %c0_86 = arith.constant 0 : index
    %c0_87 = arith.constant 0 : index
    %82 = vector.load %arg9[%c0_86, %c0_87] : memref<1x50xf32, #tpu.memory_space<vmem>>, vector<1x50xf32>
    %83 = vector.broadcast %82 : vector<1x50xf32> to vector<128x50xf32>
    %84 = arith.addf %81, %83 : vector<128x50xf32>
    %cst_88 = arith.constant 0.000000e+00 : f32
    %85 = vector.broadcast %cst_88 : f32 to vector<128x50xf32>
    %86 = arith.maximumf %84, %85 : vector<128x50xf32>
    %87 = arith.truncf %86 : vector<128x50xf32> to vector<128x50xbf16>
    %c0_89 = arith.constant 0 : index
    %c0_90 = arith.constant 0 : index
    %88 = vector.load %arg22[%c0_89, %c0_90] : memref<136x50xbf16, #tpu.memory_space<vmem>>, vector<128x50xbf16>
    tpu.vector_store %arg22[%c0_89, %c0_90], %87 {strides = array<i32>} : memref<136x50xbf16, #tpu.memory_space<vmem>>, vector<128x50xbf16>,
    %c0_91 = arith.constant 0 : index
    %c0_92 = arith.constant 0 : index
    %89 = vector.load %arg22[%c0_91, %c0_92] : memref<136x50xbf16, #tpu.memory_space<vmem>>, vector<128x50xbf16>
    %c0_93 = arith.constant 0 : index
    %c0_94 = arith.constant 0 : index
    %c0_95 = arith.constant 0 : index
    %90 = vector.load %arg10[%c0_93, %c0_94, %c0_95] : memref<3x50x60xbf16, #tpu.memory_space<vmem>>, vector<1x50x60xbf16>
    %91 = vector.shape_cast %90 : vector<1x50x60xbf16> to vector<50x60xbf16>
    %cst_96 = arith.constant dense<0.000000e+00> : vector<128x60xf32>
    %92 = tpu.matmul %89, %91, %cst_96 {dimension_numbers = #tpu.dot_dimension_numbers<[1], [0], [0], [1], [0, 0, 1, 1], [], []>} : vector<128x50xbf16>, vector<50x60xbf16>, vector<128x60xf32> -> vector<128x60xf32>
    %c1_97 = arith.constant 1 : index
    %c0_98 = arith.constant 0 : index
    %93 = vector.load %arg22[%c1_97, %c0_98] : memref<136x50xbf16, #tpu.memory_space<vmem>>, vector<128x50xbf16>
    %c1_99 = arith.constant 1 : index
    %c0_100 = arith.constant 0 : index
    %c0_101 = arith.constant 0 : index
    %94 = vector.load %arg10[%c1_99, %c0_100, %c0_101] : memref<3x50x60xbf16, #tpu.memory_space<vmem>>, vector<1x50x60xbf16>
    %95 = vector.shape_cast %94 : vector<1x50x60xbf16> to vector<50x60xbf16>
    %cst_102 = arith.constant dense<0.000000e+00> : vector<128x60xf32>
    %96 = tpu.matmul %93, %95, %cst_102 {dimension_numbers = #tpu.dot_dimension_numbers<[1], [0], [0], [1], [0, 0, 1, 1], [], []>} : vector<128x50xbf16>, vector<50x60xbf16>, vector<128x60xf32> -> vector<128x60xf32>
    %97 = arith.addf %92, %96 : vector<128x60xf32>
    %c2_103 = arith.constant 2 : index
    %c0_104 = arith.constant 0 : index
    %98 = vector.load %arg22[%c2_103, %c0_104] : memref<136x50xbf16, #tpu.memory_space<vmem>>, vector<128x50xbf16>
    %c2_105 = arith.constant 2 : index
    %c0_106 = arith.constant 0 : index
    %c0_107 = arith.constant 0 : index
    %99 = vector.load %arg10[%c2_105, %c0_106, %c0_107] : memref<3x50x60xbf16, #tpu.memory_space<vmem>>, vector<1x50x60xbf16>
    %100 = vector.shape_cast %99 : vector<1x50x60xbf16> to vector<50x60xbf16>
    %cst_108 = arith.constant dense<0.000000e+00> : vector<128x60xf32>
    %101 = tpu.matmul %98, %100, %cst_108 {dimension_numbers = #tpu.dot_dimension_numbers<[1], [0], [0], [1], [0, 0, 1, 1], [], []>} : vector<128x50xbf16>, vector<50x60xbf16>, vector<128x60xf32> -> vector<128x60xf32>
    %102 = arith.addf %97, %101 : vector<128x60xf32>
    %c0_109 = arith.constant 0 : index
    %c0_110 = arith.constant 0 : index
    %103 = vector.load %arg11[%c0_109, %c0_110] : memref<1x60xf32, #tpu.memory_space<vmem>>, vector<1x60xf32>
    %104 = vector.broadcast %103 : vector<1x60xf32> to vector<128x60xf32>
    %105 = arith.addf %102, %104 : vector<128x60xf32>
    %cst_111 = arith.constant 0.000000e+00 : f32
    %106 = vector.broadcast %cst_111 : f32 to vector<128x60xf32>
    %107 = arith.maximumf %105, %106 : vector<128x60xf32>
    %c0_112 = arith.constant 0 : index
    %c0_113 = arith.constant 0 : index
    %108 = vector.load %arg23[%c0_112, %c0_113] : memref<128x60xf32, #tpu.memory_space<vmem>>, vector<128x60xf32>
    tpu.vector_store %arg23[%c0_112, %c0_113], %107 {strides = array<i32>} : memref<128x60xf32, #tpu.memory_space<vmem>>, vector<128x60xf32>,
    %c0_114 = arith.constant 0 : index
    %c0_115 = arith.constant 0 : index
    %109 = tpu.strided_load %arg23[%c0_114, %c0_115] {strides = array<i32: 8, 1>} : memref<128x60xf32, #tpu.memory_space<vmem>>, vector<16x60xf32>
    %110 = arith.truncf %109 : vector<16x60xf32> to vector<16x60xbf16>
    %c0_116 = arith.constant 0 : index
    %c0_117 = arith.constant 0 : index
    %c0_118 = arith.constant 0 : index
    %111 = vector.load %arg12[%c0_116, %c0_117, %c0_118] : memref<3x60x20xbf16, #tpu.memory_space<vmem>>, vector<1x60x20xbf16>
    %112 = vector.shape_cast %111 : vector<1x60x20xbf16> to vector<60x20xbf16>
    %cst_119 = arith.constant dense<0.000000e+00> : vector<16x20xf32>
    %113 = tpu.matmul %110, %112, %cst_119 {dimension_numbers = #tpu.dot_dimension_numbers<[1], [0], [0], [1], [0, 0, 1, 1], [], []>} : vector<16x60xbf16>, vector<60x20xbf16>, vector<16x20xf32> -> vector<16x20xf32>
    %c1_120 = arith.constant 1 : index
    %c0_121 = arith.constant 0 : index
    %114 = tpu.strided_load %arg23[%c1_120, %c0_121] {strides = array<i32: 8, 1>} : memref<128x60xf32, #tpu.memory_space<vmem>>, vector<16x60xf32>
    %115 = arith.truncf %114 : vector<16x60xf32> to vector<16x60xbf16>
    %c1_122 = arith.constant 1 : index
    %c0_123 = arith.constant 0 : index
    %c0_124 = arith.constant 0 : index
    %116 = vector.load %arg12[%c1_122, %c0_123, %c0_124] : memref<3x60x20xbf16, #tpu.memory_space<vmem>>, vector<1x60x20xbf16>
    %117 = vector.shape_cast %116 : vector<1x60x20xbf16> to vector<60x20xbf16>
    %cst_125 = arith.constant dense<0.000000e+00> : vector<16x20xf32>
    %118 = tpu.matmul %115, %117, %cst_125 {dimension_numbers = #tpu.dot_dimension_numbers<[1], [0], [0], [1], [0, 0, 1, 1], [], []>} : vector<16x60xbf16>, vector<60x20xbf16>, vector<16x20xf32> -> vector<16x20xf32>
    %119 = arith.addf %113, %118 : vector<16x20xf32>
    %c2_126 = arith.constant 2 : index
    %c0_127 = arith.constant 0 : index
    %120 = tpu.strided_load %arg23[%c2_126, %c0_127] {strides = array<i32: 8, 1>} : memref<128x60xf32, #tpu.memory_space<vmem>>, vector<16x60xf32>
    %121 = arith.truncf %120 : vector<16x60xf32> to vector<16x60xbf16>
    %c2_128 = arith.constant 2 : index
    %c0_129 = arith.constant 0 : index
    %c0_130 = arith.constant 0 : index
    %122 = vector.load %arg12[%c2_128, %c0_129, %c0_130] : memref<3x60x20xbf16, #tpu.memory_space<vmem>>, vector<1x60x20xbf16>
    %123 = vector.shape_cast %122 : vector<1x60x20xbf16> to vector<60x20xbf16>
    %cst_131 = arith.constant dense<0.000000e+00> : vector<16x20xf32>
    %124 = tpu.matmul %121, %123, %cst_131 {dimension_numbers = #tpu.dot_dimension_numbers<[1], [0], [0], [1], [0, 0, 1, 1], [], []>} : vector<16x60xbf16>, vector<60x20xbf16>, vector<16x20xf32> -> vector<16x20xf32>
    %125 = arith.addf %119, %124 : vector<16x20xf32>
    %c0_132 = arith.constant 0 : index
    %c0_133 = arith.constant 0 : index
    %126 = vector.load %arg13[%c0_132, %c0_133] : memref<1x20xf32, #tpu.memory_space<vmem>>, vector<1x20xf32>
    %127 = vector.broadcast %126 : vector<1x20xf32> to vector<16x20xf32>
    %128 = arith.addf %125, %127 : vector<16x20xf32>
    %cst_134 = arith.constant 0.000000e+00 : f32
    %129 = vector.broadcast %cst_134 : f32 to vector<16x20xf32>
    %130 = arith.maximumf %128, %129 : vector<16x20xf32>
    %131 = arith.truncf %130 : vector<16x20xf32> to vector<16x20xbf16>
    %c0_135 = arith.constant 0 : index
    %c0_136 = arith.constant 0 : index
    %132 = vector.load %arg14[%c0_135, %c0_136] : memref<20x10xbf16, #tpu.memory_space<vmem>>, vector<20x10xbf16>
    %cst_137 = arith.constant dense<0.000000e+00> : vector<16x10xf32>
    %133 = tpu.matmul %131, %132, %cst_137 {dimension_numbers = #tpu.dot_dimension_numbers<[1], [0], [0], [1], [0, 0, 1, 1], [], []>} : vector<16x20xbf16>, vector<20x10xbf16>, vector<16x10xf32> -> vector<16x10xf32>
    %cst_138 = arith.constant 0.000000e+00 : f32
    %134 = vector.broadcast %cst_138 : f32 to vector<16x10xf32>
    %135 = arith.maximumf %133, %134 : vector<16x10xf32>
    %c0_139 = arith.constant 0 : index
    %c0_140 = arith.constant 0 : index
    %136 = vector.load %arg15[%c0_139, %c0_140] : memref<10x10xf32, #tpu.memory_space<vmem>>, vector<10x10xf32>
    %cst_141 = arith.constant dense<0.000000e+00> : vector<16x10xf32>
    %137 = tpu.matmul %135, %136, %cst_141 {dimension_numbers = #tpu.dot_dimension_numbers<[1], [0], [0], [1], [0, 0, 1, 1], [], []>} : vector<16x10xf32>, vector<10x10xf32>, vector<16x10xf32> -> vector<16x10xf32>
    %c0_142 = arith.constant 0 : index
    %c0_143 = arith.constant 0 : index
    %138 = vector.load %arg16[%c0_142, %c0_143] : memref<1x10xf32, #tpu.memory_space<vmem>>, vector<1x10xf32>
    %139 = vector.broadcast %138 : vector<1x10xf32> to vector<16x10xf32>
    %140 = arith.addf %137, %139 : vector<16x10xf32>
    %cst_144 = arith.constant dense<0xFF800000> : vector<16xf32>
    %141 = vector.multi_reduction <maximumf>, %140, %cst_144 [1] : vector<16x10xf32> to vector<16xf32>
    %142 = vector.shape_cast %141 : vector<16xf32> to vector<16x1xf32>
    %143 = vector.broadcast %142 : vector<16x1xf32> to vector<16x10xf32>
    %144 = arith.subf %140, %143 : vector<16x10xf32>
    %145 = math.exp %144 : vector<16x10xf32>
    %cst_145 = arith.constant dense<0.000000e+00> : vector<16xf32>
    %146 = vector.multi_reduction <add>, %145, %cst_145 [1] : vector<16x10xf32> to vector<16xf32>
    %147 = vector.shape_cast %146 : vector<16xf32> to vector<16x1xf32>
    %148 = math.log %147 : vector<16x1xf32>
    %149 = arith.addf %148, %142 : vector<16x1xf32>
    %150 = vector.broadcast %149 : vector<16x1xf32> to vector<16x10xf32>
    %151 = arith.subf %140, %150 : vector<16x10xf32>
    %c0_146 = arith.constant 0 : index
    %c0_147 = arith.constant 0 : index
    %152 = vector.load %arg17[%c0_146, %c0_147] : memref<16x10xf32, #tpu.memory_space<vmem>>, vector<16x10xf32>
    tpu.vector_store %arg17[%c0_146, %c0_147], %151 {strides = array<i32>} : memref<16x10xf32, #tpu.memory_space<vmem>>, vector<16x10xf32>,
    return
  }
  func.func @transform_0(%arg0: i32) -> (i32, i32) {
    %c0_i32 = arith.constant 0 : i32
    %c0_i32_0 = arith.constant 0 : i32
    return %arg0, %c0_i32 : i32, i32
  }
  func.func @transform_1(%arg0: i32) -> (i32, i32, i32) {
    %c0_i32 = arith.constant 0 : i32
    %c0_i32_0 = arith.constant 0 : i32
    %c0_i32_1 = arith.constant 0 : i32
    %c0_i32_2 = arith.constant 0 : i32
    return %c0_i32, %c0_i32_0, %c0_i32_1 : i32, i32, i32
  }
  func.func @transform_2(%arg0: i32) -> (i32, i32) {
    %c0_i32 = arith.constant 0 : i32
    %c0_i32_0 = arith.constant 0 : i32
    %c0_i32_1 = arith.constant 0 : i32
    return %c0_i32, %c0_i32_0 : i32, i32
  }
  func.func @transform_3(%arg0: i32) -> (i32, i32, i32) {
    %c0_i32 = arith.constant 0 : i32
    %c0_i32_0 = arith.constant 0 : i32
    %c0_i32_1 = arith.constant 0 : i32
    %c0_i32_2 = arith.constant 0 : i32
    return %c0_i32, %c0_i32_0, %c0_i32_1 : i32, i32, i32
  }
  func.func @transform_4(%arg0: i32) -> (i32, i32) {
    %c0_i32 = arith.constant 0 : i32
    %c0_i32_0 = arith.constant 0 : i32
    %c0_i32_1 = arith.constant 0 : i32
    return %c0_i32, %c0_i32_0 : i32, i32
  }
  func.func @transform_5(%arg0: i32) -> (i32, i32, i32) {
    %c0_i32 = arith.constant 0 : i32
    %c0_i32_0 = arith.constant 0 : i32
    %c0_i32_1 = arith.constant 0 : i32
    %c0_i32_2 = arith.constant 0 : i32
    return %c0_i32, %c0_i32_0, %c0_i32_1 : i32, i32, i32
  }
  func.func @transform_6(%arg0: i32) -> (i32, i32) {
    %c0_i32 = arith.constant 0 : i32
    %c0_i32_0 = arith.constant 0 : i32
    %c0_i32_1 = arith.constant 0 : i32
    return %c0_i32, %c0_i32_0 : i32, i32
  }
  func.func @transform_7(%arg0: i32) -> (i32, i32) {
    %c0_i32 = arith.constant 0 : i32
    %c0_i32_0 = arith.constant 0 : i32
    %c0_i32_1 = arith.constant 0 : i32
    return %c0_i32, %c0_i32_0 : i32, i32
  }
  func.func @transform_8(%arg0: i32) -> (i32, i32) {
    %c0_i32 = arith.constant 0 : i32
    %c0_i32_0 = arith.constant 0 : i32
    %c0_i32_1 = arith.constant 0 : i32
    return %c0_i32, %c0_i32_0 : i32, i32
  }
  func.func @transform_9(%arg0: i32) -> (i32, i32, i32) {
    %c0_i32 = arith.constant 0 : i32
    %c0_i32_0 = arith.constant 0 : i32
    %c0_i32_1 = arith.constant 0 : i32
    %c0_i32_2 = arith.constant 0 : i32
    return %c0_i32, %c0_i32_0, %c0_i32_1 : i32, i32, i32
  }
  func.func @transform_10(%arg0: i32) -> (i32, i32) {
    %c0_i32 = arith.constant 0 : i32
    %c0_i32_0 = arith.constant 0 : i32
    %c0_i32_1 = arith.constant 0 : i32
    return %c0_i32, %c0_i32_0 : i32, i32
  }
  func.func @transform_11(%arg0: i32) -> (i32, i32, i32) {
    %c0_i32 = arith.constant 0 : i32
    %c0_i32_0 = arith.constant 0 : i32
    %c0_i32_1 = arith.constant 0 : i32
    %c0_i32_2 = arith.constant 0 : i32
    return %c0_i32, %c0_i32_0, %c0_i32_1 : i32, i32, i32
  }
  func.func @transform_12(%arg0: i32) -> (i32, i32) {
    %c0_i32 = arith.constant 0 : i32
    %c0_i32_0 = arith.constant 0 : i32
    %c0_i32_1 = arith.constant 0 : i32
    return %c0_i32, %c0_i32_0 : i32, i32
  }
  func.func @transform_13(%arg0: i32) -> (i32, i32) {
    %c0_i32 = arith.constant 0 : i32
    %c0_i32_0 = arith.constant 0 : i32
    %c0_i32_1 = arith.constant 0 : i32
    return %c0_i32, %c0_i32_0 : i32, i32
  }
  func.func @transform_14(%arg0: i32) -> (i32, i32) {
    %c0_i32 = arith.constant 0 : i32
    %c0_i32_0 = arith.constant 0 : i32
    %c0_i32_1 = arith.constant 0 : i32
    return %c0_i32, %c0_i32_0 : i32, i32
  }
  func.func @transform_15(%arg0: i32) -> (i32, i32) {
    %c0_i32 = arith.constant 0 : i32
    %c0_i32_0 = arith.constant 0 : i32
    %c0_i32_1 = arith.constant 0 : i32
    return %c0_i32, %c0_i32_0 : i32, i32
  }
  func.func @transform_16(%arg0: i32) -> (i32, i32) {
    %c0_i32 = arith.constant 0 : i32
    %c0_i32_0 = arith.constant 0 : i32
    return %arg0, %c0_i32 : i32, i32
  }
}

</mosaic_0001>

<llo_original>
// kernel: netv2_forward.1
$region0: #{netv2_forward.1}
  #allocation0 [shape = 'u32[]', space=smem, size = 0x4, offset = 0x4, fixed_abs, tag = 'smem constant byte address 0x4 - core index']
  #allocation1 [shape = 'u32[144,128]{1,0:T(1,128)}', space=vmem, size = 0x12000, scoped, tag = 'internal scratch']
  #allocation2 [shape = 'bf16[264,16]{1,0:T(8,128)(2,1)}', space=vmem, size = 0x10800, scoped, tag = 'scratch operand']
  #allocation3 [shape = 'bf16[264,196]{1,0:T(8,128)(2,1)}', space=vmem, size = 0x21000, scoped, tag = 'scratch operand']
  #allocation4 [shape = 'bf16[264,336]{1,0:T(8,128)(2,1)}', space=vmem, size = 0x31800, scoped, tag = 'scratch operand']
  #allocation5 [shape = 'f32[256,128]{1,0:T(8,128)}', space=vmem, size = 0x20000, scoped, tag = 'scratch operand']
  #allocation6 [shape = 'bf16[136,50]{1,0:T(8,128)(2,1)}', space=vmem, size = 0x8800, scoped, tag = 'scratch operand']
  #allocation7 [shape = 'f32[128,60]{1,0:T(8,128)}', space=vmem, size = 0x10000, scoped, tag = 'scratch operand']
  %s0 = inlined_call_operand.vmem [shape: f32[512,16], index: 0, kind: input, shape index: {}]
  %s1 = inlined_call_operand.vmem [shape: bf16[3,16,196], index: 1, kind: input, shape index: {}]
  %s2 = inlined_call_operand.vmem [shape: f32[1,196], index: 2, kind: input, shape index: {}]
  %s3 = inlined_call_operand.vmem [shape: bf16[3,196,336], index: 3, kind: input, shape index: {}]
  %s4 = inlined_call_operand.vmem [shape: f32[1,336], index: 4, kind: input, shape index: {}]
  %s5 = inlined_call_operand.hbm [shape: bf16[3,336,256], index: 5, kind: input, shape index: {}]
  %s6 = inlined_call_operand.vmem [shape: f32[1,256], index: 6, kind: input, shape index: {}]
  %s7 = inlined_call_operand.vmem [shape: bf16[128,50], index: 7, kind: input, shape index: {}]
  %s8 = inlined_call_operand.vmem [shape: f32[1,50], index: 8, kind: input, shape index: {}]
  %s9 = inlined_call_operand.hbm [shape: bf16[3,50,60], index: 9, kind: input, shape index: {}]
  %s10 = inlined_call_operand.vmem [shape: f32[1,60], index: 10, kind: input, shape index: {}]
  %s11 = inlined_call_operand.vmem [shape: bf16[3,60,20], index: 11, kind: input, shape index: {}]
  %s12 = inlined_call_operand.vmem [shape: f32[1,20], index: 12, kind: input, shape index: {}]
  %s13 = inlined_call_operand.vmem [shape: bf16[20,10], index: 13, kind: input, shape index: {}]
  %s14 = inlined_call_operand.vmem [shape: f32[10,10], index: 14, kind: input, shape index: {}]
  %s15 = inlined_call_operand.vmem [shape: f32[1,10], index: 15, kind: input, shape index: {}]
  %s16 = inlined_call_operand.vmem [shape: f32[32,10], index: 16, kind: output, shape index: {}]
  %s17 = sld [smem:[#allocation0]]
  $region105: #{netv2_forward.1} parent=0
    _
  %s19 = ssub.s32 1, %s17
  %s20 = scalar_select 0, %s19, %s17
  $region1: #{netv2_forward.1} parent=0
    #allocation8 [shape = 'u8[516096]{0}', space=vmem, size = 0x7e000, scoped, tag = 'input window, operand 5, single buffered']
    #allocation9 [shape = 's32[2]{0}', space=sflag, size = 0x8, scoped, tag = 'scoped memory for netv2_forward.1']
    #allocation10 [shape = 'u8[43008]{0}', space=vmem, size = 0xa800, scoped, tag = 'input window, operand 9, single buffered']
    #allocation11 [shape = 's32[1]{0}', space=sflag, size = 0x4, scoped, tag = 'scoped memory for netv2_forward.1']
    %21 = vsyncpa [#allocation9], 0
    %22 = vsyncpa [#allocation11], 0
    loop: start=0, step=1, limit=4
    $region2: #{netv2_forward.1} parent=1 // loop_pre_header
      _
    $region3: #{netv2_forward.1} parent=1 // loop_header
      %s24 = sphi 0, %s28
      %p25 = scmp.ge.s32.totalorder %s24, 4
      %s34 = sphi 0, %s36
      %s37 = sphi 0, %s34
      %s38 = sphi 0, %s37
      %s54 = sphi 0, %s38
      %s58 = sphi 0, %s58
      %s60 = sphi 0, %s58
      %s61 = sphi 0, %s60
      %s75 = sphi 0, %s61
      %s79 = sphi 0, %s79
      %s81 = sphi 0, %s79
      %s82 = sphi 0, %s81
      %s96 = sphi 0, %s82
      %s100 = sphi 0, %s100
      %s102 = sphi 0, %s100
      %s103 = sphi 0, %s102
      %s117 = sphi 0, %s103
      %s121 = sphi 0, %s121
      %s123 = sphi 0, %s121
      %s124 = sphi 0, %s123
      %s138 = sphi 0, %s124
      %s142 = sphi 0, %s142
      %s144 = sphi 0, %s142
      %s145 = sphi 0, %s144
      %s159 = sphi 0, %s145
      %s163 = sphi 0, %s163
      %s165 = sphi 0, %s163
      %s166 = sphi 0, %s165
      %s180 = sphi 0, %s166
      %s184 = sphi 0, %s184
      %s186 = sphi 0, %s184
      %s187 = sphi 0, %s186
      %s201 = sphi 0, %s187
      %s205 = sphi 0, %s205
      %s207 = sphi 0, %s205
      %s208 = sphi 0, %s207
      %s222 = sphi 0, %s208
      %s226 = sphi 0, %s226
      %s228 = sphi 0, %s226
      %s229 = sphi 0, %s228
      %s243 = sphi 0, %s229
      %s247 = sphi 0, %s247
      %s249 = sphi 0, %s247
      %s250 = sphi 0, %s249
      %s264 = sphi 0, %s250
      %s268 = sphi 0, %s268
      %s270 = sphi 0, %s268
      %s271 = sphi 0, %s270
      %s285 = sphi 0, %s271
      %s289 = sphi 0, %s289
      %s291 = sphi 0, %s289
      %s292 = sphi 0, %s291
      %s306 = sphi 0, %s292
      %s310 = sphi 0, %s310
      %s312 = sphi 0, %s310
      %s313 = sphi 0, %s312
      %s327 = sphi 0, %s313
      %s331 = sphi 0, %s331
      %s333 = sphi 0, %s331
      %s334 = sphi 0, %s333
      %s348 = sphi 0, %s334
      %s352 = sphi 0, %s352
      %s354 = sphi 0, %s352
      %s355 = sphi 0, %s354
      %s369 = sphi 0, %s355
      %s375 = sphi 0, %s377
      %s378 = sphi 0, %s375
      %s379 = sphi 0, %s378
      %s395 = sphi 0, %s379
    $region4: #{netv2_forward.1} parent=1 // loop_header_branch
      %27 = sbr.rel (%p25) target = $region8
    $region5: #{netv2_forward.1} parent=1 // loop_body
      %s29 = ssub.s32 %s24, 1
      %s30 = ssub.s32 %s24, 2
      %s31 = sadd.s32 %s24, 1
      %s32 = ssub.s32 %s24, %s31
      %p33 = scmp.eq.s32.totalorder %s32, 0
      %s35 = sadd.s32 %s34, 1
      %s36 = scalar_select %p33, %s34, %s35
      %p39 = pneg %p33
      %p40 = scmp.eq.s32.totalorder %s24, 1
      %p41 = por %p39, %p40
      %p42 = scmp.ne.s32.totalorder %s34, %s37
      %p43 = scmp.eq.s32.totalorder %s24, 0
      %p44 = por %p42, %p43
      %p45 = scmp.ne.s32.totalorder %s34, %s37
      %p46 = scmp.eq.s32.totalorder %s29, 1
      %p47 = por %p45, %p46
      %p48 = scmp.ne.s32.totalorder %s37, %s38
      %p49 = scmp.eq.s32.totalorder %s29, 0
      %p50 = por %p48, %p49
      %p51 = scmp.ne.s32.totalorder %s37, %s38
      %p52 = scmp.eq.s32.totalorder %s30, 1
      %p53 = por %p51, %p52
      %p55 = scmp.ne.s32.totalorder %s38, %s54
      %p56 = scmp.eq.s32.totalorder %s30, 0
      %p57 = por %p55, %p56
      %s59 = sadd.s32 %s58, 1
      %p62 = scmp.eq.s32.totalorder %s24, 1
      %p63 = scmp.ne.s32.totalorder %s58, %s60
      %p64 = scmp.eq.s32.totalorder %s24, 0
      %p65 = por %p63, %p64
      %p66 = scmp.ne.s32.totalorder %s58, %s60
      %p67 = scmp.eq.s32.totalorder %s29, 1
      %p68 = por %p66, %p67
      %p69 = scmp.ne.s32.totalorder %s60, %s61
      %p70 = scmp.eq.s32.totalorder %s29, 0
      %p71 = por %p69, %p70
      %p72 = scmp.ne.s32.totalorder %s60, %s61
      %p73 = scmp.eq.s32.totalorder %s30, 1
      %p74 = por %p72, %p73
      %p76 = scmp.ne.s32.totalorder %s61, %s75
      %p77 = scmp.eq.s32.totalorder %s30, 0
      %p78 = por %p76, %p77
      %s80 = sadd.s32 %s79, 1
      %p83 = scmp.eq.s32.totalorder %s24, 1
      %p84 = scmp.ne.s32.totalorder %s79, %s81
      %p85 = scmp.eq.s32.totalorder %s24, 0
      %p86 = por %p84, %p85
      %p87 = scmp.ne.s32.totalorder %s79, %s81
      %p88 = scmp.eq.s32.totalorder %s29, 1
      %p89 = por %p87, %p88
      %p90 = scmp.ne.s32.totalorder %s81, %s82
      %p91 = scmp.eq.s32.totalorder %s29, 0
      %p92 = por %p90, %p91
      %p93 = scmp.ne.s32.totalorder %s81, %s82
      %p94 = scmp.eq.s32.totalorder %s30, 1
      %p95 = por %p93, %p94
      %p97 = scmp.ne.s32.totalorder %s82, %s96
      %p98 = scmp.eq.s32.totalorder %s30, 0
      %p99 = por %p97, %p98
      %s101 = sadd.s32 %s100, 1
      %p104 = scmp.eq.s32.totalorder %s24, 1
      %p105 = scmp.ne.s32.totalorder %s100, %s102
      %p106 = scmp.eq.s32.totalorder %s24, 0
      %p107 = por %p105, %p106
      %p108 = scmp.ne.s32.totalorder %s100, %s102
      %p109 = scmp.eq.s32.totalorder %s29, 1
      %p110 = por %p108, %p109
      %p111 = scmp.ne.s32.totalorder %s102, %s103
      %p112 = scmp.eq.s32.totalorder %s29, 0
      %p113 = por %p111, %p112
      %p114 = scmp.ne.s32.totalorder %s102, %s103
      %p115 = scmp.eq.s32.totalorder %s30, 1
      %p116 = por %p114, %p115
      %p118 = scmp.ne.s32.totalorder %s103, %s117
      %p119 = scmp.eq.s32.totalorder %s30, 0
      %p120 = por %p118, %p119
      %s122 = sadd.s32 %s121, 1
      %p125 = scmp.eq.s32.totalorder %s24, 1
      %p126 = scmp.ne.s32.totalorder %s121, %s123
      %p127 = scmp.eq.s32.totalorder %s24, 0
      %p128 = por %p126, %p127
      %p129 = scmp.ne.s32.totalorder %s121, %s123
      %p130 = scmp.eq.s32.totalorder %s29, 1
      %p131 = por %p129, %p130
      %p132 = scmp.ne.s32.totalorder %s123, %s124
      %p133 = scmp.eq.s32.totalorder %s29, 0
      %p134 = por %p132, %p133
      %p135 = scmp.ne.s32.totalorder %s123, %s124
      %p136 = scmp.eq.s32.totalorder %s30, 1
      %p137 = por %p135, %p136
      %p139 = scmp.ne.s32.totalorder %s124, %s138
      %p140 = scmp.eq.s32.totalorder %s30, 0
      %p141 = por %p139, %p140
      %s143 = sadd.s32 %s142, 1
      %p146 = scmp.eq.s32.totalorder %s24, 1
      %p147 = scmp.ne.s32.totalorder %s142, %s144
      %p148 = scmp.eq.s32.totalorder %s24, 0
      %p149 = por %p147, %p148
      %p150 = scmp.ne.s32.totalorder %s142, %s144
      %p151 = scmp.eq.s32.totalorder %s29, 1
      %p152 = por %p150, %p151
      %p153 = scmp.ne.s32.totalorder %s144, %s145
      %p154 = scmp.eq.s32.totalorder %s29, 0
      %p155 = por %p153, %p154
      %p156 = scmp.ne.s32.totalorder %s144, %s145
      %p157 = scmp.eq.s32.totalorder %s30, 1
      %p158 = por %p156, %p157
      %p160 = scmp.ne.s32.totalorder %s145, %s159
      %p161 = scmp.eq.s32.totalorder %s30, 0
      %p162 = por %p160, %p161
      %s164 = sadd.s32 %s163, 1
      %p167 = scmp.eq.s32.totalorder %s24, 1
      %p168 = scmp.ne.s32.totalorder %s163, %s165
      %p169 = scmp.eq.s32.totalorder %s24, 0
      %p170 = por %p168, %p169
      %p171 = scmp.ne.s32.totalorder %s163, %s165
      %p172 = scmp.eq.s32.totalorder %s29, 1
      %p173 = por %p171, %p172
      %p174 = scmp.ne.s32.totalorder %s165, %s166
      %p175 = scmp.eq.s32.totalorder %s29, 0
      %p176 = por %p174, %p175
      %p177 = scmp.ne.s32.totalorder %s165, %s166
      %p178 = scmp.eq.s32.totalorder %s30, 1
      %p179 = por %p177, %p178
      %p181 = scmp.ne.s32.totalorder %s166, %s180
      %p182 = scmp.eq.s32.totalorder %s30, 0
      %p183 = por %p181, %p182
      %s185 = sadd.s32 %s184, 1
      %p188 = scmp.eq.s32.totalorder %s24, 1
      %p189 = scmp.ne.s32.totalorder %s184, %s186
      %p190 = scmp.eq.s32.totalorder %s24, 0
      %p191 = por %p189, %p190
      %p192 = scmp.ne.s32.totalorder %s184, %s186
      %p193 = scmp.eq.s32.totalorder %s29, 1
      %p194 = por %p192, %p193
      %p195 = scmp.ne.s32.totalorder %s186, %s187
      %p196 = scmp.eq.s32.totalorder %s29, 0
      %p197 = por %p195, %p196
      %p198 = scmp.ne.s32.totalorder %s186, %s187
      %p199 = scmp.eq.s32.totalorder %s30, 1
      %p200 = por %p198, %p199
      %p202 = scmp.ne.s32.totalorder %s187, %s201
      %p203 = scmp.eq.s32.totalorder %s30, 0
      %p204 = por %p202, %p203
      %s206 = sadd.s32 %s205, 1
      %p209 = scmp.eq.s32.totalorder %s24, 1
      %p210 = scmp.ne.s32.totalorder %s205, %s207
      %p211 = scmp.eq.s32.totalorder %s24, 0
      %p212 = por %p210, %p211
      %p213 = scmp.ne.s32.totalorder %s205, %s207
      %p214 = scmp.eq.s32.totalorder %s29, 1
      %p215 = por %p213, %p214
      %p216 = scmp.ne.s32.totalorder %s207, %s208
      %p217 = scmp.eq.s32.totalorder %s29, 0
      %p218 = por %p216, %p217
      %p219 = scmp.ne.s32.totalorder %s207, %s208
      %p220 = scmp.eq.s32.totalorder %s30, 1
      %p221 = por %p219, %p220
      %p223 = scmp.ne.s32.totalorder %s208, %s222
      %p224 = scmp.eq.s32.totalorder %s30, 0
      %p225 = por %p223, %p224
      %s227 = sadd.s32 %s226, 1
      %p230 = scmp.eq.s32.totalorder %s24, 1
      %p231 = scmp.ne.s32.totalorder %s226, %s228
      %p232 = scmp.eq.s32.totalorder %s24, 0
      %p233 = por %p231, %p232
      %p234 = scmp.ne.s32.totalorder %s226, %s228
      %p235 = scmp.eq.s32.totalorder %s29, 1
      %p236 = por %p234, %p235
      %p237 = scmp.ne.s32.totalorder %s228, %s229
      %p238 = scmp.eq.s32.totalorder %s29, 0
      %p239 = por %p237, %p238
      %p240 = scmp.ne.s32.totalorder %s228, %s229
      %p241 = scmp.eq.s32.totalorder %s30, 1
      %p242 = por %p240, %p241
      %p244 = scmp.ne.s32.totalorder %s229, %s243
      %p245 = scmp.eq.s32.totalorder %s30, 0
      %p246 = por %p244, %p245
      %s248 = sadd.s32 %s247, 1
      %p251 = scmp.eq.s32.totalorder %s24, 1
      %p252 = scmp.ne.s32.totalorder %s247, %s249
      %p253 = scmp.eq.s32.totalorder %s24, 0
      %p254 = por %p252, %p253
      %p255 = scmp.ne.s32.totalorder %s247, %s249
      %p256 = scmp.eq.s32.totalorder %s29, 1
      %p257 = por %p255, %p256
      %p258 = scmp.ne.s32.totalorder %s249, %s250
      %p259 = scmp.eq.s32.totalorder %s29, 0
      %p260 = por %p258, %p259
      %p261 = scmp.ne.s32.totalorder %s249, %s250
      %p262 = scmp.eq.s32.totalorder %s30, 1
      %p263 = por %p261, %p262
      %p265 = scmp.ne.s32.totalorder %s250, %s264
      %p266 = scmp.eq.s32.totalorder %s30, 0
      %p267 = por %p265, %p266
      %s269 = sadd.s32 %s268, 1
      %p272 = scmp.eq.s32.totalorder %s24, 1
      %p273 = scmp.ne.s32.totalorder %s268, %s270
      %p274 = scmp.eq.s32.totalorder %s24, 0
      %p275 = por %p273, %p274
      %p276 = scmp.ne.s32.totalorder %s268, %s270
      %p277 = scmp.eq.s32.totalorder %s29, 1
      %p278 = por %p276, %p277
      %p279 = scmp.ne.s32.totalorder %s270, %s271
      %p280 = scmp.eq.s32.totalorder %s29, 0
      %p281 = por %p279, %p280
      %p282 = scmp.ne.s32.totalorder %s270, %s271
      %p283 = scmp.eq.s32.totalorder %s30, 1
      %p284 = por %p282, %p283
      %p286 = scmp.ne.s32.totalorder %s271, %s285
      %p287 = scmp.eq.s32.totalorder %s30, 0
      %p288 = por %p286, %p287
      %s290 = sadd.s32 %s289, 1
      %p293 = scmp.eq.s32.totalorder %s24, 1
      %p294 = scmp.ne.s32.totalorder %s289, %s291
      %p295 = scmp.eq.s32.totalorder %s24, 0
      %p296 = por %p294, %p295
      %p297 = scmp.ne.s32.totalorder %s289, %s291
      %p298 = scmp.eq.s32.totalorder %s29, 1
      %p299 = por %p297, %p298
      %p300 = scmp.ne.s32.totalorder %s291, %s292
      %p301 = scmp.eq.s32.totalorder %s29, 0
      %p302 = por %p300, %p301
      %p303 = scmp.ne.s32.totalorder %s291, %s292
      %p304 = scmp.eq.s32.totalorder %s30, 1
      %p305 = por %p303, %p304
      %p307 = scmp.ne.s32.totalorder %s292, %s306
      %p308 = scmp.eq.s32.totalorder %s30, 0
      %p309 = por %p307, %p308
      %s311 = sadd.s32 %s310, 1
      %p314 = scmp.eq.s32.totalorder %s24, 1
      %p315 = scmp.ne.s32.totalorder %s310, %s312
      %p316 = scmp.eq.s32.totalorder %s24, 0
      %p317 = por %p315, %p316
      %p318 = scmp.ne.s32.totalorder %s310, %s312
      %p319 = scmp.eq.s32.totalorder %s29, 1
      %p320 = por %p318, %p319
      %p321 = scmp.ne.s32.totalorder %s312, %s313
      %p322 = scmp.eq.s32.totalorder %s29, 0
      %p323 = por %p321, %p322
      %p324 = scmp.ne.s32.totalorder %s312, %s313
      %p325 = scmp.eq.s32.totalorder %s30, 1
      %p326 = por %p324, %p325
      %p328 = scmp.ne.s32.totalorder %s313, %s327
      %p329 = scmp.eq.s32.totalorder %s30, 0
      %p330 = por %p328, %p329
      %s332 = sadd.s32 %s331, 1
      %p335 = scmp.eq.s32.totalorder %s24, 1
      %p336 = scmp.ne.s32.totalorder %s331, %s333
      %p337 = scmp.eq.s32.totalorder %s24, 0
      %p338 = por %p336, %p337
      %p339 = scmp.ne.s32.totalorder %s331, %s333
      %p340 = scmp.eq.s32.totalorder %s29, 1
      %p341 = por %p339, %p340
      %p342 = scmp.ne.s32.totalorder %s333, %s334
      %p343 = scmp.eq.s32.totalorder %s29, 0
      %p344 = por %p342, %p343
      %p345 = scmp.ne.s32.totalorder %s333, %s334
      %p346 = scmp.eq.s32.totalorder %s30, 1
      %p347 = por %p345, %p346
      %p349 = scmp.ne.s32.totalorder %s334, %s348
      %p350 = scmp.eq.s32.totalorder %s30, 0
      %p351 = por %p349, %p350
      %s353 = sadd.s32 %s352, 1
      %p356 = scmp.eq.s32.totalorder %s24, 1
      %p357 = scmp.ne.s32.totalorder %s352, %s354
      %p358 = scmp.eq.s32.totalorder %s24, 0
      %p359 = por %p357, %p358
      %p360 = scmp.ne.s32.totalorder %s352, %s354
      %p361 = scmp.eq.s32.totalorder %s29, 1
      %p362 = por %p360, %p361
      %p363 = scmp.ne.s32.totalorder %s354, %s355
      %p364 = scmp.eq.s32.totalorder %s29, 0
      %p365 = por %p363, %p364
      %p366 = scmp.ne.s32.totalorder %s354, %s355
      %p367 = scmp.eq.s32.totalorder %s30, 1
      %p368 = por %p366, %p367
      %p370 = scmp.ne.s32.totalorder %s355, %s369
      %p371 = scmp.eq.s32.totalorder %s30, 0
      %p372 = por %p370, %p371
      %s373 = ssub.s32 %s24, %s31
      %p374 = scmp.eq.s32.totalorder %s373, 0
      %s376 = sadd.s32 %s375, 1
      %s377 = scalar_select %p374, %s375, %s376
      %p380 = pneg %p374
      %p381 = scmp.eq.s32.totalorder %s24, 1
      %p382 = por %p380, %p381
      %p383 = scmp.ne.s32.totalorder %s375, %s378
      %p384 = scmp.eq.s32.totalorder %s24, 0
      %p385 = por %p383, %p384
      %p386 = scmp.ne.s32.totalorder %s375, %s378
      %p387 = scmp.eq.s32.totalorder %s29, 1
      %p388 = por %p386, %p387
      %p389 = scmp.ne.s32.totalorder %s378, %s379
      %p390 = scmp.eq.s32.totalorder %s29, 0
      %p391 = por %p389, %p390
      %p392 = scmp.ne.s32.totalorder %s378, %s379
      %p393 = scmp.eq.s32.totalorder %s30, 1
      %p394 = por %p392, %p393
      %p396 = scmp.ne.s32.totalorder %s379, %s395
      %p397 = scmp.eq.s32.totalorder %s30, 0
      %p398 = por %p396, %p397
      %p399 = scmp.le.s32.totalorder 1, %s24
      %p400 = scmp.lt.s32.totalorder %s24, 3
      %p401 = pnand %p399, %p400
      %p402 = pneg %p401
      // Predicated region
      $region9: #{netv2_forward.1} parent=5 // pred_check
        _
      $region10: #{netv2_forward.1} parent=5 // pred_check_branch
        %404 = sbr.rel (%p401) target = $region12
      $region11: #{netv2_forward.1} parent=5 // pred_region
        %s405 = ssub.s32 %s24, 1
        // Predicated region
        $region13: #{netv2_forward.1} parent=11 // pred_check
          %p406 = pneg %p71
        $region14: #{netv2_forward.1} parent=11 // pred_check_branch
          %408 = sbr.rel (%p406) target = $region16
        $region15: #{netv2_forward.1} parent=11 // pred_region
          _
        $region16: #{netv2_forward.1} parent=11 // pred_fallthru
          _
        // Predicated region
        $region17: #{netv2_forward.1} parent=11 // pred_check
          %p409 = pneg %p92
        $region18: #{netv2_forward.1} parent=11 // pred_check_branch
          %411 = sbr.rel (%p409) target = $region20
        $region19: #{netv2_forward.1} parent=11 // pred_region
          _
        $region20: #{netv2_forward.1} parent=11 // pred_fallthru
          _
        // Predicated region
        $region21: #{netv2_forward.1} parent=11 // pred_check
          %p412 = pneg %p113
        $region22: #{netv2_forward.1} parent=11 // pred_check_branch
          %414 = sbr.rel (%p412) target = $region24
        $region23: #{netv2_forward.1} parent=11 // pred_region
          _
        $region24: #{netv2_forward.1} parent=11 // pred_fallthru
          _
        // Predicated region
        $region25: #{netv2_forward.1} parent=11 // pred_check
          %p415 = pneg %p134
        $region26: #{netv2_forward.1} parent=11 // pred_check_branch
          %417 = sbr.rel (%p415) target = $region28
        $region27: #{netv2_forward.1} parent=11 // pred_region
          _
        $region28: #{netv2_forward.1} parent=11 // pred_fallthru
          _
        // Predicated region
        $region29: #{netv2_forward.1} parent=11 // pred_check
          %p418 = pneg %p155
        $region30: #{netv2_forward.1} parent=11 // pred_check_branch
          %420 = sbr.rel (%p418) target = $region32
        $region31: #{netv2_forward.1} parent=11 // pred_region
          %s422 = ssub.s32 16128, 16128
          %423 = vsyncadd [#allocation9], %s422
          %s424 = sshll.u32 [#allocation8], 4
          %s425 = int_to_ptr.vmem [resolvable:$true] %s424
          %430 = dma.hbm_to_vmem [thread:$0]  %s5, 16128, %s425, [#allocation9], 128, 128, 8
        $region32: #{netv2_forward.1} parent=11 // pred_fallthru
          _
        // Predicated region
        $region33: #{netv2_forward.1} parent=11 // pred_check
          %p431 = pneg %p176
        $region34: #{netv2_forward.1} parent=11 // pred_check_branch
          %433 = sbr.rel (%p431) target = $region36
        $region35: #{netv2_forward.1} parent=11 // pred_region
          _
        $region36: #{netv2_forward.1} parent=11 // pred_fallthru
          _
        // Predicated region
        $region37: #{netv2_forward.1} parent=11 // pred_check
          %p434 = pneg %p197
        $region38: #{netv2_forward.1} parent=11 // pred_check_branch
          %436 = sbr.rel (%p434) target = $region40
        $region39: #{netv2_forward.1} parent=11 // pred_region
          _
        $region40: #{netv2_forward.1} parent=11 // pred_fallthru
          _
        // Predicated region
        $region41: #{netv2_forward.1} parent=11 // pred_check
          %p437 = pneg %p218
        $region42: #{netv2_forward.1} parent=11 // pred_check_branch
          %439 = sbr.rel (%p437) target = $region44
        $region43: #{netv2_forward.1} parent=11 // pred_region
          _
        $region44: #{netv2_forward.1} parent=11 // pred_fallthru
          _
        // Predicated region
        $region45: #{netv2_forward.1} parent=11 // pred_check
          %p440 = pneg %p239
        $region46: #{netv2_forward.1} parent=11 // pred_check_branch
          %442 = sbr.rel (%p440) target = $region48
        $region47: #{netv2_forward.1} parent=11 // pred_region
          %s444 = ssub.s32 1344, 1344
          %445 = vsyncadd [#allocation11], %s444
          %s446 = sshll.u32 [#allocation10], 4
          %s447 = int_to_ptr.vmem [resolvable:$true] %s446
          %452 = dma.hbm_to_vmem [thread:$0]  %s9, 1344, %s447, [#allocation11], 64, 64, 4
        $region48: #{netv2_forward.1} parent=11 // pred_fallthru
          _
        // Predicated region
        $region49: #{netv2_forward.1} parent=11 // pred_check
          %p453 = pneg %p260
        $region50: #{netv2_forward.1} parent=11 // pred_check_branch
          %455 = sbr.rel (%p453) target = $region52
        $region51: #{netv2_forward.1} parent=11 // pred_region
          _
        $region52: #{netv2_forward.1} parent=11 // pred_fallthru
          _
        // Predicated region
        $region53: #{netv2_forward.1} parent=11 // pred_check
          %p456 = pneg %p281
        $region54: #{netv2_forward.1} parent=11 // pred_check_branch
          %458 = sbr.rel (%p456) target = $region56
        $region55: #{netv2_forward.1} parent=11 // pred_region
          _
        $region56: #{netv2_forward.1} parent=11 // pred_fallthru
          _
        // Predicated region
        $region57: #{netv2_forward.1} parent=11 // pred_check
          %p459 = pneg %p302
        $region58: #{netv2_forward.1} parent=11 // pred_check_branch
          %461 = sbr.rel (%p459) target = $region60
        $region59: #{netv2_forward.1} parent=11 // pred_region
          _
        $region60: #{netv2_forward.1} parent=11 // pred_fallthru
          _
        // Predicated region
        $region61: #{netv2_forward.1} parent=11 // pred_check
          %p462 = pneg %p323
        $region62: #{netv2_forward.1} parent=11 // pred_check_branch
          %464 = sbr.rel (%p462) target = $region64
        $region63: #{netv2_forward.1} parent=11 // pred_region
          _
        $region64: #{netv2_forward.1} parent=11 // pred_fallthru
          _
        // Predicated region
        $region65: #{netv2_forward.1} parent=11 // pred_check
          %p465 = pneg %p344
        $region66: #{netv2_forward.1} parent=11 // pred_check_branch
          %467 = sbr.rel (%p465) target = $region68
        $region67: #{netv2_forward.1} parent=11 // pred_region
          _
        $region68: #{netv2_forward.1} parent=11 // pred_fallthru
          _
        // Predicated region
        $region69: #{netv2_forward.1} parent=11 // pred_check
          %p468 = pneg %p365
        $region70: #{netv2_forward.1} parent=11 // pred_check_branch
          %470 = sbr.rel (%p468) target = $region72
        $region71: #{netv2_forward.1} parent=11 // pred_region
          _
        $region72: #{netv2_forward.1} parent=11 // pred_fallthru
          _
      $region12: #{netv2_forward.1} parent=5 // pred_fallthru
        _
      %p471 = scmp.lt.s32.totalorder %s24, 2
      // Predicated region
      $region73: #{netv2_forward.1} parent=5 // pred_check
        %p472 = pneg %p471
      $region74: #{netv2_forward.1} parent=5 // pred_check_branch
        %474 = sbr.rel (%p472) target = $region76
      $region75: #{netv2_forward.1} parent=5 // pred_region
        // Predicated region
        $region77: #{netv2_forward.1} parent=75 // pred_check
          %p475 = pneg %p44
        $region78: #{netv2_forward.1} parent=75 // pred_check_branch
          %477 = sbr.rel (%p475) target = $region80
        $region79: #{netv2_forward.1} parent=75 // pred_region
          %s478 = smul.u32 32, %s24
          %p479 = scmp.lt.s32.totalorder %s478, 63
          %s480 = scalar_select %p479, %s478, 63
          %s481 = smul.addr %s480, 8
          %s482 = scalar_lea.vmem %s0, %s481
          %s483 = smul.u32 32, %s24
        $region80: #{netv2_forward.1} parent=75 // pred_fallthru
          _
      $region76: #{netv2_forward.1} parent=5 // pred_fallthru
        _
      %p484 = scmp.le.s32.totalorder 1, %s24
      %p485 = scmp.lt.s32.totalorder %s24, 3
      %p486 = pnand %p484, %p485
      %p487 = pneg %p486
      // Predicated region
      $region81: #{netv2_forward.1} parent=5 // pred_check
        _
      $region82: #{netv2_forward.1} parent=5 // pred_check_branch
        %489 = sbr.rel (%p486) target = $region84
      $region83: #{netv2_forward.1} parent=5 // pred_region
        %s490 = ssub.s32 %s24, 1
        // Predicated region
        $region85: #{netv2_forward.1} parent=83 // pred_check
          %p491 = pneg %p155
        $region86: #{netv2_forward.1} parent=83 // pred_check_branch
          %493 = sbr.rel (%p491) target = $region88
        $region87: #{netv2_forward.1} parent=83 // pred_region
          %494 = dma.done [#allocation9], 16128
        $region88: #{netv2_forward.1} parent=83 // pred_fallthru
          _
        // Predicated region
        $region89: #{netv2_forward.1} parent=83 // pred_check
          %p495 = pneg %p239
        $region90: #{netv2_forward.1} parent=83 // pred_check_branch
          %497 = sbr.rel (%p495) target = $region92
        $region91: #{netv2_forward.1} parent=83 // pred_region
          %498 = dma.done [#allocation11], 1344
        $region92: #{netv2_forward.1} parent=83 // pred_fallthru
          _
        %s499 = smul.u32 32, %s29
        %p500 = scmp.lt.s32.totalorder %s499, 63
        %s501 = scalar_select %p500, %s499, 63
        %s502 = smul.addr %s501, 8
        %s503 = scalar_lea.vmem %s0, %s502
        %p504 = pneg %p50
        %p505 = pneg %p47
        %p506 = pneg %p71
        %p507 = pneg %p68
        %p508 = pneg %p92
        %p509 = pneg %p89
        %p510 = pneg %p113
        %p511 = pneg %p110
        %p512 = pneg %p134
        %p513 = pneg %p131
        %p514 = pneg %p155
        %p515 = pneg %p152
        %p516 = pneg %p176
        %p517 = pneg %p173
        %p518 = pneg %p197
        %p519 = pneg %p194
        %p520 = pneg %p218
        %p521 = pneg %p215
        %p522 = pneg %p239
        %p523 = pneg %p236
        %p524 = pneg %p260
        %p525 = pneg %p257
        %p526 = pneg %p281
        %p527 = pneg %p278
        %p528 = pneg %p302
        %p529 = pneg %p299
        %p530 = pneg %p323
        %p531 = pneg %p320
        %p532 = pneg %p344
        %p533 = pneg %p341
        %p534 = pneg %p365
        %p535 = pneg %p362
        %p536 = pneg %p391
        %p537 = pneg %p388
        %s538 = smul.u32 2, %s29
        %p539 = scmp.lt.s32.totalorder %s538, 3
        %s540 = scalar_select %p539, %s538, 3
        %s541 = smul.addr %s540, 8
        %s542 = scalar_lea.vmem %s16, %s541
        %s543 = smul.u32 32, %s29
        %p544 = scmp.lt.s32.totalorder %s543, 63
        %s545 = scalar_select %p544, %s543, 63
        %s546 = smul.addr %s545, 8
        %s547 = scalar_lea.vmem %s0, %s546
        %s548 = smul.u32 32, %s29
        %s549 = smul.u32 2, %s29
        %p550 = scmp.lt.s32.totalorder %s549, 3
        %s551 = scalar_select %p550, %s549, 3
        %s552 = smul.addr %s551, 8
        %s553 = scalar_lea.vmem %s16, %s552
        %s554 = smul.u32 2, %s29
        %vm556 = vcmask 125952
        %557 = vst.msk [vmem:[#allocation2 + $0x80] sm:$0xf] %vm556, 0
        %vm558 = vcmask 1043456
        %vm559 = vcmask 556036
        %vm560 = vmor %vm559, %vm558
        %561 = vst.msk [vmem:[#allocation3 + $0x100] sm:$0xff] %vm560, 0
        %562 = vst [vmem:[#allocation4 + $0x180] sm:$0xff] 0
        %vm563 = vcmask 650240
        %564 = vst.msk [vmem:[#allocation4 + $0x188] sm:$0xf] %vm563, 0
        %vm565 = vcmask 404480
        %566 = vst.msk [vmem:[#allocation6 + $0x40] sm:$0xf] %vm565, 0
        %v567 = vld [vmem:[%s547] sm:$0xff]
        %v568 = vld [vmem:[%s547 + $0x8] sm:$0xff]
        %v569 = vld [vmem:[%s547 + $0x10] sm:$0xff]
        %v570 = vld [vmem:[%s547 + $0x18] sm:$0xff]
        %v571 = vld [vmem:[%s547 + $0x20] sm:$0xff]
        %v572 = vld [vmem:[%s547 + $0x28] sm:$0xff]
        %v573 = vld [vmem:[%s547 + $0x30] sm:$0xff]
        %v574 = vld [vmem:[%s547 + $0x38] sm:$0xff]
        %v575 = vld [vmem:[%s547 + $0x40] sm:$0xff]
        %v576 = vld [vmem:[%s547 + $0x48] sm:$0xff]
        %v577 = vld [vmem:[%s547 + $0x50] sm:$0xff]
        %v578 = vld [vmem:[%s547 + $0x58] sm:$0xff]
        %v579 = vld [vmem:[%s547 + $0x60] sm:$0xff]
        %v580 = vld [vmem:[%s547 + $0x68] sm:$0xff]
        %v581 = vld [vmem:[%s547 + $0x70] sm:$0xff]
        %v582 = vld [vmem:[%s547 + $0x78] sm:$0xff]
        %v583 = vld [vmem:[%s547 + $0x80] sm:$0xff]
        %v584 = vld [vmem:[%s547 + $0x88] sm:$0xff]
        %v585 = vld [vmem:[%s547 + $0x90] sm:$0xff]
        %v586 = vld [vmem:[%s547 + $0x98] sm:$0xff]
        %v587 = vld [vmem:[%s547 + $0xa0] sm:$0xff]
        %v588 = vld [vmem:[%s547 + $0xa8] sm:$0xff]
        %v589 = vld [vmem:[%s547 + $0xb0] sm:$0xff]
        %v590 = vld [vmem:[%s547 + $0xb8] sm:$0xff]
        %v591 = vld [vmem:[%s547 + $0xc0] sm:$0xff]
        %v592 = vld [vmem:[%s547 + $0xc8] sm:$0xff]
        %v593 = vld [vmem:[%s547 + $0xd0] sm:$0xff]
        %v594 = vld [vmem:[%s547 + $0xd8] sm:$0xff]
        %v595 = vld [vmem:[%s547 + $0xe0] sm:$0xff]
        %v596 = vld [vmem:[%s547 + $0xe8] sm:$0xff]
        %v597 = vld [vmem:[%s547 + $0xf0] sm:$0xff]
        %v598 = vld [vmem:[%s547 + $0xf8] sm:$0xff]
        %v599 = vpack.c.bf16 %v568, %v567
        %v600 = vpack.c.bf16 %v570, %v569
        %v601 = vpack.c.bf16 %v572, %v571
        %v602 = vpack.c.bf16 %v574, %v573
        %v603 = vpack.c.bf16 %v576, %v575
        %v604 = vpack.c.bf16 %v578, %v577
        %v605 = vpack.c.bf16 %v580, %v579
        %v606 = vpack.c.bf16 %v582, %v581
        %v607 = vpack.c.bf16 %v584, %v583
        %v608 = vpack.c.bf16 %v586, %v585
        %v609 = vpack.c.bf16 %v588, %v587
        %v610 = vpack.c.bf16 %v590, %v589
        %v611 = vpack.c.bf16 %v592, %v591
        %v612 = vpack.c.bf16 %v594, %v593
        %v613 = vpack.c.bf16 %v596, %v595
        %v614 = vpack.c.bf16 %v598, %v597
        %v631 = vunpack.c.l.b16 %v599
        %v632 = vunpack.c.h.b16 %v599
        %v633 = vunpack.c.l.b16 %v600
        %v634 = vunpack.c.h.b16 %v600
        %v635 = vunpack.c.l.b16 %v601
        %v636 = vunpack.c.h.b16 %v601
        %v637 = vunpack.c.l.b16 %v602
        %v638 = vunpack.c.h.b16 %v602
        %v639 = vunpack.c.l.b16 %v603
        %v640 = vunpack.c.h.b16 %v603
        %v641 = vunpack.c.l.b16 %v604
        %v642 = vunpack.c.h.b16 %v604
        %v643 = vunpack.c.l.b16 %v605
        %v644 = vunpack.c.h.b16 %v605
        %v645 = vunpack.c.l.b16 %v606
        %v646 = vunpack.c.h.b16 %v606
        %v647 = vunpack.c.l.b16 %v607
        %v648 = vunpack.c.h.b16 %v607
        %v649 = vunpack.c.l.b16 %v608
        %v650 = vunpack.c.h.b16 %v608
        %v651 = vunpack.c.l.b16 %v609
        %v652 = vunpack.c.h.b16 %v609
        %v653 = vunpack.c.l.b16 %v610
        %v654 = vunpack.c.h.b16 %v610
        %v655 = vunpack.c.l.b16 %v611
        %v656 = vunpack.c.h.b16 %v611
        %v657 = vunpack.c.l.b16 %v612
        %v658 = vunpack.c.h.b16 %v612
        %v659 = vunpack.c.l.b16 %v613
        %v660 = vunpack.c.h.b16 %v613
        %v661 = vunpack.c.l.b16 %v614
        %v662 = vunpack.c.h.b16 %v614
        %v663 = vpack.c.b16 %v631, %v631
        %v664 = vpack.c.b16 %v632, %v632
        %v665 = vpack.c.b16 %v633, %v633
        %v666 = vpack.c.b16 %v634, %v634
        %v667 = vpack.c.b16 %v635, %v635
        %v668 = vpack.c.b16 %v636, %v636
        %v669 = vpack.c.b16 %v637, %v637
        %v670 = vpack.c.b16 %v638, %v638
        %v671 = vpack.c.b16 %v639, %v639
        %v672 = vpack.c.b16 %v640, %v640
        %v673 = vpack.c.b16 %v641, %v641
        %v674 = vpack.c.b16 %v642, %v642
        %v675 = vpack.c.b16 %v643, %v643
        %v676 = vpack.c.b16 %v644, %v644
        %v677 = vpack.c.b16 %v645, %v645
        %v678 = vpack.c.b16 %v646, %v646
        %v679 = vpack.c.b16 %v647, %v647
        %v680 = vpack.c.b16 %v648, %v648
        %v681 = vpack.c.b16 %v649, %v649
        %v682 = vpack.c.b16 %v650, %v650
        %v683 = vpack.c.b16 %v651, %v651
        %v684 = vpack.c.b16 %v652, %v652
        %v685 = vpack.c.b16 %v653, %v653
        %v686 = vpack.c.b16 %v654, %v654
        %v687 = vpack.c.b16 %v655, %v655
        %v688 = vpack.c.b16 %v656, %v656
        %v689 = vpack.c.b16 %v657, %v657
        %v690 = vpack.c.b16 %v658, %v658
        %v691 = vpack.c.b16 %v659, %v659
        %v692 = vpack.c.b16 %v660, %v660
        %v693 = vpack.c.b16 %v661, %v661
        %v694 = vpack.c.b16 %v662, %v662
        %727 = vst.msk [vmem:[#allocation2] sm:$0xf] %vm556, %v663
        %728 = vst.msk [vmem:[#allocation2 + $0x4] sm:$0xf] %vm556, %v664
        %729 = vst.msk [vmem:[#allocation2 + $0x8] sm:$0xf] %vm556, %v665
        %730 = vst.msk [vmem:[#allocation2 + $0xc] sm:$0xf] %vm556, %v666
        %731 = vst.msk [vmem:[#allocation2 + $0x10] sm:$0xf] %vm556, %v667
        %732 = vst.msk [vmem:[#allocation2 + $0x14] sm:$0xf] %vm556, %v668
        %733 = vst.msk [vmem:[#allocation2 + $0x18] sm:$0xf] %vm556, %v669
        %734 = vst.msk [vmem:[#allocation2 + $0x1c] sm:$0xf] %vm556, %v670
        %735 = vst.msk [vmem:[#allocation2 + $0x20] sm:$0xf] %vm556, %v671
        %736 = vst.msk [vmem:[#allocation2 + $0x24] sm:$0xf] %vm556, %v672
        %737 = vst.msk [vmem:[#allocation2 + $0x28] sm:$0xf] %vm556, %v673
        %738 = vst.msk [vmem:[#allocation2 + $0x2c] sm:$0xf] %vm556, %v674
        %739 = vst.msk [vmem:[#allocation2 + $0x30] sm:$0xf] %vm556, %v675
        %740 = vst.msk [vmem:[#allocation2 + $0x34] sm:$0xf] %vm556, %v676
        %741 = vst.msk [vmem:[#allocation2 + $0x38] sm:$0xf] %vm556, %v677
        %742 = vst.msk [vmem:[#allocation2 + $0x3c] sm:$0xf] %vm556, %v678
        %743 = vst.msk [vmem:[#allocation2 + $0x40] sm:$0xf] %vm556, %v679
        %744 = vst.msk [vmem:[#allocation2 + $0x44] sm:$0xf] %vm556, %v680
        %745 = vst.msk [vmem:[#allocation2 + $0x48] sm:$0xf] %vm556, %v681
        %746 = vst.msk [vmem:[#allocation2 + $0x4c] sm:$0xf] %vm556, %v682
        %747 = vst.msk [vmem:[#allocation2 + $0x50] sm:$0xf] %vm556, %v683
        %748 = vst.msk [vmem:[#allocation2 + $0x54] sm:$0xf] %vm556, %v684
        %749 = vst.msk [vmem:[#allocation2 + $0x58] sm:$0xf] %vm556, %v685
        %750 = vst.msk [vmem:[#allocation2 + $0x5c] sm:$0xf] %vm556, %v686
        %751 = vst.msk [vmem:[#allocation2 + $0x60] sm:$0xf] %vm556, %v687
        %752 = vst.msk [vmem:[#allocation2 + $0x64] sm:$0xf] %vm556, %v688
        %753 = vst.msk [vmem:[#allocation2 + $0x68] sm:$0xf] %vm556, %v689
        %754 = vst.msk [vmem:[#allocation2 + $0x6c] sm:$0xf] %vm556, %v690
        %755 = vst.msk [vmem:[#allocation2 + $0x70] sm:$0xf] %vm556, %v691
        %756 = vst.msk [vmem:[#allocation2 + $0x74] sm:$0xf] %vm556, %v692
        %757 = vst.msk [vmem:[#allocation2 + $0x78] sm:$0xf] %vm556, %v693
        %758 = vst.msk [vmem:[#allocation2 + $0x7c] sm:$0xf] %vm556, %v694
        %v759 = vld [vmem:[#allocation2] sm:$0xf]
        %v760 = vld [vmem:[#allocation2 + $0x4] sm:$0xf]
        %v761 = vld [vmem:[#allocation2 + $0x8] sm:$0xf]
        %v762 = vld [vmem:[#allocation2 + $0xc] sm:$0xf]
        %v763 = vld [vmem:[#allocation2 + $0x10] sm:$0xf]
        %v764 = vld [vmem:[#allocation2 + $0x14] sm:$0xf]
        %v765 = vld [vmem:[#allocation2 + $0x18] sm:$0xf]
        %v766 = vld [vmem:[#allocation2 + $0x1c] sm:$0xf]
        %v767 = vld [vmem:[#allocation2 + $0x20] sm:$0xf]
        %v768 = vld [vmem:[#allocation2 + $0x24] sm:$0xf]
        %v769 = vld [vmem:[#allocation2 + $0x28] sm:$0xf]
        %v770 = vld [vmem:[#allocation2 + $0x2c] sm:$0xf]
        %v771 = vld [vmem:[#allocation2 + $0x30] sm:$0xf]
        %v772 = vld [vmem:[#allocation2 + $0x34] sm:$0xf]
        %v773 = vld [vmem:[#allocation2 + $0x38] sm:$0xf]
        %v774 = vld [vmem:[#allocation2 + $0x3c] sm:$0xf]
        %v775 = vld [vmem:[#allocation2 + $0x40] sm:$0xf]
        %v776 = vld [vmem:[#allocation2 + $0x44] sm:$0xf]
        %v777 = vld [vmem:[#allocation2 + $0x48] sm:$0xf]
        %v778 = vld [vmem:[#allocation2 + $0x4c] sm:$0xf]
        %v779 = vld [vmem:[#allocation2 + $0x50] sm:$0xf]
        %v780 = vld [vmem:[#allocation2 + $0x54] sm:$0xf]
        %v781 = vld [vmem:[#allocation2 + $0x58] sm:$0xf]
        %v782 = vld [vmem:[#allocation2 + $0x5c] sm:$0xf]
        %v783 = vld [vmem:[#allocation2 + $0x60] sm:$0xf]
        %v784 = vld [vmem:[#allocation2 + $0x64] sm:$0xf]
        %v785 = vld [vmem:[#allocation2 + $0x68] sm:$0xf]
        %v786 = vld [vmem:[#allocation2 + $0x6c] sm:$0xf]
        %v787 = vld [vmem:[#allocation2 + $0x70] sm:$0xf]
        %v788 = vld [vmem:[#allocation2 + $0x74] sm:$0xf]
        %v789 = vld [vmem:[#allocation2 + $0x78] sm:$0xf]
        %v790 = vld [vmem:[#allocation2 + $0x7c] sm:$0xf]
        %v791 = vld [vmem:[%s1] sm:$0xff]
        %v792 = vld [vmem:[%s1 + $0x8] sm:$0xff]
        %v793 = vld [vmem:[#allocation2 + $0x80] sm:$0x1]
        %s794 = scalar_lea.vmem %s1, 16
        %v795 = vld [vmem:[%s794] sm:$0xff]
        %v796 = vld [vmem:[%s794 + $0x8] sm:$0xff]
        %v830 = vunpack.c.l.b16 %v759
        %v831 = vunpack.c.l.b16 %v760
        %v832 = vunpack.c.l.b16 %v761
        %v833 = vunpack.c.l.b16 %v762
        %v834 = vunpack.c.l.b16 %v763
        %v835 = vunpack.c.l.b16 %v764
        %v836 = vunpack.c.l.b16 %v765
        %v837 = vunpack.c.l.b16 %v766
        %v838 = vunpack.c.l.b16 %v767
        %v839 = vunpack.c.l.b16 %v768
        %v840 = vunpack.c.l.b16 %v769
        %v841 = vunpack.c.l.b16 %v770
        %v842 = vunpack.c.l.b16 %v771
        %v843 = vunpack.c.l.b16 %v772
        %v844 = vunpack.c.l.b16 %v773
        %v845 = vunpack.c.l.b16 %v774
        %v846 = vunpack.c.l.b16 %v775
        %v847 = vunpack.c.l.b16 %v776
        %v848 = vunpack.c.l.b16 %v777
        %v849 = vunpack.c.l.b16 %v778
        %v850 = vunpack.c.l.b16 %v779
        %v851 = vunpack.c.l.b16 %v780
        %v852 = vunpack.c.l.b16 %v781
        %v853 = vunpack.c.l.b16 %v782
        %v854 = vunpack.c.l.b16 %v783
        %v855 = vunpack.c.l.b16 %v784
        %v856 = vunpack.c.l.b16 %v785
        %v857 = vunpack.c.l.b16 %v786
        %v858 = vunpack.c.l.b16 %v787
        %v859 = vunpack.c.l.b16 %v788
        %v860 = vunpack.c.l.b16 %v789
        %v861 = vunpack.c.l.b16 %v790
        %v862 = vunpack.c.l.b16 %v793
        %v863 = vpack.c.b16 %v831, %v830
        %v864 = vpack.c.b16 %v833, %v832
        %v865 = vpack.c.b16 %v835, %v834
        %v866 = vpack.c.b16 %v837, %v836
        %v867 = vpack.c.b16 %v839, %v838
        %v868 = vpack.c.b16 %v841, %v840
        %v869 = vpack.c.b16 %v843, %v842
        %v870 = vpack.c.b16 %v845, %v844
        %v871 = vpack.c.b16 %v847, %v846
        %v872 = vpack.c.b16 %v849, %v848
        %v873 = vpack.c.b16 %v851, %v850
        %v874 = vpack.c.b16 %v853, %v852
        %v875 = vpack.c.b16 %v855, %v854
        %v876 = vpack.c.b16 %v857, %v856
        %v877 = vpack.c.b16 %v859, %v858
        %v878 = vpack.c.b16 %v861, %v860
        %v879 = vpack.c.b16 %v862, %v862
        %vm880 = vsmask.f32 7424
        %v882 = vshrl.u32 %v863, 16
        %v884 = vshll.u32 %v863, 16
        %v886 = vrot.slane %v884, 1
        %v887 = vor.u32 %v882, %v886
        %v889 = vshll.u32 %v864, 16
        %v891 = vrot.slane %v889, 1
        %v892 = vsel %vm880, %v887, %v891
        %v893 = vshrl.u32 %v864, 16
        %v895 = vor.u32 %v893, %v891
        %v897 = vshll.u32 %v865, 16
        %v899 = vrot.slane %v897, 1
        %v900 = vsel %vm880, %v895, %v899
        %v901 = vshrl.u32 %v865, 16
        %v903 = vor.u32 %v901, %v899
        %v905 = vshll.u32 %v866, 16
        %v907 = vrot.slane %v905, 1
        %v908 = vsel %vm880, %v903, %v907
        %v909 = vshrl.u32 %v866, 16
        %v911 = vor.u32 %v909, %v907
        %v913 = vshll.u32 %v867, 16
        %v915 = vrot.slane %v913, 1
        %v916 = vsel %vm880, %v911, %v915
        %v917 = vshrl.u32 %v867, 16
        %v919 = vor.u32 %v917, %v915
        %v921 = vshll.u32 %v868, 16
        %v923 = vrot.slane %v921, 1
        %v924 = vsel %vm880, %v919, %v923
        %v925 = vshrl.u32 %v868, 16
        %v927 = vor.u32 %v925, %v923
        %v929 = vshll.u32 %v869, 16
        %v931 = vrot.slane %v929, 1
        %v932 = vsel %vm880, %v927, %v931
        %v933 = vshrl.u32 %v869, 16
        %v935 = vor.u32 %v933, %v931
        %v937 = vshll.u32 %v870, 16
        %v939 = vrot.slane %v937, 1
        %v940 = vsel %vm880, %v935, %v939
        %v941 = vshrl.u32 %v870, 16
        %v943 = vor.u32 %v941, %v939
        %v945 = vshll.u32 %v871, 16
        %v947 = vrot.slane %v945, 1
        %v948 = vsel %vm880, %v943, %v947
        %v949 = vshrl.u32 %v871, 16
        %v951 = vor.u32 %v949, %v947
        %v953 = vshll.u32 %v872, 16
        %v955 = vrot.slane %v953, 1
        %v956 = vsel %vm880, %v951, %v955
        %v957 = vshrl.u32 %v872, 16
        %v959 = vor.u32 %v957, %v955
        %v961 = vshll.u32 %v873, 16
        %v963 = vrot.slane %v961, 1
        %v964 = vsel %vm880, %v959, %v963
        %v965 = vshrl.u32 %v873, 16
        %v967 = vor.u32 %v965, %v963
        %v969 = vshll.u32 %v874, 16
        %v971 = vrot.slane %v969, 1
        %v972 = vsel %vm880, %v967, %v971
        %v973 = vshrl.u32 %v874, 16
        %v975 = vor.u32 %v973, %v971
        %v977 = vshll.u32 %v875, 16
        %v979 = vrot.slane %v977, 1
        %v980 = vsel %vm880, %v975, %v979
        %v981 = vshrl.u32 %v875, 16
        %v983 = vor.u32 %v981, %v979
        %v985 = vshll.u32 %v876, 16
        %v987 = vrot.slane %v985, 1
        %v988 = vsel %vm880, %v983, %v987
        %v989 = vshrl.u32 %v876, 16
        %v991 = vor.u32 %v989, %v987
        %v993 = vshll.u32 %v877, 16
        %v995 = vrot.slane %v993, 1
        %v996 = vsel %vm880, %v991, %v995
        %v997 = vshrl.u32 %v877, 16
        %v999 = vor.u32 %v997, %v995
        %v1001 = vshll.u32 %v878, 16
        %v1003 = vrot.slane %v1001, 1
        %v1004 = vsel %vm880, %v999, %v1003
        %v1005 = vshrl.u32 %v878, 16
        %v1007 = vor.u32 %v1005, %v1003
        %v1009 = vshll.u32 %v879, 16
        %v1011 = vrot.slane %v1009, 1
        %v1012 = vsel %vm880, %v1007, %v1011
        %v1015 = vunpack.c.l.b16 %v795
        %v1016 = vunpack.c.h.b16 %v795
        %v1017 = vunpack.c.l.b16 %v796
        %v1018 = vunpack.c.h.b16 %v796
        %v1019 = vpack.c.b16 %v1017, %v1015
        %v1020 = vpack.c.b16 %v1018, %v1016
        %vm1023 = vcmask 130048
        %v1025 = vsel %vm1023, %v892, 0
        %v1028 = vsel %vm1023, %v900, 0
        %v1031 = vsel %vm1023, %v908, 0
        %v1034 = vsel %vm1023, %v916, 0
        %v1037 = vsel %vm1023, %v924, 0
        %v1040 = vsel %vm1023, %v932, 0
        %v1043 = vsel %vm1023, %v940, 0
        %v1046 = vsel %vm1023, %v948, 0
        %v1049 = vsel %vm1023, %v956, 0
        %v1052 = vsel %vm1023, %v964, 0
        %v1055 = vsel %vm1023, %v972, 0
        %v1058 = vsel %vm1023, %v980, 0
        %v1061 = vsel %vm1023, %v988, 0
        %v1064 = vsel %vm1023, %v996, 0
        %v1067 = vsel %vm1023, %v1004, 0
        %v1070 = vsel %vm1023, %v1012, 0
        %1072 = vmatprep.subr.bf16.mxu0 %v1020
        %1073 = vmatpush1.bf16.msra.mxu0 %v1019
        %1074 = vmatprep.subr.bf16.mxu0 0
        %1075 = vmatpush1.bf16.msra.mxu0 0
        %1076 = vmatprep.subr.bf16.mxu0 0
        %1077 = vmatpush1.bf16.msra.mxu0 0
        %1078 = vmatprep.subr.bf16.mxu0 0
        %1079 = vmatpush1.bf16.msra.mxu0 0
        %1080 = vmatprep.subr.bf16.mxu0 0
        %1081 = vmatpush1.bf16.msra.mxu0 0
        %1082 = vmatprep.subr.bf16.mxu0 0
        %1083 = vmatpush1.bf16.msra.mxu0 0
        %1084 = vmatprep.subr.bf16.mxu0 0
        %1085 = vmatpush1.bf16.msra.mxu0 0
        %1086 = vmatprep.subr.bf16.mxu0 0
        %1087 = vmatpush1.bf16.msra.mxu0 0
        %1088 = vmatprep.subr.bf16.mxu0 0
        %1089 = vmatpush1.bf16.msra.mxu0 0
        %1090 = vmatprep.subr.bf16.mxu0 0
        %1091 = vmatpush1.bf16.msra.mxu0 0
        %1092 = vmatprep.subr.bf16.mxu0 0
        %1093 = vmatpush1.bf16.msra.mxu0 0
        %1094 = vmatprep.subr.bf16.mxu0 0
        %1095 = vmatpush1.bf16.msra.mxu0 0
        %1096 = vmatprep.subr.bf16.mxu0 0
        %1097 = vmatpush1.bf16.msra.mxu0 0
        %1098 = vmatprep.subr.bf16.mxu0 0
        %1099 = vmatpush1.bf16.msra.mxu0 0
        %1100 = vmatprep.subr.bf16.mxu0 0
        %1101 = vmatpush1.bf16.msra.mxu0 0
        %1102 = vmatprep.subr.bf16.mxu0 0
        %1103 = vmatpush1.bf16.msra.mxu0 0
        %1104 = vmatprep.mubr.bf16.mxu0 0
        %1105 = vmatmul.mubr.bf16.gmra.mrb[0].mxu0 %v1025
        %v1106 = vpop.f32.mrb[0].mxu0
        %v1107 = vadd.f32 0.0, %v1106
        %v1108 = vpop.f32.mrb[0].mxu0
        %v1109 = vadd.f32 0.0, %v1108
        %v1110 = vpop.f32.mrb[0].mxu0
        %v1111 = vadd.f32 0.0, %v1110
        %v1112 = vpop.f32.mrb[0].mxu0
        %v1113 = vadd.f32 0.0, %v1112
        %1114 = vmatprep.mubr.bf16.mxu0 0
        %1115 = vmatmul.mubr.bf16.gmra.mrb[0].mxu0 %v1028
        %v1116 = vpop.f32.mrb[0].mxu0
        %v1117 = vadd.f32 0.0, %v1116
        %v1118 = vpop.f32.mrb[0].mxu0
        %v1119 = vadd.f32 0.0, %v1118
        %v1120 = vpop.f32.mrb[0].mxu0
        %v1121 = vadd.f32 0.0, %v1120
        %v1122 = vpop.f32.mrb[0].mxu0
        %v1123 = vadd.f32 0.0, %v1122
        %1124 = vmatprep.mubr.bf16.mxu0 0
        %1125 = vmatmul.mubr.bf16.gmra.mrb[0].mxu0 %v1031
        %v1126 = vpop.f32.mrb[0].mxu0
        %v1127 = vadd.f32 0.0, %v1126
        %v1128 = vpop.f32.mrb[0].mxu0
        %v1129 = vadd.f32 0.0, %v1128
        %v1130 = vpop.f32.mrb[0].mxu0
        %v1131 = vadd.f32 0.0, %v1130
        %v1132 = vpop.f32.mrb[0].mxu0
        %v1133 = vadd.f32 0.0, %v1132
        %1134 = vmatprep.mubr.bf16.mxu0 0
        %1135 = vmatmul.mubr.bf16.gmra.mrb[0].mxu0 %v1034
        %v1136 = vpop.f32.mrb[0].mxu0
        %v1137 = vadd.f32 0.0, %v1136
        %v1138 = vpop.f32.mrb[0].mxu0
        %v1139 = vadd.f32 0.0, %v1138
        %v1140 = vpop.f32.mrb[0].mxu0
        %v1141 = vadd.f32 0.0, %v1140
        %v1142 = vpop.f32.mrb[0].mxu0
        %v1143 = vadd.f32 0.0, %v1142
        %1144 = vmatprep.mubr.bf16.mxu0 0
        %1145 = vmatmul.mubr.bf16.gmra.mrb[0].mxu0 %v1037
        %v1146 = vpop.f32.mrb[0].mxu0
        %v1147 = vadd.f32 0.0, %v1146
        %v1148 = vpop.f32.mrb[0].mxu0
        %v1149 = vadd.f32 0.0, %v1148
        %v1150 = vpop.f32.mrb[0].mxu0
        %v1151 = vadd.f32 0.0, %v1150
        %v1152 = vpop.f32.mrb[0].mxu0
        %v1153 = vadd.f32 0.0, %v1152
        %1154 = vmatprep.mubr.bf16.mxu0 0
        %1155 = vmatmul.mubr.bf16.gmra.mrb[0].mxu0 %v1040
        %v1156 = vpop.f32.mrb[0].mxu0
        %v1157 = vadd.f32 0.0, %v1156
        %v1158 = vpop.f32.mrb[0].mxu0
        %v1159 = vadd.f32 0.0, %v1158
        %v1160 = vpop.f32.mrb[0].mxu0
        %v1161 = vadd.f32 0.0, %v1160
        %v1162 = vpop.f32.mrb[0].mxu0
        %v1163 = vadd.f32 0.0, %v1162
        %1164 = vmatprep.mubr.bf16.mxu0 0
        %1165 = vmatmul.mubr.bf16.gmra.mrb[0].mxu0 %v1043
        %v1166 = vpop.f32.mrb[0].mxu0
        %v1167 = vadd.f32 0.0, %v1166
        %v1168 = vpop.f32.mrb[0].mxu0
        %v1169 = vadd.f32 0.0, %v1168
        %v1170 = vpop.f32.mrb[0].mxu0
        %v1171 = vadd.f32 0.0, %v1170
        %v1172 = vpop.f32.mrb[0].mxu0
        %v1173 = vadd.f32 0.0, %v1172
        %1174 = vmatprep.mubr.bf16.mxu0 0
        %1175 = vmatmul.mubr.bf16.gmra.mrb[0].mxu0 %v1046
        %v1176 = vpop.f32.mrb[0].mxu0
        %v1177 = vadd.f32 0.0, %v1176
        %v1178 = vpop.f32.mrb[0].mxu0
        %v1179 = vadd.f32 0.0, %v1178
        %v1180 = vpop.f32.mrb[0].mxu0
        %v1181 = vadd.f32 0.0, %v1180
        %v1182 = vpop.f32.mrb[0].mxu0
        %v1183 = vadd.f32 0.0, %v1182
        %1184 = vmatprep.mubr.bf16.mxu0 0
        %1185 = vmatmul.mubr.bf16.gmra.mrb[0].mxu0 %v1049
        %v1186 = vpop.f32.mrb[0].mxu0
        %v1187 = vadd.f32 0.0, %v1186
        %v1188 = vpop.f32.mrb[0].mxu0
        %v1189 = vadd.f32 0.0, %v1188
        %v1190 = vpop.f32.mrb[0].mxu0
        %v1191 = vadd.f32 0.0, %v1190
        %v1192 = vpop.f32.mrb[0].mxu0
        %v1193 = vadd.f32 0.0, %v1192
        %1194 = vmatprep.mubr.bf16.mxu0 0
        %1195 = vmatmul.mubr.bf16.gmra.mrb[0].mxu0 %v1052
        %v1196 = vpop.f32.mrb[0].mxu0
        %v1197 = vadd.f32 0.0, %v1196
        %v1198 = vpop.f32.mrb[0].mxu0
        %v1199 = vadd.f32 0.0, %v1198
        %v1200 = vpop.f32.mrb[0].mxu0
        %v1201 = vadd.f32 0.0, %v1200
        %v1202 = vpop.f32.mrb[0].mxu0
        %v1203 = vadd.f32 0.0, %v1202
        %1204 = vmatprep.mubr.bf16.mxu0 0
        %1205 = vmatmul.mubr.bf16.gmra.mrb[0].mxu0 %v1055
        %v1206 = vpop.f32.mrb[0].mxu0
        %v1207 = vadd.f32 0.0, %v1206
        %v1208 = vpop.f32.mrb[0].mxu0
        %v1209 = vadd.f32 0.0, %v1208
        %v1210 = vpop.f32.mrb[0].mxu0
        %v1211 = vadd.f32 0.0, %v1210
        %v1212 = vpop.f32.mrb[0].mxu0
        %v1213 = vadd.f32 0.0, %v1212
        %1214 = vmatprep.mubr.bf16.mxu0 0
        %1215 = vmatmul.mubr.bf16.gmra.mrb[0].mxu0 %v1058
        %v1216 = vpop.f32.mrb[0].mxu0
        %v1217 = vadd.f32 0.0, %v1216
        %v1218 = vpop.f32.mrb[0].mxu0
        %v1219 = vadd.f32 0.0, %v1218
        %v1220 = vpop.f32.mrb[0].mxu0
        %v1221 = vadd.f32 0.0, %v1220
        %v1222 = vpop.f32.mrb[0].mxu0
        %v1223 = vadd.f32 0.0, %v1222
        %1224 = vmatprep.mubr.bf16.mxu0 0
        %1225 = vmatmul.mubr.bf16.gmra.mrb[0].mxu0 %v1061
        %v1226 = vpop.f32.mrb[0].mxu0
        %v1227 = vadd.f32 0.0, %v1226
        %v1228 = vpop.f32.mrb[0].mxu0
        %v1229 = vadd.f32 0.0, %v1228
        %v1230 = vpop.f32.mrb[0].mxu0
        %v1231 = vadd.f32 0.0, %v1230
        %v1232 = vpop.f32.mrb[0].mxu0
        %v1233 = vadd.f32 0.0, %v1232
        %1234 = vmatprep.mubr.bf16.mxu0 0
        %1235 = vmatmul.mubr.bf16.gmra.mrb[0].mxu0 %v1064
        %v1236 = vpop.f32.mrb[0].mxu0
        %v1237 = vadd.f32 0.0, %v1236
        %v1238 = vpop.f32.mrb[0].mxu0
        %v1239 = vadd.f32 0.0, %v1238
        %v1240 = vpop.f32.mrb[0].mxu0
        %v1241 = vadd.f32 0.0, %v1240
        %v1242 = vpop.f32.mrb[0].mxu0
        %v1243 = vadd.f32 0.0, %v1242
        %1244 = vmatprep.mubr.bf16.mxu0 0
        %1245 = vmatmul.mubr.bf16.gmra.mrb[0].mxu0 %v1067
        %v1246 = vpop.f32.mrb[0].mxu0
        %v1247 = vadd.f32 0.0, %v1246
        %v1248 = vpop.f32.mrb[0].mxu0
        %v1249 = vadd.f32 0.0, %v1248
        %v1250 = vpop.f32.mrb[0].mxu0
        %v1251 = vadd.f32 0.0, %v1250
        %v1252 = vpop.f32.mrb[0].mxu0
        %v1253 = vadd.f32 0.0, %v1252
        %1254 = vmatprep.mubr.bf16.mxu0 0
        %1255 = vmatmul.mubr.bf16.gmra.mrb[0].mxu0 %v1070
        %v1256 = vpop.f32.mrb[0].mxu0
        %v1257 = vadd.f32 0.0, %v1256
        %v1258 = vpop.f32.mrb[0].mxu0
        %v1259 = vadd.f32 0.0, %v1258
        %v1260 = vpop.f32.mrb[0].mxu0
        %v1261 = vadd.f32 0.0, %v1260
        %v1262 = vpop.f32.mrb[0].mxu0
        %v1263 = vadd.f32 0.0, %v1262
        %1264 = vdwg.mxu0
        %v1267 = vunpack.c.l.b16 %v791
        %v1268 = vunpack.c.h.b16 %v791
        %v1269 = vunpack.c.l.b16 %v792
        %v1270 = vunpack.c.h.b16 %v792
        %v1271 = vpack.c.b16 %v1269, %v1267
        %v1272 = vpack.c.b16 %v1270, %v1268
        %v1275 = vsel %vm1023, %v863, 0
        %v1277 = vsel %vm1023, %v864, 0
        %v1279 = vsel %vm1023, %v865, 0
        %v1281 = vsel %vm1023, %v866, 0
        %v1283 = vsel %vm1023, %v867, 0
        %v1285 = vsel %vm1023, %v868, 0
        %v1287 = vsel %vm1023, %v869, 0
        %v1289 = vsel %vm1023, %v870, 0
        %v1291 = vsel %vm1023, %v871, 0
        %v1293 = vsel %vm1023, %v872, 0
        %v1295 = vsel %vm1023, %v873, 0
        %v1297 = vsel %vm1023, %v874, 0
        %v1299 = vsel %vm1023, %v875, 0
        %v1301 = vsel %vm1023, %v876, 0
        %v1303 = vsel %vm1023, %v877, 0
        %v1305 = vsel %vm1023, %v878, 0
        %1307 = vmatprep.subr.bf16.mxu0 %v1272
        %1308 = vmatpush1.bf16.msra.mxu0 %v1271
        %1309 = vmatprep.subr.bf16.mxu0 0
        %1310 = vmatpush1.bf16.msra.mxu0 0
        %1311 = vmatprep.subr.bf16.mxu0 0
        %1312 = vmatpush1.bf16.msra.mxu0 0
        %1313 = vmatprep.subr.bf16.mxu0 0
        %1314 = vmatpush1.bf16.msra.mxu0 0
        %1315 = vmatprep.subr.bf16.mxu0 0
        %1316 = vmatpush1.bf16.msra.mxu0 0
        %1317 = vmatprep.subr.bf16.mxu0 0
        %1318 = vmatpush1.bf16.msra.mxu0 0
        %1319 = vmatprep.subr.bf16.mxu0 0
        %1320 = vmatpush1.bf16.msra.mxu0 0
        %1321 = vmatprep.subr.bf16.mxu0 0
        %1322 = vmatpush1.bf16.msra.mxu0 0
        %1323 = vmatprep.subr.bf16.mxu0 0
        %1324 = vmatpush1.bf16.msra.mxu0 0
        %1325 = vmatprep.subr.bf16.mxu0 0
        %1326 = vmatpush1.bf16.msra.mxu0 0
        %1327 = vmatprep.subr.bf16.mxu0 0
        %1328 = vmatpush1.bf16.msra.mxu0 0
        %1329 = vmatprep.subr.bf16.mxu0 0
        %1330 = vmatpush1.bf16.msra.mxu0 0
        %1331 = vmatprep.subr.bf16.mxu0 0
        %1332 = vmatpush1.bf16.msra.mxu0 0
        %1333 = vmatprep.subr.bf16.mxu0 0
        %1334 = vmatpush1.bf16.msra.mxu0 0
        %1335 = vmatprep.subr.bf16.mxu0 0
        %1336 = vmatpush1.bf16.msra.mxu0 0
        %1337 = vmatprep.subr.bf16.mxu0 0
        %1338 = vmatpush1.bf16.msra.mxu0 0
        %1339 = vmatprep.mubr.bf16.mxu0 0
        %1340 = vmatmul.mubr.bf16.gmra.mrb[0].mxu0 %v1275
        %v1341 = vpop.f32.mrb[0].mxu0
        %v1342 = vadd.f32 %v1107, %v1341
        %v1343 = vpop.f32.mrb[0].mxu0
        %v1344 = vadd.f32 %v1109, %v1343
        %v1345 = vpop.f32.mrb[0].mxu0
        %v1346 = vadd.f32 %v1111, %v1345
        %v1347 = vpop.f32.mrb[0].mxu0
        %v1348 = vadd.f32 %v1113, %v1347
        %1349 = vmatprep.mubr.bf16.mxu0 0
        %1350 = vmatmul.mubr.bf16.gmra.mrb[0].mxu0 %v1277
        %v1351 = vpop.f32.mrb[0].mxu0
        %v1352 = vadd.f32 %v1117, %v1351
        %v1353 = vpop.f32.mrb[0].mxu0
        %v1354 = vadd.f32 %v1119, %v1353
        %v1355 = vpop.f32.mrb[0].mxu0
        %v1356 = vadd.f32 %v1121, %v1355
        %v1357 = vpop.f32.mrb[0].mxu0
        %v1358 = vadd.f32 %v1123, %v1357
        %1359 = vmatprep.mubr.bf16.mxu0 0
        %1360 = vmatmul.mubr.bf16.gmra.mrb[0].mxu0 %v1279
        %v1361 = vpop.f32.mrb[0].mxu0
        %v1362 = vadd.f32 %v1127, %v1361
        %v1363 = vpop.f32.mrb[0].mxu0
        %v1364 = vadd.f32 %v1129, %v1363
        %v1365 = vpop.f32.mrb[0].mxu0
        %v1366 = vadd.f32 %v1131, %v1365
        %v1367 = vpop.f32.mrb[0].mxu0
        %v1368 = vadd.f32 %v1133, %v1367
        %1369 = vmatprep.mubr.bf16.mxu0 0
        %1370 = vmatmul.mubr.bf16.gmra.mrb[0].mxu0 %v1281
        %v1371 = vpop.f32.mrb[0].mxu0
        %v1372 = vadd.f32 %v1137, %v1371
        %v1373 = vpop.f32.mrb[0].mxu0
        %v1374 = vadd.f32 %v1139, %v1373
        %v1375 = vpop.f32.mrb[0].mxu0
        %v1376 = vadd.f32 %v1141, %v1375
        %v1377 = vpop.f32.mrb[0].mxu0
        %v1378 = vadd.f32 %v1143, %v1377
        %1379 = vmatprep.mubr.bf16.mxu0 0
        %1380 = vmatmul.mubr.bf16.gmra.mrb[0].mxu0 %v1283
        %v1381 = vpop.f32.mrb[0].mxu0
        %v1382 = vadd.f32 %v1147, %v1381
        %v1383 = vpop.f32.mrb[0].mxu0
        %v1384 = vadd.f32 %v1149, %v1383
        %v1385 = vpop.f32.mrb[0].mxu0
        %v1386 = vadd.f32 %v1151, %v1385
        %v1387 = vpop.f32.mrb[0].mxu0
        %v1388 = vadd.f32 %v1153, %v1387
        %1389 = vmatprep.mubr.bf16.mxu0 0
        %1390 = vmatmul.mubr.bf16.gmra.mrb[0].mxu0 %v1285
        %v1391 = vpop.f32.mrb[0].mxu0
        %v1392 = vadd.f32 %v1157, %v1391
        %v1393 = vpop.f32.mrb[0].mxu0
        %v1394 = vadd.f32 %v1159, %v1393
        %v1395 = vpop.f32.mrb[0].mxu0
        %v1396 = vadd.f32 %v1161, %v1395
        %v1397 = vpop.f32.mrb[0].mxu0
        %v1398 = vadd.f32 %v1163, %v1397
        %1399 = vmatprep.mubr.bf16.mxu0 0
        %1400 = vmatmul.mubr.bf16.gmra.mrb[0].mxu0 %v1287
        %v1401 = vpop.f32.mrb[0].mxu0
        %v1402 = vadd.f32 %v1167, %v1401
        %v1403 = vpop.f32.mrb[0].mxu0
        %v1404 = vadd.f32 %v1169, %v1403
        %v1405 = vpop.f32.mrb[0].mxu0
        %v1406 = vadd.f32 %v1171, %v1405
        %v1407 = vpop.f32.mrb[0].mxu0
        %v1408 = vadd.f32 %v1173, %v1407
        %1409 = vmatprep.mubr.bf16.mxu0 0
        %1410 = vmatmul.mubr.bf16.gmra.mrb[0].mxu0 %v1289
        %v1411 = vpop.f32.mrb[0].mxu0
        %v1412 = vadd.f32 %v1177, %v1411
        %v1413 = vpop.f32.mrb[0].mxu0
        %v1414 = vadd.f32 %v1179, %v1413
        %v1415 = vpop.f32.mrb[0].mxu0
        %v1416 = vadd.f32 %v1181, %v1415
        %v1417 = vpop.f32.mrb[0].mxu0
        %v1418 = vadd.f32 %v1183, %v1417
        %1419 = vmatprep.mubr.bf16.mxu0 0
        %1420 = vmatmul.mubr.bf16.gmra.mrb[0].mxu0 %v1291
        %v1421 = vpop.f32.mrb[0].mxu0
        %v1422 = vadd.f32 %v1187, %v1421
        %v1423 = vpop.f32.mrb[0].mxu0
        %v1424 = vadd.f32 %v1189, %v1423
        %v1425 = vpop.f32.mrb[0].mxu0
        %v1426 = vadd.f32 %v1191, %v1425
        %v1427 = vpop.f32.mrb[0].mxu0
        %v1428 = vadd.f32 %v1193, %v1427
        %1429 = vmatprep.mubr.bf16.mxu0 0
        %1430 = vmatmul.mubr.bf16.gmra.mrb[0].mxu0 %v1293
        %v1431 = vpop.f32.mrb[0].mxu0
        %v1432 = vadd.f32 %v1197, %v1431
        %v1433 = vpop.f32.mrb[0].mxu0
        %v1434 = vadd.f32 %v1199, %v1433
        %v1435 = vpop.f32.mrb[0].mxu0
        %v1436 = vadd.f32 %v1201, %v1435
        %v1437 = vpop.f32.mrb[0].mxu0
        %v1438 = vadd.f32 %v1203, %v1437
        %1439 = vmatprep.mubr.bf16.mxu0 0
        %1440 = vmatmul.mubr.bf16.gmra.mrb[0].mxu0 %v1295
        %v1441 = vpop.f32.mrb[0].mxu0
        %v1442 = vadd.f32 %v1207, %v1441
        %v1443 = vpop.f32.mrb[0].mxu0
        %v1444 = vadd.f32 %v1209, %v1443
        %v1445 = vpop.f32.mrb[0].mxu0
        %v1446 = vadd.f32 %v1211, %v1445
        %v1447 = vpop.f32.mrb[0].mxu0
        %v1448 = vadd.f32 %v1213, %v1447
        %1449 = vmatprep.mubr.bf16.mxu0 0
        %1450 = vmatmul.mubr.bf16.gmra.mrb[0].mxu0 %v1297
        %v1451 = vpop.f32.mrb[0].mxu0
        %v1452 = vadd.f32 %v1217, %v1451
        %v1453 = vpop.f32.mrb[0].mxu0
        %v1454 = vadd.f32 %v1219, %v1453
        %v1455 = vpop.f32.mrb[0].mxu0
        %v1456 = vadd.f32 %v1221, %v1455
        %v1457 = vpop.f32.mrb[0].mxu0
        %v1458 = vadd.f32 %v1223, %v1457
        %1459 = vmatprep.mubr.bf16.mxu0 0
        %1460 = vmatmul.mubr.bf16.gmra.mrb[0].mxu0 %v1299
        %v1461 = vpop.f32.mrb[0].mxu0
        %v1462 = vadd.f32 %v1227, %v1461
        %v1463 = vpop.f32.mrb[0].mxu0
        %v1464 = vadd.f32 %v1229, %v1463
        %v1465 = vpop.f32.mrb[0].mxu0
        %v1466 = vadd.f32 %v1231, %v1465
        %v1467 = vpop.f32.mrb[0].mxu0
        %v1468 = vadd.f32 %v1233, %v1467
        %1469 = vmatprep.mubr.bf16.mxu0 0
        %1470 = vmatmul.mubr.bf16.gmra.mrb[0].mxu0 %v1301
        %v1471 = vpop.f32.mrb[0].mxu0
        %v1472 = vadd.f32 %v1237, %v1471
        %v1473 = vpop.f32.mrb[0].mxu0
        %v1474 = vadd.f32 %v1239, %v1473
        %v1475 = vpop.f32.mrb[0].mxu0
        %v1476 = vadd.f32 %v1241, %v1475
        %v1477 = vpop.f32.mrb[0].mxu0
        %v1478 = vadd.f32 %v1243, %v1477
        %1479 = vmatprep.mubr.bf16.mxu0 0
        %1480 = vmatmul.mubr.bf16.gmra.mrb[0].mxu0 %v1303
        %v1481 = vpop.f32.mrb[0].mxu0
        %v1482 = vadd.f32 %v1247, %v1481
        %v1483 = vpop.f32.mrb[0].mxu0
        %v1484 = vadd.f32 %v1249, %v1483
        %v1485 = vpop.f32.mrb[0].mxu0
        %v1486 = vadd.f32 %v1251, %v1485
        %v1487 = vpop.f32.mrb[0].mxu0
        %v1488 = vadd.f32 %v1253, %v1487
        %1489 = vmatprep.mubr.bf16.mxu0 0
        %1490 = vmatmul.mubr.bf16.gmra.mrb[0].mxu0 %v1305
        %v1491 = vpop.f32.mrb[0].mxu0
        %v1492 = vadd.f32 %v1257, %v1491
        %v1493 = vpop.f32.mrb[0].mxu0
        %v1494 = vadd.f32 %v1259, %v1493
        %v1495 = vpop.f32.mrb[0].mxu0
        %v1496 = vadd.f32 %v1261, %v1495
        %v1497 = vpop.f32.mrb[0].mxu0
        %v1498 = vadd.f32 %v1263, %v1497
        %1499 = vdwg.mxu0
        %v1500 = vld [vmem:[#allocation2] sm:$0xe]
        %s1501 = scalar_lea.vmem %s1, 32
        %v1502 = vld [vmem:[%s1501] sm:$0xff]
        %v1503 = vld [vmem:[%s1501 + $0x8] sm:$0xff]
        %v1505 = vunpack.c.l.b16 %v1500
        %v1506 = vpack.c.b16 %v831, %v1505
        %vm1507 = vcmask 1046528
        %v1508 = vrot.slane %v1506, 1
        %v1509 = vrot.slane %v864, 1
        %v1510 = vsel %vm1507, %v1508, %v1509
        %v1511 = vrot.slane %v865, 1
        %v1512 = vsel %vm1507, %v1509, %v1511
        %v1513 = vrot.slane %v866, 1
        %v1514 = vsel %vm1507, %v1511, %v1513
        %v1515 = vrot.slane %v867, 1
        %v1516 = vsel %vm1507, %v1513, %v1515
        %v1517 = vrot.slane %v868, 1
        %v1518 = vsel %vm1507, %v1515, %v1517
        %v1519 = vrot.slane %v869, 1
        %v1520 = vsel %vm1507, %v1517, %v1519
        %v1521 = vrot.slane %v870, 1
        %v1522 = vsel %vm1507, %v1519, %v1521
        %v1523 = vrot.slane %v871, 1
        %v1524 = vsel %vm1507, %v1521, %v1523
        %v1525 = vrot.slane %v872, 1
        %v1526 = vsel %vm1507, %v1523, %v1525
        %v1527 = vrot.slane %v873, 1
        %v1528 = vsel %vm1507, %v1525, %v1527
        %v1529 = vrot.slane %v874, 1
        %v1530 = vsel %vm1507, %v1527, %v1529
        %v1531 = vrot.slane %v875, 1
        %v1532 = vsel %vm1507, %v1529, %v1531
        %v1533 = vrot.slane %v876, 1
        %v1534 = vsel %vm1507, %v1531, %v1533
        %v1535 = vrot.slane %v877, 1
        %v1536 = vsel %vm1507, %v1533, %v1535
        %v1537 = vrot.slane %v878, 1
        %v1538 = vsel %vm1507, %v1535, %v1537
        %v1539 = vrot.slane %v879, 1
        %v1540 = vsel %vm1507, %v1537, %v1539
        %v1543 = vunpack.c.l.b16 %v1502
        %v1544 = vunpack.c.h.b16 %v1502
        %v1545 = vunpack.c.l.b16 %v1503
        %v1546 = vunpack.c.h.b16 %v1503
        %v1547 = vpack.c.b16 %v1545, %v1543
        %v1548 = vpack.c.b16 %v1546, %v1544
        %v1552 = vsel %vm1023, %v1510, 0
        %v1555 = vsel %vm1023, %v1512, 0
        %v1558 = vsel %vm1023, %v1514, 0
        %v1561 = vsel %vm1023, %v1516, 0
        %v1564 = vsel %vm1023, %v1518, 0
        %v1567 = vsel %vm1023, %v1520, 0
        %v1570 = vsel %vm1023, %v1522, 0
        %v1573 = vsel %vm1023, %v1524, 0
        %v1576 = vsel %vm1023, %v1526, 0
        %v1579 = vsel %vm1023, %v1528, 0
        %v1582 = vsel %vm1023, %v1530, 0
        %v1585 = vsel %vm1023, %v1532, 0
        %v1588 = vsel %vm1023, %v1534, 0
        %v1591 = vsel %vm1023, %v1536, 0
        %v1594 = vsel %vm1023, %v1538, 0
        %v1597 = vsel %vm1023, %v1540, 0
        %1599 = vmatprep.subr.bf16.mxu0 %v1548
        %1600 = vmatpush1.bf16.msra.mxu0 %v1547
        %1601 = vmatprep.subr.bf16.mxu0 0
        %1602 = vmatpush1.bf16.msra.mxu0 0
        %1603 = vmatprep.subr.bf16.mxu0 0
        %1604 = vmatpush1.bf16.msra.mxu0 0
        %1605 = vmatprep.subr.bf16.mxu0 0
        %1606 = vmatpush1.bf16.msra.mxu0 0
        %1607 = vmatprep.subr.bf16.mxu0 0
        %1608 = vmatpush1.bf16.msra.mxu0 0
        %1609 = vmatprep.subr.bf16.mxu0 0
        %1610 = vmatpush1.bf16.msra.mxu0 0
        %1611 = vmatprep.subr.bf16.mxu0 0
        %1612 = vmatpush1.bf16.msra.mxu0 0
        %1613 = vmatprep.subr.bf16.mxu0 0
        %1614 = vmatpush1.bf16.msra.mxu0 0
        %1615 = vmatprep.subr.bf16.mxu0 0
        %1616 = vmatpush1.bf16.msra.mxu0 0
        %1617 = vmatprep.subr.bf16.mxu0 0
        %1618 = vmatpush1.bf16.msra.mxu0 0
        %1619 = vmatprep.subr.bf16.mxu0 0
        %1620 = vmatpush1.bf16.msra.mxu0 0
        %1621 = vmatprep.subr.bf16.mxu0 0
        %1622 = vmatpush1.bf16.msra.mxu0 0
        %1623 = vmatprep.subr.bf16.mxu0 0
        %1624 = vmatpush1.bf16.msra.mxu0 0
        %1625 = vmatprep.subr.bf16.mxu0 0
        %1626 = vmatpush1.bf16.msra.mxu0 0
        %1627 = vmatprep.subr.bf16.mxu0 0
        %1628 = vmatpush1.bf16.msra.mxu0 0
        %1629 = vmatprep.subr.bf16.mxu0 0
        %1630 = vmatpush1.bf16.msra.mxu0 0
        %1631 = vmatprep.mubr.bf16.mxu0 0
        %1632 = vmatmul.mubr.bf16.gmra.mrb[0].mxu0 %v1552
        %v1633 = vpop.f32.mrb[0].mxu0
        %v1634 = vadd.f32 0.0, %v1633
        %v1635 = vpop.f32.mrb[0].mxu0
        %v1636 = vadd.f32 0.0, %v1635
        %v1637 = vpop.f32.mrb[0].mxu0
        %v1638 = vadd.f32 0.0, %v1637
        %v1639 = vpop.f32.mrb[0].mxu0
        %v1640 = vadd.f32 0.0, %v1639
        %1641 = vmatprep.mubr.bf16.mxu0 0
        %1642 = vmatmul.mubr.bf16.gmra.mrb[0].mxu0 %v1555
        %v1643 = vpop.f32.mrb[0].mxu0
        %v1644 = vadd.f32 0.0, %v1643
        %v1645 = vpop.f32.mrb[0].mxu0
        %v1646 = vadd.f32 0.0, %v1645
        %v1647 = vpop.f32.mrb[0].mxu0
        %v1648 = vadd.f32 0.0, %v1647
        %v1649 = vpop.f32.mrb[0].mxu0
        %v1650 = vadd.f32 0.0, %v1649
        %1651 = vmatprep.mubr.bf16.mxu0 0
        %1652 = vmatmul.mubr.bf16.gmra.mrb[0].mxu0 %v1558
        %v1653 = vpop.f32.mrb[0].mxu0
        %v1654 = vadd.f32 0.0, %v1653
        %v1655 = vpop.f32.mrb[0].mxu0
        %v1656 = vadd.f32 0.0, %v1655
        %v1657 = vpop.f32.mrb[0].mxu0
        %v1658 = vadd.f32 0.0, %v1657
        %v1659 = vpop.f32.mrb[0].mxu0
        %v1660 = vadd.f32 0.0, %v1659
        %1661 = vmatprep.mubr.bf16.mxu0 0
        %1662 = vmatmul.mubr.bf16.gmra.mrb[0].mxu0 %v1561
        %v1663 = vpop.f32.mrb[0].mxu0
        %v1664 = vadd.f32 0.0, %v1663
        %v1665 = vpop.f32.mrb[0].mxu0
        %v1666 = vadd.f32 0.0, %v1665
        %v1667 = vpop.f32.mrb[0].mxu0
        %v1668 = vadd.f32 0.0, %v1667
        %v1669 = vpop.f32.mrb[0].mxu0
        %v1670 = vadd.f32 0.0, %v1669
        %1671 = vmatprep.mubr.bf16.mxu0 0
        %1672 = vmatmul.mubr.bf16.gmra.mrb[0].mxu0 %v1564
        %v1673 = vpop.f32.mrb[0].mxu0
        %v1674 = vadd.f32 0.0, %v1673
        %v1675 = vpop.f32.mrb[0].mxu0
        %v1676 = vadd.f32 0.0, %v1675
        %v1677 = vpop.f32.mrb[0].mxu0
        %v1678 = vadd.f32 0.0, %v1677
        %v1679 = vpop.f32.mrb[0].mxu0
        %v1680 = vadd.f32 0.0, %v1679
        %1681 = vmatprep.mubr.bf16.mxu0 0
        %1682 = vmatmul.mubr.bf16.gmra.mrb[0].mxu0 %v1567
        %v1683 = vpop.f32.mrb[0].mxu0
        %v1684 = vadd.f32 0.0, %v1683
        %v1685 = vpop.f32.mrb[0].mxu0
        %v1686 = vadd.f32 0.0, %v1685
        %v1687 = vpop.f32.mrb[0].mxu0
        %v1688 = vadd.f32 0.0, %v1687
        %v1689 = vpop.f32.mrb[0].mxu0
        %v1690 = vadd.f32 0.0, %v1689
        %1691 = vmatprep.mubr.bf16.mxu0 0
        %1692 = vmatmul.mubr.bf16.gmra.mrb[0].mxu0 %v1570
        %v1693 = vpop.f32.mrb[0].mxu0
        %v1694 = vadd.f32 0.0, %v1693
        %v1695 = vpop.f32.mrb[0].mxu0
        %v1696 = vadd.f32 0.0, %v1695
        %v1697 = vpop.f32.mrb[0].mxu0
        %v1698 = vadd.f32 0.0, %v1697
        %v1699 = vpop.f32.mrb[0].mxu0
        %v1700 = vadd.f32 0.0, %v1699
        %1701 = vmatprep.mubr.bf16.mxu0 0
        %1702 = vmatmul.mubr.bf16.gmra.mrb[0].mxu0 %v1573
        %v1703 = vpop.f32.mrb[0].mxu0
        %v1704 = vadd.f32 0.0, %v1703
        %v1705 = vpop.f32.mrb[0].mxu0
        %v1706 = vadd.f32 0.0, %v1705
        %v1707 = vpop.f32.mrb[0].mxu0
        %v1708 = vadd.f32 0.0, %v1707
        %v1709 = vpop.f32.mrb[0].mxu0
        %v1710 = vadd.f32 0.0, %v1709
        %1711 = vmatprep.mubr.bf16.mxu0 0
        %1712 = vmatmul.mubr.bf16.gmra.mrb[0].mxu0 %v1576
        %v1713 = vpop.f32.mrb[0].mxu0
        %v1714 = vadd.f32 0.0, %v1713
        %v1715 = vpop.f32.mrb[0].mxu0
        %v1716 = vadd.f32 0.0, %v1715
        %v1717 = vpop.f32.mrb[0].mxu0
        %v1718 = vadd.f32 0.0, %v1717
        %v1719 = vpop.f32.mrb[0].mxu0
        %v1720 = vadd.f32 0.0, %v1719
        %1721 = vmatprep.mubr.bf16.mxu0 0
        %1722 = vmatmul.mubr.bf16.gmra.mrb[0].mxu0 %v1579
        %v1723 = vpop.f32.mrb[0].mxu0
        %v1724 = vadd.f32 0.0, %v1723
        %v1725 = vpop.f32.mrb[0].mxu0
        %v1726 = vadd.f32 0.0, %v1725
        %v1727 = vpop.f32.mrb[0].mxu0
        %v1728 = vadd.f32 0.0, %v1727
        %v1729 = vpop.f32.mrb[0].mxu0
        %v1730 = vadd.f32 0.0, %v1729
        %1731 = vmatprep.mubr.bf16.mxu0 0
        %1732 = vmatmul.mubr.bf16.gmra.mrb[0].mxu0 %v1582
        %v1733 = vpop.f32.mrb[0].mxu0
        %v1734 = vadd.f32 0.0, %v1733
        %v1735 = vpop.f32.mrb[0].mxu0
        %v1736 = vadd.f32 0.0, %v1735
        %v1737 = vpop.f32.mrb[0].mxu0
        %v1738 = vadd.f32 0.0, %v1737
        %v1739 = vpop.f32.mrb[0].mxu0
        %v1740 = vadd.f32 0.0, %v1739
        %1741 = vmatprep.mubr.bf16.mxu0 0
        %1742 = vmatmul.mubr.bf16.gmra.mrb[0].mxu0 %v1585
        %v1743 = vpop.f32.mrb[0].mxu0
        %v1744 = vadd.f32 0.0, %v1743
        %v1745 = vpop.f32.mrb[0].mxu0
        %v1746 = vadd.f32 0.0, %v1745
        %v1747 = vpop.f32.mrb[0].mxu0
        %v1748 = vadd.f32 0.0, %v1747
        %v1749 = vpop.f32.mrb[0].mxu0
        %v1750 = vadd.f32 0.0, %v1749
        %1751 = vmatprep.mubr.bf16.mxu0 0
        %1752 = vmatmul.mubr.bf16.gmra.mrb[0].mxu0 %v1588
        %v1753 = vpop.f32.mrb[0].mxu0
        %v1754 = vadd.f32 0.0, %v1753
        %v1755 = vpop.f32.mrb[0].mxu0
        %v1756 = vadd.f32 0.0, %v1755
        %v1757 = vpop.f32.mrb[0].mxu0
        %v1758 = vadd.f32 0.0, %v1757
        %v1759 = vpop.f32.mrb[0].mxu0
        %v1760 = vadd.f32 0.0, %v1759
        %1761 = vmatprep.mubr.bf16.mxu0 0
        %1762 = vmatmul.mubr.bf16.gmra.mrb[0].mxu0 %v1591
        %v1763 = vpop.f32.mrb[0].mxu0
        %v1764 = vadd.f32 0.0, %v1763
        %v1765 = vpop.f32.mrb[0].mxu0
        %v1766 = vadd.f32 0.0, %v1765
        %v1767 = vpop.f32.mrb[0].mxu0
        %v1768 = vadd.f32 0.0, %v1767
        %v1769 = vpop.f32.mrb[0].mxu0
        %v1770 = vadd.f32 0.0, %v1769
        %1771 = vmatprep.mubr.bf16.mxu0 0
        %1772 = vmatmul.mubr.bf16.gmra.mrb[0].mxu0 %v1594
        %v1773 = vpop.f32.mrb[0].mxu0
        %v1774 = vadd.f32 0.0, %v1773
        %v1775 = vpop.f32.mrb[0].mxu0
        %v1776 = vadd.f32 0.0, %v1775
        %v1777 = vpop.f32.mrb[0].mxu0
        %v1778 = vadd.f32 0.0, %v1777
        %v1779 = vpop.f32.mrb[0].mxu0
        %v1780 = vadd.f32 0.0, %v1779
        %1781 = vmatprep.mubr.bf16.mxu0 0
        %1782 = vmatmul.mubr.bf16.gmra.mrb[0].mxu0 %v1597
        %v1783 = vpop.f32.mrb[0].mxu0
        %v1784 = vadd.f32 0.0, %v1783
        %v1785 = vpop.f32.mrb[0].mxu0
        %v1786 = vadd.f32 0.0, %v1785
        %v1787 = vpop.f32.mrb[0].mxu0
        %v1788 = vadd.f32 0.0, %v1787
        %v1789 = vpop.f32.mrb[0].mxu0
        %v1790 = vadd.f32 0.0, %v1789
        %1791 = vdwg.mxu0
        %v1792 = vadd.f32 %v1342, %v1634
        %v1793 = vadd.f32 %v1344, %v1636
        %v1794 = vadd.f32 %v1346, %v1638
        %v1795 = vadd.f32 %v1348, %v1640
        %v1796 = vadd.f32 %v1352, %v1644
        %v1797 = vadd.f32 %v1354, %v1646
        %v1798 = vadd.f32 %v1356, %v1648
        %v1799 = vadd.f32 %v1358, %v1650
        %v1800 = vadd.f32 %v1362, %v1654
        %v1801 = vadd.f32 %v1364, %v1656
        %v1802 = vadd.f32 %v1366, %v1658
        %v1803 = vadd.f32 %v1368, %v1660
        %v1804 = vadd.f32 %v1372, %v1664
        %v1805 = vadd.f32 %v1374, %v1666
        %v1806 = vadd.f32 %v1376, %v1668
        %v1807 = vadd.f32 %v1378, %v1670
        %v1808 = vadd.f32 %v1382, %v1674
        %v1809 = vadd.f32 %v1384, %v1676
        %v1810 = vadd.f32 %v1386, %v1678
        %v1811 = vadd.f32 %v1388, %v1680
        %v1812 = vadd.f32 %v1392, %v1684
        %v1813 = vadd.f32 %v1394, %v1686
        %v1814 = vadd.f32 %v1396, %v1688
        %v1815 = vadd.f32 %v1398, %v1690
        %v1816 = vadd.f32 %v1402, %v1694
        %v1817 = vadd.f32 %v1404, %v1696
        %v1818 = vadd.f32 %v1406, %v1698
        %v1819 = vadd.f32 %v1408, %v1700
        %v1820 = vadd.f32 %v1412, %v1704
        %v1821 = vadd.f32 %v1414, %v1706
        %v1822 = vadd.f32 %v1416, %v1708
        %v1823 = vadd.f32 %v1418, %v1710
        %v1824 = vadd.f32 %v1422, %v1714
        %v1825 = vadd.f32 %v1424, %v1716
        %v1826 = vadd.f32 %v1426, %v1718
        %v1827 = vadd.f32 %v1428, %v1720
        %v1828 = vadd.f32 %v1432, %v1724
        %v1829 = vadd.f32 %v1434, %v1726
        %v1830 = vadd.f32 %v1436, %v1728
        %v1831 = vadd.f32 %v1438, %v1730
        %v1832 = vadd.f32 %v1442, %v1734
        %v1833 = vadd.f32 %v1444, %v1736
        %v1834 = vadd.f32 %v1446, %v1738
        %v1835 = vadd.f32 %v1448, %v1740
        %v1836 = vadd.f32 %v1452, %v1744
        %v1837 = vadd.f32 %v1454, %v1746
        %v1838 = vadd.f32 %v1456, %v1748
        %v1839 = vadd.f32 %v1458, %v1750
        %v1840 = vadd.f32 %v1462, %v1754
        %v1841 = vadd.f32 %v1464, %v1756
        %v1842 = vadd.f32 %v1466, %v1758
        %v1843 = vadd.f32 %v1468, %v1760
        %v1844 = vadd.f32 %v1472, %v1764
        %v1845 = vadd.f32 %v1474, %v1766
        %v1846 = vadd.f32 %v1476, %v1768
        %v1847 = vadd.f32 %v1478, %v1770
        %v1848 = vadd.f32 %v1482, %v1774
        %v1849 = vadd.f32 %v1484, %v1776
        %v1850 = vadd.f32 %v1486, %v1778
        %v1851 = vadd.f32 %v1488, %v1780
        %v1852 = vadd.f32 %v1492, %v1784
        %v1853 = vadd.f32 %v1494, %v1786
        %v1854 = vadd.f32 %v1496, %v1788
        %v1855 = vadd.f32 %v1498, %v1790
        %v1856 = vld [vmem:[%s2] sm:$0x3]
        %v1858 = vlaneseq
        %v1859 = vshrl.u32 %v1858, 7
        %v1860 = vsub.s32 0, %v1859
        %v1861 = vrot.slane %v1856, %v1860
        %v1862 = vlaneseq
        %v1863 = vshrl.u32 %v1862, 7
        %v1864 = vsub.s32 1, %v1863
        %v1865 = vrot.slane %v1856, %v1864
        %v1868 = vadd.f32 %v1792, %v1861
        %v1869 = vadd.f32 %v1793, %v1865
        %v1870 = vadd.f32 %v1794, %v1861
        %v1871 = vadd.f32 %v1795, %v1865
        %v1872 = vadd.f32 %v1796, %v1861
        %v1873 = vadd.f32 %v1797, %v1865
        %v1874 = vadd.f32 %v1798, %v1861
        %v1875 = vadd.f32 %v1799, %v1865
        %v1876 = vadd.f32 %v1800, %v1861
        %v1877 = vadd.f32 %v1801, %v1865
        %v1878 = vadd.f32 %v1802, %v1861
        %v1879 = vadd.f32 %v1803, %v1865
        %v1880 = vadd.f32 %v1804, %v1861
        %v1881 = vadd.f32 %v1805, %v1865
        %v1882 = vadd.f32 %v1806, %v1861
        %v1883 = vadd.f32 %v1807, %v1865
        %v1884 = vadd.f32 %v1808, %v1861
        %v1885 = vadd.f32 %v1809, %v1865
        %v1886 = vadd.f32 %v1810, %v1861
        %v1887 = vadd.f32 %v1811, %v1865
        %v1888 = vadd.f32 %v1812, %v1861
        %v1889 = vadd.f32 %v1813, %v1865
        %v1890 = vadd.f32 %v1814, %v1861
        %v1891 = vadd.f32 %v1815, %v1865
        %v1892 = vadd.f32 %v1816, %v1861
        %v1893 = vadd.f32 %v1817, %v1865
        %v1894 = vadd.f32 %v1818, %v1861
        %v1895 = vadd.f32 %v1819, %v1865
        %v1896 = vadd.f32 %v1820, %v1861
        %v1897 = vadd.f32 %v1821, %v1865
        %v1898 = vadd.f32 %v1822, %v1861
        %v1899 = vadd.f32 %v1823, %v1865
        %v1900 = vadd.f32 %v1824, %v1861
        %v1901 = vadd.f32 %v1825, %v1865
        %v1902 = vadd.f32 %v1826, %v1861
        %v1903 = vadd.f32 %v1827, %v1865
        %v1904 = vadd.f32 %v1828, %v1861
        %v1905 = vadd.f32 %v1829, %v1865
        %v1906 = vadd.f32 %v1830, %v1861
        %v1907 = vadd.f32 %v1831, %v1865
        %v1908 = vadd.f32 %v1832, %v1861
        %v1909 = vadd.f32 %v1833, %v1865
        %v1910 = vadd.f32 %v1834, %v1861
        %v1911 = vadd.f32 %v1835, %v1865
        %v1912 = vadd.f32 %v1836, %v1861
        %v1913 = vadd.f32 %v1837, %v1865
        %v1914 = vadd.f32 %v1838, %v1861
        %v1915 = vadd.f32 %v1839, %v1865
        %v1916 = vadd.f32 %v1840, %v1861
        %v1917 = vadd.f32 %v1841, %v1865
        %v1918 = vadd.f32 %v1842, %v1861
        %v1919 = vadd.f32 %v1843, %v1865
        %v1920 = vadd.f32 %v1844, %v1861
        %v1921 = vadd.f32 %v1845, %v1865
        %v1922 = vadd.f32 %v1846, %v1861
        %v1923 = vadd.f32 %v1847, %v1865
        %v1924 = vadd.f32 %v1848, %v1861
        %v1925 = vadd.f32 %v1849, %v1865
        %v1926 = vadd.f32 %v1850, %v1861
        %v1927 = vadd.f32 %v1851, %v1865
        %v1928 = vadd.f32 %v1852, %v1861
        %v1929 = vadd.f32 %v1853, %v1865
        %v1930 = vadd.f32 %v1854, %v1861
        %v1931 = vadd.f32 %v1855, %v1865
        %v1932 = vmax.f32 %v1868, 0.0
        %v1933 = vmax.f32 %v1869, 0.0
        %v1934 = vmax.f32 %v1870, 0.0
        %v1935 = vmax.f32 %v1871, 0.0
        %v1936 = vmax.f32 %v1872, 0.0
        %v1937 = vmax.f32 %v1873, 0.0
        %v1938 = vmax.f32 %v1874, 0.0
        %v1939 = vmax.f32 %v1875, 0.0
        %v1940 = vmax.f32 %v1876, 0.0
        %v1941 = vmax.f32 %v1877, 0.0
        %v1942 = vmax.f32 %v1878, 0.0
        %v1943 = vmax.f32 %v1879, 0.0
        %v1944 = vmax.f32 %v1880, 0.0
        %v1945 = vmax.f32 %v1881, 0.0
        %v1946 = vmax.f32 %v1882, 0.0
        %v1947 = vmax.f32 %v1883, 0.0
        %v1948 = vmax.f32 %v1884, 0.0
        %v1949 = vmax.f32 %v1885, 0.0
        %v1950 = vmax.f32 %v1886, 0.0
        %v1951 = vmax.f32 %v1887, 0.0
        %v1952 = vmax.f32 %v1888, 0.0
        %v1953 = vmax.f32 %v1889, 0.0
        %v1954 = vmax.f32 %v1890, 0.0
        %v1955 = vmax.f32 %v1891, 0.0
        %v1956 = vmax.f32 %v1892, 0.0
        %v1957 = vmax.f32 %v1893, 0.0
        %v1958 = vmax.f32 %v1894, 0.0
        %v1959 = vmax.f32 %v1895, 0.0
        %v1960 = vmax.f32 %v1896, 0.0
        %v1961 = vmax.f32 %v1897, 0.0
        %v1962 = vmax.f32 %v1898, 0.0
        %v1963 = vmax.f32 %v1899, 0.0
        %v1964 = vmax.f32 %v1900, 0.0
        %v1965 = vmax.f32 %v1901, 0.0
        %v1966 = vmax.f32 %v1902, 0.0
        %v1967 = vmax.f32 %v1903, 0.0
        %v1968 = vmax.f32 %v1904, 0.0
        %v1969 = vmax.f32 %v1905, 0.0
        %v1970 = vmax.f32 %v1906, 0.0
        %v1971 = vmax.f32 %v1907, 0.0
        %v1972 = vmax.f32 %v1908, 0.0
        %v1973 = vmax.f32 %v1909, 0.0
        %v1974 = vmax.f32 %v1910, 0.0
        %v1975 = vmax.f32 %v1911, 0.0
        %v1976 = vmax.f32 %v1912, 0.0
        %v1977 = vmax.f32 %v1913, 0.0
        %v1978 = vmax.f32 %v1914, 0.0
        %v1979 = vmax.f32 %v1915, 0.0
        %v1980 = vmax.f32 %v1916, 0.0
        %v1981 = vmax.f32 %v1917, 0.0
        %v1982 = vmax.f32 %v1918, 0.0
        %v1983 = vmax.f32 %v1919, 0.0
        %v1984 = vmax.f32 %v1920, 0.0
        %v1985 = vmax.f32 %v1921, 0.0
        %v1986 = vmax.f32 %v1922, 0.0
        %v1987 = vmax.f32 %v1923, 0.0
        %v1988 = vmax.f32 %v1924, 0.0
        %v1989 = vmax.f32 %v1925, 0.0
        %v1990 = vmax.f32 %v1926, 0.0
        %v1991 = vmax.f32 %v1927, 0.0
        %v1992 = vmax.f32 %v1928, 0.0
        %v1993 = vmax.f32 %v1929, 0.0
        %v1994 = vmax.f32 %v1930, 0.0
        %v1995 = vmax.f32 %v1931, 0.0
        %v1996 = vpack.c.bf16 %v1934, %v1932
        %v1997 = vpack.c.bf16 %v1935, %v1933
        %v1998 = vpack.c.bf16 %v1938, %v1936
        %v1999 = vpack.c.bf16 %v1939, %v1937
        %v2000 = vpack.c.bf16 %v1942, %v1940
        %v2001 = vpack.c.bf16 %v1943, %v1941
        %v2002 = vpack.c.bf16 %v1946, %v1944
        %v2003 = vpack.c.bf16 %v1947, %v1945
        %v2004 = vpack.c.bf16 %v1950, %v1948
        %v2005 = vpack.c.bf16 %v1951, %v1949
        %v2006 = vpack.c.bf16 %v1954, %v1952
        %v2007 = vpack.c.bf16 %v1955, %v1953
        %v2008 = vpack.c.bf16 %v1958, %v1956
        %v2009 = vpack.c.bf16 %v1959, %v1957
        %v2010 = vpack.c.bf16 %v1962, %v1960
        %v2011 = vpack.c.bf16 %v1963, %v1961
        %v2012 = vpack.c.bf16 %v1966, %v1964
        %v2013 = vpack.c.bf16 %v1967, %v1965
        %v2014 = vpack.c.bf16 %v1970, %v1968
        %v2015 = vpack.c.bf16 %v1971, %v1969
        %v2016 = vpack.c.bf16 %v1974, %v1972
        %v2017 = vpack.c.bf16 %v1975, %v1973
        %v2018 = vpack.c.bf16 %v1978, %v1976
        %v2019 = vpack.c.bf16 %v1979, %v1977
        %v2020 = vpack.c.bf16 %v1982, %v1980
        %v2021 = vpack.c.bf16 %v1983, %v1981
        %v2022 = vpack.c.bf16 %v1986, %v1984
        %v2023 = vpack.c.bf16 %v1987, %v1985
        %v2024 = vpack.c.bf16 %v1990, %v1988
        %v2025 = vpack.c.bf16 %v1991, %v1989
        %v2026 = vpack.c.bf16 %v1994, %v1992
        %v2027 = vpack.c.bf16 %v1995, %v1993
        %v2060 = vunpack.c.l.b16 %v1996
        %v2061 = vunpack.c.l.b16 %v1997
        %v2062 = vunpack.c.h.b16 %v1996
        %v2063 = vunpack.c.h.b16 %v1997
        %v2064 = vunpack.c.l.b16 %v1998
        %v2065 = vunpack.c.l.b16 %v1999
        %v2066 = vunpack.c.h.b16 %v1998
        %v2067 = vunpack.c.h.b16 %v1999
        %v2068 = vunpack.c.l.b16 %v2000
        %v2069 = vunpack.c.l.b16 %v2001
        %v2070 = vunpack.c.h.b16 %v2000
        %v2071 = vunpack.c.h.b16 %v2001
        %v2072 = vunpack.c.l.b16 %v2002
        %v2073 = vunpack.c.l.b16 %v2003
        %v2074 = vunpack.c.h.b16 %v2002
        %v2075 = vunpack.c.h.b16 %v2003
        %v2076 = vunpack.c.l.b16 %v2004
        %v2077 = vunpack.c.l.b16 %v2005
        %v2078 = vunpack.c.h.b16 %v2004
        %v2079 = vunpack.c.h.b16 %v2005
        %v2080 = vunpack.c.l.b16 %v2006
        %v2081 = vunpack.c.l.b16 %v2007
        %v2082 = vunpack.c.h.b16 %v2006
        %v2083 = vunpack.c.h.b16 %v2007
        %v2084 = vunpack.c.l.b16 %v2008
        %v2085 = vunpack.c.l.b16 %v2009
        %v2086 = vunpack.c.h.b16 %v2008
        %v2087 = vunpack.c.h.b16 %v2009
        %v2088 = vunpack.c.l.b16 %v2010
        %v2089 = vunpack.c.l.b16 %v2011
        %v2090 = vunpack.c.h.b16 %v2010
        %v2091 = vunpack.c.h.b16 %v2011
        %v2092 = vunpack.c.l.b16 %v2012
        %v2093 = vunpack.c.l.b16 %v2013
        %v2094 = vunpack.c.h.b16 %v2012
        %v2095 = vunpack.c.h.b16 %v2013
        %v2096 = vunpack.c.l.b16 %v2014
        %v2097 = vunpack.c.l.b16 %v2015
        %v2098 = vunpack.c.h.b16 %v2014
        %v2099 = vunpack.c.h.b16 %v2015
        %v2100 = vunpack.c.l.b16 %v2016
        %v2101 = vunpack.c.l.b16 %v2017
        %v2102 = vunpack.c.h.b16 %v2016
        %v2103 = vunpack.c.h.b16 %v2017
        %v2104 = vunpack.c.l.b16 %v2018
        %v2105 = vunpack.c.l.b16 %v2019
        %v2106 = vunpack.c.h.b16 %v2018
        %v2107 = vunpack.c.h.b16 %v2019
        %v2108 = vunpack.c.l.b16 %v2020
        %v2109 = vunpack.c.l.b16 %v2021
        %v2110 = vunpack.c.h.b16 %v2020
        %v2111 = vunpack.c.h.b16 %v2021
        %v2112 = vunpack.c.l.b16 %v2022
        %v2113 = vunpack.c.l.b16 %v2023
        %v2114 = vunpack.c.h.b16 %v2022
        %v2115 = vunpack.c.h.b16 %v2023
        %v2116 = vunpack.c.l.b16 %v2024
        %v2117 = vunpack.c.l.b16 %v2025
        %v2118 = vunpack.c.h.b16 %v2024
        %v2119 = vunpack.c.h.b16 %v2025
        %v2120 = vunpack.c.l.b16 %v2026
        %v2121 = vunpack.c.l.b16 %v2027
        %v2122 = vunpack.c.h.b16 %v2026
        %v2123 = vunpack.c.h.b16 %v2027
        %v2124 = vpack.c.b16 %v2061, %v2060
        %v2125 = vpack.c.b16 %v2063, %v2062
        %v2126 = vpack.c.b16 %v2065, %v2064
        %v2127 = vpack.c.b16 %v2067, %v2066
        %v2128 = vpack.c.b16 %v2069, %v2068
        %v2129 = vpack.c.b16 %v2071, %v2070
        %v2130 = vpack.c.b16 %v2073, %v2072
        %v2131 = vpack.c.b16 %v2075, %v2074
        %v2132 = vpack.c.b16 %v2077, %v2076
        %v2133 = vpack.c.b16 %v2079, %v2078
        %v2134 = vpack.c.b16 %v2081, %v2080
        %v2135 = vpack.c.b16 %v2083, %v2082
        %v2136 = vpack.c.b16 %v2085, %v2084
        %v2137 = vpack.c.b16 %v2087, %v2086
        %v2138 = vpack.c.b16 %v2089, %v2088
        %v2139 = vpack.c.b16 %v2091, %v2090
        %v2140 = vpack.c.b16 %v2093, %v2092
        %v2141 = vpack.c.b16 %v2095, %v2094
        %v2142 = vpack.c.b16 %v2097, %v2096
        %v2143 = vpack.c.b16 %v2099, %v2098
        %v2144 = vpack.c.b16 %v2101, %v2100
        %v2145 = vpack.c.b16 %v2103, %v2102
        %v2146 = vpack.c.b16 %v2105, %v2104
        %v2147 = vpack.c.b16 %v2107, %v2106
        %v2148 = vpack.c.b16 %v2109, %v2108
        %v2149 = vpack.c.b16 %v2111, %v2110
        %v2150 = vpack.c.b16 %v2113, %v2112
        %v2151 = vpack.c.b16 %v2115, %v2114
        %v2152 = vpack.c.b16 %v2117, %v2116
        %v2153 = vpack.c.b16 %v2119, %v2118
        %v2154 = vpack.c.b16 %v2121, %v2120
        %v2155 = vpack.c.b16 %v2123, %v2122
        %2188 = vst.msk [vmem:[#allocation3] sm:$0xff] %vm560, %v2124
        %2189 = vst.msk [vmem:[#allocation3 + $0x8] sm:$0xff] %vm560, %v2125
        %2190 = vst.msk [vmem:[#allocation3 + $0x10] sm:$0xff] %vm560, %v2126
        %2191 = vst.msk [vmem:[#allocation3 + $0x18] sm:$0xff] %vm560, %v2127
        %2192 = vst.msk [vmem:[#allocation3 + $0x20] sm:$0xff] %vm560, %v2128
        %2193 = vst.msk [vmem:[#allocation3 + $0x28] sm:$0xff] %vm560, %v2129
        %2194 = vst.msk [vmem:[#allocation3 + $0x30] sm:$0xff] %vm560, %v2130
        %2195 = vst.msk [vmem:[#allocation3 + $0x38] sm:$0xff] %vm560, %v2131
        %2196 = vst.msk [vmem:[#allocation3 + $0x40] sm:$0xff] %vm560, %v2132
        %2197 = vst.msk [vmem:[#allocation3 + $0x48] sm:$0xff] %vm560, %v2133
        %2198 = vst.msk [vmem:[#allocation3 + $0x50] sm:$0xff] %vm560, %v2134
        %2199 = vst.msk [vmem:[#allocation3 + $0x58] sm:$0xff] %vm560, %v2135
        %2200 = vst.msk [vmem:[#allocation3 + $0x60] sm:$0xff] %vm560, %v2136
        %2201 = vst.msk [vmem:[#allocation3 + $0x68] sm:$0xff] %vm560, %v2137
        %2202 = vst.msk [vmem:[#allocation3 + $0x70] sm:$0xff] %vm560, %v2138
        %2203 = vst.msk [vmem:[#allocation3 + $0x78] sm:$0xff] %vm560, %v2139
        %2204 = vst.msk [vmem:[#allocation3 + $0x80] sm:$0xff] %vm560, %v2140
        %2205 = vst.msk [vmem:[#allocation3 + $0x88] sm:$0xff] %vm560, %v2141
        %2206 = vst.msk [vmem:[#allocation3 + $0x90] sm:$0xff] %vm560, %v2142
        %2207 = vst.msk [vmem:[#allocation3 + $0x98] sm:$0xff] %vm560, %v2143
        %2208 = vst.msk [vmem:[#allocation3 + $0xa0] sm:$0xff] %vm560, %v2144
        %2209 = vst.msk [vmem:[#allocation3 + $0xa8] sm:$0xff] %vm560, %v2145
        %2210 = vst.msk [vmem:[#allocation3 + $0xb0] sm:$0xff] %vm560, %v2146
        %2211 = vst.msk [vmem:[#allocation3 + $0xb8] sm:$0xff] %vm560, %v2147
        %2212 = vst.msk [vmem:[#allocation3 + $0xc0] sm:$0xff] %vm560, %v2148
        %2213 = vst.msk [vmem:[#allocation3 + $0xc8] sm:$0xff] %vm560, %v2149
        %2214 = vst.msk [vmem:[#allocation3 + $0xd0] sm:$0xff] %vm560, %v2150
        %2215 = vst.msk [vmem:[#allocation3 + $0xd8] sm:$0xff] %vm560, %v2151
        %2216 = vst.msk [vmem:[#allocation3 + $0xe0] sm:$0xff] %vm560, %v2152
        %2217 = vst.msk [vmem:[#allocation3 + $0xe8] sm:$0xff] %vm560, %v2153
        %2218 = vst.msk [vmem:[#allocation3 + $0xf0] sm:$0xff] %vm560, %v2154
        %2219 = vst.msk [vmem:[#allocation3 + $0xf8] sm:$0xff] %vm560, %v2155
        %v2220 = vld [vmem:[#allocation3] sm:$0xff]
        %v2221 = vld [vmem:[#allocation3 + $0x8] sm:$0xff]
        %v2222 = vld [vmem:[#allocation3 + $0x10] sm:$0xff]
        %v2223 = vld [vmem:[#allocation3 + $0x18] sm:$0xff]
        %v2224 = vld [vmem:[#allocation3 + $0x20] sm:$0xff]
        %v2225 = vld [vmem:[#allocation3 + $0x28] sm:$0xff]
        %v2226 = vld [vmem:[#allocation3 + $0x30] sm:$0xff]
        %v2227 = vld [vmem:[#allocation3 + $0x38] sm:$0xff]
        %v2228 = vld [vmem:[#allocation3 + $0x40] sm:$0xff]
        %v2229 = vld [vmem:[#allocation3 + $0x48] sm:$0xff]
        %v2230 = vld [vmem:[#allocation3 + $0x50] sm:$0xff]
        %v2231 = vld [vmem:[#allocation3 + $0x58] sm:$0xff]
        %v2232 = vld [vmem:[#allocation3 + $0x60] sm:$0xff]
        %v2233 = vld [vmem:[#allocation3 + $0x68] sm:$0xff]
        %v2234 = vld [vmem:[#allocation3 + $0x70] sm:$0xff]
        %v2235 = vld [vmem:[#allocation3 + $0x78] sm:$0xff]
        %v2236 = vld [vmem:[#allocation3 + $0x80] sm:$0xff]
        %v2237 = vld [vmem:[#allocation3 + $0x88] sm:$0xff]
        %v2238 = vld [vmem:[#allocation3 + $0x90] sm:$0xff]
        %v2239 = vld [vmem:[#allocation3 + $0x98] sm:$0xff]
        %v2240 = vld [vmem:[#allocation3 + $0xa0] sm:$0xff]
        %v2241 = vld [vmem:[#allocation3 + $0xa8] sm:$0xff]
        %v2242 = vld [vmem:[#allocation3 + $0xb0] sm:$0xff]
        %v2243 = vld [vmem:[#allocation3 + $0xb8] sm:$0xff]
        %v2244 = vld [vmem:[#allocation3 + $0xc0] sm:$0xff]
        %v2245 = vld [vmem:[#allocation3 + $0xc8] sm:$0xff]
        %v2246 = vld [vmem:[#allocation3 + $0xd0] sm:$0xff]
        %v2247 = vld [vmem:[#allocation3 + $0xd8] sm:$0xff]
        %v2248 = vld [vmem:[#allocation3 + $0xe0] sm:$0xff]
        %v2249 = vld [vmem:[#allocation3 + $0xe8] sm:$0xff]
        %v2250 = vld [vmem:[#allocation3 + $0xf0] sm:$0xff]
        %v2251 = vld [vmem:[#allocation3 + $0xf8] sm:$0xff]
        %v2252 = vld [vmem:[%s3] sm:$0xff]
        %v2253 = vld [vmem:[%s3 + $0x8] sm:$0xf]
        %v2254 = vld [vmem:[%s3 + $0xc] sm:$0xff]
        %v2255 = vld [vmem:[%s3 + $0x14] sm:$0xf]
        %v2256 = vld [vmem:[%s3 + $0x18] sm:$0xff]
        %v2257 = vld [vmem:[%s3 + $0x20] sm:$0xf]
        %v2258 = vld [vmem:[%s3 + $0x24] sm:$0xff]
        %v2259 = vld [vmem:[%s3 + $0x2c] sm:$0xf]
        %v2260 = vld [vmem:[%s3 + $0x30] sm:$0xff]
        %v2261 = vld [vmem:[%s3 + $0x38] sm:$0xf]
        %v2262 = vld [vmem:[%s3 + $0x3c] sm:$0xff]
        %v2263 = vld [vmem:[%s3 + $0x44] sm:$0xf]
        %v2264 = vld [vmem:[%s3 + $0x48] sm:$0xff]
        %v2265 = vld [vmem:[%s3 + $0x50] sm:$0xf]
        %v2266 = vld [vmem:[%s3 + $0x54] sm:$0xff]
        %v2267 = vld [vmem:[%s3 + $0x5c] sm:$0xf]
        %v2268 = vld [vmem:[%s3 + $0x60] sm:$0xff]
        %v2269 = vld [vmem:[%s3 + $0x68] sm:$0xf]
        %v2270 = vld [vmem:[%s3 + $0x6c] sm:$0xff]
        %v2271 = vld [vmem:[%s3 + $0x74] sm:$0xf]
        %v2272 = vld [vmem:[%s3 + $0x78] sm:$0xff]
        %v2273 = vld [vmem:[%s3 + $0x80] sm:$0xf]
        %v2274 = vld [vmem:[%s3 + $0x84] sm:$0xff]
        %v2275 = vld [vmem:[%s3 + $0x8c] sm:$0xf]
        %v2276 = vld [vmem:[%s3 + $0x90] sm:$0xff]
        %v2277 = vld [vmem:[%s3 + $0x98] sm:$0xf]
        %v2278 = vld [vmem:[%s3 + $0x9c] sm:$0xff]
        %v2279 = vld [vmem:[%s3 + $0xa4] sm:$0xf]
        %v2280 = vld [vmem:[%s3 + $0xa8] sm:$0xff]
        %v2281 = vld [vmem:[%s3 + $0xb0] sm:$0xf]
        %v2282 = vld [vmem:[%s3 + $0xb4] sm:$0xff]
        %v2283 = vld [vmem:[%s3 + $0xbc] sm:$0xf]
        %v2284 = vld [vmem:[%s3 + $0xc0] sm:$0xff]
        %v2285 = vld [vmem:[%s3 + $0xc8] sm:$0xf]
        %v2286 = vld [vmem:[%s3 + $0xcc] sm:$0xff]
        %v2287 = vld [vmem:[%s3 + $0xd4] sm:$0xf]
        %v2288 = vld [vmem:[%s3 + $0xd8] sm:$0xff]
        %v2289 = vld [vmem:[%s3 + $0xe0] sm:$0xf]
        %v2290 = vld [vmem:[%s3 + $0xe4] sm:$0xff]
        %v2291 = vld [vmem:[%s3 + $0xec] sm:$0xf]
        %v2292 = vld [vmem:[%s3 + $0xf0] sm:$0xff]
        %v2293 = vld [vmem:[%s3 + $0xf8] sm:$0xf]
        %v2294 = vld [vmem:[%s3 + $0xfc] sm:$0xff]
        %v2295 = vld [vmem:[%s3 + $0x104] sm:$0xf]
        %v2296 = vld [vmem:[%s3 + $0x108] sm:$0xff]
        %v2297 = vld [vmem:[%s3 + $0x110] sm:$0xf]
        %v2298 = vld [vmem:[%s3 + $0x114] sm:$0xff]
        %v2299 = vld [vmem:[%s3 + $0x11c] sm:$0xf]
        %v2300 = vld [vmem:[%s3 + $0x120] sm:$0x33]
        %v2301 = vld [vmem:[%s3 + $0x128] sm:$0x3]
        %v2302 = vld [vmem:[#allocation3 + $0x100] sm:$0x11]
        %s2303 = scalar_lea.vmem %s3, 300
        %v2304 = vld [vmem:[%s2303] sm:$0xff]
        %v2305 = vld [vmem:[%s2303 + $0x8] sm:$0xf]
        %v2306 = vld [vmem:[%s2303 + $0xc] sm:$0xff]
        %v2307 = vld [vmem:[%s2303 + $0x14] sm:$0xf]
        %v2308 = vld [vmem:[%s2303 + $0x18] sm:$0xff]
        %v2309 = vld [vmem:[%s2303 + $0x20] sm:$0xf]
        %v2310 = vld [vmem:[%s2303 + $0x24] sm:$0xff]
        %v2311 = vld [vmem:[%s2303 + $0x2c] sm:$0xf]
        %v2312 = vld [vmem:[%s2303 + $0x30] sm:$0xff]
        %v2313 = vld [vmem:[%s2303 + $0x38] sm:$0xf]
        %v2314 = vld [vmem:[%s2303 + $0x3c] sm:$0xff]
        %v2315 = vld [vmem:[%s2303 + $0x44] sm:$0xf]
        %v2316 = vld [vmem:[%s2303 + $0x48] sm:$0xff]
        %v2317 = vld [vmem:[%s2303 + $0x50] sm:$0xf]
        %v2318 = vld [vmem:[%s2303 + $0x54] sm:$0xff]
        %v2319 = vld [vmem:[%s2303 + $0x5c] sm:$0xf]
        %v2320 = vld [vmem:[%s2303 + $0x60] sm:$0xff]
        %v2321 = vld [vmem:[%s2303 + $0x68] sm:$0xf]
        %v2322 = vld [vmem:[%s2303 + $0x6c] sm:$0xff]
        %v2323 = vld [vmem:[%s2303 + $0x74] sm:$0xf]
        %v2324 = vld [vmem:[%s2303 + $0x78] sm:$0xff]
        %v2325 = vld [vmem:[%s2303 + $0x80] sm:$0xf]
        %v2326 = vld [vmem:[%s2303 + $0x84] sm:$0xff]
        %v2327 = vld [vmem:[%s2303 + $0x8c] sm:$0xf]
        %v2328 = vld [vmem:[%s2303 + $0x90] sm:$0xff]
        %v2329 = vld [vmem:[%s2303 + $0x98] sm:$0xf]
        %v2330 = vld [vmem:[%s2303 + $0x9c] sm:$0xff]
        %v2331 = vld [vmem:[%s2303 + $0xa4] sm:$0xf]
        %v2332 = vld [vmem:[%s2303 + $0xa8] sm:$0xff]
        %v2333 = vld [vmem:[%s2303 + $0xb0] sm:$0xf]
        %v2334 = vld [vmem:[%s2303 + $0xb4] sm:$0xff]
        %v2335 = vld [vmem:[%s2303 + $0xbc] sm:$0xf]
        %v2336 = vld [vmem:[%s2303 + $0xc0] sm:$0xff]
        %v2337 = vld [vmem:[%s2303 + $0xc8] sm:$0xf]
        %v2338 = vld [vmem:[%s2303 + $0xcc] sm:$0xff]
        %v2339 = vld [vmem:[%s2303 + $0xd4] sm:$0xf]
        %v2340 = vld [vmem:[%s2303 + $0xd8] sm:$0xff]
        %v2341 = vld [vmem:[%s2303 + $0xe0] sm:$0xf]
        %v2342 = vld [vmem:[%s2303 + $0xe4] sm:$0xff]
        %v2343 = vld [vmem:[%s2303 + $0xec] sm:$0xf]
        %v2344 = vld [vmem:[%s2303 + $0xf0] sm:$0xff]
        %v2345 = vld [vmem:[%s2303 + $0xf8] sm:$0xf]
        %v2346 = vld [vmem:[%s2303 + $0xfc] sm:$0xff]
        %v2347 = vld [vmem:[%s2303 + $0x104] sm:$0xf]
        %v2348 = vld [vmem:[%s2303 + $0x108] sm:$0xff]
        %v2349 = vld [vmem:[%s2303 + $0x110] sm:$0xf]
        %v2350 = vld [vmem:[%s2303 + $0x114] sm:$0xff]
        %v2351 = vld [vmem:[%s2303 + $0x11c] sm:$0xf]
        %v2352 = vld [vmem:[%s2303 + $0x120] sm:$0x33]
        %v2353 = vld [vmem:[%s2303 + $0x128] sm:$0x3]
        %v2387 = vunpack.c.l.b16 %v2220
        %v2388 = vunpack.c.h.b16 %v2220
        %v2389 = vunpack.c.l.b16 %v2221
        %v2390 = vunpack.c.h.b16 %v2221
        %v2391 = vunpack.c.l.b16 %v2222
        %v2392 = vunpack.c.h.b16 %v2222
        %v2393 = vunpack.c.l.b16 %v2223
        %v2394 = vunpack.c.h.b16 %v2223
        %v2395 = vunpack.c.l.b16 %v2224
        %v2396 = vunpack.c.h.b16 %v2224
        %v2397 = vunpack.c.l.b16 %v2225
        %v2398 = vunpack.c.h.b16 %v2225
        %v2399 = vunpack.c.l.b16 %v2226
        %v2400 = vunpack.c.h.b16 %v2226
        %v2401 = vunpack.c.l.b16 %v2227
        %v2402 = vunpack.c.h.b16 %v2227
        %v2403 = vunpack.c.l.b16 %v2228
        %v2404 = vunpack.c.h.b16 %v2228
        %v2405 = vunpack.c.l.b16 %v2229
        %v2406 = vunpack.c.h.b16 %v2229
        %v2407 = vunpack.c.l.b16 %v2230
        %v2408 = vunpack.c.h.b16 %v2230
        %v2409 = vunpack.c.l.b16 %v2231
        %v2410 = vunpack.c.h.b16 %v2231
        %v2411 = vunpack.c.l.b16 %v2232
        %v2412 = vunpack.c.h.b16 %v2232
        %v2413 = vunpack.c.l.b16 %v2233
        %v2414 = vunpack.c.h.b16 %v2233
        %v2415 = vunpack.c.l.b16 %v2234
        %v2416 = vunpack.c.h.b16 %v2234
        %v2417 = vunpack.c.l.b16 %v2235
        %v2418 = vunpack.c.h.b16 %v2235
        %v2419 = vunpack.c.l.b16 %v2236
        %v2420 = vunpack.c.h.b16 %v2236
        %v2421 = vunpack.c.l.b16 %v2237
        %v2422 = vunpack.c.h.b16 %v2237
        %v2423 = vunpack.c.l.b16 %v2238
        %v2424 = vunpack.c.h.b16 %v2238
        %v2425 = vunpack.c.l.b16 %v2239
        %v2426 = vunpack.c.h.b16 %v2239
        %v2427 = vunpack.c.l.b16 %v2240
        %v2428 = vunpack.c.h.b16 %v2240
        %v2429 = vunpack.c.l.b16 %v2241
        %v2430 = vunpack.c.h.b16 %v2241
        %v2431 = vunpack.c.l.b16 %v2242
        %v2432 = vunpack.c.h.b16 %v2242
        %v2433 = vunpack.c.l.b16 %v2243
        %v2434 = vunpack.c.h.b16 %v2243
        %v2435 = vunpack.c.l.b16 %v2244
        %v2436 = vunpack.c.h.b16 %v2244
        %v2437 = vunpack.c.l.b16 %v2245
        %v2438 = vunpack.c.h.b16 %v2245
        %v2439 = vunpack.c.l.b16 %v2246
        %v2440 = vunpack.c.h.b16 %v2246
        %v2441 = vunpack.c.l.b16 %v2247
        %v2442 = vunpack.c.h.b16 %v2247
        %v2443 = vunpack.c.l.b16 %v2248
        %v2444 = vunpack.c.h.b16 %v2248
        %v2445 = vunpack.c.l.b16 %v2249
        %v2446 = vunpack.c.h.b16 %v2249
        %v2447 = vunpack.c.l.b16 %v2250
        %v2448 = vunpack.c.h.b16 %v2250
        %v2449 = vunpack.c.l.b16 %v2251
        %v2450 = vunpack.c.h.b16 %v2251
        %v2451 = vunpack.c.l.b16 %v2302
        %v2452 = vunpack.c.h.b16 %v2302
        %v2453 = vpack.c.b16 %v2389, %v2387
        %v2454 = vpack.c.b16 %v2390, %v2388
        %v2455 = vpack.c.b16 %v2393, %v2391
        %v2456 = vpack.c.b16 %v2394, %v2392
        %v2457 = vpack.c.b16 %v2397, %v2395
        %v2458 = vpack.c.b16 %v2398, %v2396
        %v2459 = vpack.c.b16 %v2401, %v2399
        %v2460 = vpack.c.b16 %v2402, %v2400
        %v2461 = vpack.c.b16 %v2405, %v2403
        %v2462 = vpack.c.b16 %v2406, %v2404
        %v2463 = vpack.c.b16 %v2409, %v2407
        %v2464 = vpack.c.b16 %v2410, %v2408
        %v2465 = vpack.c.b16 %v2413, %v2411
        %v2466 = vpack.c.b16 %v2414, %v2412
        %v2467 = vpack.c.b16 %v2417, %v2415
        %v2468 = vpack.c.b16 %v2418, %v2416
        %v2469 = vpack.c.b16 %v2421, %v2419
        %v2470 = vpack.c.b16 %v2422, %v2420
        %v2471 = vpack.c.b16 %v2425, %v2423
        %v2472 = vpack.c.b16 %v2426, %v2424
        %v2473 = vpack.c.b16 %v2429, %v2427
        %v2474 = vpack.c.b16 %v2430, %v2428
        %v2475 = vpack.c.b16 %v2433, %v2431
        %v2476 = vpack.c.b16 %v2434, %v2432
        %v2477 = vpack.c.b16 %v2437, %v2435
        %v2478 = vpack.c.b16 %v2438, %v2436
        %v2479 = vpack.c.b16 %v2441, %v2439
        %v2480 = vpack.c.b16 %v2442, %v2440
        %v2481 = vpack.c.b16 %v2445, %v2443
        %v2482 = vpack.c.b16 %v2446, %v2444
        %v2483 = vpack.c.b16 %v2449, %v2447
        %v2484 = vpack.c.b16 %v2450, %v2448
        %v2485 = vpack.c.b16 %v2451, %v2451
        %v2486 = vpack.c.b16 %v2452, %v2452
        %v2488 = vshrl.u32 %v2453, 16
        %v2490 = vshll.u32 %v2453, 16
        %v2492 = vrot.slane %v2490, 1
        %v2493 = vor.u32 %v2488, %v2492
        %v2495 = vshll.u32 %v2455, 16
        %v2497 = vrot.slane %v2495, 1
        %v2498 = vsel %vm880, %v2493, %v2497
        %v2500 = vshrl.u32 %v2454, 16
        %v2502 = vshll.u32 %v2454, 16
        %v2504 = vrot.slane %v2502, 1
        %v2505 = vor.u32 %v2500, %v2504
        %v2507 = vshll.u32 %v2456, 16
        %v2509 = vrot.slane %v2507, 1
        %v2510 = vsel %vm880, %v2505, %v2509
        %v2511 = vshrl.u32 %v2455, 16
        %v2513 = vor.u32 %v2511, %v2497
        %v2515 = vshll.u32 %v2457, 16
        %v2517 = vrot.slane %v2515, 1
        %v2518 = vsel %vm880, %v2513, %v2517
        %v2519 = vshrl.u32 %v2456, 16
        %v2521 = vor.u32 %v2519, %v2509
        %v2523 = vshll.u32 %v2458, 16
        %v2525 = vrot.slane %v2523, 1
        %v2526 = vsel %vm880, %v2521, %v2525
        %v2527 = vshrl.u32 %v2457, 16
        %v2529 = vor.u32 %v2527, %v2517
        %v2531 = vshll.u32 %v2459, 16
        %v2533 = vrot.slane %v2531, 1
        %v2534 = vsel %vm880, %v2529, %v2533
        %v2535 = vshrl.u32 %v2458, 16
        %v2537 = vor.u32 %v2535, %v2525
        %v2539 = vshll.u32 %v2460, 16
        %v2541 = vrot.slane %v2539, 1
        %v2542 = vsel %vm880, %v2537, %v2541
        %v2543 = vshrl.u32 %v2459, 16
        %v2545 = vor.u32 %v2543, %v2533
        %v2547 = vshll.u32 %v2461, 16
        %v2549 = vrot.slane %v2547, 1
        %v2550 = vsel %vm880, %v2545, %v2549
        %v2551 = vshrl.u32 %v2460, 16
        %v2553 = vor.u32 %v2551, %v2541
        %v2555 = vshll.u32 %v2462, 16
        %v2557 = vrot.slane %v2555, 1
        %v2558 = vsel %vm880, %v2553, %v2557
        %v2559 = vshrl.u32 %v2461, 16
        %v2561 = vor.u32 %v2559, %v2549
        %v2563 = vshll.u32 %v2463, 16
        %v2565 = vrot.slane %v2563, 1
        %v2566 = vsel %vm880, %v2561, %v2565
        %v2567 = vshrl.u32 %v2462, 16
        %v2569 = vor.u32 %v2567, %v2557
        %v2571 = vshll.u32 %v2464, 16
        %v2573 = vrot.slane %v2571, 1
        %v2574 = vsel %vm880, %v2569, %v2573
        %v2575 = vshrl.u32 %v2463, 16
        %v2577 = vor.u32 %v2575, %v2565
        %v2579 = vshll.u32 %v2465, 16
        %v2581 = vrot.slane %v2579, 1
        %v2582 = vsel %vm880, %v2577, %v2581
        %v2583 = vshrl.u32 %v2464, 16
        %v2585 = vor.u32 %v2583, %v2573
        %v2587 = vshll.u32 %v2466, 16
        %v2589 = vrot.slane %v2587, 1
        %v2590 = vsel %vm880, %v2585, %v2589
        %v2591 = vshrl.u32 %v2465, 16
        %v2593 = vor.u32 %v2591, %v2581
        %v2595 = vshll.u32 %v2467, 16
        %v2597 = vrot.slane %v2595, 1
        %v2598 = vsel %vm880, %v2593, %v2597
        %v2599 = vshrl.u32 %v2466, 16
        %v2601 = vor.u32 %v2599, %v2589
        %v2603 = vshll.u32 %v2468, 16
        %v2605 = vrot.slane %v2603, 1
        %v2606 = vsel %vm880, %v2601, %v2605
        %v2607 = vshrl.u32 %v2467, 16
        %v2609 = vor.u32 %v2607, %v2597
        %v2611 = vshll.u32 %v2469, 16
        %v2613 = vrot.slane %v2611, 1
        %v2614 = vsel %vm880, %v2609, %v2613
        %v2615 = vshrl.u32 %v2468, 16
        %v2617 = vor.u32 %v2615, %v2605
        %v2619 = vshll.u32 %v2470, 16
        %v2621 = vrot.slane %v2619, 1
        %v2622 = vsel %vm880, %v2617, %v2621
        %v2623 = vshrl.u32 %v2469, 16
        %v2625 = vor.u32 %v2623, %v2613
        %v2627 = vshll.u32 %v2471, 16
        %v2629 = vrot.slane %v2627, 1
        %v2630 = vsel %vm880, %v2625, %v2629
        %v2631 = vshrl.u32 %v2470, 16
        %v2633 = vor.u32 %v2631, %v2621
        %v2635 = vshll.u32 %v2472, 16
        %v2637 = vrot.slane %v2635, 1
        %v2638 = vsel %vm880, %v2633, %v2637
        %v2639 = vshrl.u32 %v2471, 16
        %v2641 = vor.u32 %v2639, %v2629
        %v2643 = vshll.u32 %v2473, 16
        %v2645 = vrot.slane %v2643, 1
        %v2646 = vsel %vm880, %v2641, %v2645
        %v2647 = vshrl.u32 %v2472, 16
        %v2649 = vor.u32 %v2647, %v2637
        %v2651 = vshll.u32 %v2474, 16
        %v2653 = vrot.slane %v2651, 1
        %v2654 = vsel %vm880, %v2649, %v2653
        %v2655 = vshrl.u32 %v2473, 16
        %v2657 = vor.u32 %v2655, %v2645
        %v2659 = vshll.u32 %v2475, 16
        %v2661 = vrot.slane %v2659, 1
        %v2662 = vsel %vm880, %v2657, %v2661
        %v2663 = vshrl.u32 %v2474, 16
        %v2665 = vor.u32 %v2663, %v2653
        %v2667 = vshll.u32 %v2476, 16
        %v2669 = vrot.slane %v2667, 1
        %v2670 = vsel %vm880, %v2665, %v2669
        %v2671 = vshrl.u32 %v2475, 16
        %v2673 = vor.u32 %v2671, %v2661
        %v2675 = vshll.u32 %v2477, 16
        %v2677 = vrot.slane %v2675, 1
        %v2678 = vsel %vm880, %v2673, %v2677
        %v2679 = vshrl.u32 %v2476, 16
        %v2681 = vor.u32 %v2679, %v2669
        %v2683 = vshll.u32 %v2478, 16
        %v2685 = vrot.slane %v2683, 1
        %v2686 = vsel %vm880, %v2681, %v2685
        %v2687 = vshrl.u32 %v2477, 16
        %v2689 = vor.u32 %v2687, %v2677
        %v2691 = vshll.u32 %v2479, 16
        %v2693 = vrot.slane %v2691, 1
        %v2694 = vsel %vm880, %v2689, %v2693
        %v2695 = vshrl.u32 %v2478, 16
        %v2697 = vor.u32 %v2695, %v2685
        %v2699 = vshll.u32 %v2480, 16
        %v2701 = vrot.slane %v2699, 1
        %v2702 = vsel %vm880, %v2697, %v2701
        %v2703 = vshrl.u32 %v2479, 16
        %v2705 = vor.u32 %v2703, %v2693
        %v2707 = vshll.u32 %v2481, 16
        %v2709 = vrot.slane %v2707, 1
        %v2710 = vsel %vm880, %v2705, %v2709
        %v2711 = vshrl.u32 %v2480, 16
        %v2713 = vor.u32 %v2711, %v2701
        %v2715 = vshll.u32 %v2482, 16
        %v2717 = vrot.slane %v2715, 1
        %v2718 = vsel %vm880, %v2713, %v2717
        %v2719 = vshrl.u32 %v2481, 16
        %v2721 = vor.u32 %v2719, %v2709
        %v2723 = vshll.u32 %v2483, 16
        %v2725 = vrot.slane %v2723, 1
        %v2726 = vsel %vm880, %v2721, %v2725
        %v2727 = vshrl.u32 %v2482, 16
        %v2729 = vor.u32 %v2727, %v2717
        %v2731 = vshll.u32 %v2484, 16
        %v2733 = vrot.slane %v2731, 1
        %v2734 = vsel %vm880, %v2729, %v2733
        %v2735 = vshrl.u32 %v2483, 16
        %v2737 = vor.u32 %v2735, %v2725
        %v2739 = vshll.u32 %v2485, 16
        %v2741 = vrot.slane %v2739, 1
        %v2742 = vsel %vm880, %v2737, %v2741
        %v2743 = vshrl.u32 %v2484, 16
        %v2745 = vor.u32 %v2743, %v2733
        %v2747 = vshll.u32 %v2486, 16
        %v2749 = vrot.slane %v2747, 1
        %v2750 = vsel %vm880, %v2745, %v2749
        %v2817 = vunpack.c.l.b16 %v2304
        %v2818 = vunpack.c.h.b16 %v2304
        %v2819 = vunpack.c.l.b16 %v2305
        %v2820 = vunpack.c.l.b16 %v2306
        %v2821 = vunpack.c.h.b16 %v2306
        %v2822 = vunpack.c.l.b16 %v2307
        %v2823 = vunpack.c.l.b16 %v2308
        %v2824 = vunpack.c.h.b16 %v2308
        %v2825 = vunpack.c.l.b16 %v2309
        %v2826 = vunpack.c.l.b16 %v2310
        %v2827 = vunpack.c.h.b16 %v2310
        %v2828 = vunpack.c.l.b16 %v2311
        %v2829 = vunpack.c.l.b16 %v2312
        %v2830 = vunpack.c.h.b16 %v2312
        %v2831 = vunpack.c.l.b16 %v2313
        %v2832 = vunpack.c.l.b16 %v2314
        %v2833 = vunpack.c.h.b16 %v2314
        %v2834 = vunpack.c.l.b16 %v2315
        %v2835 = vunpack.c.l.b16 %v2316
        %v2836 = vunpack.c.h.b16 %v2316
        %v2837 = vunpack.c.l.b16 %v2317
        %v2838 = vunpack.c.l.b16 %v2318
        %v2839 = vunpack.c.h.b16 %v2318
        %v2840 = vunpack.c.l.b16 %v2319
        %v2841 = vunpack.c.l.b16 %v2320
        %v2842 = vunpack.c.h.b16 %v2320
        %v2843 = vunpack.c.l.b16 %v2321
        %v2844 = vunpack.c.l.b16 %v2322
        %v2845 = vunpack.c.h.b16 %v2322
        %v2846 = vunpack.c.l.b16 %v2323
        %v2847 = vunpack.c.l.b16 %v2324
        %v2848 = vunpack.c.h.b16 %v2324
        %v2849 = vunpack.c.l.b16 %v2325
        %v2850 = vunpack.c.l.b16 %v2326
        %v2851 = vunpack.c.h.b16 %v2326
        %v2852 = vunpack.c.l.b16 %v2327
        %v2853 = vunpack.c.l.b16 %v2328
        %v2854 = vunpack.c.h.b16 %v2328
        %v2855 = vunpack.c.l.b16 %v2329
        %v2856 = vunpack.c.l.b16 %v2330
        %v2857 = vunpack.c.h.b16 %v2330
        %v2858 = vunpack.c.l.b16 %v2331
        %v2859 = vunpack.c.l.b16 %v2332
        %v2860 = vunpack.c.h.b16 %v2332
        %v2861 = vunpack.c.l.b16 %v2333
        %v2862 = vunpack.c.l.b16 %v2334
        %v2863 = vunpack.c.h.b16 %v2334
        %v2864 = vunpack.c.l.b16 %v2335
        %v2865 = vunpack.c.l.b16 %v2336
        %v2866 = vunpack.c.h.b16 %v2336
        %v2867 = vunpack.c.l.b16 %v2337
        %v2868 = vunpack.c.l.b16 %v2338
        %v2869 = vunpack.c.h.b16 %v2338
        %v2870 = vunpack.c.l.b16 %v2339
        %v2871 = vunpack.c.l.b16 %v2340
        %v2872 = vunpack.c.h.b16 %v2340
        %v2873 = vunpack.c.l.b16 %v2341
        %v2874 = vunpack.c.l.b16 %v2342
        %v2875 = vunpack.c.h.b16 %v2342
        %v2876 = vunpack.c.l.b16 %v2343
        %v2877 = vunpack.c.l.b16 %v2344
        %v2878 = vunpack.c.h.b16 %v2344
        %v2879 = vunpack.c.l.b16 %v2345
        %v2880 = vunpack.c.l.b16 %v2346
        %v2881 = vunpack.c.h.b16 %v2346
        %v2882 = vunpack.c.l.b16 %v2347
        %v2883 = vunpack.c.l.b16 %v2348
        %v2884 = vunpack.c.h.b16 %v2348
        %v2885 = vunpack.c.l.b16 %v2349
        %v2886 = vunpack.c.l.b16 %v2350
        %v2887 = vunpack.c.h.b16 %v2350
        %v2888 = vunpack.c.l.b16 %v2351
        %v2889 = vunpack.c.l.b16 %v2352
        %v2890 = vunpack.c.h.b16 %v2352
        %v2891 = vunpack.c.l.b16 %v2353
        %v2892 = vpack.c.b16 %v2820, %v2817
        %v2893 = vpack.c.b16 %v2821, %v2818
        %v2894 = vpack.c.b16 %v2822, %v2819
        %v2895 = vpack.c.b16 %v2826, %v2823
        %v2896 = vpack.c.b16 %v2827, %v2824
        %v2897 = vpack.c.b16 %v2828, %v2825
        %v2898 = vpack.c.b16 %v2832, %v2829
        %v2899 = vpack.c.b16 %v2833, %v2830
        %v2900 = vpack.c.b16 %v2834, %v2831
        %v2901 = vpack.c.b16 %v2838, %v2835
        %v2902 = vpack.c.b16 %v2839, %v2836
        %v2903 = vpack.c.b16 %v2840, %v2837
        %v2904 = vpack.c.b16 %v2844, %v2841
        %v2905 = vpack.c.b16 %v2845, %v2842
        %v2906 = vpack.c.b16 %v2846, %v2843
        %v2907 = vpack.c.b16 %v2850, %v2847
        %v2908 = vpack.c.b16 %v2851, %v2848
        %v2909 = vpack.c.b16 %v2852, %v2849
        %v2910 = vpack.c.b16 %v2856, %v2853
        %v2911 = vpack.c.b16 %v2857, %v2854
        %v2912 = vpack.c.b16 %v2858, %v2855
        %v2913 = vpack.c.b16 %v2862, %v2859
        %v2914 = vpack.c.b16 %v2863, %v2860
        %v2915 = vpack.c.b16 %v2864, %v2861
        %v2916 = vpack.c.b16 %v2868, %v2865
        %v2917 = vpack.c.b16 %v2869, %v2866
        %v2918 = vpack.c.b16 %v2870, %v2867
        %v2919 = vpack.c.b16 %v2874, %v2871
        %v2920 = vpack.c.b16 %v2875, %v2872
        %v2921 = vpack.c.b16 %v2876, %v2873
        %v2922 = vpack.c.b16 %v2880, %v2877
        %v2923 = vpack.c.b16 %v2881, %v2878
        %v2924 = vpack.c.b16 %v2882, %v2879
        %v2925 = vpack.c.b16 %v2886, %v2883
        %v2926 = vpack.c.b16 %v2887, %v2884
        %v2927 = vpack.c.b16 %v2888, %v2885
        %v2928 = vpack.c.b16 %v2889, %v2889
        %v2929 = vpack.c.b16 %v2890, %v2890
        %v2930 = vpack.c.b16 %v2891, %v2891
        %vm2967 = vcmask 556032
        %v2969 = vsel %vm2967, %v2510, 0
        %v2972 = vsel %vm2967, %v2526, 0
        %v2975 = vsel %vm2967, %v2542, 0
        %v2978 = vsel %vm2967, %v2558, 0
        %v2981 = vsel %vm2967, %v2574, 0
        %v2984 = vsel %vm2967, %v2590, 0
        %v2987 = vsel %vm2967, %v2606, 0
        %v2990 = vsel %vm2967, %v2622, 0
        %v2993 = vsel %vm2967, %v2638, 0
        %v2996 = vsel %vm2967, %v2654, 0
        %v2999 = vsel %vm2967, %v2670, 0
        %v3002 = vsel %vm2967, %v2686, 0
        %v3005 = vsel %vm2967, %v2702, 0
        %v3008 = vsel %vm2967, %v2718, 0
        %v3011 = vsel %vm2967, %v2734, 0
        %v3014 = vsel %vm2967, %v2750, 0
        %vm3016 = vcmask 1041408
        %v3018 = vsel %vm3016, %v2928, 0
        %v3021 = vsel %vm3016, %v2929, 0
        %v3024 = vsel %vm3016, %v2930, 0
        %3026 = vmatprep.subr.bf16.mxu0 %v2893
        %3027 = vmatpush1.bf16.msra.mxu0 %v2892
        %3028 = vmatprep.subr.bf16.mxu0 %v2896
        %3029 = vmatpush1.bf16.msra.mxu0 %v2895
        %3030 = vmatprep.subr.bf16.mxu0 %v2899
        %3031 = vmatpush1.bf16.msra.mxu0 %v2898
        %3032 = vmatprep.subr.bf16.mxu0 %v2902
        %3033 = vmatpush1.bf16.msra.mxu0 %v2901
        %3034 = vmatprep.subr.bf16.mxu0 %v2905
        %3035 = vmatpush1.bf16.msra.mxu0 %v2904
        %3036 = vmatprep.subr.bf16.mxu0 %v2908
        %3037 = vmatpush1.bf16.msra.mxu0 %v2907
        %3038 = vmatprep.subr.bf16.mxu0 %v2911
        %3039 = vmatpush1.bf16.msra.mxu0 %v2910
        %3040 = vmatprep.subr.bf16.mxu0 %v2914
        %3041 = vmatpush1.bf16.msra.mxu0 %v2913
        %3042 = vmatprep.subr.bf16.mxu0 %v2917
        %3043 = vmatpush1.bf16.msra.mxu0 %v2916
        %3044 = vmatprep.subr.bf16.mxu0 %v2920
        %3045 = vmatpush1.bf16.msra.mxu0 %v2919
        %3046 = vmatprep.subr.bf16.mxu0 %v2923
        %3047 = vmatpush1.bf16.msra.mxu0 %v2922
        %3048 = vmatprep.subr.bf16.mxu0 %v2926
        %3049 = vmatpush1.bf16.msra.mxu0 %v2925
        %3050 = vmatprep.subr.bf16.mxu0 %v3021
        %3051 = vmatpush1.bf16.msra.mxu0 %v3018
        %3052 = vmatprep.subr.bf16.mxu0 0
        %3053 = vmatpush1.bf16.msra.mxu0 0
        %3054 = vmatprep.subr.bf16.mxu0 0
        %3055 = vmatpush1.bf16.msra.mxu0 0
        %3056 = vmatprep.subr.bf16.mxu0 0
        %3057 = vmatpush1.bf16.msra.mxu0 0
        %3058 = vmatprep.mubr.bf16.mxu0 %v2969
        %3059 = vmatmul.mubr.bf16.gmra.mrb[0].mxu0 %v2498
        %v3060 = vpop.f32.mrb[0].mxu0
        %v3061 = vadd.f32 0.0, %v3060
        %v3062 = vpop.f32.mrb[0].mxu0
        %v3063 = vadd.f32 0.0, %v3062
        %v3064 = vpop.f32.mrb[0].mxu0
        %v3065 = vadd.f32 0.0, %v3064
        %v3066 = vpop.f32.mrb[0].mxu0
        %v3067 = vadd.f32 0.0, %v3066
        %3068 = vmatprep.mubr.bf16.mxu0 %v2972
        %3069 = vmatmul.mubr.bf16.gmra.mrb[0].mxu0 %v2518
        %v3070 = vpop.f32.mrb[0].mxu0
        %v3071 = vadd.f32 0.0, %v3070
        %v3072 = vpop.f32.mrb[0].mxu0
        %v3073 = vadd.f32 0.0, %v3072
        %v3074 = vpop.f32.mrb[0].mxu0
        %v3075 = vadd.f32 0.0, %v3074
        %v3076 = vpop.f32.mrb[0].mxu0
        %v3077 = vadd.f32 0.0, %v3076
        %3078 = vmatprep.mubr.bf16.mxu0 %v2975
        %3079 = vmatmul.mubr.bf16.gmra.mrb[0].mxu0 %v2534
        %v3080 = vpop.f32.mrb[0].mxu0
        %v3081 = vadd.f32 0.0, %v3080
        %v3082 = vpop.f32.mrb[0].mxu0
        %v3083 = vadd.f32 0.0, %v3082
        %v3084 = vpop.f32.mrb[0].mxu0
        %v3085 = vadd.f32 0.0, %v3084
        %v3086 = vpop.f32.mrb[0].mxu0
        %v3087 = vadd.f32 0.0, %v3086
        %3088 = vmatprep.mubr.bf16.mxu0 %v2978
        %3089 = vmatmul.mubr.bf16.gmra.mrb[0].mxu0 %v2550
        %v3090 = vpop.f32.mrb[0].mxu0
        %v3091 = vadd.f32 0.0, %v3090
        %v3092 = vpop.f32.mrb[0].mxu0
        %v3093 = vadd.f32 0.0, %v3092
        %v3094 = vpop.f32.mrb[0].mxu0
        %v3095 = vadd.f32 0.0, %v3094
        %v3096 = vpop.f32.mrb[0].mxu0
        %v3097 = vadd.f32 0.0, %v3096
        %3098 = vmatprep.mubr.bf16.mxu0 %v2981
        %3099 = vmatmul.mubr.bf16.gmra.mrb[0].mxu0 %v2566
        %v3100 = vpop.f32.mrb[0].mxu0
        %v3101 = vadd.f32 0.0, %v3100
        %v3102 = vpop.f32.mrb[0].mxu0
        %v3103 = vadd.f32 0.0, %v3102
        %v3104 = vpop.f32.mrb[0].mxu0
        %v3105 = vadd.f32 0.0, %v3104
        %v3106 = vpop.f32.mrb[0].mxu0
        %v3107 = vadd.f32 0.0, %v3106
        %3108 = vmatprep.mubr.bf16.mxu0 %v2984
        %3109 = vmatmul.mubr.bf16.gmra.mrb[0].mxu0 %v2582
        %v3110 = vpop.f32.mrb[0].mxu0
        %v3111 = vadd.f32 0.0, %v3110
        %v3112 = vpop.f32.mrb[0].mxu0
        %v3113 = vadd.f32 0.0, %v3112
        %v3114 = vpop.f32.mrb[0].mxu0
        %v3115 = vadd.f32 0.0, %v3114
        %v3116 = vpop.f32.mrb[0].mxu0
        %v3117 = vadd.f32 0.0, %v3116
        %3118 = vmatprep.mubr.bf16.mxu0 %v2987
        %3119 = vmatmul.mubr.bf16.gmra.mrb[0].mxu0 %v2598
        %v3120 = vpop.f32.mrb[0].mxu0
        %v3121 = vadd.f32 0.0, %v3120
        %v3122 = vpop.f32.mrb[0].mxu0
        %v3123 = vadd.f32 0.0, %v3122
        %v3124 = vpop.f32.mrb[0].mxu0
        %v3125 = vadd.f32 0.0, %v3124
        %v3126 = vpop.f32.mrb[0].mxu0
        %v3127 = vadd.f32 0.0, %v3126
        %3128 = vmatprep.mubr.bf16.mxu0 %v2990
        %3129 = vmatmul.mubr.bf16.gmra.mrb[0].mxu0 %v2614
        %v3130 = vpop.f32.mrb[0].mxu0
        %v3131 = vadd.f32 0.0, %v3130
        %v3132 = vpop.f32.mrb[0].mxu0
        %v3133 = vadd.f32 0.0, %v3132
        %v3134 = vpop.f32.mrb[0].mxu0
        %v3135 = vadd.f32 0.0, %v3134
        %v3136 = vpop.f32.mrb[0].mxu0
        %v3137 = vadd.f32 0.0, %v3136
        %3138 = vmatprep.mubr.bf16.mxu0 %v2993
        %3139 = vmatmul.mubr.bf16.gmra.mrb[0].mxu0 %v2630
        %v3140 = vpop.f32.mrb[0].mxu0
        %v3141 = vadd.f32 0.0, %v3140
        %v3142 = vpop.f32.mrb[0].mxu0
        %v3143 = vadd.f32 0.0, %v3142
        %v3144 = vpop.f32.mrb[0].mxu0
        %v3145 = vadd.f32 0.0, %v3144
        %v3146 = vpop.f32.mrb[0].mxu0
        %v3147 = vadd.f32 0.0, %v3146
        %3148 = vmatprep.mubr.bf16.mxu0 %v2996
        %3149 = vmatmul.mubr.bf16.gmra.mrb[0].mxu0 %v2646
        %v3150 = vpop.f32.mrb[0].mxu0
        %v3151 = vadd.f32 0.0, %v3150
        %v3152 = vpop.f32.mrb[0].mxu0
        %v3153 = vadd.f32 0.0, %v3152
        %v3154 = vpop.f32.mrb[0].mxu0
        %v3155 = vadd.f32 0.0, %v3154
        %v3156 = vpop.f32.mrb[0].mxu0
        %v3157 = vadd.f32 0.0, %v3156
        %3158 = vmatprep.mubr.bf16.mxu0 %v2999
        %3159 = vmatmul.mubr.bf16.gmra.mrb[0].mxu0 %v2662
        %v3160 = vpop.f32.mrb[0].mxu0
        %v3161 = vadd.f32 0.0, %v3160
        %v3162 = vpop.f32.mrb[0].mxu0
        %v3163 = vadd.f32 0.0, %v3162
        %v3164 = vpop.f32.mrb[0].mxu0
        %v3165 = vadd.f32 0.0, %v3164
        %v3166 = vpop.f32.mrb[0].mxu0
        %v3167 = vadd.f32 0.0, %v3166
        %3168 = vmatprep.mubr.bf16.mxu0 %v3002
        %3169 = vmatmul.mubr.bf16.gmra.mrb[0].mxu0 %v2678
        %v3170 = vpop.f32.mrb[0].mxu0
        %v3171 = vadd.f32 0.0, %v3170
        %v3172 = vpop.f32.mrb[0].mxu0
        %v3173 = vadd.f32 0.0, %v3172
        %v3174 = vpop.f32.mrb[0].mxu0
        %v3175 = vadd.f32 0.0, %v3174
        %v3176 = vpop.f32.mrb[0].mxu0
        %v3177 = vadd.f32 0.0, %v3176
        %3178 = vmatprep.mubr.bf16.mxu0 %v3005
        %3179 = vmatmul.mubr.bf16.gmra.mrb[0].mxu0 %v2694
        %v3180 = vpop.f32.mrb[0].mxu0
        %v3181 = vadd.f32 0.0, %v3180
        %v3182 = vpop.f32.mrb[0].mxu0
        %v3183 = vadd.f32 0.0, %v3182
        %v3184 = vpop.f32.mrb[0].mxu0
        %v3185 = vadd.f32 0.0, %v3184
        %v3186 = vpop.f32.mrb[0].mxu0
        %v3187 = vadd.f32 0.0, %v3186
        %3188 = vmatprep.mubr.bf16.mxu0 %v3008
        %3189 = vmatmul.mubr.bf16.gmra.mrb[0].mxu0 %v2710
        %v3190 = vpop.f32.mrb[0].mxu0
        %v3191 = vadd.f32 0.0, %v3190
        %v3192 = vpop.f32.mrb[0].mxu0
        %v3193 = vadd.f32 0.0, %v3192
        %v3194 = vpop.f32.mrb[0].mxu0
        %v3195 = vadd.f32 0.0, %v3194
        %v3196 = vpop.f32.mrb[0].mxu0
        %v3197 = vadd.f32 0.0, %v3196
        %3198 = vmatprep.mubr.bf16.mxu0 %v3011
        %3199 = vmatmul.mubr.bf16.gmra.mrb[0].mxu0 %v2726
        %v3200 = vpop.f32.mrb[0].mxu0
        %v3201 = vadd.f32 0.0, %v3200
        %v3202 = vpop.f32.mrb[0].mxu0
        %v3203 = vadd.f32 0.0, %v3202
        %v3204 = vpop.f32.mrb[0].mxu0
        %v3205 = vadd.f32 0.0, %v3204
        %v3206 = vpop.f32.mrb[0].mxu0
        %v3207 = vadd.f32 0.0, %v3206
        %3208 = vmatprep.mubr.bf16.mxu0 %v3014
        %3209 = vmatmul.mubr.bf16.gmra.mrb[0].mxu0 %v2742
        %v3210 = vpop.f32.mrb[0].mxu0
        %v3211 = vadd.f32 0.0, %v3210
        %v3212 = vpop.f32.mrb[0].mxu0
        %v3213 = vadd.f32 0.0, %v3212
        %v3214 = vpop.f32.mrb[0].mxu0
        %v3215 = vadd.f32 0.0, %v3214
        %v3216 = vpop.f32.mrb[0].mxu0
        %v3217 = vadd.f32 0.0, %v3216
        %3218 = vdwg.mxu0
        %3219 = vmatprep.subr.bf16.mxu0 0
        %3220 = vmatpush1.bf16.msra.mxu0 %v2894
        %3221 = vmatprep.subr.bf16.mxu0 0
        %3222 = vmatpush1.bf16.msra.mxu0 %v2897
        %3223 = vmatprep.subr.bf16.mxu0 0
        %3224 = vmatpush1.bf16.msra.mxu0 %v2900
        %3225 = vmatprep.subr.bf16.mxu0 0
        %3226 = vmatpush1.bf16.msra.mxu0 %v2903
        %3227 = vmatprep.subr.bf16.mxu0 0
        %3228 = vmatpush1.bf16.msra.mxu0 %v2906
        %3229 = vmatprep.subr.bf16.mxu0 0
        %3230 = vmatpush1.bf16.msra.mxu0 %v2909
        %3231 = vmatprep.subr.bf16.mxu0 0
        %3232 = vmatpush1.bf16.msra.mxu0 %v2912
        %3233 = vmatprep.subr.bf16.mxu0 0
        %3234 = vmatpush1.bf16.msra.mxu0 %v2915
        %3235 = vmatprep.subr.bf16.mxu0 0
        %3236 = vmatpush1.bf16.msra.mxu0 %v2918
        %3237 = vmatprep.subr.bf16.mxu0 0
        %3238 = vmatpush1.bf16.msra.mxu0 %v2921
        %3239 = vmatprep.subr.bf16.mxu0 0
        %3240 = vmatpush1.bf16.msra.mxu0 %v2924
        %3241 = vmatprep.subr.bf16.mxu0 0
        %3242 = vmatpush1.bf16.msra.mxu0 %v2927
        %3243 = vmatprep.subr.bf16.mxu0 0
        %3244 = vmatpush1.bf16.msra.mxu0 %v3024
        %3245 = vmatprep.subr.bf16.mxu0 0
        %3246 = vmatpush1.bf16.msra.mxu0 0
        %3247 = vmatprep.subr.bf16.mxu0 0
        %3248 = vmatpush1.bf16.msra.mxu0 0
        %3249 = vmatprep.subr.bf16.mxu0 0
        %3250 = vmatpush1.bf16.msra.mxu0 0
        %3251 = vmatprep.mubr.bf16.mxu0 %v2969
        %3252 = vmatmul.mubr.bf16.gmra.mrb[0].mxu0 %v2498
        %v3253 = vpop.f32.mrb[0].mxu0
        %v3254 = vadd.f32 0.0, %v3253
        %v3255 = vpop.f32.mrb[0].mxu0
        %v3256 = vpop.f32.mrb[0].mxu0
        %v3257 = vadd.f32 0.0, %v3256
        %v3258 = vpop.f32.mrb[0].mxu0
        %3259 = vmatprep.mubr.bf16.mxu0 %v2972
        %3260 = vmatmul.mubr.bf16.gmra.mrb[0].mxu0 %v2518
        %v3261 = vpop.f32.mrb[0].mxu0
        %v3262 = vadd.f32 0.0, %v3261
        %v3263 = vpop.f32.mrb[0].mxu0
        %v3264 = vpop.f32.mrb[0].mxu0
        %v3265 = vadd.f32 0.0, %v3264
        %v3266 = vpop.f32.mrb[0].mxu0
        %3267 = vmatprep.mubr.bf16.mxu0 %v2975
        %3268 = vmatmul.mubr.bf16.gmra.mrb[0].mxu0 %v2534
        %v3269 = vpop.f32.mrb[0].mxu0
        %v3270 = vadd.f32 0.0, %v3269
        %v3271 = vpop.f32.mrb[0].mxu0
        %v3272 = vpop.f32.mrb[0].mxu0
        %v3273 = vadd.f32 0.0, %v3272
        %v3274 = vpop.f32.mrb[0].mxu0
        %3275 = vmatprep.mubr.bf16.mxu0 %v2978
        %3276 = vmatmul.mubr.bf16.gmra.mrb[0].mxu0 %v2550
        %v3277 = vpop.f32.mrb[0].mxu0
        %v3278 = vadd.f32 0.0, %v3277
        %v3279 = vpop.f32.mrb[0].mxu0
        %v3280 = vpop.f32.mrb[0].mxu0
        %v3281 = vadd.f32 0.0, %v3280
        %v3282 = vpop.f32.mrb[0].mxu0
        %3283 = vmatprep.mubr.bf16.mxu0 %v2981
        %3284 = vmatmul.mubr.bf16.gmra.mrb[0].mxu0 %v2566
        %v3285 = vpop.f32.mrb[0].mxu0
        %v3286 = vadd.f32 0.0, %v3285
        %v3287 = vpop.f32.mrb[0].mxu0
        %v3288 = vpop.f32.mrb[0].mxu0
        %v3289 = vadd.f32 0.0, %v3288
        %v3290 = vpop.f32.mrb[0].mxu0
        %3291 = vmatprep.mubr.bf16.mxu0 %v2984
        %3292 = vmatmul.mubr.bf16.gmra.mrb[0].mxu0 %v2582
        %v3293 = vpop.f32.mrb[0].mxu0
        %v3294 = vadd.f32 0.0, %v3293
        %v3295 = vpop.f32.mrb[0].mxu0
        %v3296 = vpop.f32.mrb[0].mxu0
        %v3297 = vadd.f32 0.0, %v3296
        %v3298 = vpop.f32.mrb[0].mxu0
        %3299 = vmatprep.mubr.bf16.mxu0 %v2987
        %3300 = vmatmul.mubr.bf16.gmra.mrb[0].mxu0 %v2598
        %v3301 = vpop.f32.mrb[0].mxu0
        %v3302 = vadd.f32 0.0, %v3301
        %v3303 = vpop.f32.mrb[0].mxu0
        %v3304 = vpop.f32.mrb[0].mxu0
        %v3305 = vadd.f32 0.0, %v3304
        %v3306 = vpop.f32.mrb[0].mxu0
        %3307 = vmatprep.mubr.bf16.mxu0 %v2990
        %3308 = vmatmul.mubr.bf16.gmra.mrb[0].mxu0 %v2614
        %v3309 = vpop.f32.mrb[0].mxu0
        %v3310 = vadd.f32 0.0, %v3309
        %v3311 = vpop.f32.mrb[0].mxu0
        %v3312 = vpop.f32.mrb[0].mxu0
        %v3313 = vadd.f32 0.0, %v3312
        %v3314 = vpop.f32.mrb[0].mxu0
        %3315 = vmatprep.mubr.bf16.mxu0 %v2993
        %3316 = vmatmul.mubr.bf16.gmra.mrb[0].mxu0 %v2630
        %v3317 = vpop.f32.mrb[0].mxu0
        %v3318 = vadd.f32 0.0, %v3317
        %v3319 = vpop.f32.mrb[0].mxu0
        %v3320 = vpop.f32.mrb[0].mxu0
        %v3321 = vadd.f32 0.0, %v3320
        %v3322 = vpop.f32.mrb[0].mxu0
        %3323 = vmatprep.mubr.bf16.mxu0 %v2996
        %3324 = vmatmul.mubr.bf16.gmra.mrb[0].mxu0 %v2646
        %v3325 = vpop.f32.mrb[0].mxu0
        %v3326 = vadd.f32 0.0, %v3325
        %v3327 = vpop.f32.mrb[0].mxu0
        %v3328 = vpop.f32.mrb[0].mxu0
        %v3329 = vadd.f32 0.0, %v3328
        %v3330 = vpop.f32.mrb[0].mxu0
        %3331 = vmatprep.mubr.bf16.mxu0 %v2999
        %3332 = vmatmul.mubr.bf16.gmra.mrb[0].mxu0 %v2662
        %v3333 = vpop.f32.mrb[0].mxu0
        %v3334 = vadd.f32 0.0, %v3333
        %v3335 = vpop.f32.mrb[0].mxu0
        %v3336 = vpop.f32.mrb[0].mxu0
        %v3337 = vadd.f32 0.0, %v3336
        %v3338 = vpop.f32.mrb[0].mxu0
        %3339 = vmatprep.mubr.bf16.mxu0 %v3002
        %3340 = vmatmul.mubr.bf16.gmra.mrb[0].mxu0 %v2678
        %v3341 = vpop.f32.mrb[0].mxu0
        %v3342 = vadd.f32 0.0, %v3341
        %v3343 = vpop.f32.mrb[0].mxu0
        %v3344 = vpop.f32.mrb[0].mxu0
        %v3345 = vadd.f32 0.0, %v3344
        %v3346 = vpop.f32.mrb[0].mxu0
        %3347 = vmatprep.mubr.bf16.mxu0 %v3005
        %3348 = vmatmul.mubr.bf16.gmra.mrb[0].mxu0 %v2694
        %v3349 = vpop.f32.mrb[0].mxu0
        %v3350 = vadd.f32 0.0, %v3349
        %v3351 = vpop.f32.mrb[0].mxu0
        %v3352 = vpop.f32.mrb[0].mxu0
        %v3353 = vadd.f32 0.0, %v3352
        %v3354 = vpop.f32.mrb[0].mxu0
        %3355 = vmatprep.mubr.bf16.mxu0 %v3008
        %3356 = vmatmul.mubr.bf16.gmra.mrb[0].mxu0 %v2710
        %v3357 = vpop.f32.mrb[0].mxu0
        %v3358 = vadd.f32 0.0, %v3357
        %v3359 = vpop.f32.mrb[0].mxu0
        %v3360 = vpop.f32.mrb[0].mxu0
        %v3361 = vadd.f32 0.0, %v3360
        %v3362 = vpop.f32.mrb[0].mxu0
        %3363 = vmatprep.mubr.bf16.mxu0 %v3011
        %3364 = vmatmul.mubr.bf16.gmra.mrb[0].mxu0 %v2726
        %v3365 = vpop.f32.mrb[0].mxu0
        %v3366 = vadd.f32 0.0, %v3365
        %v3367 = vpop.f32.mrb[0].mxu0
        %v3368 = vpop.f32.mrb[0].mxu0
        %v3369 = vadd.f32 0.0, %v3368
        %v3370 = vpop.f32.mrb[0].mxu0
        %3371 = vmatprep.mubr.bf16.mxu0 %v3014
        %3372 = vmatmul.mubr.bf16.gmra.mrb[0].mxu0 %v2742
        %v3373 = vpop.f32.mrb[0].mxu0
        %v3374 = vadd.f32 0.0, %v3373
        %v3375 = vpop.f32.mrb[0].mxu0
        %v3376 = vpop.f32.mrb[0].mxu0
        %v3377 = vadd.f32 0.0, %v3376
        %v3378 = vpop.f32.mrb[0].mxu0
        %3379 = vdwg.mxu0
        %v3446 = vunpack.c.l.b16 %v2252
        %v3447 = vunpack.c.h.b16 %v2252
        %v3448 = vunpack.c.l.b16 %v2253
        %v3449 = vunpack.c.l.b16 %v2254
        %v3450 = vunpack.c.h.b16 %v2254
        %v3451 = vunpack.c.l.b16 %v2255
        %v3452 = vunpack.c.l.b16 %v2256
        %v3453 = vunpack.c.h.b16 %v2256
        %v3454 = vunpack.c.l.b16 %v2257
        %v3455 = vunpack.c.l.b16 %v2258
        %v3456 = vunpack.c.h.b16 %v2258
        %v3457 = vunpack.c.l.b16 %v2259
        %v3458 = vunpack.c.l.b16 %v2260
        %v3459 = vunpack.c.h.b16 %v2260
        %v3460 = vunpack.c.l.b16 %v2261
        %v3461 = vunpack.c.l.b16 %v2262
        %v3462 = vunpack.c.h.b16 %v2262
        %v3463 = vunpack.c.l.b16 %v2263
        %v3464 = vunpack.c.l.b16 %v2264
        %v3465 = vunpack.c.h.b16 %v2264
        %v3466 = vunpack.c.l.b16 %v2265
        %v3467 = vunpack.c.l.b16 %v2266
        %v3468 = vunpack.c.h.b16 %v2266
        %v3469 = vunpack.c.l.b16 %v2267
        %v3470 = vunpack.c.l.b16 %v2268
        %v3471 = vunpack.c.h.b16 %v2268
        %v3472 = vunpack.c.l.b16 %v2269
        %v3473 = vunpack.c.l.b16 %v2270
        %v3474 = vunpack.c.h.b16 %v2270
        %v3475 = vunpack.c.l.b16 %v2271
        %v3476 = vunpack.c.l.b16 %v2272
        %v3477 = vunpack.c.h.b16 %v2272
        %v3478 = vunpack.c.l.b16 %v2273
        %v3479 = vunpack.c.l.b16 %v2274
        %v3480 = vunpack.c.h.b16 %v2274
        %v3481 = vunpack.c.l.b16 %v2275
        %v3482 = vunpack.c.l.b16 %v2276
        %v3483 = vunpack.c.h.b16 %v2276
        %v3484 = vunpack.c.l.b16 %v2277
        %v3485 = vunpack.c.l.b16 %v2278
        %v3486 = vunpack.c.h.b16 %v2278
        %v3487 = vunpack.c.l.b16 %v2279
        %v3488 = vunpack.c.l.b16 %v2280
        %v3489 = vunpack.c.h.b16 %v2280
        %v3490 = vunpack.c.l.b16 %v2281
        %v3491 = vunpack.c.l.b16 %v2282
        %v3492 = vunpack.c.h.b16 %v2282
        %v3493 = vunpack.c.l.b16 %v2283
        %v3494 = vunpack.c.l.b16 %v2284
        %v3495 = vunpack.c.h.b16 %v2284
        %v3496 = vunpack.c.l.b16 %v2285
        %v3497 = vunpack.c.l.b16 %v2286
        %v3498 = vunpack.c.h.b16 %v2286
        %v3499 = vunpack.c.l.b16 %v2287
        %v3500 = vunpack.c.l.b16 %v2288
        %v3501 = vunpack.c.h.b16 %v2288
        %v3502 = vunpack.c.l.b16 %v2289
        %v3503 = vunpack.c.l.b16 %v2290
        %v3504 = vunpack.c.h.b16 %v2290
        %v3505 = vunpack.c.l.b16 %v2291
        %v3506 = vunpack.c.l.b16 %v2292
        %v3507 = vunpack.c.h.b16 %v2292
        %v3508 = vunpack.c.l.b16 %v2293
        %v3509 = vunpack.c.l.b16 %v2294
        %v3510 = vunpack.c.h.b16 %v2294
        %v3511 = vunpack.c.l.b16 %v2295
        %v3512 = vunpack.c.l.b16 %v2296
        %v3513 = vunpack.c.h.b16 %v2296
        %v3514 = vunpack.c.l.b16 %v2297
        %v3515 = vunpack.c.l.b16 %v2298
        %v3516 = vunpack.c.h.b16 %v2298
        %v3517 = vunpack.c.l.b16 %v2299
        %v3518 = vunpack.c.l.b16 %v2300
        %v3519 = vunpack.c.h.b16 %v2300
        %v3520 = vunpack.c.l.b16 %v2301
        %v3521 = vpack.c.b16 %v3449, %v3446
        %v3522 = vpack.c.b16 %v3450, %v3447
        %v3523 = vpack.c.b16 %v3451, %v3448
        %v3524 = vpack.c.b16 %v3455, %v3452
        %v3525 = vpack.c.b16 %v3456, %v3453
        %v3526 = vpack.c.b16 %v3457, %v3454
        %v3527 = vpack.c.b16 %v3461, %v3458
        %v3528 = vpack.c.b16 %v3462, %v3459
        %v3529 = vpack.c.b16 %v3463, %v3460
        %v3530 = vpack.c.b16 %v3467, %v3464
        %v3531 = vpack.c.b16 %v3468, %v3465
        %v3532 = vpack.c.b16 %v3469, %v3466
        %v3533 = vpack.c.b16 %v3473, %v3470
        %v3534 = vpack.c.b16 %v3474, %v3471
        %v3535 = vpack.c.b16 %v3475, %v3472
        %v3536 = vpack.c.b16 %v3479, %v3476
        %v3537 = vpack.c.b16 %v3480, %v3477
        %v3538 = vpack.c.b16 %v3481, %v3478
        %v3539 = vpack.c.b16 %v3485, %v3482
        %v3540 = vpack.c.b16 %v3486, %v3483
        %v3541 = vpack.c.b16 %v3487, %v3484
        %v3542 = vpack.c.b16 %v3491, %v3488
        %v3543 = vpack.c.b16 %v3492, %v3489
        %v3544 = vpack.c.b16 %v3493, %v3490
        %v3545 = vpack.c.b16 %v3497, %v3494
        %v3546 = vpack.c.b16 %v3498, %v3495
        %v3547 = vpack.c.b16 %v3499, %v3496
        %v3548 = vpack.c.b16 %v3503, %v3500
        %v3549 = vpack.c.b16 %v3504, %v3501
        %v3550 = vpack.c.b16 %v3505, %v3502
        %v3551 = vpack.c.b16 %v3509, %v3506
        %v3552 = vpack.c.b16 %v3510, %v3507
        %v3553 = vpack.c.b16 %v3511, %v3508
        %v3554 = vpack.c.b16 %v3515, %v3512
        %v3555 = vpack.c.b16 %v3516, %v3513
        %v3556 = vpack.c.b16 %v3517, %v3514
        %v3557 = vpack.c.b16 %v3518, %v3518
        %v3558 = vpack.c.b16 %v3519, %v3519
        %v3559 = vpack.c.b16 %v3520, %v3520
        %v3596 = vsel %vm2967, %v2454, 0
        %v3598 = vsel %vm2967, %v2456, 0
        %v3600 = vsel %vm2967, %v2458, 0
        %v3602 = vsel %vm2967, %v2460, 0
        %v3604 = vsel %vm2967, %v2462, 0
        %v3606 = vsel %vm2967, %v2464, 0
        %v3608 = vsel %vm2967, %v2466, 0
        %v3610 = vsel %vm2967, %v2468, 0
        %v3612 = vsel %vm2967, %v2470, 0
        %v3614 = vsel %vm2967, %v2472, 0
        %v3616 = vsel %vm2967, %v2474, 0
        %v3618 = vsel %vm2967, %v2476, 0
        %v3620 = vsel %vm2967, %v2478, 0
        %v3622 = vsel %vm2967, %v2480, 0
        %v3624 = vsel %vm2967, %v2482, 0
        %v3626 = vsel %vm2967, %v2484, 0
        %v3629 = vsel %vm3016, %v3557, 0
        %v3632 = vsel %vm3016, %v3558, 0
        %v3635 = vsel %vm3016, %v3559, 0
        %3637 = vmatprep.subr.bf16.mxu0 %v3522
        %3638 = vmatpush1.bf16.msra.mxu0 %v3521
        %3639 = vmatprep.subr.bf16.mxu0 %v3525
        %3640 = vmatpush1.bf16.msra.mxu0 %v3524
        %3641 = vmatprep.subr.bf16.mxu0 %v3528
        %3642 = vmatpush1.bf16.msra.mxu0 %v3527
        %3643 = vmatprep.subr.bf16.mxu0 %v3531
        %3644 = vmatpush1.bf16.msra.mxu0 %v3530
        %3645 = vmatprep.subr.bf16.mxu0 %v3534
        %3646 = vmatpush1.bf16.msra.mxu0 %v3533
        %3647 = vmatprep.subr.bf16.mxu0 %v3537
        %3648 = vmatpush1.bf16.msra.mxu0 %v3536
        %3649 = vmatprep.subr.bf16.mxu0 %v3540
        %3650 = vmatpush1.bf16.msra.mxu0 %v3539
        %3651 = vmatprep.subr.bf16.mxu0 %v3543
        %3652 = vmatpush1.bf16.msra.mxu0 %v3542
        %3653 = vmatprep.subr.bf16.mxu0 %v3546
        %3654 = vmatpush1.bf16.msra.mxu0 %v3545
        %3655 = vmatprep.subr.bf16.mxu0 %v3549
        %3656 = vmatpush1.bf16.msra.mxu0 %v3548
        %3657 = vmatprep.subr.bf16.mxu0 %v3552
        %3658 = vmatpush1.bf16.msra.mxu0 %v3551
        %3659 = vmatprep.subr.bf16.mxu0 %v3555
        %3660 = vmatpush1.bf16.msra.mxu0 %v3554
        %3661 = vmatprep.subr.bf16.mxu0 %v3632
        %3662 = vmatpush1.bf16.msra.mxu0 %v3629
        %3663 = vmatprep.subr.bf16.mxu0 0
        %3664 = vmatpush1.bf16.msra.mxu0 0
        %3665 = vmatprep.subr.bf16.mxu0 0
        %3666 = vmatpush1.bf16.msra.mxu0 0
        %3667 = vmatprep.subr.bf16.mxu0 0
        %3668 = vmatpush1.bf16.msra.mxu0 0
        %3669 = vmatprep.mubr.bf16.mxu0 %v3596
        %3670 = vmatmul.mubr.bf16.gmra.mrb[0].mxu0 %v2453
        %v3671 = vpop.f32.mrb[0].mxu0
        %v3672 = vadd.f32 %v3061, %v3671
        %v3673 = vpop.f32.mrb[0].mxu0
        %v3674 = vadd.f32 %v3063, %v3673
        %v3675 = vpop.f32.mrb[0].mxu0
        %v3676 = vadd.f32 %v3065, %v3675
        %v3677 = vpop.f32.mrb[0].mxu0
        %v3678 = vadd.f32 %v3067, %v3677
        %3679 = vmatprep.mubr.bf16.mxu0 %v3598
        %3680 = vmatmul.mubr.bf16.gmra.mrb[0].mxu0 %v2455
        %v3681 = vpop.f32.mrb[0].mxu0
        %v3682 = vadd.f32 %v3071, %v3681
        %v3683 = vpop.f32.mrb[0].mxu0
        %v3684 = vadd.f32 %v3073, %v3683
        %v3685 = vpop.f32.mrb[0].mxu0
        %v3686 = vadd.f32 %v3075, %v3685
        %v3687 = vpop.f32.mrb[0].mxu0
        %v3688 = vadd.f32 %v3077, %v3687
        %3689 = vmatprep.mubr.bf16.mxu0 %v3600
        %3690 = vmatmul.mubr.bf16.gmra.mrb[0].mxu0 %v2457
        %v3691 = vpop.f32.mrb[0].mxu0
        %v3692 = vadd.f32 %v3081, %v3691
        %v3693 = vpop.f32.mrb[0].mxu0
        %v3694 = vadd.f32 %v3083, %v3693
        %v3695 = vpop.f32.mrb[0].mxu0
        %v3696 = vadd.f32 %v3085, %v3695
        %v3697 = vpop.f32.mrb[0].mxu0
        %v3698 = vadd.f32 %v3087, %v3697
        %3699 = vmatprep.mubr.bf16.mxu0 %v3602
        %3700 = vmatmul.mubr.bf16.gmra.mrb[0].mxu0 %v2459
        %v3701 = vpop.f32.mrb[0].mxu0
        %v3702 = vadd.f32 %v3091, %v3701
        %v3703 = vpop.f32.mrb[0].mxu0
        %v3704 = vadd.f32 %v3093, %v3703
        %v3705 = vpop.f32.mrb[0].mxu0
        %v3706 = vadd.f32 %v3095, %v3705
        %v3707 = vpop.f32.mrb[0].mxu0
        %v3708 = vadd.f32 %v3097, %v3707
        %3709 = vmatprep.mubr.bf16.mxu0 %v3604
        %3710 = vmatmul.mubr.bf16.gmra.mrb[0].mxu0 %v2461
        %v3711 = vpop.f32.mrb[0].mxu0
        %v3712 = vadd.f32 %v3101, %v3711
        %v3713 = vpop.f32.mrb[0].mxu0
        %v3714 = vadd.f32 %v3103, %v3713
        %v3715 = vpop.f32.mrb[0].mxu0
        %v3716 = vadd.f32 %v3105, %v3715
        %v3717 = vpop.f32.mrb[0].mxu0
        %v3718 = vadd.f32 %v3107, %v3717
        %3719 = vmatprep.mubr.bf16.mxu0 %v3606
        %3720 = vmatmul.mubr.bf16.gmra.mrb[0].mxu0 %v2463
        %v3721 = vpop.f32.mrb[0].mxu0
        %v3722 = vadd.f32 %v3111, %v3721
        %v3723 = vpop.f32.mrb[0].mxu0
        %v3724 = vadd.f32 %v3113, %v3723
        %v3725 = vpop.f32.mrb[0].mxu0
        %v3726 = vadd.f32 %v3115, %v3725
        %v3727 = vpop.f32.mrb[0].mxu0
        %v3728 = vadd.f32 %v3117, %v3727
        %3729 = vmatprep.mubr.bf16.mxu0 %v3608
        %3730 = vmatmul.mubr.bf16.gmra.mrb[0].mxu0 %v2465
        %v3731 = vpop.f32.mrb[0].mxu0
        %v3732 = vadd.f32 %v3121, %v3731
        %v3733 = vpop.f32.mrb[0].mxu0
        %v3734 = vadd.f32 %v3123, %v3733
        %v3735 = vpop.f32.mrb[0].mxu0
        %v3736 = vadd.f32 %v3125, %v3735
        %v3737 = vpop.f32.mrb[0].mxu0
        %v3738 = vadd.f32 %v3127, %v3737
        %3739 = vmatprep.mubr.bf16.mxu0 %v3610
        %3740 = vmatmul.mubr.bf16.gmra.mrb[0].mxu0 %v2467
        %v3741 = vpop.f32.mrb[0].mxu0
        %v3742 = vadd.f32 %v3131, %v3741
        %v3743 = vpop.f32.mrb[0].mxu0
        %v3744 = vadd.f32 %v3133, %v3743
        %v3745 = vpop.f32.mrb[0].mxu0
        %v3746 = vadd.f32 %v3135, %v3745
        %v3747 = vpop.f32.mrb[0].mxu0
        %v3748 = vadd.f32 %v3137, %v3747
        %3749 = vmatprep.mubr.bf16.mxu0 %v3612
        %3750 = vmatmul.mubr.bf16.gmra.mrb[0].mxu0 %v2469
        %v3751 = vpop.f32.mrb[0].mxu0
        %v3752 = vadd.f32 %v3141, %v3751
        %v3753 = vpop.f32.mrb[0].mxu0
        %v3754 = vadd.f32 %v3143, %v3753
        %v3755 = vpop.f32.mrb[0].mxu0
        %v3756 = vadd.f32 %v3145, %v3755
        %v3757 = vpop.f32.mrb[0].mxu0
        %v3758 = vadd.f32 %v3147, %v3757
        %3759 = vmatprep.mubr.bf16.mxu0 %v3614
        %3760 = vmatmul.mubr.bf16.gmra.mrb[0].mxu0 %v2471
        %v3761 = vpop.f32.mrb[0].mxu0
        %v3762 = vadd.f32 %v3151, %v3761
        %v3763 = vpop.f32.mrb[0].mxu0
        %v3764 = vadd.f32 %v3153, %v3763
        %v3765 = vpop.f32.mrb[0].mxu0
        %v3766 = vadd.f32 %v3155, %v3765
        %v3767 = vpop.f32.mrb[0].mxu0
        %v3768 = vadd.f32 %v3157, %v3767
        %3769 = vmatprep.mubr.bf16.mxu0 %v3616
        %3770 = vmatmul.mubr.bf16.gmra.mrb[0].mxu0 %v2473
        %v3771 = vpop.f32.mrb[0].mxu0
        %v3772 = vadd.f32 %v3161, %v3771
        %v3773 = vpop.f32.mrb[0].mxu0
        %v3774 = vadd.f32 %v3163, %v3773
        %v3775 = vpop.f32.mrb[0].mxu0
        %v3776 = vadd.f32 %v3165, %v3775
        %v3777 = vpop.f32.mrb[0].mxu0
        %v3778 = vadd.f32 %v3167, %v3777
        %3779 = vmatprep.mubr.bf16.mxu0 %v3618
        %3780 = vmatmul.mubr.bf16.gmra.mrb[0].mxu0 %v2475
        %v3781 = vpop.f32.mrb[0].mxu0
        %v3782 = vadd.f32 %v3171, %v3781
        %v3783 = vpop.f32.mrb[0].mxu0
        %v3784 = vadd.f32 %v3173, %v3783
        %v3785 = vpop.f32.mrb[0].mxu0
        %v3786 = vadd.f32 %v3175, %v3785
        %v3787 = vpop.f32.mrb[0].mxu0
        %v3788 = vadd.f32 %v3177, %v3787
        %3789 = vmatprep.mubr.bf16.mxu0 %v3620
        %3790 = vmatmul.mubr.bf16.gmra.mrb[0].mxu0 %v2477
        %v3791 = vpop.f32.mrb[0].mxu0
        %v3792 = vadd.f32 %v3181, %v3791
        %v3793 = vpop.f32.mrb[0].mxu0
        %v3794 = vadd.f32 %v3183, %v3793
        %v3795 = vpop.f32.mrb[0].mxu0
        %v3796 = vadd.f32 %v3185, %v3795
        %v3797 = vpop.f32.mrb[0].mxu0
        %v3798 = vadd.f32 %v3187, %v3797
        %3799 = vmatprep.mubr.bf16.mxu0 %v3622
        %3800 = vmatmul.mubr.bf16.gmra.mrb[0].mxu0 %v2479
        %v3801 = vpop.f32.mrb[0].mxu0
        %v3802 = vadd.f32 %v3191, %v3801
        %v3803 = vpop.f32.mrb[0].mxu0
        %v3804 = vadd.f32 %v3193, %v3803
        %v3805 = vpop.f32.mrb[0].mxu0
        %v3806 = vadd.f32 %v3195, %v3805
        %v3807 = vpop.f32.mrb[0].mxu0
        %v3808 = vadd.f32 %v3197, %v3807
        %3809 = vmatprep.mubr.bf16.mxu0 %v3624
        %3810 = vmatmul.mubr.bf16.gmra.mrb[0].mxu0 %v2481
        %v3811 = vpop.f32.mrb[0].mxu0
        %v3812 = vadd.f32 %v3201, %v3811
        %v3813 = vpop.f32.mrb[0].mxu0
        %v3814 = vadd.f32 %v3203, %v3813
        %v3815 = vpop.f32.mrb[0].mxu0
        %v3816 = vadd.f32 %v3205, %v3815
        %v3817 = vpop.f32.mrb[0].mxu0
        %v3818 = vadd.f32 %v3207, %v3817
        %3819 = vmatprep.mubr.bf16.mxu0 %v3626
        %3820 = vmatmul.mubr.bf16.gmra.mrb[0].mxu0 %v2483
        %v3821 = vpop.f32.mrb[0].mxu0
        %v3822 = vadd.f32 %v3211, %v3821
        %v3823 = vpop.f32.mrb[0].mxu0
        %v3824 = vadd.f32 %v3213, %v3823
        %v3825 = vpop.f32.mrb[0].mxu0
        %v3826 = vadd.f32 %v3215, %v3825
        %v3827 = vpop.f32.mrb[0].mxu0
        %v3828 = vadd.f32 %v3217, %v3827
        %3829 = vdwg.mxu0
        %3830 = vmatprep.subr.bf16.mxu0 0
        %3831 = vmatpush1.bf16.msra.mxu0 %v3523
        %3832 = vmatprep.subr.bf16.mxu0 0
        %3833 = vmatpush1.bf16.msra.mxu0 %v3526
        %3834 = vmatprep.subr.bf16.mxu0 0
        %3835 = vmatpush1.bf16.msra.mxu0 %v3529
        %3836 = vmatprep.subr.bf16.mxu0 0
        %3837 = vmatpush1.bf16.msra.mxu0 %v3532
        %3838 = vmatprep.subr.bf16.mxu0 0
        %3839 = vmatpush1.bf16.msra.mxu0 %v3535
        %3840 = vmatprep.subr.bf16.mxu0 0
        %3841 = vmatpush1.bf16.msra.mxu0 %v3538
        %3842 = vmatprep.subr.bf16.mxu0 0
        %3843 = vmatpush1.bf16.msra.mxu0 %v3541
        %3844 = vmatprep.subr.bf16.mxu0 0
        %3845 = vmatpush1.bf16.msra.mxu0 %v3544
        %3846 = vmatprep.subr.bf16.mxu0 0
        %3847 = vmatpush1.bf16.msra.mxu0 %v3547
        %3848 = vmatprep.subr.bf16.mxu0 0
        %3849 = vmatpush1.bf16.msra.mxu0 %v3550
        %3850 = vmatprep.subr.bf16.mxu0 0
        %3851 = vmatpush1.bf16.msra.mxu0 %v3553
        %3852 = vmatprep.subr.bf16.mxu0 0
        %3853 = vmatpush1.bf16.msra.mxu0 %v3556
        %3854 = vmatprep.subr.bf16.mxu0 0
        %3855 = vmatpush1.bf16.msra.mxu0 %v3635
        %3856 = vmatprep.subr.bf16.mxu0 0
        %3857 = vmatpush1.bf16.msra.mxu0 0
        %3858 = vmatprep.subr.bf16.mxu0 0
        %3859 = vmatpush1.bf16.msra.mxu0 0
        %3860 = vmatprep.subr.bf16.mxu0 0
        %3861 = vmatpush1.bf16.msra.mxu0 0
        %3862 = vmatprep.mubr.bf16.mxu0 %v3596
        %3863 = vmatmul.mubr.bf16.gmra.mrb[0].mxu0 %v2453
        %v3864 = vpop.f32.mrb[0].mxu0
        %v3865 = vadd.f32 %v3254, %v3864
        %v3866 = vpop.f32.mrb[0].mxu0
        %v3867 = vpop.f32.mrb[0].mxu0
        %v3868 = vadd.f32 %v3257, %v3867
        %v3869 = vpop.f32.mrb[0].mxu0
        %3870 = vmatprep.mubr.bf16.mxu0 %v3598
        %3871 = vmatmul.mubr.bf16.gmra.mrb[0].mxu0 %v2455
        %v3872 = vpop.f32.mrb[0].mxu0
        %v3873 = vadd.f32 %v3262, %v3872
        %v3874 = vpop.f32.mrb[0].mxu0
        %v3875 = vpop.f32.mrb[0].mxu0
        %v3876 = vadd.f32 %v3265, %v3875
        %v3877 = vpop.f32.mrb[0].mxu0
        %3878 = vmatprep.mubr.bf16.mxu0 %v3600
        %3879 = vmatmul.mubr.bf16.gmra.mrb[0].mxu0 %v2457
        %v3880 = vpop.f32.mrb[0].mxu0
        %v3881 = vadd.f32 %v3270, %v3880
        %v3882 = vpop.f32.mrb[0].mxu0
        %v3883 = vpop.f32.mrb[0].mxu0
        %v3884 = vadd.f32 %v3273, %v3883
        %v3885 = vpop.f32.mrb[0].mxu0
        %3886 = vmatprep.mubr.bf16.mxu0 %v3602
        %3887 = vmatmul.mubr.bf16.gmra.mrb[0].mxu0 %v2459
        %v3888 = vpop.f32.mrb[0].mxu0
        %v3889 = vadd.f32 %v3278, %v3888
        %v3890 = vpop.f32.mrb[0].mxu0
        %v3891 = vpop.f32.mrb[0].mxu0
        %v3892 = vadd.f32 %v3281, %v3891
        %v3893 = vpop.f32.mrb[0].mxu0
        %3894 = vmatprep.mubr.bf16.mxu0 %v3604
        %3895 = vmatmul.mubr.bf16.gmra.mrb[0].mxu0 %v2461
        %v3896 = vpop.f32.mrb[0].mxu0
        %v3897 = vadd.f32 %v3286, %v3896
        %v3898 = vpop.f32.mrb[0].mxu0
        %v3899 = vpop.f32.mrb[0].mxu0
        %v3900 = vadd.f32 %v3289, %v3899
        %v3901 = vpop.f32.mrb[0].mxu0
        %3902 = vmatprep.mubr.bf16.mxu0 %v3606
        %3903 = vmatmul.mubr.bf16.gmra.mrb[0].mxu0 %v2463
        %v3904 = vpop.f32.mrb[0].mxu0
        %v3905 = vadd.f32 %v3294, %v3904
        %v3906 = vpop.f32.mrb[0].mxu0
        %v3907 = vpop.f32.mrb[0].mxu0
        %v3908 = vadd.f32 %v3297, %v3907
        %v3909 = vpop.f32.mrb[0].mxu0
        %3910 = vmatprep.mubr.bf16.mxu0 %v3608
        %3911 = vmatmul.mubr.bf16.gmra.mrb[0].mxu0 %v2465
        %v3912 = vpop.f32.mrb[0].mxu0
        %v3913 = vadd.f32 %v3302, %v3912
        %v3914 = vpop.f32.mrb[0].mxu0
        %v3915 = vpop.f32.mrb[0].mxu0
        %v3916 = vadd.f32 %v3305, %v3915
        %v3917 = vpop.f32.mrb[0].mxu0
        %3918 = vmatprep.mubr.bf16.mxu0 %v3610
        %3919 = vmatmul.mubr.bf16.gmra.mrb[0].mxu0 %v2467
        %v3920 = vpop.f32.mrb[0].mxu0
        %v3921 = vadd.f32 %v3310, %v3920
        %v3922 = vpop.f32.mrb[0].mxu0
        %v3923 = vpop.f32.mrb[0].mxu0
        %v3924 = vadd.f32 %v3313, %v3923
        %v3925 = vpop.f32.mrb[0].mxu0
        %3926 = vmatprep.mubr.bf16.mxu0 %v3612
        %3927 = vmatmul.mubr.bf16.gmra.mrb[0].mxu0 %v2469
        %v3928 = vpop.f32.mrb[0].mxu0
        %v3929 = vadd.f32 %v3318, %v3928
        %v3930 = vpop.f32.mrb[0].mxu0
        %v3931 = vpop.f32.mrb[0].mxu0
        %v3932 = vadd.f32 %v3321, %v3931
        %v3933 = vpop.f32.mrb[0].mxu0
        %3934 = vmatprep.mubr.bf16.mxu0 %v3614
        %3935 = vmatmul.mubr.bf16.gmra.mrb[0].mxu0 %v2471
        %v3936 = vpop.f32.mrb[0].mxu0
        %v3937 = vadd.f32 %v3326, %v3936
        %v3938 = vpop.f32.mrb[0].mxu0
        %v3939 = vpop.f32.mrb[0].mxu0
        %v3940 = vadd.f32 %v3329, %v3939
        %v3941 = vpop.f32.mrb[0].mxu0
        %3942 = vmatprep.mubr.bf16.mxu0 %v3616
        %3943 = vmatmul.mubr.bf16.gmra.mrb[0].mxu0 %v2473
        %v3944 = vpop.f32.mrb[0].mxu0
        %v3945 = vadd.f32 %v3334, %v3944
        %v3946 = vpop.f32.mrb[0].mxu0
        %v3947 = vpop.f32.mrb[0].mxu0
        %v3948 = vadd.f32 %v3337, %v3947
        %v3949 = vpop.f32.mrb[0].mxu0
        %3950 = vmatprep.mubr.bf16.mxu0 %v3618
        %3951 = vmatmul.mubr.bf16.gmra.mrb[0].mxu0 %v2475
        %v3952 = vpop.f32.mrb[0].mxu0
        %v3953 = vadd.f32 %v3342, %v3952
        %v3954 = vpop.f32.mrb[0].mxu0
        %v3955 = vpop.f32.mrb[0].mxu0
        %v3956 = vadd.f32 %v3345, %v3955
        %v3957 = vpop.f32.mrb[0].mxu0
        %3958 = vmatprep.mubr.bf16.mxu0 %v3620
        %3959 = vmatmul.mubr.bf16.gmra.mrb[0].mxu0 %v2477
        %v3960 = vpop.f32.mrb[0].mxu0
        %v3961 = vadd.f32 %v3350, %v3960
        %v3962 = vpop.f32.mrb[0].mxu0
        %v3963 = vpop.f32.mrb[0].mxu0
        %v3964 = vadd.f32 %v3353, %v3963
        %v3965 = vpop.f32.mrb[0].mxu0
        %3966 = vmatprep.mubr.bf16.mxu0 %v3622
        %3967 = vmatmul.mubr.bf16.gmra.mrb[0].mxu0 %v2479
        %v3968 = vpop.f32.mrb[0].mxu0
        %v3969 = vadd.f32 %v3358, %v3968
        %v3970 = vpop.f32.mrb[0].mxu0
        %v3971 = vpop.f32.mrb[0].mxu0
        %v3972 = vadd.f32 %v3361, %v3971
        %v3973 = vpop.f32.mrb[0].mxu0
        %3974 = vmatprep.mubr.bf16.mxu0 %v3624
        %3975 = vmatmul.mubr.bf16.gmra.mrb[0].mxu0 %v2481
        %v3976 = vpop.f32.mrb[0].mxu0
        %v3977 = vadd.f32 %v3366, %v3976
        %v3978 = vpop.f32.mrb[0].mxu0
        %v3979 = vpop.f32.mrb[0].mxu0
        %v3980 = vadd.f32 %v3369, %v3979
        %v3981 = vpop.f32.mrb[0].mxu0
        %3982 = vmatprep.mubr.bf16.mxu0 %v3626
        %3983 = vmatmul.mubr.bf16.gmra.mrb[0].mxu0 %v2483
        %v3984 = vpop.f32.mrb[0].mxu0
        %v3985 = vadd.f32 %v3374, %v3984
        %v3986 = vpop.f32.mrb[0].mxu0
        %v3987 = vpop.f32.mrb[0].mxu0
        %v3988 = vadd.f32 %v3377, %v3987
        %v3989 = vpop.f32.mrb[0].mxu0
        %3990 = vdwg.mxu0
        %v3991 = vld [vmem:[#allocation3] sm:$0xee]
        %s3992 = scalar_lea.vmem %s3, 600
        %v3993 = vld [vmem:[%s3992] sm:$0xff]
        %v3994 = vld [vmem:[%s3992 + $0x8] sm:$0xf]
        %v3995 = vld [vmem:[%s3992 + $0xc] sm:$0xff]
        %v3996 = vld [vmem:[%s3992 + $0x14] sm:$0xf]
        %v3997 = vld [vmem:[%s3992 + $0x18] sm:$0xff]
        %v3998 = vld [vmem:[%s3992 + $0x20] sm:$0xf]
        %v3999 = vld [vmem:[%s3992 + $0x24] sm:$0xff]
        %v4000 = vld [vmem:[%s3992 + $0x2c] sm:$0xf]
        %v4001 = vld [vmem:[%s3992 + $0x30] sm:$0xff]
        %v4002 = vld [vmem:[%s3992 + $0x38] sm:$0xf]
        %v4003 = vld [vmem:[%s3992 + $0x3c] sm:$0xff]
        %v4004 = vld [vmem:[%s3992 + $0x44] sm:$0xf]
        %v4005 = vld [vmem:[%s3992 + $0x48] sm:$0xff]
        %v4006 = vld [vmem:[%s3992 + $0x50] sm:$0xf]
        %v4007 = vld [vmem:[%s3992 + $0x54] sm:$0xff]
        %v4008 = vld [vmem:[%s3992 + $0x5c] sm:$0xf]
        %v4009 = vld [vmem:[%s3992 + $0x60] sm:$0xff]
        %v4010 = vld [vmem:[%s3992 + $0x68] sm:$0xf]
        %v4011 = vld [vmem:[%s3992 + $0x6c] sm:$0xff]
        %v4012 = vld [vmem:[%s3992 + $0x74] sm:$0xf]
        %v4013 = vld [vmem:[%s3992 + $0x78] sm:$0xff]
        %v4014 = vld [vmem:[%s3992 + $0x80] sm:$0xf]
        %v4015 = vld [vmem:[%s3992 + $0x84] sm:$0xff]
        %v4016 = vld [vmem:[%s3992 + $0x8c] sm:$0xf]
        %v4017 = vld [vmem:[%s3992 + $0x90] sm:$0xff]
        %v4018 = vld [vmem:[%s3992 + $0x98] sm:$0xf]
        %v4019 = vld [vmem:[%s3992 + $0x9c] sm:$0xff]
        %v4020 = vld [vmem:[%s3992 + $0xa4] sm:$0xf]
        %v4021 = vld [vmem:[%s3992 + $0xa8] sm:$0xff]
        %v4022 = vld [vmem:[%s3992 + $0xb0] sm:$0xf]
        %v4023 = vld [vmem:[%s3992 + $0xb4] sm:$0xff]
        %v4024 = vld [vmem:[%s3992 + $0xbc] sm:$0xf]
        %v4025 = vld [vmem:[%s3992 + $0xc0] sm:$0xff]
        %v4026 = vld [vmem:[%s3992 + $0xc8] sm:$0xf]
        %v4027 = vld [vmem:[%s3992 + $0xcc] sm:$0xff]
        %v4028 = vld [vmem:[%s3992 + $0xd4] sm:$0xf]
        %v4029 = vld [vmem:[%s3992 + $0xd8] sm:$0xff]
        %v4030 = vld [vmem:[%s3992 + $0xe0] sm:$0xf]
        %v4031 = vld [vmem:[%s3992 + $0xe4] sm:$0xff]
        %v4032 = vld [vmem:[%s3992 + $0xec] sm:$0xf]
        %v4033 = vld [vmem:[%s3992 + $0xf0] sm:$0xff]
        %v4034 = vld [vmem:[%s3992 + $0xf8] sm:$0xf]
        %v4035 = vld [vmem:[%s3992 + $0xfc] sm:$0xff]
        %v4036 = vld [vmem:[%s3992 + $0x104] sm:$0xf]
        %v4037 = vld [vmem:[%s3992 + $0x108] sm:$0xff]
        %v4038 = vld [vmem:[%s3992 + $0x110] sm:$0xf]
        %v4039 = vld [vmem:[%s3992 + $0x114] sm:$0xff]
        %v4040 = vld [vmem:[%s3992 + $0x11c] sm:$0xf]
        %v4041 = vld [vmem:[%s3992 + $0x120] sm:$0x33]
        %v4042 = vld [vmem:[%s3992 + $0x128] sm:$0x3]
        %v4044 = vunpack.c.l.b16 %v3991
        %v4045 = vunpack.c.h.b16 %v3991
        %v4046 = vpack.c.b16 %v2389, %v4044
        %v4047 = vpack.c.b16 %v2390, %v4045
        %v4048 = vrot.slane %v4046, 1
        %v4049 = vrot.slane %v2455, 1
        %v4050 = vsel %vm1507, %v4048, %v4049
        %v4051 = vrot.slane %v4047, 1
        %v4052 = vrot.slane %v2456, 1
        %v4053 = vsel %vm1507, %v4051, %v4052
        %v4054 = vrot.slane %v2457, 1
        %v4055 = vsel %vm1507, %v4049, %v4054
        %v4056 = vrot.slane %v2458, 1
        %v4057 = vsel %vm1507, %v4052, %v4056
        %v4058 = vrot.slane %v2459, 1
        %v4059 = vsel %vm1507, %v4054, %v4058
        %v4060 = vrot.slane %v2460, 1
        %v4061 = vsel %vm1507, %v4056, %v4060
        %v4062 = vrot.slane %v2461, 1
        %v4063 = vsel %vm1507, %v4058, %v4062
        %v4064 = vrot.slane %v2462, 1
        %v4065 = vsel %vm1507, %v4060, %v4064
        %v4066 = vrot.slane %v2463, 1
        %v4067 = vsel %vm1507, %v4062, %v4066
        %v4068 = vrot.slane %v2464, 1
        %v4069 = vsel %vm1507, %v4064, %v4068
        %v4070 = vrot.slane %v2465, 1
        %v4071 = vsel %vm1507, %v4066, %v4070
        %v4072 = vrot.slane %v2466, 1
        %v4073 = vsel %vm1507, %v4068, %v4072
        %v4074 = vrot.slane %v2467, 1
        %v4075 = vsel %vm1507, %v4070, %v4074
        %v4076 = vrot.slane %v2468, 1
        %v4077 = vsel %vm1507, %v4072, %v4076
        %v4078 = vrot.slane %v2469, 1
        %v4079 = vsel %vm1507, %v4074, %v4078
        %v4080 = vrot.slane %v2470, 1
        %v4081 = vsel %vm1507, %v4076, %v4080
        %v4082 = vrot.slane %v2471, 1
        %v4083 = vsel %vm1507, %v4078, %v4082
        %v4084 = vrot.slane %v2472, 1
        %v4085 = vsel %vm1507, %v4080, %v4084
        %v4086 = vrot.slane %v2473, 1
        %v4087 = vsel %vm1507, %v4082, %v4086
        %v4088 = vrot.slane %v2474, 1
        %v4089 = vsel %vm1507, %v4084, %v4088
        %v4090 = vrot.slane %v2475, 1
        %v4091 = vsel %vm1507, %v4086, %v4090
        %v4092 = vrot.slane %v2476, 1
        %v4093 = vsel %vm1507, %v4088, %v4092
        %v4094 = vrot.slane %v2477, 1
        %v4095 = vsel %vm1507, %v4090, %v4094
        %v4096 = vrot.slane %v2478, 1
        %v4097 = vsel %vm1507, %v4092, %v4096
        %v4098 = vrot.slane %v2479, 1
        %v4099 = vsel %vm1507, %v4094, %v4098
        %v4100 = vrot.slane %v2480, 1
        %v4101 = vsel %vm1507, %v4096, %v4100
        %v4102 = vrot.slane %v2481, 1
        %v4103 = vsel %vm1507, %v4098, %v4102
        %v4104 = vrot.slane %v2482, 1
        %v4105 = vsel %vm1507, %v4100, %v4104
        %v4106 = vrot.slane %v2483, 1
        %v4107 = vsel %vm1507, %v4102, %v4106
        %v4108 = vrot.slane %v2484, 1
        %v4109 = vsel %vm1507, %v4104, %v4108
        %v4110 = vrot.slane %v2485, 1
        %v4111 = vsel %vm1507, %v4106, %v4110
        %v4112 = vrot.slane %v2486, 1
        %v4113 = vsel %vm1507, %v4108, %v4112
        %v4180 = vunpack.c.l.b16 %v3993
        %v4181 = vunpack.c.h.b16 %v3993
        %v4182 = vunpack.c.l.b16 %v3994
        %v4183 = vunpack.c.l.b16 %v3995
        %v4184 = vunpack.c.h.b16 %v3995
        %v4185 = vunpack.c.l.b16 %v3996
        %v4186 = vunpack.c.l.b16 %v3997
        %v4187 = vunpack.c.h.b16 %v3997
        %v4188 = vunpack.c.l.b16 %v3998
        %v4189 = vunpack.c.l.b16 %v3999
        %v4190 = vunpack.c.h.b16 %v3999
        %v4191 = vunpack.c.l.b16 %v4000
        %v4192 = vunpack.c.l.b16 %v4001
        %v4193 = vunpack.c.h.b16 %v4001
        %v4194 = vunpack.c.l.b16 %v4002
        %v4195 = vunpack.c.l.b16 %v4003
        %v4196 = vunpack.c.h.b16 %v4003
        %v4197 = vunpack.c.l.b16 %v4004
        %v4198 = vunpack.c.l.b16 %v4005
        %v4199 = vunpack.c.h.b16 %v4005
        %v4200 = vunpack.c.l.b16 %v4006
        %v4201 = vunpack.c.l.b16 %v4007
        %v4202 = vunpack.c.h.b16 %v4007
        %v4203 = vunpack.c.l.b16 %v4008
        %v4204 = vunpack.c.l.b16 %v4009
        %v4205 = vunpack.c.h.b16 %v4009
        %v4206 = vunpack.c.l.b16 %v4010
        %v4207 = vunpack.c.l.b16 %v4011
        %v4208 = vunpack.c.h.b16 %v4011
        %v4209 = vunpack.c.l.b16 %v4012
        %v4210 = vunpack.c.l.b16 %v4013
        %v4211 = vunpack.c.h.b16 %v4013
        %v4212 = vunpack.c.l.b16 %v4014
        %v4213 = vunpack.c.l.b16 %v4015
        %v4214 = vunpack.c.h.b16 %v4015
        %v4215 = vunpack.c.l.b16 %v4016
        %v4216 = vunpack.c.l.b16 %v4017
        %v4217 = vunpack.c.h.b16 %v4017
        %v4218 = vunpack.c.l.b16 %v4018
        %v4219 = vunpack.c.l.b16 %v4019
        %v4220 = vunpack.c.h.b16 %v4019
        %v4221 = vunpack.c.l.b16 %v4020
        %v4222 = vunpack.c.l.b16 %v4021
        %v4223 = vunpack.c.h.b16 %v4021
        %v4224 = vunpack.c.l.b16 %v4022
        %v4225 = vunpack.c.l.b16 %v4023
        %v4226 = vunpack.c.h.b16 %v4023
        %v4227 = vunpack.c.l.b16 %v4024
        %v4228 = vunpack.c.l.b16 %v4025
        %v4229 = vunpack.c.h.b16 %v4025
        %v4230 = vunpack.c.l.b16 %v4026
        %v4231 = vunpack.c.l.b16 %v4027
        %v4232 = vunpack.c.h.b16 %v4027
        %v4233 = vunpack.c.l.b16 %v4028
        %v4234 = vunpack.c.l.b16 %v4029
        %v4235 = vunpack.c.h.b16 %v4029
        %v4236 = vunpack.c.l.b16 %v4030
        %v4237 = vunpack.c.l.b16 %v4031
        %v4238 = vunpack.c.h.b16 %v4031
        %v4239 = vunpack.c.l.b16 %v4032
        %v4240 = vunpack.c.l.b16 %v4033
        %v4241 = vunpack.c.h.b16 %v4033
        %v4242 = vunpack.c.l.b16 %v4034
        %v4243 = vunpack.c.l.b16 %v4035
        %v4244 = vunpack.c.h.b16 %v4035
        %v4245 = vunpack.c.l.b16 %v4036
        %v4246 = vunpack.c.l.b16 %v4037
        %v4247 = vunpack.c.h.b16 %v4037
        %v4248 = vunpack.c.l.b16 %v4038
        %v4249 = vunpack.c.l.b16 %v4039
        %v4250 = vunpack.c.h.b16 %v4039
        %v4251 = vunpack.c.l.b16 %v4040
        %v4252 = vunpack.c.l.b16 %v4041
        %v4253 = vunpack.c.h.b16 %v4041
        %v4254 = vunpack.c.l.b16 %v4042
        %v4255 = vpack.c.b16 %v4183, %v4180
        %v4256 = vpack.c.b16 %v4184, %v4181
        %v4257 = vpack.c.b16 %v4185, %v4182
        %v4258 = vpack.c.b16 %v4189, %v4186
        %v4259 = vpack.c.b16 %v4190, %v4187
        %v4260 = vpack.c.b16 %v4191, %v4188
        %v4261 = vpack.c.b16 %v4195, %v4192
        %v4262 = vpack.c.b16 %v4196, %v4193
        %v4263 = vpack.c.b16 %v4197, %v4194
        %v4264 = vpack.c.b16 %v4201, %v4198
        %v4265 = vpack.c.b16 %v4202, %v4199
        %v4266 = vpack.c.b16 %v4203, %v4200
        %v4267 = vpack.c.b16 %v4207, %v4204
        %v4268 = vpack.c.b16 %v4208, %v4205
        %v4269 = vpack.c.b16 %v4209, %v4206
        %v4270 = vpack.c.b16 %v4213, %v4210
        %v4271 = vpack.c.b16 %v4214, %v4211
        %v4272 = vpack.c.b16 %v4215, %v4212
        %v4273 = vpack.c.b16 %v4219, %v4216
        %v4274 = vpack.c.b16 %v4220, %v4217
        %v4275 = vpack.c.b16 %v4221, %v4218
        %v4276 = vpack.c.b16 %v4225, %v4222
        %v4277 = vpack.c.b16 %v4226, %v4223
        %v4278 = vpack.c.b16 %v4227, %v4224
        %v4279 = vpack.c.b16 %v4231, %v4228
        %v4280 = vpack.c.b16 %v4232, %v4229
        %v4281 = vpack.c.b16 %v4233, %v4230
        %v4282 = vpack.c.b16 %v4237, %v4234
        %v4283 = vpack.c.b16 %v4238, %v4235
        %v4284 = vpack.c.b16 %v4239, %v4236
        %v4285 = vpack.c.b16 %v4243, %v4240
        %v4286 = vpack.c.b16 %v4244, %v4241
        %v4287 = vpack.c.b16 %v4245, %v4242
        %v4288 = vpack.c.b16 %v4249, %v4246
        %v4289 = vpack.c.b16 %v4250, %v4247
        %v4290 = vpack.c.b16 %v4251, %v4248
        %v4291 = vpack.c.b16 %v4252, %v4252
        %v4292 = vpack.c.b16 %v4253, %v4253
        %v4293 = vpack.c.b16 %v4254, %v4254
        %v4331 = vsel %vm2967, %v4053, 0
        %v4334 = vsel %vm2967, %v4057, 0
        %v4337 = vsel %vm2967, %v4061, 0
        %v4340 = vsel %vm2967, %v4065, 0
        %v4343 = vsel %vm2967, %v4069, 0
        %v4346 = vsel %vm2967, %v4073, 0
        %v4349 = vsel %vm2967, %v4077, 0
        %v4352 = vsel %vm2967, %v4081, 0
        %v4355 = vsel %vm2967, %v4085, 0
        %v4358 = vsel %vm2967, %v4089, 0
        %v4361 = vsel %vm2967, %v4093, 0
        %v4364 = vsel %vm2967, %v4097, 0
        %v4367 = vsel %vm2967, %v4101, 0
        %v4370 = vsel %vm2967, %v4105, 0
        %v4373 = vsel %vm2967, %v4109, 0
        %v4376 = vsel %vm2967, %v4113, 0
        %v4379 = vsel %vm3016, %v4291, 0
        %v4382 = vsel %vm3016, %v4292, 0
        %v4385 = vsel %vm3016, %v4293, 0
        %4387 = vmatprep.subr.bf16.mxu0 %v4256
        %4388 = vmatpush1.bf16.msra.mxu0 %v4255
        %4389 = vmatprep.subr.bf16.mxu0 %v4259
        %4390 = vmatpush1.bf16.msra.mxu0 %v4258
        %4391 = vmatprep.subr.bf16.mxu0 %v4262
        %4392 = vmatpush1.bf16.msra.mxu0 %v4261
        %4393 = vmatprep.subr.bf16.mxu0 %v4265
        %4394 = vmatpush1.bf16.msra.mxu0 %v4264
        %4395 = vmatprep.subr.bf16.mxu0 %v4268
        %4396 = vmatpush1.bf16.msra.mxu0 %v4267
        %4397 = vmatprep.subr.bf16.mxu0 %v4271
        %4398 = vmatpush1.bf16.msra.mxu0 %v4270
        %4399 = vmatprep.subr.bf16.mxu0 %v4274
        %4400 = vmatpush1.bf16.msra.mxu0 %v4273
        %4401 = vmatprep.subr.bf16.mxu0 %v4277
        %4402 = vmatpush1.bf16.msra.mxu0 %v4276
        %4403 = vmatprep.subr.bf16.mxu0 %v4280
        %4404 = vmatpush1.bf16.msra.mxu0 %v4279
        %4405 = vmatprep.subr.bf16.mxu0 %v4283
        %4406 = vmatpush1.bf16.msra.mxu0 %v4282
        %4407 = vmatprep.subr.bf16.mxu0 %v4286
        %4408 = vmatpush1.bf16.msra.mxu0 %v4285
        %4409 = vmatprep.subr.bf16.mxu0 %v4289
        %4410 = vmatpush1.bf16.msra.mxu0 %v4288
        %4411 = vmatprep.subr.bf16.mxu0 %v4382
        %4412 = vmatpush1.bf16.msra.mxu0 %v4379
        %4413 = vmatprep.subr.bf16.mxu0 0
        %4414 = vmatpush1.bf16.msra.mxu0 0
        %4415 = vmatprep.subr.bf16.mxu0 0
        %4416 = vmatpush1.bf16.msra.mxu0 0
        %4417 = vmatprep.subr.bf16.mxu0 0
        %4418 = vmatpush1.bf16.msra.mxu0 0
        %4419 = vmatprep.mubr.bf16.mxu0 %v4331
        %4420 = vmatmul.mubr.bf16.gmra.mrb[0].mxu0 %v4050
        %v4421 = vpop.f32.mrb[0].mxu0
        %v4422 = vadd.f32 0.0, %v4421
        %v4423 = vpop.f32.mrb[0].mxu0
        %v4424 = vadd.f32 0.0, %v4423
        %v4425 = vpop.f32.mrb[0].mxu0
        %v4426 = vadd.f32 0.0, %v4425
        %v4427 = vpop.f32.mrb[0].mxu0
        %v4428 = vadd.f32 0.0, %v4427
        %4429 = vmatprep.mubr.bf16.mxu0 %v4334
        %4430 = vmatmul.mubr.bf16.gmra.mrb[0].mxu0 %v4055
        %v4431 = vpop.f32.mrb[0].mxu0
        %v4432 = vadd.f32 0.0, %v4431
        %v4433 = vpop.f32.mrb[0].mxu0
        %v4434 = vadd.f32 0.0, %v4433
        %v4435 = vpop.f32.mrb[0].mxu0
        %v4436 = vadd.f32 0.0, %v4435
        %v4437 = vpop.f32.mrb[0].mxu0
        %v4438 = vadd.f32 0.0, %v4437
        %4439 = vmatprep.mubr.bf16.mxu0 %v4337
        %4440 = vmatmul.mubr.bf16.gmra.mrb[0].mxu0 %v4059
        %v4441 = vpop.f32.mrb[0].mxu0
        %v4442 = vadd.f32 0.0, %v4441
        %v4443 = vpop.f32.mrb[0].mxu0
        %v4444 = vadd.f32 0.0, %v4443
        %v4445 = vpop.f32.mrb[0].mxu0
        %v4446 = vadd.f32 0.0, %v4445
        %v4447 = vpop.f32.mrb[0].mxu0
        %v4448 = vadd.f32 0.0, %v4447
        %4449 = vmatprep.mubr.bf16.mxu0 %v4340
        %4450 = vmatmul.mubr.bf16.gmra.mrb[0].mxu0 %v4063
        %v4451 = vpop.f32.mrb[0].mxu0
        %v4452 = vadd.f32 0.0, %v4451
        %v4453 = vpop.f32.mrb[0].mxu0
        %v4454 = vadd.f32 0.0, %v4453
        %v4455 = vpop.f32.mrb[0].mxu0
        %v4456 = vadd.f32 0.0, %v4455
        %v4457 = vpop.f32.mrb[0].mxu0
        %v4458 = vadd.f32 0.0, %v4457
        %4459 = vmatprep.mubr.bf16.mxu0 %v4343
        %4460 = vmatmul.mubr.bf16.gmra.mrb[0].mxu0 %v4067
        %v4461 = vpop.f32.mrb[0].mxu0
        %v4462 = vadd.f32 0.0, %v4461
        %v4463 = vpop.f32.mrb[0].mxu0
        %v4464 = vadd.f32 0.0, %v4463
        %v4465 = vpop.f32.mrb[0].mxu0
        %v4466 = vadd.f32 0.0, %v4465
        %v4467 = vpop.f32.mrb[0].mxu0
        %v4468 = vadd.f32 0.0, %v4467
        %4469 = vmatprep.mubr.bf16.mxu0 %v4346
        %4470 = vmatmul.mubr.bf16.gmra.mrb[0].mxu0 %v4071
        %v4471 = vpop.f32.mrb[0].mxu0
        %v4472 = vadd.f32 0.0, %v4471
        %v4473 = vpop.f32.mrb[0].mxu0
        %v4474 = vadd.f32 0.0, %v4473
        %v4475 = vpop.f32.mrb[0].mxu0
        %v4476 = vadd.f32 0.0, %v4475
        %v4477 = vpop.f32.mrb[0].mxu0
        %v4478 = vadd.f32 0.0, %v4477
        %4479 = vmatprep.mubr.bf16.mxu0 %v4349
        %4480 = vmatmul.mubr.bf16.gmra.mrb[0].mxu0 %v4075
        %v4481 = vpop.f32.mrb[0].mxu0
        %v4482 = vadd.f32 0.0, %v4481
        %v4483 = vpop.f32.mrb[0].mxu0
        %v4484 = vadd.f32 0.0, %v4483
        %v4485 = vpop.f32.mrb[0].mxu0
        %v4486 = vadd.f32 0.0, %v4485
        %v4487 = vpop.f32.mrb[0].mxu0
        %v4488 = vadd.f32 0.0, %v4487
        %4489 = vmatprep.mubr.bf16.mxu0 %v4352
        %4490 = vmatmul.mubr.bf16.gmra.mrb[0].mxu0 %v4079
        %v4491 = vpop.f32.mrb[0].mxu0
        %v4492 = vadd.f32 0.0, %v4491
        %v4493 = vpop.f32.mrb[0].mxu0
        %v4494 = vadd.f32 0.0, %v4493
        %v4495 = vpop.f32.mrb[0].mxu0
        %v4496 = vadd.f32 0.0, %v4495
        %v4497 = vpop.f32.mrb[0].mxu0
        %v4498 = vadd.f32 0.0, %v4497
        %4499 = vmatprep.mubr.bf16.mxu0 %v4355
        %4500 = vmatmul.mubr.bf16.gmra.mrb[0].mxu0 %v4083
        %v4501 = vpop.f32.mrb[0].mxu0
        %v4502 = vadd.f32 0.0, %v4501
        %v4503 = vpop.f32.mrb[0].mxu0
        %v4504 = vadd.f32 0.0, %v4503
        %v4505 = vpop.f32.mrb[0].mxu0
        %v4506 = vadd.f32 0.0, %v4505
        %v4507 = vpop.f32.mrb[0].mxu0
        %v4508 = vadd.f32 0.0, %v4507
        %4509 = vmatprep.mubr.bf16.mxu0 %v4358
        %4510 = vmatmul.mubr.bf16.gmra.mrb[0].mxu0 %v4087
        %v4511 = vpop.f32.mrb[0].mxu0
        %v4512 = vadd.f32 0.0, %v4511
        %v4513 = vpop.f32.mrb[0].mxu0
        %v4514 = vadd.f32 0.0, %v4513
        %v4515 = vpop.f32.mrb[0].mxu0
        %v4516 = vadd.f32 0.0, %v4515
        %v4517 = vpop.f32.mrb[0].mxu0
        %v4518 = vadd.f32 0.0, %v4517
        %4519 = vmatprep.mubr.bf16.mxu0 %v4361
        %4520 = vmatmul.mubr.bf16.gmra.mrb[0].mxu0 %v4091
        %v4521 = vpop.f32.mrb[0].mxu0
        %v4522 = vadd.f32 0.0, %v4521
        %v4523 = vpop.f32.mrb[0].mxu0
        %v4524 = vadd.f32 0.0, %v4523
        %v4525 = vpop.f32.mrb[0].mxu0
        %v4526 = vadd.f32 0.0, %v4525
        %v4527 = vpop.f32.mrb[0].mxu0
        %v4528 = vadd.f32 0.0, %v4527
        %4529 = vmatprep.mubr.bf16.mxu0 %v4364
        %4530 = vmatmul.mubr.bf16.gmra.mrb[0].mxu0 %v4095
        %v4531 = vpop.f32.mrb[0].mxu0
        %v4532 = vadd.f32 0.0, %v4531
        %v4533 = vpop.f32.mrb[0].mxu0
        %v4534 = vadd.f32 0.0, %v4533
        %v4535 = vpop.f32.mrb[0].mxu0
        %v4536 = vadd.f32 0.0, %v4535
        %v4537 = vpop.f32.mrb[0].mxu0
        %v4538 = vadd.f32 0.0, %v4537
        %4539 = vmatprep.mubr.bf16.mxu0 %v4367
        %4540 = vmatmul.mubr.bf16.gmra.mrb[0].mxu0 %v4099
        %v4541 = vpop.f32.mrb[0].mxu0
        %v4542 = vadd.f32 0.0, %v4541
        %v4543 = vpop.f32.mrb[0].mxu0
        %v4544 = vadd.f32 0.0, %v4543
        %v4545 = vpop.f32.mrb[0].mxu0
        %v4546 = vadd.f32 0.0, %v4545
        %v4547 = vpop.f32.mrb[0].mxu0
        %v4548 = vadd.f32 0.0, %v4547
        %4549 = vmatprep.mubr.bf16.mxu0 %v4370
        %4550 = vmatmul.mubr.bf16.gmra.mrb[0].mxu0 %v4103
        %v4551 = vpop.f32.mrb[0].mxu0
        %v4552 = vadd.f32 0.0, %v4551
        %v4553 = vpop.f32.mrb[0].mxu0
        %v4554 = vadd.f32 0.0, %v4553
        %v4555 = vpop.f32.mrb[0].mxu0
        %v4556 = vadd.f32 0.0, %v4555
        %v4557 = vpop.f32.mrb[0].mxu0
        %v4558 = vadd.f32 0.0, %v4557
        %4559 = vmatprep.mubr.bf16.mxu0 %v4373
        %4560 = vmatmul.mubr.bf16.gmra.mrb[0].mxu0 %v4107
        %v4561 = vpop.f32.mrb[0].mxu0
        %v4562 = vadd.f32 0.0, %v4561
        %v4563 = vpop.f32.mrb[0].mxu0
        %v4564 = vadd.f32 0.0, %v4563
        %v4565 = vpop.f32.mrb[0].mxu0
        %v4566 = vadd.f32 0.0, %v4565
        %v4567 = vpop.f32.mrb[0].mxu0
        %v4568 = vadd.f32 0.0, %v4567
        %4569 = vmatprep.mubr.bf16.mxu0 %v4376
        %4570 = vmatmul.mubr.bf16.gmra.mrb[0].mxu0 %v4111
        %v4571 = vpop.f32.mrb[0].mxu0
        %v4572 = vadd.f32 0.0, %v4571
        %v4573 = vpop.f32.mrb[0].mxu0
        %v4574 = vadd.f32 0.0, %v4573
        %v4575 = vpop.f32.mrb[0].mxu0
        %v4576 = vadd.f32 0.0, %v4575
        %v4577 = vpop.f32.mrb[0].mxu0
        %v4578 = vadd.f32 0.0, %v4577
        %4579 = vdwg.mxu0
        %4580 = vmatprep.subr.bf16.mxu0 0
        %4581 = vmatpush1.bf16.msra.mxu0 %v4257
        %4582 = vmatprep.subr.bf16.mxu0 0
        %4583 = vmatpush1.bf16.msra.mxu0 %v4260
        %4584 = vmatprep.subr.bf16.mxu0 0
        %4585 = vmatpush1.bf16.msra.mxu0 %v4263
        %4586 = vmatprep.subr.bf16.mxu0 0
        %4587 = vmatpush1.bf16.msra.mxu0 %v4266
        %4588 = vmatprep.subr.bf16.mxu0 0
        %4589 = vmatpush1.bf16.msra.mxu0 %v4269
        %4590 = vmatprep.subr.bf16.mxu0 0
        %4591 = vmatpush1.bf16.msra.mxu0 %v4272
        %4592 = vmatprep.subr.bf16.mxu0 0
        %4593 = vmatpush1.bf16.msra.mxu0 %v4275
        %4594 = vmatprep.subr.bf16.mxu0 0
        %4595 = vmatpush1.bf16.msra.mxu0 %v4278
        %4596 = vmatprep.subr.bf16.mxu0 0
        %4597 = vmatpush1.bf16.msra.mxu0 %v4281
        %4598 = vmatprep.subr.bf16.mxu0 0
        %4599 = vmatpush1.bf16.msra.mxu0 %v4284
        %4600 = vmatprep.subr.bf16.mxu0 0
        %4601 = vmatpush1.bf16.msra.mxu0 %v4287
        %4602 = vmatprep.subr.bf16.mxu0 0
        %4603 = vmatpush1.bf16.msra.mxu0 %v4290
        %4604 = vmatprep.subr.bf16.mxu0 0
        %4605 = vmatpush1.bf16.msra.mxu0 %v4385
        %4606 = vmatprep.subr.bf16.mxu0 0
        %4607 = vmatpush1.bf16.msra.mxu0 0
        %4608 = vmatprep.subr.bf16.mxu0 0
        %4609 = vmatpush1.bf16.msra.mxu0 0
        %4610 = vmatprep.subr.bf16.mxu0 0
        %4611 = vmatpush1.bf16.msra.mxu0 0
        %4612 = vmatprep.mubr.bf16.mxu0 %v4331
        %4613 = vmatmul.mubr.bf16.gmra.mrb[0].mxu0 %v4050
        %v4614 = vpop.f32.mrb[0].mxu0
        %v4615 = vadd.f32 0.0, %v4614
        %v4616 = vpop.f32.mrb[0].mxu0
        %v4617 = vpop.f32.mrb[0].mxu0
        %v4618 = vadd.f32 0.0, %v4617
        %v4619 = vpop.f32.mrb[0].mxu0
        %4620 = vmatprep.mubr.bf16.mxu0 %v4334
        %4621 = vmatmul.mubr.bf16.gmra.mrb[0].mxu0 %v4055
        %v4622 = vpop.f32.mrb[0].mxu0
        %v4623 = vadd.f32 0.0, %v4622
        %v4624 = vpop.f32.mrb[0].mxu0
        %v4625 = vpop.f32.mrb[0].mxu0
        %v4626 = vadd.f32 0.0, %v4625
        %v4627 = vpop.f32.mrb[0].mxu0
        %4628 = vmatprep.mubr.bf16.mxu0 %v4337
        %4629 = vmatmul.mubr.bf16.gmra.mrb[0].mxu0 %v4059
        %v4630 = vpop.f32.mrb[0].mxu0
        %v4631 = vadd.f32 0.0, %v4630
        %v4632 = vpop.f32.mrb[0].mxu0
        %v4633 = vpop.f32.mrb[0].mxu0
        %v4634 = vadd.f32 0.0, %v4633
        %v4635 = vpop.f32.mrb[0].mxu0
        %4636 = vmatprep.mubr.bf16.mxu0 %v4340
        %4637 = vmatmul.mubr.bf16.gmra.mrb[0].mxu0 %v4063
        %v4638 = vpop.f32.mrb[0].mxu0
        %v4639 = vadd.f32 0.0, %v4638
        %v4640 = vpop.f32.mrb[0].mxu0
        %v4641 = vpop.f32.mrb[0].mxu0
        %v4642 = vadd.f32 0.0, %v4641
        %v4643 = vpop.f32.mrb[0].mxu0
        %4644 = vmatprep.mubr.bf16.mxu0 %v4343
        %4645 = vmatmul.mubr.bf16.gmra.mrb[0].mxu0 %v4067
        %v4646 = vpop.f32.mrb[0].mxu0
        %v4647 = vadd.f32 0.0, %v4646
        %v4648 = vpop.f32.mrb[0].mxu0
        %v4649 = vpop.f32.mrb[0].mxu0
        %v4650 = vadd.f32 0.0, %v4649
        %v4651 = vpop.f32.mrb[0].mxu0
        %4652 = vmatprep.mubr.bf16.mxu0 %v4346
        %4653 = vmatmul.mubr.bf16.gmra.mrb[0].mxu0 %v4071
        %v4654 = vpop.f32.mrb[0].mxu0
        %v4655 = vadd.f32 0.0, %v4654
        %v4656 = vpop.f32.mrb[0].mxu0
        %v4657 = vpop.f32.mrb[0].mxu0
        %v4658 = vadd.f32 0.0, %v4657
        %v4659 = vpop.f32.mrb[0].mxu0
        %4660 = vmatprep.mubr.bf16.mxu0 %v4349
        %4661 = vmatmul.mubr.bf16.gmra.mrb[0].mxu0 %v4075
        %v4662 = vpop.f32.mrb[0].mxu0
        %v4663 = vadd.f32 0.0, %v4662
        %v4664 = vpop.f32.mrb[0].mxu0
        %v4665 = vpop.f32.mrb[0].mxu0
        %v4666 = vadd.f32 0.0, %v4665
        %v4667 = vpop.f32.mrb[0].mxu0
        %4668 = vmatprep.mubr.bf16.mxu0 %v4352
        %4669 = vmatmul.mubr.bf16.gmra.mrb[0].mxu0 %v4079
        %v4670 = vpop.f32.mrb[0].mxu0
        %v4671 = vadd.f32 0.0, %v4670
        %v4672 = vpop.f32.mrb[0].mxu0
        %v4673 = vpop.f32.mrb[0].mxu0
        %v4674 = vadd.f32 0.0, %v4673
        %v4675 = vpop.f32.mrb[0].mxu0
        %4676 = vmatprep.mubr.bf16.mxu0 %v4355
        %4677 = vmatmul.mubr.bf16.gmra.mrb[0].mxu0 %v4083
        %v4678 = vpop.f32.mrb[0].mxu0
        %v4679 = vadd.f32 0.0, %v4678
        %v4680 = vpop.f32.mrb[0].mxu0
        %v4681 = vpop.f32.mrb[0].mxu0
        %v4682 = vadd.f32 0.0, %v4681
        %v4683 = vpop.f32.mrb[0].mxu0
        %4684 = vmatprep.mubr.bf16.mxu0 %v4358
        %4685 = vmatmul.mubr.bf16.gmra.mrb[0].mxu0 %v4087
        %v4686 = vpop.f32.mrb[0].mxu0
        %v4687 = vadd.f32 0.0, %v4686
        %v4688 = vpop.f32.mrb[0].mxu0
        %v4689 = vpop.f32.mrb[0].mxu0
        %v4690 = vadd.f32 0.0, %v4689
        %v4691 = vpop.f32.mrb[0].mxu0
        %4692 = vmatprep.mubr.bf16.mxu0 %v4361
        %4693 = vmatmul.mubr.bf16.gmra.mrb[0].mxu0 %v4091
        %v4694 = vpop.f32.mrb[0].mxu0
        %v4695 = vadd.f32 0.0, %v4694
        %v4696 = vpop.f32.mrb[0].mxu0
        %v4697 = vpop.f32.mrb[0].mxu0
        %v4698 = vadd.f32 0.0, %v4697
        %v4699 = vpop.f32.mrb[0].mxu0
        %4700 = vmatprep.mubr.bf16.mxu0 %v4364
        %4701 = vmatmul.mubr.bf16.gmra.mrb[0].mxu0 %v4095
        %v4702 = vpop.f32.mrb[0].mxu0
        %v4703 = vadd.f32 0.0, %v4702
        %v4704 = vpop.f32.mrb[0].mxu0
        %v4705 = vpop.f32.mrb[0].mxu0
        %v4706 = vadd.f32 0.0, %v4705
        %v4707 = vpop.f32.mrb[0].mxu0
        %4708 = vmatprep.mubr.bf16.mxu0 %v4367
        %4709 = vmatmul.mubr.bf16.gmra.mrb[0].mxu0 %v4099
        %v4710 = vpop.f32.mrb[0].mxu0
        %v4711 = vadd.f32 0.0, %v4710
        %v4712 = vpop.f32.mrb[0].mxu0
        %v4713 = vpop.f32.mrb[0].mxu0
        %v4714 = vadd.f32 0.0, %v4713
        %v4715 = vpop.f32.mrb[0].mxu0
        %4716 = vmatprep.mubr.bf16.mxu0 %v4370
        %4717 = vmatmul.mubr.bf16.gmra.mrb[0].mxu0 %v4103
        %v4718 = vpop.f32.mrb[0].mxu0
        %v4719 = vadd.f32 0.0, %v4718
        %v4720 = vpop.f32.mrb[0].mxu0
        %v4721 = vpop.f32.mrb[0].mxu0
        %v4722 = vadd.f32 0.0, %v4721
        %v4723 = vpop.f32.mrb[0].mxu0
        %4724 = vmatprep.mubr.bf16.mxu0 %v4373
        %4725 = vmatmul.mubr.bf16.gmra.mrb[0].mxu0 %v4107
        %v4726 = vpop.f32.mrb[0].mxu0
        %v4727 = vadd.f32 0.0, %v4726
        %v4728 = vpop.f32.mrb[0].mxu0
        %v4729 = vpop.f32.mrb[0].mxu0
        %v4730 = vadd.f32 0.0, %v4729
        %v4731 = vpop.f32.mrb[0].mxu0
        %4732 = vmatprep.mubr.bf16.mxu0 %v4376
        %4733 = vmatmul.mubr.bf16.gmra.mrb[0].mxu0 %v4111
        %v4734 = vpop.f32.mrb[0].mxu0
        %v4735 = vadd.f32 0.0, %v4734
        %v4736 = vpop.f32.mrb[0].mxu0
        %v4737 = vpop.f32.mrb[0].mxu0
        %v4738 = vadd.f32 0.0, %v4737
        %v4739 = vpop.f32.mrb[0].mxu0
        %4740 = vdwg.mxu0
        %v4741 = vadd.f32 %v3672, %v4422
        %v4742 = vadd.f32 %v3674, %v4424
        %v4743 = vadd.f32 %v3865, %v4615
        %v4744 = vadd.f32 %v3676, %v4426
        %v4745 = vadd.f32 %v3678, %v4428
        %v4746 = vadd.f32 %v3868, %v4618
        %v4747 = vadd.f32 %v3682, %v4432
        %v4748 = vadd.f32 %v3684, %v4434
        %v4749 = vadd.f32 %v3873, %v4623
        %v4750 = vadd.f32 %v3686, %v4436
        %v4751 = vadd.f32 %v3688, %v4438
        %v4752 = vadd.f32 %v3876, %v4626
        %v4753 = vadd.f32 %v3692, %v4442
        %v4754 = vadd.f32 %v3694, %v4444
        %v4755 = vadd.f32 %v3881, %v4631
        %v4756 = vadd.f32 %v3696, %v4446
        %v4757 = vadd.f32 %v3698, %v4448
        %v4758 = vadd.f32 %v3884, %v4634
        %v4759 = vadd.f32 %v3702, %v4452
        %v4760 = vadd.f32 %v3704, %v4454
        %v4761 = vadd.f32 %v3889, %v4639
        %v4762 = vadd.f32 %v3706, %v4456
        %v4763 = vadd.f32 %v3708, %v4458
        %v4764 = vadd.f32 %v3892, %v4642
        %v4765 = vadd.f32 %v3712, %v4462
        %v4766 = vadd.f32 %v3714, %v4464
        %v4767 = vadd.f32 %v3897, %v4647
        %v4768 = vadd.f32 %v3716, %v4466
        %v4769 = vadd.f32 %v3718, %v4468
        %v4770 = vadd.f32 %v3900, %v4650
        %v4771 = vadd.f32 %v3722, %v4472
        %v4772 = vadd.f32 %v3724, %v4474
        %v4773 = vadd.f32 %v3905, %v4655
        %v4774 = vadd.f32 %v3726, %v4476
        %v4775 = vadd.f32 %v3728, %v4478
        %v4776 = vadd.f32 %v3908, %v4658
        %v4777 = vadd.f32 %v3732, %v4482
        %v4778 = vadd.f32 %v3734, %v4484
        %v4779 = vadd.f32 %v3913, %v4663
        %v4780 = vadd.f32 %v3736, %v4486
        %v4781 = vadd.f32 %v3738, %v4488
        %v4782 = vadd.f32 %v3916, %v4666
        %v4783 = vadd.f32 %v3742, %v4492
        %v4784 = vadd.f32 %v3744, %v4494
        %v4785 = vadd.f32 %v3921, %v4671
        %v4786 = vadd.f32 %v3746, %v4496
        %v4787 = vadd.f32 %v3748, %v4498
        %v4788 = vadd.f32 %v3924, %v4674
        %v4789 = vadd.f32 %v3752, %v4502
        %v4790 = vadd.f32 %v3754, %v4504
        %v4791 = vadd.f32 %v3929, %v4679
        %v4792 = vadd.f32 %v3756, %v4506
        %v4793 = vadd.f32 %v3758, %v4508
        %v4794 = vadd.f32 %v3932, %v4682
        %v4795 = vadd.f32 %v3762, %v4512
        %v4796 = vadd.f32 %v3764, %v4514
        %v4797 = vadd.f32 %v3937, %v4687
        %v4798 = vadd.f32 %v3766, %v4516
        %v4799 = vadd.f32 %v3768, %v4518
        %v4800 = vadd.f32 %v3940, %v4690
        %v4801 = vadd.f32 %v3772, %v4522
        %v4802 = vadd.f32 %v3774, %v4524
        %v4803 = vadd.f32 %v3945, %v4695
        %v4804 = vadd.f32 %v3776, %v4526
        %v4805 = vadd.f32 %v3778, %v4528
        %v4806 = vadd.f32 %v3948, %v4698
        %v4807 = vadd.f32 %v3782, %v4532
        %v4808 = vadd.f32 %v3784, %v4534
        %v4809 = vadd.f32 %v3953, %v4703
        %v4810 = vadd.f32 %v3786, %v4536
        %v4811 = vadd.f32 %v3788, %v4538
        %v4812 = vadd.f32 %v3956, %v4706
        %v4813 = vadd.f32 %v3792, %v4542
        %v4814 = vadd.f32 %v3794, %v4544
        %v4815 = vadd.f32 %v3961, %v4711
        %v4816 = vadd.f32 %v3796, %v4546
        %v4817 = vadd.f32 %v3798, %v4548
        %v4818 = vadd.f32 %v3964, %v4714
        %v4819 = vadd.f32 %v3802, %v4552
        %v4820 = vadd.f32 %v3804, %v4554
        %v4821 = vadd.f32 %v3969, %v4719
        %v4822 = vadd.f32 %v3806, %v4556
        %v4823 = vadd.f32 %v3808, %v4558
        %v4824 = vadd.f32 %v3972, %v4722
        %v4825 = vadd.f32 %v3812, %v4562
        %v4826 = vadd.f32 %v3814, %v4564
        %v4827 = vadd.f32 %v3977, %v4727
        %v4828 = vadd.f32 %v3816, %v4566
        %v4829 = vadd.f32 %v3818, %v4568
        %v4830 = vadd.f32 %v3980, %v4730
        %v4831 = vadd.f32 %v3822, %v4572
        %v4832 = vadd.f32 %v3824, %v4574
        %v4833 = vadd.f32 %v3985, %v4735
        %v4834 = vadd.f32 %v3826, %v4576
        %v4835 = vadd.f32 %v3828, %v4578
        %v4836 = vadd.f32 %v3988, %v4738
        %v4837 = vld [vmem:[%s4] sm:$0x7]
        %v4839 = vlaneseq
        %v4840 = vshrl.u32 %v4839, 7
        %v4841 = vsub.s32 0, %v4840
        %v4842 = vrot.slane %v4837, %v4841
        %v4843 = vlaneseq
        %v4844 = vshrl.u32 %v4843, 7
        %v4845 = vsub.s32 1, %v4844
        %v4846 = vrot.slane %v4837, %v4845
        %v4847 = vlaneseq
        %v4848 = vshrl.u32 %v4847, 7
        %v4849 = vsub.s32 2, %v4848
        %v4850 = vrot.slane %v4837, %v4849
        %v4854 = vadd.f32 %v4741, %v4842
        %v4855 = vadd.f32 %v4742, %v4846
        %v4856 = vadd.f32 %v4743, %v4850
        %v4857 = vadd.f32 %v4744, %v4842
        %v4858 = vadd.f32 %v4745, %v4846
        %v4859 = vadd.f32 %v4746, %v4850
        %v4860 = vadd.f32 %v4747, %v4842
        %v4861 = vadd.f32 %v4748, %v4846
        %v4862 = vadd.f32 %v4749, %v4850
        %v4863 = vadd.f32 %v4750, %v4842
        %v4864 = vadd.f32 %v4751, %v4846
        %v4865 = vadd.f32 %v4752, %v4850
        %v4866 = vadd.f32 %v4753, %v4842
        %v4867 = vadd.f32 %v4754, %v4846
        %v4868 = vadd.f32 %v4755, %v4850
        %v4869 = vadd.f32 %v4756, %v4842
        %v4870 = vadd.f32 %v4757, %v4846
        %v4871 = vadd.f32 %v4758, %v4850
        %v4872 = vadd.f32 %v4759, %v4842
        %v4873 = vadd.f32 %v4760, %v4846
        %v4874 = vadd.f32 %v4761, %v4850
        %v4875 = vadd.f32 %v4762, %v4842
        %v4876 = vadd.f32 %v4763, %v4846
        %v4877 = vadd.f32 %v4764, %v4850
        %v4878 = vadd.f32 %v4765, %v4842
        %v4879 = vadd.f32 %v4766, %v4846
        %v4880 = vadd.f32 %v4767, %v4850
        %v4881 = vadd.f32 %v4768, %v4842
        %v4882 = vadd.f32 %v4769, %v4846
        %v4883 = vadd.f32 %v4770, %v4850
        %v4884 = vadd.f32 %v4771, %v4842
        %v4885 = vadd.f32 %v4772, %v4846
        %v4886 = vadd.f32 %v4773, %v4850
        %v4887 = vadd.f32 %v4774, %v4842
        %v4888 = vadd.f32 %v4775, %v4846
        %v4889 = vadd.f32 %v4776, %v4850
        %v4890 = vadd.f32 %v4777, %v4842
        %v4891 = vadd.f32 %v4778, %v4846
        %v4892 = vadd.f32 %v4779, %v4850
        %v4893 = vadd.f32 %v4780, %v4842
        %v4894 = vadd.f32 %v4781, %v4846
        %v4895 = vadd.f32 %v4782, %v4850
        %v4896 = vadd.f32 %v4783, %v4842
        %v4897 = vadd.f32 %v4784, %v4846
        %v4898 = vadd.f32 %v4785, %v4850
        %v4899 = vadd.f32 %v4786, %v4842
        %v4900 = vadd.f32 %v4787, %v4846
        %v4901 = vadd.f32 %v4788, %v4850
        %v4902 = vadd.f32 %v4789, %v4842
        %v4903 = vadd.f32 %v4790, %v4846
        %v4904 = vadd.f32 %v4791, %v4850
        %v4905 = vadd.f32 %v4792, %v4842
        %v4906 = vadd.f32 %v4793, %v4846
        %v4907 = vadd.f32 %v4794, %v4850
        %v4908 = vadd.f32 %v4795, %v4842
        %v4909 = vadd.f32 %v4796, %v4846
        %v4910 = vadd.f32 %v4797, %v4850
        %v4911 = vadd.f32 %v4798, %v4842
        %v4912 = vadd.f32 %v4799, %v4846
        %v4913 = vadd.f32 %v4800, %v4850
        %v4914 = vadd.f32 %v4801, %v4842
        %v4915 = vadd.f32 %v4802, %v4846
        %v4916 = vadd.f32 %v4803, %v4850
        %v4917 = vadd.f32 %v4804, %v4842
        %v4918 = vadd.f32 %v4805, %v4846
        %v4919 = vadd.f32 %v4806, %v4850
        %v4920 = vadd.f32 %v4807, %v4842
        %v4921 = vadd.f32 %v4808, %v4846
        %v4922 = vadd.f32 %v4809, %v4850
        %v4923 = vadd.f32 %v4810, %v4842
        %v4924 = vadd.f32 %v4811, %v4846
        %v4925 = vadd.f32 %v4812, %v4850
        %v4926 = vadd.f32 %v4813, %v4842
        %v4927 = vadd.f32 %v4814, %v4846
        %v4928 = vadd.f32 %v4815, %v4850
        %v4929 = vadd.f32 %v4816, %v4842
        %v4930 = vadd.f32 %v4817, %v4846
        %v4931 = vadd.f32 %v4818, %v4850
        %v4932 = vadd.f32 %v4819, %v4842
        %v4933 = vadd.f32 %v4820, %v4846
        %v4934 = vadd.f32 %v4821, %v4850
        %v4935 = vadd.f32 %v4822, %v4842
        %v4936 = vadd.f32 %v4823, %v4846
        %v4937 = vadd.f32 %v4824, %v4850
        %v4938 = vadd.f32 %v4825, %v4842
        %v4939 = vadd.f32 %v4826, %v4846
        %v4940 = vadd.f32 %v4827, %v4850
        %v4941 = vadd.f32 %v4828, %v4842
        %v4942 = vadd.f32 %v4829, %v4846
        %v4943 = vadd.f32 %v4830, %v4850
        %v4944 = vadd.f32 %v4831, %v4842
        %v4945 = vadd.f32 %v4832, %v4846
        %v4946 = vadd.f32 %v4833, %v4850
        %v4947 = vadd.f32 %v4834, %v4842
        %v4948 = vadd.f32 %v4835, %v4846
        %v4949 = vadd.f32 %v4836, %v4850
        %v4950 = vmax.f32 %v4854, 0.0
        %v4951 = vmax.f32 %v4855, 0.0
        %v4952 = vmax.f32 %v4856, 0.0
        %v4953 = vmax.f32 %v4857, 0.0
        %v4954 = vmax.f32 %v4858, 0.0
        %v4955 = vmax.f32 %v4859, 0.0
        %v4956 = vmax.f32 %v4860, 0.0
        %v4957 = vmax.f32 %v4861, 0.0
        %v4958 = vmax.f32 %v4862, 0.0
        %v4959 = vmax.f32 %v4863, 0.0
        %v4960 = vmax.f32 %v4864, 0.0
        %v4961 = vmax.f32 %v4865, 0.0
        %v4962 = vmax.f32 %v4866, 0.0
        %v4963 = vmax.f32 %v4867, 0.0
        %v4964 = vmax.f32 %v4868, 0.0
        %v4965 = vmax.f32 %v4869, 0.0
        %v4966 = vmax.f32 %v4870, 0.0
        %v4967 = vmax.f32 %v4871, 0.0
        %v4968 = vmax.f32 %v4872, 0.0
        %v4969 = vmax.f32 %v4873, 0.0
        %v4970 = vmax.f32 %v4874, 0.0
        %v4971 = vmax.f32 %v4875, 0.0
        %v4972 = vmax.f32 %v4876, 0.0
        %v4973 = vmax.f32 %v4877, 0.0
        %v4974 = vmax.f32 %v4878, 0.0
        %v4975 = vmax.f32 %v4879, 0.0
        %v4976 = vmax.f32 %v4880, 0.0
        %v4977 = vmax.f32 %v4881, 0.0
        %v4978 = vmax.f32 %v4882, 0.0
        %v4979 = vmax.f32 %v4883, 0.0
        %v4980 = vmax.f32 %v4884, 0.0
        %v4981 = vmax.f32 %v4885, 0.0
        %v4982 = vmax.f32 %v4886, 0.0
        %v4983 = vmax.f32 %v4887, 0.0
        %v4984 = vmax.f32 %v4888, 0.0
        %v4985 = vmax.f32 %v4889, 0.0
        %v4986 = vmax.f32 %v4890, 0.0
        %v4987 = vmax.f32 %v4891, 0.0
        %v4988 = vmax.f32 %v4892, 0.0
        %v4989 = vmax.f32 %v4893, 0.0
        %v4990 = vmax.f32 %v4894, 0.0
        %v4991 = vmax.f32 %v4895, 0.0
        %v4992 = vmax.f32 %v4896, 0.0
        %v4993 = vmax.f32 %v4897, 0.0
        %v4994 = vmax.f32 %v4898, 0.0
        %v4995 = vmax.f32 %v4899, 0.0
        %v4996 = vmax.f32 %v4900, 0.0
        %v4997 = vmax.f32 %v4901, 0.0
        %v4998 = vmax.f32 %v4902, 0.0
        %v4999 = vmax.f32 %v4903, 0.0
        %v5000 = vmax.f32 %v4904, 0.0
        %v5001 = vmax.f32 %v4905, 0.0
        %v5002 = vmax.f32 %v4906, 0.0
        %v5003 = vmax.f32 %v4907, 0.0
        %v5004 = vmax.f32 %v4908, 0.0
        %v5005 = vmax.f32 %v4909, 0.0
        %v5006 = vmax.f32 %v4910, 0.0
        %v5007 = vmax.f32 %v4911, 0.0
        %v5008 = vmax.f32 %v4912, 0.0
        %v5009 = vmax.f32 %v4913, 0.0
        %v5010 = vmax.f32 %v4914, 0.0
        %v5011 = vmax.f32 %v4915, 0.0
        %v5012 = vmax.f32 %v4916, 0.0
        %v5013 = vmax.f32 %v4917, 0.0
        %v5014 = vmax.f32 %v4918, 0.0
        %v5015 = vmax.f32 %v4919, 0.0
        %v5016 = vmax.f32 %v4920, 0.0
        %v5017 = vmax.f32 %v4921, 0.0
        %v5018 = vmax.f32 %v4922, 0.0
        %v5019 = vmax.f32 %v4923, 0.0
        %v5020 = vmax.f32 %v4924, 0.0
        %v5021 = vmax.f32 %v4925, 0.0
        %v5022 = vmax.f32 %v4926, 0.0
        %v5023 = vmax.f32 %v4927, 0.0
        %v5024 = vmax.f32 %v4928, 0.0
        %v5025 = vmax.f32 %v4929, 0.0
        %v5026 = vmax.f32 %v4930, 0.0
        %v5027 = vmax.f32 %v4931, 0.0
        %v5028 = vmax.f32 %v4932, 0.0
        %v5029 = vmax.f32 %v4933, 0.0
        %v5030 = vmax.f32 %v4934, 0.0
        %v5031 = vmax.f32 %v4935, 0.0
        %v5032 = vmax.f32 %v4936, 0.0
        %v5033 = vmax.f32 %v4937, 0.0
        %v5034 = vmax.f32 %v4938, 0.0
        %v5035 = vmax.f32 %v4939, 0.0
        %v5036 = vmax.f32 %v4940, 0.0
        %v5037 = vmax.f32 %v4941, 0.0
        %v5038 = vmax.f32 %v4942, 0.0
        %v5039 = vmax.f32 %v4943, 0.0
        %v5040 = vmax.f32 %v4944, 0.0
        %v5041 = vmax.f32 %v4945, 0.0
        %v5042 = vmax.f32 %v4946, 0.0
        %v5043 = vmax.f32 %v4947, 0.0
        %v5044 = vmax.f32 %v4948, 0.0
        %v5045 = vmax.f32 %v4949, 0.0
        %v5046 = vpack.c.bf16 %v4953, %v4950
        %v5047 = vpack.c.bf16 %v4954, %v4951
        %v5048 = vpack.c.bf16 %v4955, %v4952
        %v5049 = vpack.c.bf16 %v4959, %v4956
        %v5050 = vpack.c.bf16 %v4960, %v4957
        %v5051 = vpack.c.bf16 %v4961, %v4958
        %v5052 = vpack.c.bf16 %v4965, %v4962
        %v5053 = vpack.c.bf16 %v4966, %v4963
        %v5054 = vpack.c.bf16 %v4967, %v4964
        %v5055 = vpack.c.bf16 %v4971, %v4968
        %v5056 = vpack.c.bf16 %v4972, %v4969
        %v5057 = vpack.c.bf16 %v4973, %v4970
        %v5058 = vpack.c.bf16 %v4977, %v4974
        %v5059 = vpack.c.bf16 %v4978, %v4975
        %v5060 = vpack.c.bf16 %v4979, %v4976
        %v5061 = vpack.c.bf16 %v4983, %v4980
        %v5062 = vpack.c.bf16 %v4984, %v4981
        %v5063 = vpack.c.bf16 %v4985, %v4982
        %v5064 = vpack.c.bf16 %v4989, %v4986
        %v5065 = vpack.c.bf16 %v4990, %v4987
        %v5066 = vpack.c.bf16 %v4991, %v4988
        %v5067 = vpack.c.bf16 %v4995, %v4992
        %v5068 = vpack.c.bf16 %v4996, %v4993
        %v5069 = vpack.c.bf16 %v4997, %v4994
        %v5070 = vpack.c.bf16 %v5001, %v4998
        %v5071 = vpack.c.bf16 %v5002, %v4999
        %v5072 = vpack.c.bf16 %v5003, %v5000
        %v5073 = vpack.c.bf16 %v5007, %v5004
        %v5074 = vpack.c.bf16 %v5008, %v5005
        %v5075 = vpack.c.bf16 %v5009, %v5006
        %v5076 = vpack.c.bf16 %v5013, %v5010
        %v5077 = vpack.c.bf16 %v5014, %v5011
        %v5078 = vpack.c.bf16 %v5015, %v5012
        %v5079 = vpack.c.bf16 %v5019, %v5016
        %v5080 = vpack.c.bf16 %v5020, %v5017
        %v5081 = vpack.c.bf16 %v5021, %v5018
        %v5082 = vpack.c.bf16 %v5025, %v5022
        %v5083 = vpack.c.bf16 %v5026, %v5023
        %v5084 = vpack.c.bf16 %v5027, %v5024
        %v5085 = vpack.c.bf16 %v5031, %v5028
        %v5086 = vpack.c.bf16 %v5032, %v5029
        %v5087 = vpack.c.bf16 %v5033, %v5030
        %v5088 = vpack.c.bf16 %v5037, %v5034
        %v5089 = vpack.c.bf16 %v5038, %v5035
        %v5090 = vpack.c.bf16 %v5039, %v5036
        %v5091 = vpack.c.bf16 %v5043, %v5040
        %v5092 = vpack.c.bf16 %v5044, %v5041
        %v5093 = vpack.c.bf16 %v5045, %v5042
        %v5142 = vunpack.c.l.b16 %v5046
        %v5143 = vunpack.c.l.b16 %v5047
        %v5144 = vunpack.c.l.b16 %v5048
        %v5145 = vunpack.c.h.b16 %v5046
        %v5146 = vunpack.c.h.b16 %v5047
        %v5147 = vunpack.c.h.b16 %v5048
        %v5148 = vunpack.c.l.b16 %v5049
        %v5149 = vunpack.c.l.b16 %v5050
        %v5150 = vunpack.c.l.b16 %v5051
        %v5151 = vunpack.c.h.b16 %v5049
        %v5152 = vunpack.c.h.b16 %v5050
        %v5153 = vunpack.c.h.b16 %v5051
        %v5154 = vunpack.c.l.b16 %v5052
        %v5155 = vunpack.c.l.b16 %v5053
        %v5156 = vunpack.c.l.b16 %v5054
        %v5157 = vunpack.c.h.b16 %v5052
        %v5158 = vunpack.c.h.b16 %v5053
        %v5159 = vunpack.c.h.b16 %v5054
        %v5160 = vunpack.c.l.b16 %v5055
        %v5161 = vunpack.c.l.b16 %v5056
        %v5162 = vunpack.c.l.b16 %v5057
        %v5163 = vunpack.c.h.b16 %v5055
        %v5164 = vunpack.c.h.b16 %v5056
        %v5165 = vunpack.c.h.b16 %v5057
        %v5166 = vunpack.c.l.b16 %v5058
        %v5167 = vunpack.c.l.b16 %v5059
        %v5168 = vunpack.c.l.b16 %v5060
        %v5169 = vunpack.c.h.b16 %v5058
        %v5170 = vunpack.c.h.b16 %v5059
        %v5171 = vunpack.c.h.b16 %v5060
        %v5172 = vunpack.c.l.b16 %v5061
        %v5173 = vunpack.c.l.b16 %v5062
        %v5174 = vunpack.c.l.b16 %v5063
        %v5175 = vunpack.c.h.b16 %v5061
        %v5176 = vunpack.c.h.b16 %v5062
        %v5177 = vunpack.c.h.b16 %v5063
        %v5178 = vunpack.c.l.b16 %v5064
        %v5179 = vunpack.c.l.b16 %v5065
        %v5180 = vunpack.c.l.b16 %v5066
        %v5181 = vunpack.c.h.b16 %v5064
        %v5182 = vunpack.c.h.b16 %v5065
        %v5183 = vunpack.c.h.b16 %v5066
        %v5184 = vunpack.c.l.b16 %v5067
        %v5185 = vunpack.c.l.b16 %v5068
        %v5186 = vunpack.c.l.b16 %v5069
        %v5187 = vunpack.c.h.b16 %v5067
        %v5188 = vunpack.c.h.b16 %v5068
        %v5189 = vunpack.c.h.b16 %v5069
        %v5190 = vunpack.c.l.b16 %v5070
        %v5191 = vunpack.c.l.b16 %v5071
        %v5192 = vunpack.c.l.b16 %v5072
        %v5193 = vunpack.c.h.b16 %v5070
        %v5194 = vunpack.c.h.b16 %v5071
        %v5195 = vunpack.c.h.b16 %v5072
        %v5196 = vunpack.c.l.b16 %v5073
        %v5197 = vunpack.c.l.b16 %v5074
        %v5198 = vunpack.c.l.b16 %v5075
        %v5199 = vunpack.c.h.b16 %v5073
        %v5200 = vunpack.c.h.b16 %v5074
        %v5201 = vunpack.c.h.b16 %v5075
        %v5202 = vunpack.c.l.b16 %v5076
        %v5203 = vunpack.c.l.b16 %v5077
        %v5204 = vunpack.c.l.b16 %v5078
        %v5205 = vunpack.c.h.b16 %v5076
        %v5206 = vunpack.c.h.b16 %v5077
        %v5207 = vunpack.c.h.b16 %v5078
        %v5208 = vunpack.c.l.b16 %v5079
        %v5209 = vunpack.c.l.b16 %v5080
        %v5210 = vunpack.c.l.b16 %v5081
        %v5211 = vunpack.c.h.b16 %v5079
        %v5212 = vunpack.c.h.b16 %v5080
        %v5213 = vunpack.c.h.b16 %v5081
        %v5214 = vunpack.c.l.b16 %v5082
        %v5215 = vunpack.c.l.b16 %v5083
        %v5216 = vunpack.c.l.b16 %v5084
        %v5217 = vunpack.c.h.b16 %v5082
        %v5218 = vunpack.c.h.b16 %v5083
        %v5219 = vunpack.c.h.b16 %v5084
        %v5220 = vunpack.c.l.b16 %v5085
        %v5221 = vunpack.c.l.b16 %v5086
        %v5222 = vunpack.c.l.b16 %v5087
        %v5223 = vunpack.c.h.b16 %v5085
        %v5224 = vunpack.c.h.b16 %v5086
        %v5225 = vunpack.c.h.b16 %v5087
        %v5226 = vunpack.c.l.b16 %v5088
        %v5227 = vunpack.c.l.b16 %v5089
        %v5228 = vunpack.c.l.b16 %v5090
        %v5229 = vunpack.c.h.b16 %v5088
        %v5230 = vunpack.c.h.b16 %v5089
        %v5231 = vunpack.c.h.b16 %v5090
        %v5232 = vunpack.c.l.b16 %v5091
        %v5233 = vunpack.c.l.b16 %v5092
        %v5234 = vunpack.c.l.b16 %v5093
        %v5235 = vunpack.c.h.b16 %v5091
        %v5236 = vunpack.c.h.b16 %v5092
        %v5237 = vunpack.c.h.b16 %v5093
        %v5238 = vpack.c.b16 %v5143, %v5142
        %v5239 = vpack.c.b16 %v5144, %v5144
        %v5240 = vpack.c.b16 %v5146, %v5145
        %v5241 = vpack.c.b16 %v5147, %v5147
        %v5242 = vpack.c.b16 %v5149, %v5148
        %v5243 = vpack.c.b16 %v5150, %v5150
        %v5244 = vpack.c.b16 %v5152, %v5151
        %v5245 = vpack.c.b16 %v5153, %v5153
        %v5246 = vpack.c.b16 %v5155, %v5154
        %v5247 = vpack.c.b16 %v5156, %v5156
        %v5248 = vpack.c.b16 %v5158, %v5157
        %v5249 = vpack.c.b16 %v5159, %v5159
        %v5250 = vpack.c.b16 %v5161, %v5160
        %v5251 = vpack.c.b16 %v5162, %v5162
        %v5252 = vpack.c.b16 %v5164, %v5163
        %v5253 = vpack.c.b16 %v5165, %v5165
        %v5254 = vpack.c.b16 %v5167, %v5166
        %v5255 = vpack.c.b16 %v5168, %v5168
        %v5256 = vpack.c.b16 %v5170, %v5169
        %v5257 = vpack.c.b16 %v5171, %v5171
        %v5258 = vpack.c.b16 %v5173, %v5172
        %v5259 = vpack.c.b16 %v5174, %v5174
        %v5260 = vpack.c.b16 %v5176, %v5175
        %v5261 = vpack.c.b16 %v5177, %v5177
        %v5262 = vpack.c.b16 %v5179, %v5178
        %v5263 = vpack.c.b16 %v5180, %v5180
        %v5264 = vpack.c.b16 %v5182, %v5181
        %v5265 = vpack.c.b16 %v5183, %v5183
        %v5266 = vpack.c.b16 %v5185, %v5184
        %v5267 = vpack.c.b16 %v5186, %v5186
        %v5268 = vpack.c.b16 %v5188, %v5187
        %v5269 = vpack.c.b16 %v5189, %v5189
        %v5270 = vpack.c.b16 %v5191, %v5190
        %v5271 = vpack.c.b16 %v5192, %v5192
        %v5272 = vpack.c.b16 %v5194, %v5193
        %v5273 = vpack.c.b16 %v5195, %v5195
        %v5274 = vpack.c.b16 %v5197, %v5196
        %v5275 = vpack.c.b16 %v5198, %v5198
        %v5276 = vpack.c.b16 %v5200, %v5199
        %v5277 = vpack.c.b16 %v5201, %v5201
        %v5278 = vpack.c.b16 %v5203, %v5202
        %v5279 = vpack.c.b16 %v5204, %v5204
        %v5280 = vpack.c.b16 %v5206, %v5205
        %v5281 = vpack.c.b16 %v5207, %v5207
        %v5282 = vpack.c.b16 %v5209, %v5208
        %v5283 = vpack.c.b16 %v5210, %v5210
        %v5284 = vpack.c.b16 %v5212, %v5211
        %v5285 = vpack.c.b16 %v5213, %v5213
        %v5286 = vpack.c.b16 %v5215, %v5214
        %v5287 = vpack.c.b16 %v5216, %v5216
        %v5288 = vpack.c.b16 %v5218, %v5217
        %v5289 = vpack.c.b16 %v5219, %v5219
        %v5290 = vpack.c.b16 %v5221, %v5220
        %v5291 = vpack.c.b16 %v5222, %v5222
        %v5292 = vpack.c.b16 %v5224, %v5223
        %v5293 = vpack.c.b16 %v5225, %v5225
        %v5294 = vpack.c.b16 %v5227, %v5226
        %v5295 = vpack.c.b16 %v5228, %v5228
        %v5296 = vpack.c.b16 %v5230, %v5229
        %v5297 = vpack.c.b16 %v5231, %v5231
        %v5298 = vpack.c.b16 %v5233, %v5232
        %v5299 = vpack.c.b16 %v5234, %v5234
        %v5300 = vpack.c.b16 %v5236, %v5235
        %v5301 = vpack.c.b16 %v5237, %v5237
        %5366 = vst [vmem:[#allocation4] sm:$0xff] %v5238
        %5367 = vst.msk [vmem:[#allocation4 + $0x8] sm:$0xf] %vm563, %v5239
        %5368 = vst [vmem:[#allocation4 + $0xc] sm:$0xff] %v5240
        %5369 = vst.msk [vmem:[#allocation4 + $0x14] sm:$0xf] %vm563, %v5241
        %5370 = vst [vmem:[#allocation4 + $0x18] sm:$0xff] %v5242
        %5371 = vst.msk [vmem:[#allocation4 + $0x20] sm:$0xf] %vm563, %v5243
        %5372 = vst [vmem:[#allocation4 + $0x24] sm:$0xff] %v5244
        %5373 = vst.msk [vmem:[#allocation4 + $0x2c] sm:$0xf] %vm563, %v5245
        %5374 = vst [vmem:[#allocation4 + $0x30] sm:$0xff] %v5246
        %5375 = vst.msk [vmem:[#allocation4 + $0x38] sm:$0xf] %vm563, %v5247
        %5376 = vst [vmem:[#allocation4 + $0x3c] sm:$0xff] %v5248
        %5377 = vst.msk [vmem:[#allocation4 + $0x44] sm:$0xf] %vm563, %v5249
        %5378 = vst [vmem:[#allocation4 + $0x48] sm:$0xff] %v5250
        %5379 = vst.msk [vmem:[#allocation4 + $0x50] sm:$0xf] %vm563, %v5251
        %5380 = vst [vmem:[#allocation4 + $0x54] sm:$0xff] %v5252
        %5381 = vst.msk [vmem:[#allocation4 + $0x5c] sm:$0xf] %vm563, %v5253
        %5382 = vst [vmem:[#allocation4 + $0x60] sm:$0xff] %v5254
        %5383 = vst.msk [vmem:[#allocation4 + $0x68] sm:$0xf] %vm563, %v5255
        %5384 = vst [vmem:[#allocation4 + $0x6c] sm:$0xff] %v5256
        %5385 = vst.msk [vmem:[#allocation4 + $0x74] sm:$0xf] %vm563, %v5257
        %5386 = vst [vmem:[#allocation4 + $0x78] sm:$0xff] %v5258
        %5387 = vst.msk [vmem:[#allocation4 + $0x80] sm:$0xf] %vm563, %v5259
        %5388 = vst [vmem:[#allocation4 + $0x84] sm:$0xff] %v5260
        %5389 = vst.msk [vmem:[#allocation4 + $0x8c] sm:$0xf] %vm563, %v5261
        %5390 = vst [vmem:[#allocation4 + $0x90] sm:$0xff] %v5262
        %5391 = vst.msk [vmem:[#allocation4 + $0x98] sm:$0xf] %vm563, %v5263
        %5392 = vst [vmem:[#allocation4 + $0x9c] sm:$0xff] %v5264
        %5393 = vst.msk [vmem:[#allocation4 + $0xa4] sm:$0xf] %vm563, %v5265
        %5394 = vst [vmem:[#allocation4 + $0xa8] sm:$0xff] %v5266
        %5395 = vst.msk [vmem:[#allocation4 + $0xb0] sm:$0xf] %vm563, %v5267
        %5396 = vst [vmem:[#allocation4 + $0xb4] sm:$0xff] %v5268
        %5397 = vst.msk [vmem:[#allocation4 + $0xbc] sm:$0xf] %vm563, %v5269
        %5398 = vst [vmem:[#allocation4 + $0xc0] sm:$0xff] %v5270
        %5399 = vst.msk [vmem:[#allocation4 + $0xc8] sm:$0xf] %vm563, %v5271
        %5400 = vst [vmem:[#allocation4 + $0xcc] sm:$0xff] %v5272
        %5401 = vst.msk [vmem:[#allocation4 + $0xd4] sm:$0xf] %vm563, %v5273
        %5402 = vst [vmem:[#allocation4 + $0xd8] sm:$0xff] %v5274
        %5403 = vst.msk [vmem:[#allocation4 + $0xe0] sm:$0xf] %vm563, %v5275
        %5404 = vst [vmem:[#allocation4 + $0xe4] sm:$0xff] %v5276
        %5405 = vst.msk [vmem:[#allocation4 + $0xec] sm:$0xf] %vm563, %v5277
        %5406 = vst [vmem:[#allocation4 + $0xf0] sm:$0xff] %v5278
        %5407 = vst.msk [vmem:[#allocation4 + $0xf8] sm:$0xf] %vm563, %v5279
        %5408 = vst [vmem:[#allocation4 + $0xfc] sm:$0xff] %v5280
        %5409 = vst.msk [vmem:[#allocation4 + $0x104] sm:$0xf] %vm563, %v5281
        %5410 = vst [vmem:[#allocation4 + $0x108] sm:$0xff] %v5282
        %5411 = vst.msk [vmem:[#allocation4 + $0x110] sm:$0xf] %vm563, %v5283
        %5412 = vst [vmem:[#allocation4 + $0x114] sm:$0xff] %v5284
        %5413 = vst.msk [vmem:[#allocation4 + $0x11c] sm:$0xf] %vm563, %v5285
        %5414 = vst [vmem:[#allocation4 + $0x120] sm:$0xff] %v5286
        %5415 = vst.msk [vmem:[#allocation4 + $0x128] sm:$0xf] %vm563, %v5287
        %5416 = vst [vmem:[#allocation4 + $0x12c] sm:$0xff] %v5288
        %5417 = vst.msk [vmem:[#allocation4 + $0x134] sm:$0xf] %vm563, %v5289
        %5418 = vst [vmem:[#allocation4 + $0x138] sm:$0xff] %v5290
        %5419 = vst.msk [vmem:[#allocation4 + $0x140] sm:$0xf] %vm563, %v5291
        %5420 = vst [vmem:[#allocation4 + $0x144] sm:$0xff] %v5292
        %5421 = vst.msk [vmem:[#allocation4 + $0x14c] sm:$0xf] %vm563, %v5293
        %5422 = vst [vmem:[#allocation4 + $0x150] sm:$0xff] %v5294
        %5423 = vst.msk [vmem:[#allocation4 + $0x158] sm:$0xf] %vm563, %v5295
        %5424 = vst [vmem:[#allocation4 + $0x15c] sm:$0xff] %v5296
        %5425 = vst.msk [vmem:[#allocation4 + $0x164] sm:$0xf] %vm563, %v5297
        %5426 = vst [vmem:[#allocation4 + $0x168] sm:$0xff] %v5298
        %5427 = vst.msk [vmem:[#allocation4 + $0x170] sm:$0xf] %vm563, %v5299
        %5428 = vst [vmem:[#allocation4 + $0x174] sm:$0xff] %v5300
        %5429 = vst.msk [vmem:[#allocation4 + $0x17c] sm:$0xf] %vm563, %v5301
        %v5430 = vld [vmem:[#allocation4] sm:$0xff]
        %v5431 = vld [vmem:[#allocation4 + $0x8] sm:$0xf]
        %v5432 = vld [vmem:[#allocation4 + $0xc] sm:$0xff]
        %v5433 = vld [vmem:[#allocation4 + $0x14] sm:$0xf]
        %v5434 = vld [vmem:[#allocation4 + $0x18] sm:$0xff]
        %v5435 = vld [vmem:[#allocation4 + $0x20] sm:$0xf]
        %v5436 = vld [vmem:[#allocation4 + $0x24] sm:$0xff]
        %v5437 = vld [vmem:[#allocation4 + $0x2c] sm:$0xf]
        %v5438 = vld [vmem:[#allocation4 + $0x30] sm:$0xff]
        %v5439 = vld [vmem:[#allocation4 + $0x38] sm:$0xf]
        %v5440 = vld [vmem:[#allocation4 + $0x3c] sm:$0xff]
        %v5441 = vld [vmem:[#allocation4 + $0x44] sm:$0xf]
        %v5442 = vld [vmem:[#allocation4 + $0x48] sm:$0xff]
        %v5443 = vld [vmem:[#allocation4 + $0x50] sm:$0xf]
        %v5444 = vld [vmem:[#allocation4 + $0x54] sm:$0xff]
        %v5445 = vld [vmem:[#allocation4 + $0x5c] sm:$0xf]
        %v5446 = vld [vmem:[#allocation4 + $0x60] sm:$0xff]
        %v5447 = vld [vmem:[#allocation4 + $0x68] sm:$0xf]
        %v5448 = vld [vmem:[#allocation4 + $0x6c] sm:$0xff]
        %v5449 = vld [vmem:[#allocation4 + $0x74] sm:$0xf]
        %v5450 = vld [vmem:[#allocation4 + $0x78] sm:$0xff]
        %v5451 = vld [vmem:[#allocation4 + $0x80] sm:$0xf]
        %v5452 = vld [vmem:[#allocation4 + $0x84] sm:$0xff]
        %v5453 = vld [vmem:[#allocation4 + $0x8c] sm:$0xf]
        %v5454 = vld [vmem:[#allocation4 + $0x90] sm:$0xff]
        %v5455 = vld [vmem:[#allocation4 + $0x98] sm:$0xf]
        %v5456 = vld [vmem:[#allocation4 + $0x9c] sm:$0xff]
        %v5457 = vld [vmem:[#allocation4 + $0xa4] sm:$0xf]
        %v5458 = vld [vmem:[#allocation4 + $0xa8] sm:$0xff]
        %v5459 = vld [vmem:[#allocation4 + $0xb0] sm:$0xf]
        %v5460 = vld [vmem:[#allocation4 + $0xb4] sm:$0xff]
        %v5461 = vld [vmem:[#allocation4 + $0xbc] sm:$0xf]
        %v5462 = vld [vmem:[#allocation4 + $0xc0] sm:$0xff]
        %v5463 = vld [vmem:[#allocation4 + $0xc8] sm:$0xf]
        %v5464 = vld [vmem:[#allocation4 + $0xcc] sm:$0xff]
        %v5465 = vld [vmem:[#allocation4 + $0xd4] sm:$0xf]
        %v5466 = vld [vmem:[#allocation4 + $0xd8] sm:$0xff]
        %v5467 = vld [vmem:[#allocation4 + $0xe0] sm:$0xf]
        %v5468 = vld [vmem:[#allocation4 + $0xe4] sm:$0xff]
        %v5469 = vld [vmem:[#allocation4 + $0xec] sm:$0xf]
        %v5470 = vld [vmem:[#allocation4 + $0xf0] sm:$0xff]
        %v5471 = vld [vmem:[#allocation4 + $0xf8] sm:$0xf]
        %v5472 = vld [vmem:[#allocation4 + $0xfc] sm:$0xff]
        %v5473 = vld [vmem:[#allocation4 + $0x104] sm:$0xf]
        %v5474 = vld [vmem:[#allocation4 + $0x108] sm:$0xff]
        %v5475 = vld [vmem:[#allocation4 + $0x110] sm:$0xf]
        %v5476 = vld [vmem:[#allocation4 + $0x114] sm:$0xff]
        %v5477 = vld [vmem:[#allocation4 + $0x11c] sm:$0xf]
        %v5478 = vld [vmem:[#allocation4 + $0x120] sm:$0xff]
        %v5479 = vld [vmem:[#allocation4 + $0x128] sm:$0xf]
        %v5480 = vld [vmem:[#allocation4 + $0x12c] sm:$0xff]
        %v5481 = vld [vmem:[#allocation4 + $0x134] sm:$0xf]
        %v5482 = vld [vmem:[#allocation4 + $0x138] sm:$0xff]
        %v5483 = vld [vmem:[#allocation4 + $0x140] sm:$0xf]
        %v5484 = vld [vmem:[#allocation4 + $0x144] sm:$0xff]
        %v5485 = vld [vmem:[#allocation4 + $0x14c] sm:$0xf]
        %v5486 = vld [vmem:[#allocation4 + $0x150] sm:$0xff]
        %v5487 = vld [vmem:[#allocation4 + $0x158] sm:$0xf]
        %v5488 = vld [vmem:[#allocation4 + $0x15c] sm:$0xff]
        %v5489 = vld [vmem:[#allocation4 + $0x164] sm:$0xf]
        %v5490 = vld [vmem:[#allocation4 + $0x168] sm:$0xff]
        %v5491 = vld [vmem:[#allocation4 + $0x170] sm:$0xf]
        %v5492 = vld [vmem:[#allocation4 + $0x174] sm:$0xff]
        %v5493 = vld [vmem:[#allocation4 + $0x17c] sm:$0xf]
        %v5494 = vld [vmem:[#allocation8] sm:$0xff]
        %v5495 = vld [vmem:[#allocation8 + $0x8] sm:$0xff]
        %v5496 = vld [vmem:[#allocation8 + $0x10] sm:$0xff]
        %v5497 = vld [vmem:[#allocation8 + $0x18] sm:$0xff]
        %v5498 = vld [vmem:[#allocation8 + $0x20] sm:$0xff]
        %v5499 = vld [vmem:[#allocation8 + $0x28] sm:$0xff]
        %v5500 = vld [vmem:[#allocation8 + $0x30] sm:$0xff]
        %v5501 = vld [vmem:[#allocation8 + $0x38] sm:$0xff]
        %v5502 = vld [vmem:[#allocation8 + $0x40] sm:$0xff]
        %v5503 = vld [vmem:[#allocation8 + $0x48] sm:$0xff]
        %v5504 = vld [vmem:[#allocation8 + $0x50] sm:$0xff]
        %v5505 = vld [vmem:[#allocation8 + $0x58] sm:$0xff]
        %v5506 = vld [vmem:[#allocation8 + $0x60] sm:$0xff]
        %v5507 = vld [vmem:[#allocation8 + $0x68] sm:$0xff]
        %v5508 = vld [vmem:[#allocation8 + $0x70] sm:$0xff]
        %v5509 = vld [vmem:[#allocation8 + $0x78] sm:$0xff]
        %v5510 = vld [vmem:[#allocation8 + $0x80] sm:$0xff]
        %v5511 = vld [vmem:[#allocation8 + $0x88] sm:$0xff]
        %v5512 = vld [vmem:[#allocation8 + $0x90] sm:$0xff]
        %v5513 = vld [vmem:[#allocation8 + $0x98] sm:$0xff]
        %v5514 = vld [vmem:[#allocation8 + $0xa0] sm:$0xff]
        %v5515 = vld [vmem:[#allocation8 + $0xa8] sm:$0xff]
        %v5516 = vld [vmem:[#allocation8 + $0xb0] sm:$0xff]
        %v5517 = vld [vmem:[#allocation8 + $0xb8] sm:$0xff]
        %v5518 = vld [vmem:[#allocation8 + $0xc0] sm:$0xff]
        %v5519 = vld [vmem:[#allocation8 + $0xc8] sm:$0xff]
        %v5520 = vld [vmem:[#allocation8 + $0xd0] sm:$0xff]
        %v5521 = vld [vmem:[#allocation8 + $0xd8] sm:$0xff]
        %v5522 = vld [vmem:[#allocation8 + $0xe0] sm:$0xff]
        %v5523 = vld [vmem:[#allocation8 + $0xe8] sm:$0xff]
        %v5524 = vld [vmem:[#allocation8 + $0xf0] sm:$0xff]
        %v5525 = vld [vmem:[#allocation8 + $0xf8] sm:$0xff]
        %v5526 = vld [vmem:[#allocation8 + $0x100] sm:$0xff]
        %v5527 = vld [vmem:[#allocation8 + $0x108] sm:$0xff]
        %v5528 = vld [vmem:[#allocation8 + $0x110] sm:$0xff]
        %v5529 = vld [vmem:[#allocation8 + $0x118] sm:$0xff]
        %v5530 = vld [vmem:[#allocation8 + $0x120] sm:$0xff]
        %v5531 = vld [vmem:[#allocation8 + $0x128] sm:$0xff]
        %v5532 = vld [vmem:[#allocation8 + $0x130] sm:$0xff]
        %v5533 = vld [vmem:[#allocation8 + $0x138] sm:$0xff]
        %v5534 = vld [vmem:[#allocation8 + $0x140] sm:$0xff]
        %v5535 = vld [vmem:[#allocation8 + $0x148] sm:$0xff]
        %v5536 = vld [vmem:[#allocation4 + $0x180] sm:$0x11]
        %v5537 = vld [vmem:[#allocation4 + $0x188] sm:$0x1]
        %s5538 = scalar_lea.vmem [#allocation8], 336
        %v5539 = vld [vmem:[%s5538] sm:$0xff]
        %v5540 = vld [vmem:[%s5538 + $0x8] sm:$0xff]
        %v5541 = vld [vmem:[%s5538 + $0x10] sm:$0xff]
        %v5542 = vld [vmem:[%s5538 + $0x18] sm:$0xff]
        %v5543 = vld [vmem:[%s5538 + $0x20] sm:$0xff]
        %v5544 = vld [vmem:[%s5538 + $0x28] sm:$0xff]
        %v5545 = vld [vmem:[%s5538 + $0x30] sm:$0xff]
        %v5546 = vld [vmem:[%s5538 + $0x38] sm:$0xff]
        %v5547 = vld [vmem:[%s5538 + $0x40] sm:$0xff]
        %v5548 = vld [vmem:[%s5538 + $0x48] sm:$0xff]
        %v5549 = vld [vmem:[%s5538 + $0x50] sm:$0xff]
        %v5550 = vld [vmem:[%s5538 + $0x58] sm:$0xff]
        %v5551 = vld [vmem:[%s5538 + $0x60] sm:$0xff]
        %v5552 = vld [vmem:[%s5538 + $0x68] sm:$0xff]
        %v5553 = vld [vmem:[%s5538 + $0x70] sm:$0xff]
        %v5554 = vld [vmem:[%s5538 + $0x78] sm:$0xff]
        %v5555 = vld [vmem:[%s5538 + $0x80] sm:$0xff]
        %v5556 = vld [vmem:[%s5538 + $0x88] sm:$0xff]
        %v5557 = vld [vmem:[%s5538 + $0x90] sm:$0xff]
        %v5558 = vld [vmem:[%s5538 + $0x98] sm:$0xff]
        %v5559 = vld [vmem:[%s5538 + $0xa0] sm:$0xff]
        %v5560 = vld [vmem:[%s5538 + $0xa8] sm:$0xff]
        %v5561 = vld [vmem:[%s5538 + $0xb0] sm:$0xff]
        %v5562 = vld [vmem:[%s5538 + $0xb8] sm:$0xff]
        %v5563 = vld [vmem:[%s5538 + $0xc0] sm:$0xff]
        %v5564 = vld [vmem:[%s5538 + $0xc8] sm:$0xff]
        %v5565 = vld [vmem:[%s5538 + $0xd0] sm:$0xff]
        %v5566 = vld [vmem:[%s5538 + $0xd8] sm:$0xff]
        %v5567 = vld [vmem:[%s5538 + $0xe0] sm:$0xff]
        %v5568 = vld [vmem:[%s5538 + $0xe8] sm:$0xff]
        %v5569 = vld [vmem:[%s5538 + $0xf0] sm:$0xff]
        %v5570 = vld [vmem:[%s5538 + $0xf8] sm:$0xff]
        %v5571 = vld [vmem:[%s5538 + $0x100] sm:$0xff]
        %v5572 = vld [vmem:[%s5538 + $0x108] sm:$0xff]
        %v5573 = vld [vmem:[%s5538 + $0x110] sm:$0xff]
        %v5574 = vld [vmem:[%s5538 + $0x118] sm:$0xff]
        %v5575 = vld [vmem:[%s5538 + $0x120] sm:$0xff]
        %v5576 = vld [vmem:[%s5538 + $0x128] sm:$0xff]
        %v5577 = vld [vmem:[%s5538 + $0x130] sm:$0xff]
        %v5578 = vld [vmem:[%s5538 + $0x138] sm:$0xff]
        %v5579 = vld [vmem:[%s5538 + $0x140] sm:$0xff]
        %v5580 = vld [vmem:[%s5538 + $0x148] sm:$0xff]
        %v5647 = vunpack.c.l.b16 %v5430
        %v5648 = vunpack.c.h.b16 %v5430
        %v5649 = vunpack.c.l.b16 %v5431
        %v5650 = vunpack.c.l.b16 %v5432
        %v5651 = vunpack.c.h.b16 %v5432
        %v5652 = vunpack.c.l.b16 %v5433
        %v5653 = vunpack.c.l.b16 %v5434
        %v5654 = vunpack.c.h.b16 %v5434
        %v5655 = vunpack.c.l.b16 %v5435
        %v5656 = vunpack.c.l.b16 %v5436
        %v5657 = vunpack.c.h.b16 %v5436
        %v5658 = vunpack.c.l.b16 %v5437
        %v5659 = vunpack.c.l.b16 %v5438
        %v5660 = vunpack.c.h.b16 %v5438
        %v5661 = vunpack.c.l.b16 %v5439
        %v5662 = vunpack.c.l.b16 %v5440
        %v5663 = vunpack.c.h.b16 %v5440
        %v5664 = vunpack.c.l.b16 %v5441
        %v5665 = vunpack.c.l.b16 %v5442
        %v5666 = vunpack.c.h.b16 %v5442
        %v5667 = vunpack.c.l.b16 %v5443
        %v5668 = vunpack.c.l.b16 %v5444
        %v5669 = vunpack.c.h.b16 %v5444
        %v5670 = vunpack.c.l.b16 %v5445
        %v5671 = vunpack.c.l.b16 %v5446
        %v5672 = vunpack.c.h.b16 %v5446
        %v5673 = vunpack.c.l.b16 %v5447
        %v5674 = vunpack.c.l.b16 %v5448
        %v5675 = vunpack.c.h.b16 %v5448
        %v5676 = vunpack.c.l.b16 %v5449
        %v5677 = vunpack.c.l.b16 %v5450
        %v5678 = vunpack.c.h.b16 %v5450
        %v5679 = vunpack.c.l.b16 %v5451
        %v5680 = vunpack.c.l.b16 %v5452
        %v5681 = vunpack.c.h.b16 %v5452
        %v5682 = vunpack.c.l.b16 %v5453
        %v5683 = vunpack.c.l.b16 %v5454
        %v5684 = vunpack.c.h.b16 %v5454
        %v5685 = vunpack.c.l.b16 %v5455
        %v5686 = vunpack.c.l.b16 %v5456
        %v5687 = vunpack.c.h.b16 %v5456
        %v5688 = vunpack.c.l.b16 %v5457
        %v5689 = vunpack.c.l.b16 %v5458
        %v5690 = vunpack.c.h.b16 %v5458
        %v5691 = vunpack.c.l.b16 %v5459
        %v5692 = vunpack.c.l.b16 %v5460
        %v5693 = vunpack.c.h.b16 %v5460
        %v5694 = vunpack.c.l.b16 %v5461
        %v5695 = vunpack.c.l.b16 %v5462
        %v5696 = vunpack.c.h.b16 %v5462
        %v5697 = vunpack.c.l.b16 %v5463
        %v5698 = vunpack.c.l.b16 %v5464
        %v5699 = vunpack.c.h.b16 %v5464
        %v5700 = vunpack.c.l.b16 %v5465
        %v5701 = vunpack.c.l.b16 %v5466
        %v5702 = vunpack.c.h.b16 %v5466
        %v5703 = vunpack.c.l.b16 %v5467
        %v5704 = vunpack.c.l.b16 %v5468
        %v5705 = vunpack.c.h.b16 %v5468
        %v5706 = vunpack.c.l.b16 %v5469
        %v5707 = vunpack.c.l.b16 %v5470
        %v5708 = vunpack.c.h.b16 %v5470
        %v5709 = vunpack.c.l.b16 %v5471
        %v5710 = vunpack.c.l.b16 %v5472
        %v5711 = vunpack.c.h.b16 %v5472
        %v5712 = vunpack.c.l.b16 %v5473
        %v5713 = vunpack.c.l.b16 %v5474
        %v5714 = vunpack.c.h.b16 %v5474
        %v5715 = vunpack.c.l.b16 %v5475
        %v5716 = vunpack.c.l.b16 %v5476
        %v5717 = vunpack.c.h.b16 %v5476
        %v5718 = vunpack.c.l.b16 %v5477
        %v5719 = vunpack.c.l.b16 %v5478
        %v5720 = vunpack.c.h.b16 %v5478
        %v5721 = vunpack.c.l.b16 %v5479
        %v5722 = vunpack.c.l.b16 %v5480
        %v5723 = vunpack.c.h.b16 %v5480
        %v5724 = vunpack.c.l.b16 %v5481
        %v5725 = vunpack.c.l.b16 %v5482
        %v5726 = vunpack.c.h.b16 %v5482
        %v5727 = vunpack.c.l.b16 %v5483
        %v5728 = vunpack.c.l.b16 %v5484
        %v5729 = vunpack.c.h.b16 %v5484
        %v5730 = vunpack.c.l.b16 %v5485
        %v5731 = vunpack.c.l.b16 %v5486
        %v5732 = vunpack.c.h.b16 %v5486
        %v5733 = vunpack.c.l.b16 %v5487
        %v5734 = vunpack.c.l.b16 %v5488
        %v5735 = vunpack.c.h.b16 %v5488
        %v5736 = vunpack.c.l.b16 %v5489
        %v5737 = vunpack.c.l.b16 %v5490
        %v5738 = vunpack.c.h.b16 %v5490
        %v5739 = vunpack.c.l.b16 %v5491
        %v5740 = vunpack.c.l.b16 %v5492
        %v5741 = vunpack.c.h.b16 %v5492
        %v5742 = vunpack.c.l.b16 %v5493
        %v5743 = vunpack.c.l.b16 %v5536
        %v5744 = vunpack.c.h.b16 %v5536
        %v5745 = vunpack.c.l.b16 %v5537
        %v5746 = vpack.c.b16 %v5650, %v5647
        %v5747 = vpack.c.b16 %v5651, %v5648
        %v5748 = vpack.c.b16 %v5652, %v5649
        %v5749 = vpack.c.b16 %v5656, %v5653
        %v5750 = vpack.c.b16 %v5657, %v5654
        %v5751 = vpack.c.b16 %v5658, %v5655
        %v5752 = vpack.c.b16 %v5662, %v5659
        %v5753 = vpack.c.b16 %v5663, %v5660
        %v5754 = vpack.c.b16 %v5664, %v5661
        %v5755 = vpack.c.b16 %v5668, %v5665
        %v5756 = vpack.c.b16 %v5669, %v5666
        %v5757 = vpack.c.b16 %v5670, %v5667
        %v5758 = vpack.c.b16 %v5674, %v5671
        %v5759 = vpack.c.b16 %v5675, %v5672
        %v5760 = vpack.c.b16 %v5676, %v5673
        %v5761 = vpack.c.b16 %v5680, %v5677
        %v5762 = vpack.c.b16 %v5681, %v5678
        %v5763 = vpack.c.b16 %v5682, %v5679
        %v5764 = vpack.c.b16 %v5686, %v5683
        %v5765 = vpack.c.b16 %v5687, %v5684
        %v5766 = vpack.c.b16 %v5688, %v5685
        %v5767 = vpack.c.b16 %v5692, %v5689
        %v5768 = vpack.c.b16 %v5693, %v5690
        %v5769 = vpack.c.b16 %v5694, %v5691
        %v5770 = vpack.c.b16 %v5698, %v5695
        %v5771 = vpack.c.b16 %v5699, %v5696
        %v5772 = vpack.c.b16 %v5700, %v5697
        %v5773 = vpack.c.b16 %v5704, %v5701
        %v5774 = vpack.c.b16 %v5705, %v5702
        %v5775 = vpack.c.b16 %v5706, %v5703
        %v5776 = vpack.c.b16 %v5710, %v5707
        %v5777 = vpack.c.b16 %v5711, %v5708
        %v5778 = vpack.c.b16 %v5712, %v5709
        %v5779 = vpack.c.b16 %v5716, %v5713
        %v5780 = vpack.c.b16 %v5717, %v5714
        %v5781 = vpack.c.b16 %v5718, %v5715
        %v5782 = vpack.c.b16 %v5722, %v5719
        %v5783 = vpack.c.b16 %v5723, %v5720
        %v5784 = vpack.c.b16 %v5724, %v5721
        %v5785 = vpack.c.b16 %v5728, %v5725
        %v5786 = vpack.c.b16 %v5729, %v5726
        %v5787 = vpack.c.b16 %v5730, %v5727
        %v5788 = vpack.c.b16 %v5734, %v5731
        %v5789 = vpack.c.b16 %v5735, %v5732
        %v5790 = vpack.c.b16 %v5736, %v5733
        %v5791 = vpack.c.b16 %v5740, %v5737
        %v5792 = vpack.c.b16 %v5741, %v5738
        %v5793 = vpack.c.b16 %v5742, %v5739
        %v5794 = vpack.c.b16 %v5743, %v5743
        %v5795 = vpack.c.b16 %v5744, %v5744
        %v5796 = vpack.c.b16 %v5745, %v5745
        %v5798 = vshrl.u32 %v5746, 16
        %v5800 = vshll.u32 %v5746, 16
        %v5802 = vrot.slane %v5800, 1
        %v5803 = vor.u32 %v5798, %v5802
        %v5805 = vshll.u32 %v5749, 16
        %v5807 = vrot.slane %v5805, 1
        %v5808 = vsel %vm880, %v5803, %v5807
        %v5810 = vshrl.u32 %v5747, 16
        %v5812 = vshll.u32 %v5747, 16
        %v5814 = vrot.slane %v5812, 1
        %v5815 = vor.u32 %v5810, %v5814
        %v5817 = vshll.u32 %v5750, 16
        %v5819 = vrot.slane %v5817, 1
        %v5820 = vsel %vm880, %v5815, %v5819
        %v5822 = vshrl.u32 %v5748, 16
        %v5824 = vshll.u32 %v5748, 16
        %v5826 = vrot.slane %v5824, 1
        %v5827 = vor.u32 %v5822, %v5826
        %v5829 = vshll.u32 %v5751, 16
        %v5831 = vrot.slane %v5829, 1
        %v5832 = vsel %vm880, %v5827, %v5831
        %v5833 = vshrl.u32 %v5749, 16
        %v5835 = vor.u32 %v5833, %v5807
        %v5837 = vshll.u32 %v5752, 16
        %v5839 = vrot.slane %v5837, 1
        %v5840 = vsel %vm880, %v5835, %v5839
        %v5841 = vshrl.u32 %v5750, 16
        %v5843 = vor.u32 %v5841, %v5819
        %v5845 = vshll.u32 %v5753, 16
        %v5847 = vrot.slane %v5845, 1
        %v5848 = vsel %vm880, %v5843, %v5847
        %v5849 = vshrl.u32 %v5751, 16
        %v5851 = vor.u32 %v5849, %v5831
        %v5853 = vshll.u32 %v5754, 16
        %v5855 = vrot.slane %v5853, 1
        %v5856 = vsel %vm880, %v5851, %v5855
        %v5857 = vshrl.u32 %v5752, 16
        %v5859 = vor.u32 %v5857, %v5839
        %v5861 = vshll.u32 %v5755, 16
        %v5863 = vrot.slane %v5861, 1
        %v5864 = vsel %vm880, %v5859, %v5863
        %v5865 = vshrl.u32 %v5753, 16
        %v5867 = vor.u32 %v5865, %v5847
        %v5869 = vshll.u32 %v5756, 16
        %v5871 = vrot.slane %v5869, 1
        %v5872 = vsel %vm880, %v5867, %v5871
        %v5873 = vshrl.u32 %v5754, 16
        %v5875 = vor.u32 %v5873, %v5855
        %v5877 = vshll.u32 %v5757, 16
        %v5879 = vrot.slane %v5877, 1
        %v5880 = vsel %vm880, %v5875, %v5879
        %v5881 = vshrl.u32 %v5755, 16
        %v5883 = vor.u32 %v5881, %v5863
        %v5885 = vshll.u32 %v5758, 16
        %v5887 = vrot.slane %v5885, 1
        %v5888 = vsel %vm880, %v5883, %v5887
        %v5889 = vshrl.u32 %v5756, 16
        %v5891 = vor.u32 %v5889, %v5871
        %v5893 = vshll.u32 %v5759, 16
        %v5895 = vrot.slane %v5893, 1
        %v5896 = vsel %vm880, %v5891, %v5895
        %v5897 = vshrl.u32 %v5757, 16
        %v5899 = vor.u32 %v5897, %v5879
        %v5901 = vshll.u32 %v5760, 16
        %v5903 = vrot.slane %v5901, 1
        %v5904 = vsel %vm880, %v5899, %v5903
        %v5905 = vshrl.u32 %v5758, 16
        %v5907 = vor.u32 %v5905, %v5887
        %v5909 = vshll.u32 %v5761, 16
        %v5911 = vrot.slane %v5909, 1
        %v5912 = vsel %vm880, %v5907, %v5911
        %v5913 = vshrl.u32 %v5759, 16
        %v5915 = vor.u32 %v5913, %v5895
        %v5917 = vshll.u32 %v5762, 16
        %v5919 = vrot.slane %v5917, 1
        %v5920 = vsel %vm880, %v5915, %v5919
        %v5921 = vshrl.u32 %v5760, 16
        %v5923 = vor.u32 %v5921, %v5903
        %v5925 = vshll.u32 %v5763, 16
        %v5927 = vrot.slane %v5925, 1
        %v5928 = vsel %vm880, %v5923, %v5927
        %v5929 = vshrl.u32 %v5761, 16
        %v5931 = vor.u32 %v5929, %v5911
        %v5933 = vshll.u32 %v5764, 16
        %v5935 = vrot.slane %v5933, 1
        %v5936 = vsel %vm880, %v5931, %v5935
        %v5937 = vshrl.u32 %v5762, 16
        %v5939 = vor.u32 %v5937, %v5919
        %v5941 = vshll.u32 %v5765, 16
        %v5943 = vrot.slane %v5941, 1
        %v5944 = vsel %vm880, %v5939, %v5943
        %v5945 = vshrl.u32 %v5763, 16
        %v5947 = vor.u32 %v5945, %v5927
        %v5949 = vshll.u32 %v5766, 16
        %v5951 = vrot.slane %v5949, 1
        %v5952 = vsel %vm880, %v5947, %v5951
        %v5953 = vshrl.u32 %v5764, 16
        %v5955 = vor.u32 %v5953, %v5935
        %v5957 = vshll.u32 %v5767, 16
        %v5959 = vrot.slane %v5957, 1
        %v5960 = vsel %vm880, %v5955, %v5959
        %v5961 = vshrl.u32 %v5765, 16
        %v5963 = vor.u32 %v5961, %v5943
        %v5965 = vshll.u32 %v5768, 16
        %v5967 = vrot.slane %v5965, 1
        %v5968 = vsel %vm880, %v5963, %v5967
        %v5969 = vshrl.u32 %v5766, 16
        %v5971 = vor.u32 %v5969, %v5951
        %v5973 = vshll.u32 %v5769, 16
        %v5975 = vrot.slane %v5973, 1
        %v5976 = vsel %vm880, %v5971, %v5975
        %v5977 = vshrl.u32 %v5767, 16
        %v5979 = vor.u32 %v5977, %v5959
        %v5981 = vshll.u32 %v5770, 16
        %v5983 = vrot.slane %v5981, 1
        %v5984 = vsel %vm880, %v5979, %v5983
        %v5985 = vshrl.u32 %v5768, 16
        %v5987 = vor.u32 %v5985, %v5967
        %v5989 = vshll.u32 %v5771, 16
        %v5991 = vrot.slane %v5989, 1
        %v5992 = vsel %vm880, %v5987, %v5991
        %v5993 = vshrl.u32 %v5769, 16
        %v5995 = vor.u32 %v5993, %v5975
        %v5997 = vshll.u32 %v5772, 16
        %v5999 = vrot.slane %v5997, 1
        %v6000 = vsel %vm880, %v5995, %v5999
        %v6001 = vshrl.u32 %v5770, 16
        %v6003 = vor.u32 %v6001, %v5983
        %v6005 = vshll.u32 %v5773, 16
        %v6007 = vrot.slane %v6005, 1
        %v6008 = vsel %vm880, %v6003, %v6007
        %v6009 = vshrl.u32 %v5771, 16
        %v6011 = vor.u32 %v6009, %v5991
        %v6013 = vshll.u32 %v5774, 16
        %v6015 = vrot.slane %v6013, 1
        %v6016 = vsel %vm880, %v6011, %v6015
        %v6017 = vshrl.u32 %v5772, 16
        %v6019 = vor.u32 %v6017, %v5999
        %v6021 = vshll.u32 %v5775, 16
        %v6023 = vrot.slane %v6021, 1
        %v6024 = vsel %vm880, %v6019, %v6023
        %v6025 = vshrl.u32 %v5773, 16
        %v6027 = vor.u32 %v6025, %v6007
        %v6029 = vshll.u32 %v5776, 16
        %v6031 = vrot.slane %v6029, 1
        %v6032 = vsel %vm880, %v6027, %v6031
        %v6033 = vshrl.u32 %v5774, 16
        %v6035 = vor.u32 %v6033, %v6015
        %v6037 = vshll.u32 %v5777, 16
        %v6039 = vrot.slane %v6037, 1
        %v6040 = vsel %vm880, %v6035, %v6039
        %v6041 = vshrl.u32 %v5775, 16
        %v6043 = vor.u32 %v6041, %v6023
        %v6045 = vshll.u32 %v5778, 16
        %v6047 = vrot.slane %v6045, 1
        %v6048 = vsel %vm880, %v6043, %v6047
        %v6049 = vshrl.u32 %v5776, 16
        %v6051 = vor.u32 %v6049, %v6031
        %v6053 = vshll.u32 %v5779, 16
        %v6055 = vrot.slane %v6053, 1
        %v6056 = vsel %vm880, %v6051, %v6055
        %v6057 = vshrl.u32 %v5777, 16
        %v6059 = vor.u32 %v6057, %v6039
        %v6061 = vshll.u32 %v5780, 16
        %v6063 = vrot.slane %v6061, 1
        %v6064 = vsel %vm880, %v6059, %v6063
        %v6065 = vshrl.u32 %v5778, 16
        %v6067 = vor.u32 %v6065, %v6047
        %v6069 = vshll.u32 %v5781, 16
        %v6071 = vrot.slane %v6069, 1
        %v6072 = vsel %vm880, %v6067, %v6071
        %v6073 = vshrl.u32 %v5779, 16
        %v6075 = vor.u32 %v6073, %v6055
        %v6077 = vshll.u32 %v5782, 16
        %v6079 = vrot.slane %v6077, 1
        %v6080 = vsel %vm880, %v6075, %v6079
        %v6081 = vshrl.u32 %v5780, 16
        %v6083 = vor.u32 %v6081, %v6063
        %v6085 = vshll.u32 %v5783, 16
        %v6087 = vrot.slane %v6085, 1
        %v6088 = vsel %vm880, %v6083, %v6087
        %v6089 = vshrl.u32 %v5781, 16
        %v6091 = vor.u32 %v6089, %v6071
        %v6093 = vshll.u32 %v5784, 16
        %v6095 = vrot.slane %v6093, 1
        %v6096 = vsel %vm880, %v6091, %v6095
        %v6097 = vshrl.u32 %v5782, 16
        %v6099 = vor.u32 %v6097, %v6079
        %v6101 = vshll.u32 %v5785, 16
        %v6103 = vrot.slane %v6101, 1
        %v6104 = vsel %vm880, %v6099, %v6103
        %v6105 = vshrl.u32 %v5783, 16
        %v6107 = vor.u32 %v6105, %v6087
        %v6109 = vshll.u32 %v5786, 16
        %v6111 = vrot.slane %v6109, 1
        %v6112 = vsel %vm880, %v6107, %v6111
        %v6113 = vshrl.u32 %v5784, 16
        %v6115 = vor.u32 %v6113, %v6095
        %v6117 = vshll.u32 %v5787, 16
        %v6119 = vrot.slane %v6117, 1
        %v6120 = vsel %vm880, %v6115, %v6119
        %v6121 = vshrl.u32 %v5785, 16
        %v6123 = vor.u32 %v6121, %v6103
        %v6125 = vshll.u32 %v5788, 16
        %v6127 = vrot.slane %v6125, 1
        %v6128 = vsel %vm880, %v6123, %v6127
        %v6129 = vshrl.u32 %v5786, 16
        %v6131 = vor.u32 %v6129, %v6111
        %v6133 = vshll.u32 %v5789, 16
        %v6135 = vrot.slane %v6133, 1
        %v6136 = vsel %vm880, %v6131, %v6135
        %v6137 = vshrl.u32 %v5787, 16
        %v6139 = vor.u32 %v6137, %v6119
        %v6141 = vshll.u32 %v5790, 16
        %v6143 = vrot.slane %v6141, 1
        %v6144 = vsel %vm880, %v6139, %v6143
        %v6145 = vshrl.u32 %v5788, 16
        %v6147 = vor.u32 %v6145, %v6127
        %v6149 = vshll.u32 %v5791, 16
        %v6151 = vrot.slane %v6149, 1
        %v6152 = vsel %vm880, %v6147, %v6151
        %v6153 = vshrl.u32 %v5789, 16
        %v6155 = vor.u32 %v6153, %v6135
        %v6157 = vshll.u32 %v5792, 16
        %v6159 = vrot.slane %v6157, 1
        %v6160 = vsel %vm880, %v6155, %v6159
        %v6161 = vshrl.u32 %v5790, 16
        %v6163 = vor.u32 %v6161, %v6143
        %v6165 = vshll.u32 %v5793, 16
        %v6167 = vrot.slane %v6165, 1
        %v6168 = vsel %vm880, %v6163, %v6167
        %v6169 = vshrl.u32 %v5791, 16
        %v6171 = vor.u32 %v6169, %v6151
        %v6173 = vshll.u32 %v5794, 16
        %v6175 = vrot.slane %v6173, 1
        %v6176 = vsel %vm880, %v6171, %v6175
        %v6177 = vshrl.u32 %v5792, 16
        %v6179 = vor.u32 %v6177, %v6159
        %v6181 = vshll.u32 %v5795, 16
        %v6183 = vrot.slane %v6181, 1
        %v6184 = vsel %vm880, %v6179, %v6183
        %v6185 = vshrl.u32 %v5793, 16
        %v6187 = vor.u32 %v6185, %v6167
        %v6189 = vshll.u32 %v5796, 16
        %v6191 = vrot.slane %v6189, 1
        %v6192 = vsel %vm880, %v6187, %v6191
        %v6267 = vunpack.c.l.b16 %v5539
        %v6268 = vunpack.c.h.b16 %v5539
        %v6269 = vunpack.c.l.b16 %v5540
        %v6270 = vunpack.c.h.b16 %v5540
        %v6271 = vunpack.c.l.b16 %v5541
        %v6272 = vunpack.c.h.b16 %v5541
        %v6273 = vunpack.c.l.b16 %v5542
        %v6274 = vunpack.c.h.b16 %v5542
        %v6275 = vunpack.c.l.b16 %v5543
        %v6276 = vunpack.c.h.b16 %v5543
        %v6277 = vunpack.c.l.b16 %v5544
        %v6278 = vunpack.c.h.b16 %v5544
        %v6279 = vunpack.c.l.b16 %v5545
        %v6280 = vunpack.c.h.b16 %v5545
        %v6281 = vunpack.c.l.b16 %v5546
        %v6282 = vunpack.c.h.b16 %v5546
        %v6283 = vunpack.c.l.b16 %v5547
        %v6284 = vunpack.c.h.b16 %v5547
        %v6285 = vunpack.c.l.b16 %v5548
        %v6286 = vunpack.c.h.b16 %v5548
        %v6287 = vunpack.c.l.b16 %v5549
        %v6288 = vunpack.c.h.b16 %v5549
        %v6289 = vunpack.c.l.b16 %v5550
        %v6290 = vunpack.c.h.b16 %v5550
        %v6291 = vunpack.c.l.b16 %v5551
        %v6292 = vunpack.c.h.b16 %v5551
        %v6293 = vunpack.c.l.b16 %v5552
        %v6294 = vunpack.c.h.b16 %v5552
        %v6295 = vunpack.c.l.b16 %v5553
        %v6296 = vunpack.c.h.b16 %v5553
        %v6297 = vunpack.c.l.b16 %v5554
        %v6298 = vunpack.c.h.b16 %v5554
        %v6299 = vunpack.c.l.b16 %v5555
        %v6300 = vunpack.c.h.b16 %v5555
        %v6301 = vunpack.c.l.b16 %v5556
        %v6302 = vunpack.c.h.b16 %v5556
        %v6303 = vunpack.c.l.b16 %v5557
        %v6304 = vunpack.c.h.b16 %v5557
        %v6305 = vunpack.c.l.b16 %v5558
        %v6306 = vunpack.c.h.b16 %v5558
        %v6307 = vunpack.c.l.b16 %v5559
        %v6308 = vunpack.c.h.b16 %v5559
        %v6309 = vunpack.c.l.b16 %v5560
        %v6310 = vunpack.c.h.b16 %v5560
        %v6311 = vunpack.c.l.b16 %v5561
        %v6312 = vunpack.c.h.b16 %v5561
        %v6313 = vunpack.c.l.b16 %v5562
        %v6314 = vunpack.c.h.b16 %v5562
        %v6315 = vunpack.c.l.b16 %v5563
        %v6316 = vunpack.c.h.b16 %v5563
        %v6317 = vunpack.c.l.b16 %v5564
        %v6318 = vunpack.c.h.b16 %v5564
        %v6319 = vunpack.c.l.b16 %v5565
        %v6320 = vunpack.c.h.b16 %v5565
        %v6321 = vunpack.c.l.b16 %v5566
        %v6322 = vunpack.c.h.b16 %v5566
        %v6323 = vunpack.c.l.b16 %v5567
        %v6324 = vunpack.c.h.b16 %v5567
        %v6325 = vunpack.c.l.b16 %v5568
        %v6326 = vunpack.c.h.b16 %v5568
        %v6327 = vunpack.c.l.b16 %v5569
        %v6328 = vunpack.c.h.b16 %v5569
        %v6329 = vunpack.c.l.b16 %v5570
        %v6330 = vunpack.c.h.b16 %v5570
        %v6331 = vunpack.c.l.b16 %v5571
        %v6332 = vunpack.c.h.b16 %v5571
        %v6333 = vunpack.c.l.b16 %v5572
        %v6334 = vunpack.c.h.b16 %v5572
        %v6335 = vunpack.c.l.b16 %v5573
        %v6336 = vunpack.c.h.b16 %v5573
        %v6337 = vunpack.c.l.b16 %v5574
        %v6338 = vunpack.c.h.b16 %v5574
        %v6339 = vunpack.c.l.b16 %v5575
        %v6340 = vunpack.c.h.b16 %v5575
        %v6341 = vunpack.c.l.b16 %v5576
        %v6342 = vunpack.c.h.b16 %v5576
        %v6343 = vunpack.c.l.b16 %v5577
        %v6344 = vunpack.c.h.b16 %v5577
        %v6345 = vunpack.c.l.b16 %v5578
        %v6346 = vunpack.c.h.b16 %v5578
        %v6347 = vunpack.c.l.b16 %v5579
        %v6348 = vunpack.c.h.b16 %v5579
        %v6349 = vunpack.c.l.b16 %v5580
        %v6350 = vunpack.c.h.b16 %v5580
        %v6351 = vpack.c.b16 %v6269, %v6267
        %v6352 = vpack.c.b16 %v6270, %v6268
        %v6353 = vpack.c.b16 %v6273, %v6271
        %v6354 = vpack.c.b16 %v6274, %v6272
        %v6355 = vpack.c.b16 %v6277, %v6275
        %v6356 = vpack.c.b16 %v6278, %v6276
        %v6357 = vpack.c.b16 %v6281, %v6279
        %v6358 = vpack.c.b16 %v6282, %v6280
        %v6359 = vpack.c.b16 %v6285, %v6283
        %v6360 = vpack.c.b16 %v6286, %v6284
        %v6361 = vpack.c.b16 %v6289, %v6287
        %v6362 = vpack.c.b16 %v6290, %v6288
        %v6363 = vpack.c.b16 %v6293, %v6291
        %v6364 = vpack.c.b16 %v6294, %v6292
        %v6365 = vpack.c.b16 %v6297, %v6295
        %v6366 = vpack.c.b16 %v6298, %v6296
        %v6367 = vpack.c.b16 %v6301, %v6299
        %v6368 = vpack.c.b16 %v6302, %v6300
        %v6369 = vpack.c.b16 %v6305, %v6303
        %v6370 = vpack.c.b16 %v6306, %v6304
        %v6371 = vpack.c.b16 %v6309, %v6307
        %v6372 = vpack.c.b16 %v6310, %v6308
        %v6373 = vpack.c.b16 %v6313, %v6311
        %v6374 = vpack.c.b16 %v6314, %v6312
        %v6375 = vpack.c.b16 %v6317, %v6315
        %v6376 = vpack.c.b16 %v6318, %v6316
        %v6377 = vpack.c.b16 %v6321, %v6319
        %v6378 = vpack.c.b16 %v6322, %v6320
        %v6379 = vpack.c.b16 %v6325, %v6323
        %v6380 = vpack.c.b16 %v6326, %v6324
        %v6381 = vpack.c.b16 %v6329, %v6327
        %v6382 = vpack.c.b16 %v6330, %v6328
        %v6383 = vpack.c.b16 %v6333, %v6331
        %v6384 = vpack.c.b16 %v6334, %v6332
        %v6385 = vpack.c.b16 %v6337, %v6335
        %v6386 = vpack.c.b16 %v6338, %v6336
        %v6387 = vpack.c.b16 %v6341, %v6339
        %v6388 = vpack.c.b16 %v6342, %v6340
        %v6389 = vpack.c.b16 %v6345, %v6343
        %v6390 = vpack.c.b16 %v6346, %v6344
        %v6391 = vpack.c.b16 %v6349, %v6347
        %v6392 = vpack.c.b16 %v6350, %v6348
        %vm6435 = vcmask 654336
        %v6437 = vsel %vm6435, %v5832, 0
        %v6440 = vsel %vm6435, %v5856, 0
        %v6443 = vsel %vm6435, %v5880, 0
        %v6446 = vsel %vm6435, %v5904, 0
        %v6449 = vsel %vm6435, %v5928, 0
        %v6452 = vsel %vm6435, %v5952, 0
        %v6455 = vsel %vm6435, %v5976, 0
        %v6458 = vsel %vm6435, %v6000, 0
        %v6461 = vsel %vm6435, %v6024, 0
        %v6464 = vsel %vm6435, %v6048, 0
        %v6467 = vsel %vm6435, %v6072, 0
        %v6470 = vsel %vm6435, %v6096, 0
        %v6473 = vsel %vm6435, %v6120, 0
        %v6476 = vsel %vm6435, %v6144, 0
        %v6479 = vsel %vm6435, %v6168, 0
        %v6482 = vsel %vm6435, %v6192, 0
        %6484 = vmatprep.subr.bf16.mxu0 %v6352
        %6485 = vmatpush1.bf16.msra.mxu0 %v6351
        %6486 = vmatprep.subr.bf16.mxu0 %v6354
        %6487 = vmatpush1.bf16.msra.mxu0 %v6353
        %6488 = vmatprep.subr.bf16.mxu0 %v6356
        %6489 = vmatpush1.bf16.msra.mxu0 %v6355
        %6490 = vmatprep.subr.bf16.mxu0 %v6358
        %6491 = vmatpush1.bf16.msra.mxu0 %v6357
        %6492 = vmatprep.subr.bf16.mxu0 %v6360
        %6493 = vmatpush1.bf16.msra.mxu0 %v6359
        %6494 = vmatprep.subr.bf16.mxu0 %v6362
        %6495 = vmatpush1.bf16.msra.mxu0 %v6361
        %6496 = vmatprep.subr.bf16.mxu0 %v6364
        %6497 = vmatpush1.bf16.msra.mxu0 %v6363
        %6498 = vmatprep.subr.bf16.mxu0 %v6366
        %6499 = vmatpush1.bf16.msra.mxu0 %v6365
        %6500 = vmatprep.subr.bf16.mxu0 %v6368
        %6501 = vmatpush1.bf16.msra.mxu0 %v6367
        %6502 = vmatprep.subr.bf16.mxu0 %v6370
        %6503 = vmatpush1.bf16.msra.mxu0 %v6369
        %6504 = vmatprep.subr.bf16.mxu0 %v6372
        %6505 = vmatpush1.bf16.msra.mxu0 %v6371
        %6506 = vmatprep.subr.bf16.mxu0 %v6374
        %6507 = vmatpush1.bf16.msra.mxu0 %v6373
        %6508 = vmatprep.subr.bf16.mxu0 %v6376
        %6509 = vmatpush1.bf16.msra.mxu0 %v6375
        %6510 = vmatprep.subr.bf16.mxu0 %v6378
        %6511 = vmatpush1.bf16.msra.mxu0 %v6377
        %6512 = vmatprep.subr.bf16.mxu0 %v6380
        %6513 = vmatpush1.bf16.msra.mxu0 %v6379
        %6514 = vmatprep.subr.bf16.mxu0 %v6382
        %6515 = vmatpush1.bf16.msra.mxu0 %v6381
        %6516 = vmatprep.mubr.bf16.mxu0 %v5820
        %6517 = vmatmul.mubr.bf16.gmra.mrb[0].mxu0 %v5808
        %v6518 = vpop.f32.mrb[0].mxu0
        %v6519 = vadd.f32 0.0, %v6518
        %v6520 = vpop.f32.mrb[0].mxu0
        %v6521 = vadd.f32 0.0, %v6520
        %v6522 = vpop.f32.mrb[0].mxu0
        %v6523 = vadd.f32 0.0, %v6522
        %v6524 = vpop.f32.mrb[0].mxu0
        %v6525 = vadd.f32 0.0, %v6524
        %6526 = vmatprep.mubr.bf16.mxu0 %v5848
        %6527 = vmatmul.mubr.bf16.gmra.mrb[0].mxu0 %v5840
        %v6528 = vpop.f32.mrb[0].mxu0
        %v6529 = vadd.f32 0.0, %v6528
        %v6530 = vpop.f32.mrb[0].mxu0
        %v6531 = vadd.f32 0.0, %v6530
        %v6532 = vpop.f32.mrb[0].mxu0
        %v6533 = vadd.f32 0.0, %v6532
        %v6534 = vpop.f32.mrb[0].mxu0
        %v6535 = vadd.f32 0.0, %v6534
        %6536 = vmatprep.mubr.bf16.mxu0 %v5872
        %6537 = vmatmul.mubr.bf16.gmra.mrb[0].mxu0 %v5864
        %v6538 = vpop.f32.mrb[0].mxu0
        %v6539 = vadd.f32 0.0, %v6538
        %v6540 = vpop.f32.mrb[0].mxu0
        %v6541 = vadd.f32 0.0, %v6540
        %v6542 = vpop.f32.mrb[0].mxu0
        %v6543 = vadd.f32 0.0, %v6542
        %v6544 = vpop.f32.mrb[0].mxu0
        %v6545 = vadd.f32 0.0, %v6544
        %6546 = vmatprep.mubr.bf16.mxu0 %v5896
        %6547 = vmatmul.mubr.bf16.gmra.mrb[0].mxu0 %v5888
        %v6548 = vpop.f32.mrb[0].mxu0
        %v6549 = vadd.f32 0.0, %v6548
        %v6550 = vpop.f32.mrb[0].mxu0
        %v6551 = vadd.f32 0.0, %v6550
        %v6552 = vpop.f32.mrb[0].mxu0
        %v6553 = vadd.f32 0.0, %v6552
        %v6554 = vpop.f32.mrb[0].mxu0
        %v6555 = vadd.f32 0.0, %v6554
        %6556 = vmatprep.mubr.bf16.mxu0 %v5920
        %6557 = vmatmul.mubr.bf16.gmra.mrb[0].mxu0 %v5912
        %v6558 = vpop.f32.mrb[0].mxu0
        %v6559 = vadd.f32 0.0, %v6558
        %v6560 = vpop.f32.mrb[0].mxu0
        %v6561 = vadd.f32 0.0, %v6560
        %v6562 = vpop.f32.mrb[0].mxu0
        %v6563 = vadd.f32 0.0, %v6562
        %v6564 = vpop.f32.mrb[0].mxu0
        %v6565 = vadd.f32 0.0, %v6564
        %6566 = vmatprep.mubr.bf16.mxu0 %v5944
        %6567 = vmatmul.mubr.bf16.gmra.mrb[0].mxu0 %v5936
        %v6568 = vpop.f32.mrb[0].mxu0
        %v6569 = vadd.f32 0.0, %v6568
        %v6570 = vpop.f32.mrb[0].mxu0
        %v6571 = vadd.f32 0.0, %v6570
        %v6572 = vpop.f32.mrb[0].mxu0
        %v6573 = vadd.f32 0.0, %v6572
        %v6574 = vpop.f32.mrb[0].mxu0
        %v6575 = vadd.f32 0.0, %v6574
        %6576 = vmatprep.mubr.bf16.mxu0 %v5968
        %6577 = vmatmul.mubr.bf16.gmra.mrb[0].mxu0 %v5960
        %v6578 = vpop.f32.mrb[0].mxu0
        %v6579 = vadd.f32 0.0, %v6578
        %v6580 = vpop.f32.mrb[0].mxu0
        %v6581 = vadd.f32 0.0, %v6580
        %v6582 = vpop.f32.mrb[0].mxu0
        %v6583 = vadd.f32 0.0, %v6582
        %v6584 = vpop.f32.mrb[0].mxu0
        %v6585 = vadd.f32 0.0, %v6584
        %6586 = vmatprep.mubr.bf16.mxu0 %v5992
        %6587 = vmatmul.mubr.bf16.gmra.mrb[0].mxu0 %v5984
        %v6588 = vpop.f32.mrb[0].mxu0
        %v6589 = vadd.f32 0.0, %v6588
        %v6590 = vpop.f32.mrb[0].mxu0
        %v6591 = vadd.f32 0.0, %v6590
        %v6592 = vpop.f32.mrb[0].mxu0
        %v6593 = vadd.f32 0.0, %v6592
        %v6594 = vpop.f32.mrb[0].mxu0
        %v6595 = vadd.f32 0.0, %v6594
        %6596 = vmatprep.mubr.bf16.mxu0 %v6016
        %6597 = vmatmul.mubr.bf16.gmra.mrb[0].mxu0 %v6008
        %v6598 = vpop.f32.mrb[0].mxu0
        %v6599 = vadd.f32 0.0, %v6598
        %v6600 = vpop.f32.mrb[0].mxu0
        %v6601 = vadd.f32 0.0, %v6600
        %v6602 = vpop.f32.mrb[0].mxu0
        %v6603 = vadd.f32 0.0, %v6602
        %v6604 = vpop.f32.mrb[0].mxu0
        %v6605 = vadd.f32 0.0, %v6604
        %6606 = vmatprep.mubr.bf16.mxu0 %v6040
        %6607 = vmatmul.mubr.bf16.gmra.mrb[0].mxu0 %v6032
        %v6608 = vpop.f32.mrb[0].mxu0
        %v6609 = vadd.f32 0.0, %v6608
        %v6610 = vpop.f32.mrb[0].mxu0
        %v6611 = vadd.f32 0.0, %v6610
        %v6612 = vpop.f32.mrb[0].mxu0
        %v6613 = vadd.f32 0.0, %v6612
        %v6614 = vpop.f32.mrb[0].mxu0
        %v6615 = vadd.f32 0.0, %v6614
        %6616 = vmatprep.mubr.bf16.mxu0 %v6064
        %6617 = vmatmul.mubr.bf16.gmra.mrb[0].mxu0 %v6056
        %v6618 = vpop.f32.mrb[0].mxu0
        %v6619 = vadd.f32 0.0, %v6618
        %v6620 = vpop.f32.mrb[0].mxu0
        %v6621 = vadd.f32 0.0, %v6620
        %v6622 = vpop.f32.mrb[0].mxu0
        %v6623 = vadd.f32 0.0, %v6622
        %v6624 = vpop.f32.mrb[0].mxu0
        %v6625 = vadd.f32 0.0, %v6624
        %6626 = vmatprep.mubr.bf16.mxu0 %v6088
        %6627 = vmatmul.mubr.bf16.gmra.mrb[0].mxu0 %v6080
        %v6628 = vpop.f32.mrb[0].mxu0
        %v6629 = vadd.f32 0.0, %v6628
        %v6630 = vpop.f32.mrb[0].mxu0
        %v6631 = vadd.f32 0.0, %v6630
        %v6632 = vpop.f32.mrb[0].mxu0
        %v6633 = vadd.f32 0.0, %v6632
        %v6634 = vpop.f32.mrb[0].mxu0
        %v6635 = vadd.f32 0.0, %v6634
        %6636 = vmatprep.mubr.bf16.mxu0 %v6112
        %6637 = vmatmul.mubr.bf16.gmra.mrb[0].mxu0 %v6104
        %v6638 = vpop.f32.mrb[0].mxu0
        %v6639 = vadd.f32 0.0, %v6638
        %v6640 = vpop.f32.mrb[0].mxu0
        %v6641 = vadd.f32 0.0, %v6640
        %v6642 = vpop.f32.mrb[0].mxu0
        %v6643 = vadd.f32 0.0, %v6642
        %v6644 = vpop.f32.mrb[0].mxu0
        %v6645 = vadd.f32 0.0, %v6644
        %6646 = vmatprep.mubr.bf16.mxu0 %v6136
        %6647 = vmatmul.mubr.bf16.gmra.mrb[0].mxu0 %v6128
        %v6648 = vpop.f32.mrb[0].mxu0
        %v6649 = vadd.f32 0.0, %v6648
        %v6650 = vpop.f32.mrb[0].mxu0
        %v6651 = vadd.f32 0.0, %v6650
        %v6652 = vpop.f32.mrb[0].mxu0
        %v6653 = vadd.f32 0.0, %v6652
        %v6654 = vpop.f32.mrb[0].mxu0
        %v6655 = vadd.f32 0.0, %v6654
        %6656 = vmatprep.mubr.bf16.mxu0 %v6160
        %6657 = vmatmul.mubr.bf16.gmra.mrb[0].mxu0 %v6152
        %v6658 = vpop.f32.mrb[0].mxu0
        %v6659 = vadd.f32 0.0, %v6658
        %v6660 = vpop.f32.mrb[0].mxu0
        %v6661 = vadd.f32 0.0, %v6660
        %v6662 = vpop.f32.mrb[0].mxu0
        %v6663 = vadd.f32 0.0, %v6662
        %v6664 = vpop.f32.mrb[0].mxu0
        %v6665 = vadd.f32 0.0, %v6664
        %6666 = vmatprep.mubr.bf16.mxu0 %v6184
        %6667 = vmatmul.mubr.bf16.gmra.mrb[0].mxu0 %v6176
        %v6668 = vpop.f32.mrb[0].mxu0
        %v6669 = vadd.f32 0.0, %v6668
        %v6670 = vpop.f32.mrb[0].mxu0
        %v6671 = vadd.f32 0.0, %v6670
        %v6672 = vpop.f32.mrb[0].mxu0
        %v6673 = vadd.f32 0.0, %v6672
        %v6674 = vpop.f32.mrb[0].mxu0
        %v6675 = vadd.f32 0.0, %v6674
        %6676 = vdwg.mxu0
        %6677 = vmatprep.subr.bf16.mxu0 %v6384
        %6678 = vmatpush1.bf16.msra.mxu0 %v6383
        %6679 = vmatprep.subr.bf16.mxu0 %v6386
        %6680 = vmatpush1.bf16.msra.mxu0 %v6385
        %6681 = vmatprep.subr.bf16.mxu0 %v6388
        %6682 = vmatpush1.bf16.msra.mxu0 %v6387
        %6683 = vmatprep.subr.bf16.mxu0 %v6390
        %6684 = vmatpush1.bf16.msra.mxu0 %v6389
        %6685 = vmatprep.subr.bf16.mxu0 %v6392
        %6686 = vmatpush1.bf16.msra.mxu0 %v6391
        %6687 = vmatprep.subr.bf16.mxu0 0
        %6688 = vmatpush1.bf16.msra.mxu0 0
        %6689 = vmatprep.subr.bf16.mxu0 0
        %6690 = vmatpush1.bf16.msra.mxu0 0
        %6691 = vmatprep.subr.bf16.mxu0 0
        %6692 = vmatpush1.bf16.msra.mxu0 0
        %6693 = vmatprep.subr.bf16.mxu0 0
        %6694 = vmatpush1.bf16.msra.mxu0 0
        %6695 = vmatprep.subr.bf16.mxu0 0
        %6696 = vmatpush1.bf16.msra.mxu0 0
        %6697 = vmatprep.subr.bf16.mxu0 0
        %6698 = vmatpush1.bf16.msra.mxu0 0
        %6699 = vmatprep.subr.bf16.mxu0 0
        %6700 = vmatpush1.bf16.msra.mxu0 0
        %6701 = vmatprep.subr.bf16.mxu0 0
        %6702 = vmatpush1.bf16.msra.mxu0 0
        %6703 = vmatprep.subr.bf16.mxu0 0
        %6704 = vmatpush1.bf16.msra.mxu0 0
        %6705 = vmatprep.subr.bf16.mxu0 0
        %6706 = vmatpush1.bf16.msra.mxu0 0
        %6707 = vmatprep.subr.bf16.mxu0 0
        %6708 = vmatpush1.bf16.msra.mxu0 0
        %6709 = vmatprep.mubr.bf16.mxu0 0
        %6710 = vmatmul.mubr.bf16.gmra.mrb[0].mxu0 %v6437
        %v6711 = vpop.f32.mrb[0].mxu0
        %v6712 = vadd.f32 %v6519, %v6711
        %v6713 = vpop.f32.mrb[0].mxu0
        %v6714 = vadd.f32 %v6521, %v6713
        %v6715 = vpop.f32.mrb[0].mxu0
        %v6716 = vadd.f32 %v6523, %v6715
        %v6717 = vpop.f32.mrb[0].mxu0
        %v6718 = vadd.f32 %v6525, %v6717
        %6719 = vmatprep.mubr.bf16.mxu0 0
        %6720 = vmatmul.mubr.bf16.gmra.mrb[0].mxu0 %v6440
        %v6721 = vpop.f32.mrb[0].mxu0
        %v6722 = vadd.f32 %v6529, %v6721
        %v6723 = vpop.f32.mrb[0].mxu0
        %v6724 = vadd.f32 %v6531, %v6723
        %v6725 = vpop.f32.mrb[0].mxu0
        %v6726 = vadd.f32 %v6533, %v6725
        %v6727 = vpop.f32.mrb[0].mxu0
        %v6728 = vadd.f32 %v6535, %v6727
        %6729 = vmatprep.mubr.bf16.mxu0 0
        %6730 = vmatmul.mubr.bf16.gmra.mrb[0].mxu0 %v6443
        %v6731 = vpop.f32.mrb[0].mxu0
        %v6732 = vadd.f32 %v6539, %v6731
        %v6733 = vpop.f32.mrb[0].mxu0
        %v6734 = vadd.f32 %v6541, %v6733
        %v6735 = vpop.f32.mrb[0].mxu0
        %v6736 = vadd.f32 %v6543, %v6735
        %v6737 = vpop.f32.mrb[0].mxu0
        %v6738 = vadd.f32 %v6545, %v6737
        %6739 = vmatprep.mubr.bf16.mxu0 0
        %6740 = vmatmul.mubr.bf16.gmra.mrb[0].mxu0 %v6446
        %v6741 = vpop.f32.mrb[0].mxu0
        %v6742 = vadd.f32 %v6549, %v6741
        %v6743 = vpop.f32.mrb[0].mxu0
        %v6744 = vadd.f32 %v6551, %v6743
        %v6745 = vpop.f32.mrb[0].mxu0
        %v6746 = vadd.f32 %v6553, %v6745
        %v6747 = vpop.f32.mrb[0].mxu0
        %v6748 = vadd.f32 %v6555, %v6747
        %6749 = vmatprep.mubr.bf16.mxu0 0
        %6750 = vmatmul.mubr.bf16.gmra.mrb[0].mxu0 %v6449
        %v6751 = vpop.f32.mrb[0].mxu0
        %v6752 = vadd.f32 %v6559, %v6751
        %v6753 = vpop.f32.mrb[0].mxu0
        %v6754 = vadd.f32 %v6561, %v6753
        %v6755 = vpop.f32.mrb[0].mxu0
        %v6756 = vadd.f32 %v6563, %v6755
        %v6757 = vpop.f32.mrb[0].mxu0
        %v6758 = vadd.f32 %v6565, %v6757
        %6759 = vmatprep.mubr.bf16.mxu0 0
        %6760 = vmatmul.mubr.bf16.gmra.mrb[0].mxu0 %v6452
        %v6761 = vpop.f32.mrb[0].mxu0
        %v6762 = vadd.f32 %v6569, %v6761
        %v6763 = vpop.f32.mrb[0].mxu0
        %v6764 = vadd.f32 %v6571, %v6763
        %v6765 = vpop.f32.mrb[0].mxu0
        %v6766 = vadd.f32 %v6573, %v6765
        %v6767 = vpop.f32.mrb[0].mxu0
        %v6768 = vadd.f32 %v6575, %v6767
        %6769 = vmatprep.mubr.bf16.mxu0 0
        %6770 = vmatmul.mubr.bf16.gmra.mrb[0].mxu0 %v6455
        %v6771 = vpop.f32.mrb[0].mxu0
        %v6772 = vadd.f32 %v6579, %v6771
        %v6773 = vpop.f32.mrb[0].mxu0
        %v6774 = vadd.f32 %v6581, %v6773
        %v6775 = vpop.f32.mrb[0].mxu0
        %v6776 = vadd.f32 %v6583, %v6775
        %v6777 = vpop.f32.mrb[0].mxu0
        %v6778 = vadd.f32 %v6585, %v6777
        %6779 = vmatprep.mubr.bf16.mxu0 0
        %6780 = vmatmul.mubr.bf16.gmra.mrb[0].mxu0 %v6458
        %v6781 = vpop.f32.mrb[0].mxu0
        %v6782 = vadd.f32 %v6589, %v6781
        %v6783 = vpop.f32.mrb[0].mxu0
        %v6784 = vadd.f32 %v6591, %v6783
        %v6785 = vpop.f32.mrb[0].mxu0
        %v6786 = vadd.f32 %v6593, %v6785
        %v6787 = vpop.f32.mrb[0].mxu0
        %v6788 = vadd.f32 %v6595, %v6787
        %6789 = vmatprep.mubr.bf16.mxu0 0
        %6790 = vmatmul.mubr.bf16.gmra.mrb[0].mxu0 %v6461
        %v6791 = vpop.f32.mrb[0].mxu0
        %v6792 = vadd.f32 %v6599, %v6791
        %v6793 = vpop.f32.mrb[0].mxu0
        %v6794 = vadd.f32 %v6601, %v6793
        %v6795 = vpop.f32.mrb[0].mxu0
        %v6796 = vadd.f32 %v6603, %v6795
        %v6797 = vpop.f32.mrb[0].mxu0
        %v6798 = vadd.f32 %v6605, %v6797
        %6799 = vmatprep.mubr.bf16.mxu0 0
        %6800 = vmatmul.mubr.bf16.gmra.mrb[0].mxu0 %v6464
        %v6801 = vpop.f32.mrb[0].mxu0
        %v6802 = vadd.f32 %v6609, %v6801
        %v6803 = vpop.f32.mrb[0].mxu0
        %v6804 = vadd.f32 %v6611, %v6803
        %v6805 = vpop.f32.mrb[0].mxu0
        %v6806 = vadd.f32 %v6613, %v6805
        %v6807 = vpop.f32.mrb[0].mxu0
        %v6808 = vadd.f32 %v6615, %v6807
        %6809 = vmatprep.mubr.bf16.mxu0 0
        %6810 = vmatmul.mubr.bf16.gmra.mrb[0].mxu0 %v6467
        %v6811 = vpop.f32.mrb[0].mxu0
        %v6812 = vadd.f32 %v6619, %v6811
        %v6813 = vpop.f32.mrb[0].mxu0
        %v6814 = vadd.f32 %v6621, %v6813
        %v6815 = vpop.f32.mrb[0].mxu0
        %v6816 = vadd.f32 %v6623, %v6815
        %v6817 = vpop.f32.mrb[0].mxu0
        %v6818 = vadd.f32 %v6625, %v6817
        %6819 = vmatprep.mubr.bf16.mxu0 0
        %6820 = vmatmul.mubr.bf16.gmra.mrb[0].mxu0 %v6470
        %v6821 = vpop.f32.mrb[0].mxu0
        %v6822 = vadd.f32 %v6629, %v6821
        %v6823 = vpop.f32.mrb[0].mxu0
        %v6824 = vadd.f32 %v6631, %v6823
        %v6825 = vpop.f32.mrb[0].mxu0
        %v6826 = vadd.f32 %v6633, %v6825
        %v6827 = vpop.f32.mrb[0].mxu0
        %v6828 = vadd.f32 %v6635, %v6827
        %6829 = vmatprep.mubr.bf16.mxu0 0
        %6830 = vmatmul.mubr.bf16.gmra.mrb[0].mxu0 %v6473
        %v6831 = vpop.f32.mrb[0].mxu0
        %v6832 = vadd.f32 %v6639, %v6831
        %v6833 = vpop.f32.mrb[0].mxu0
        %v6834 = vadd.f32 %v6641, %v6833
        %v6835 = vpop.f32.mrb[0].mxu0
        %v6836 = vadd.f32 %v6643, %v6835
        %v6837 = vpop.f32.mrb[0].mxu0
        %v6838 = vadd.f32 %v6645, %v6837
        %6839 = vmatprep.mubr.bf16.mxu0 0
        %6840 = vmatmul.mubr.bf16.gmra.mrb[0].mxu0 %v6476
        %v6841 = vpop.f32.mrb[0].mxu0
        %v6842 = vadd.f32 %v6649, %v6841
        %v6843 = vpop.f32.mrb[0].mxu0
        %v6844 = vadd.f32 %v6651, %v6843
        %v6845 = vpop.f32.mrb[0].mxu0
        %v6846 = vadd.f32 %v6653, %v6845
        %v6847 = vpop.f32.mrb[0].mxu0
        %v6848 = vadd.f32 %v6655, %v6847
        %6849 = vmatprep.mubr.bf16.mxu0 0
        %6850 = vmatmul.mubr.bf16.gmra.mrb[0].mxu0 %v6479
        %v6851 = vpop.f32.mrb[0].mxu0
        %v6852 = vadd.f32 %v6659, %v6851
        %v6853 = vpop.f32.mrb[0].mxu0
        %v6854 = vadd.f32 %v6661, %v6853
        %v6855 = vpop.f32.mrb[0].mxu0
        %v6856 = vadd.f32 %v6663, %v6855
        %v6857 = vpop.f32.mrb[0].mxu0
        %v6858 = vadd.f32 %v6665, %v6857
        %6859 = vmatprep.mubr.bf16.mxu0 0
        %6860 = vmatmul.mubr.bf16.gmra.mrb[0].mxu0 %v6482
        %v6861 = vpop.f32.mrb[0].mxu0
        %v6862 = vadd.f32 %v6669, %v6861
        %v6863 = vpop.f32.mrb[0].mxu0
        %v6864 = vadd.f32 %v6671, %v6863
        %v6865 = vpop.f32.mrb[0].mxu0
        %v6866 = vadd.f32 %v6673, %v6865
        %v6867 = vpop.f32.mrb[0].mxu0
        %v6868 = vadd.f32 %v6675, %v6867
        %6869 = vdwg.mxu0
        %v6944 = vunpack.c.l.b16 %v5494
        %v6945 = vunpack.c.h.b16 %v5494
        %v6946 = vunpack.c.l.b16 %v5495
        %v6947 = vunpack.c.h.b16 %v5495
        %v6948 = vunpack.c.l.b16 %v5496
        %v6949 = vunpack.c.h.b16 %v5496
        %v6950 = vunpack.c.l.b16 %v5497
        %v6951 = vunpack.c.h.b16 %v5497
        %v6952 = vunpack.c.l.b16 %v5498
        %v6953 = vunpack.c.h.b16 %v5498
        %v6954 = vunpack.c.l.b16 %v5499
        %v6955 = vunpack.c.h.b16 %v5499
        %v6956 = vunpack.c.l.b16 %v5500
        %v6957 = vunpack.c.h.b16 %v5500
        %v6958 = vunpack.c.l.b16 %v5501
        %v6959 = vunpack.c.h.b16 %v5501
        %v6960 = vunpack.c.l.b16 %v5502
        %v6961 = vunpack.c.h.b16 %v5502
        %v6962 = vunpack.c.l.b16 %v5503
        %v6963 = vunpack.c.h.b16 %v5503
        %v6964 = vunpack.c.l.b16 %v5504
        %v6965 = vunpack.c.h.b16 %v5504
        %v6966 = vunpack.c.l.b16 %v5505
        %v6967 = vunpack.c.h.b16 %v5505
        %v6968 = vunpack.c.l.b16 %v5506
        %v6969 = vunpack.c.h.b16 %v5506
        %v6970 = vunpack.c.l.b16 %v5507
        %v6971 = vunpack.c.h.b16 %v5507
        %v6972 = vunpack.c.l.b16 %v5508
        %v6973 = vunpack.c.h.b16 %v5508
        %v6974 = vunpack.c.l.b16 %v5509
        %v6975 = vunpack.c.h.b16 %v5509
        %v6976 = vunpack.c.l.b16 %v5510
        %v6977 = vunpack.c.h.b16 %v5510
        %v6978 = vunpack.c.l.b16 %v5511
        %v6979 = vunpack.c.h.b16 %v5511
        %v6980 = vunpack.c.l.b16 %v5512
        %v6981 = vunpack.c.h.b16 %v5512
        %v6982 = vunpack.c.l.b16 %v5513
        %v6983 = vunpack.c.h.b16 %v5513
        %v6984 = vunpack.c.l.b16 %v5514
        %v6985 = vunpack.c.h.b16 %v5514
        %v6986 = vunpack.c.l.b16 %v5515
        %v6987 = vunpack.c.h.b16 %v5515
        %v6988 = vunpack.c.l.b16 %v5516
        %v6989 = vunpack.c.h.b16 %v5516
        %v6990 = vunpack.c.l.b16 %v5517
        %v6991 = vunpack.c.h.b16 %v5517
        %v6992 = vunpack.c.l.b16 %v5518
        %v6993 = vunpack.c.h.b16 %v5518
        %v6994 = vunpack.c.l.b16 %v5519
        %v6995 = vunpack.c.h.b16 %v5519
        %v6996 = vunpack.c.l.b16 %v5520
        %v6997 = vunpack.c.h.b16 %v5520
        %v6998 = vunpack.c.l.b16 %v5521
        %v6999 = vunpack.c.h.b16 %v5521
        %v7000 = vunpack.c.l.b16 %v5522
        %v7001 = vunpack.c.h.b16 %v5522
        %v7002 = vunpack.c.l.b16 %v5523
        %v7003 = vunpack.c.h.b16 %v5523
        %v7004 = vunpack.c.l.b16 %v5524
        %v7005 = vunpack.c.h.b16 %v5524
        %v7006 = vunpack.c.l.b16 %v5525
        %v7007 = vunpack.c.h.b16 %v5525
        %v7008 = vunpack.c.l.b16 %v5526
        %v7009 = vunpack.c.h.b16 %v5526
        %v7010 = vunpack.c.l.b16 %v5527
        %v7011 = vunpack.c.h.b16 %v5527
        %v7012 = vunpack.c.l.b16 %v5528
        %v7013 = vunpack.c.h.b16 %v5528
        %v7014 = vunpack.c.l.b16 %v5529
        %v7015 = vunpack.c.h.b16 %v5529
        %v7016 = vunpack.c.l.b16 %v5530
        %v7017 = vunpack.c.h.b16 %v5530
        %v7018 = vunpack.c.l.b16 %v5531
        %v7019 = vunpack.c.h.b16 %v5531
        %v7020 = vunpack.c.l.b16 %v5532
        %v7021 = vunpack.c.h.b16 %v5532
        %v7022 = vunpack.c.l.b16 %v5533
        %v7023 = vunpack.c.h.b16 %v5533
        %v7024 = vunpack.c.l.b16 %v5534
        %v7025 = vunpack.c.h.b16 %v5534
        %v7026 = vunpack.c.l.b16 %v5535
        %v7027 = vunpack.c.h.b16 %v5535
        %v7028 = vpack.c.b16 %v6946, %v6944
        %v7029 = vpack.c.b16 %v6947, %v6945
        %v7030 = vpack.c.b16 %v6950, %v6948
        %v7031 = vpack.c.b16 %v6951, %v6949
        %v7032 = vpack.c.b16 %v6954, %v6952
        %v7033 = vpack.c.b16 %v6955, %v6953
        %v7034 = vpack.c.b16 %v6958, %v6956
        %v7035 = vpack.c.b16 %v6959, %v6957
        %v7036 = vpack.c.b16 %v6962, %v6960
        %v7037 = vpack.c.b16 %v6963, %v6961
        %v7038 = vpack.c.b16 %v6966, %v6964
        %v7039 = vpack.c.b16 %v6967, %v6965
        %v7040 = vpack.c.b16 %v6970, %v6968
        %v7041 = vpack.c.b16 %v6971, %v6969
        %v7042 = vpack.c.b16 %v6974, %v6972
        %v7043 = vpack.c.b16 %v6975, %v6973
        %v7044 = vpack.c.b16 %v6978, %v6976
        %v7045 = vpack.c.b16 %v6979, %v6977
        %v7046 = vpack.c.b16 %v6982, %v6980
        %v7047 = vpack.c.b16 %v6983, %v6981
        %v7048 = vpack.c.b16 %v6986, %v6984
        %v7049 = vpack.c.b16 %v6987, %v6985
        %v7050 = vpack.c.b16 %v6990, %v6988
        %v7051 = vpack.c.b16 %v6991, %v6989
        %v7052 = vpack.c.b16 %v6994, %v6992
        %v7053 = vpack.c.b16 %v6995, %v6993
        %v7054 = vpack.c.b16 %v6998, %v6996
        %v7055 = vpack.c.b16 %v6999, %v6997
        %v7056 = vpack.c.b16 %v7002, %v7000
        %v7057 = vpack.c.b16 %v7003, %v7001
        %v7058 = vpack.c.b16 %v7006, %v7004
        %v7059 = vpack.c.b16 %v7007, %v7005
        %v7060 = vpack.c.b16 %v7010, %v7008
        %v7061 = vpack.c.b16 %v7011, %v7009
        %v7062 = vpack.c.b16 %v7014, %v7012
        %v7063 = vpack.c.b16 %v7015, %v7013
        %v7064 = vpack.c.b16 %v7018, %v7016
        %v7065 = vpack.c.b16 %v7019, %v7017
        %v7066 = vpack.c.b16 %v7022, %v7020
        %v7067 = vpack.c.b16 %v7023, %v7021
        %v7068 = vpack.c.b16 %v7026, %v7024
        %v7069 = vpack.c.b16 %v7027, %v7025
        %v7112 = vsel %vm6435, %v5748, 0
        %v7114 = vsel %vm6435, %v5751, 0
        %v7116 = vsel %vm6435, %v5754, 0
        %v7118 = vsel %vm6435, %v5757, 0
        %v7120 = vsel %vm6435, %v5760, 0
        %v7122 = vsel %vm6435, %v5763, 0
        %v7124 = vsel %vm6435, %v5766, 0
        %v7126 = vsel %vm6435, %v5769, 0
        %v7128 = vsel %vm6435, %v5772, 0
        %v7130 = vsel %vm6435, %v5775, 0
        %v7132 = vsel %vm6435, %v5778, 0
        %v7134 = vsel %vm6435, %v5781, 0
        %v7136 = vsel %vm6435, %v5784, 0
        %v7138 = vsel %vm6435, %v5787, 0
        %v7140 = vsel %vm6435, %v5790, 0
        %v7142 = vsel %vm6435, %v5793, 0
        %7144 = vmatprep.subr.bf16.mxu0 %v7029
        %7145 = vmatpush1.bf16.msra.mxu0 %v7028
        %7146 = vmatprep.subr.bf16.mxu0 %v7031
        %7147 = vmatpush1.bf16.msra.mxu0 %v7030
        %7148 = vmatprep.subr.bf16.mxu0 %v7033
        %7149 = vmatpush1.bf16.msra.mxu0 %v7032
        %7150 = vmatprep.subr.bf16.mxu0 %v7035
        %7151 = vmatpush1.bf16.msra.mxu0 %v7034
        %7152 = vmatprep.subr.bf16.mxu0 %v7037
        %7153 = vmatpush1.bf16.msra.mxu0 %v7036
        %7154 = vmatprep.subr.bf16.mxu0 %v7039
        %7155 = vmatpush1.bf16.msra.mxu0 %v7038
        %7156 = vmatprep.subr.bf16.mxu0 %v7041
        %7157 = vmatpush1.bf16.msra.mxu0 %v7040
        %7158 = vmatprep.subr.bf16.mxu0 %v7043
        %7159 = vmatpush1.bf16.msra.mxu0 %v7042
        %7160 = vmatprep.subr.bf16.mxu0 %v7045
        %7161 = vmatpush1.bf16.msra.mxu0 %v7044
        %7162 = vmatprep.subr.bf16.mxu0 %v7047
        %7163 = vmatpush1.bf16.msra.mxu0 %v7046
        %7164 = vmatprep.subr.bf16.mxu0 %v7049
        %7165 = vmatpush1.bf16.msra.mxu0 %v7048
        %7166 = vmatprep.subr.bf16.mxu0 %v7051
        %7167 = vmatpush1.bf16.msra.mxu0 %v7050
        %7168 = vmatprep.subr.bf16.mxu0 %v7053
        %7169 = vmatpush1.bf16.msra.mxu0 %v7052
        %7170 = vmatprep.subr.bf16.mxu0 %v7055
        %7171 = vmatpush1.bf16.msra.mxu0 %v7054
        %7172 = vmatprep.subr.bf16.mxu0 %v7057
        %7173 = vmatpush1.bf16.msra.mxu0 %v7056
        %7174 = vmatprep.subr.bf16.mxu0 %v7059
        %7175 = vmatpush1.bf16.msra.mxu0 %v7058
        %7176 = vmatprep.mubr.bf16.mxu0 %v5747
        %7177 = vmatmul.mubr.bf16.gmra.mrb[0].mxu0 %v5746
        %v7178 = vpop.f32.mrb[0].mxu0
        %v7179 = vadd.f32 %v6712, %v7178
        %v7180 = vpop.f32.mrb[0].mxu0
        %v7181 = vadd.f32 %v6714, %v7180
        %v7182 = vpop.f32.mrb[0].mxu0
        %v7183 = vadd.f32 %v6716, %v7182
        %v7184 = vpop.f32.mrb[0].mxu0
        %v7185 = vadd.f32 %v6718, %v7184
        %7186 = vmatprep.mubr.bf16.mxu0 %v5750
        %7187 = vmatmul.mubr.bf16.gmra.mrb[0].mxu0 %v5749
        %v7188 = vpop.f32.mrb[0].mxu0
        %v7189 = vadd.f32 %v6722, %v7188
        %v7190 = vpop.f32.mrb[0].mxu0
        %v7191 = vadd.f32 %v6724, %v7190
        %v7192 = vpop.f32.mrb[0].mxu0
        %v7193 = vadd.f32 %v6726, %v7192
        %v7194 = vpop.f32.mrb[0].mxu0
        %v7195 = vadd.f32 %v6728, %v7194
        %7196 = vmatprep.mubr.bf16.mxu0 %v5753
        %7197 = vmatmul.mubr.bf16.gmra.mrb[0].mxu0 %v5752
        %v7198 = vpop.f32.mrb[0].mxu0
        %v7199 = vadd.f32 %v6732, %v7198
        %v7200 = vpop.f32.mrb[0].mxu0
        %v7201 = vadd.f32 %v6734, %v7200
        %v7202 = vpop.f32.mrb[0].mxu0
        %v7203 = vadd.f32 %v6736, %v7202
        %v7204 = vpop.f32.mrb[0].mxu0
        %v7205 = vadd.f32 %v6738, %v7204
        %7206 = vmatprep.mubr.bf16.mxu0 %v5756
        %7207 = vmatmul.mubr.bf16.gmra.mrb[0].mxu0 %v5755
        %v7208 = vpop.f32.mrb[0].mxu0
        %v7209 = vadd.f32 %v6742, %v7208
        %v7210 = vpop.f32.mrb[0].mxu0
        %v7211 = vadd.f32 %v6744, %v7210
        %v7212 = vpop.f32.mrb[0].mxu0
        %v7213 = vadd.f32 %v6746, %v7212
        %v7214 = vpop.f32.mrb[0].mxu0
        %v7215 = vadd.f32 %v6748, %v7214
        %7216 = vmatprep.mubr.bf16.mxu0 %v5759
        %7217 = vmatmul.mubr.bf16.gmra.mrb[0].mxu0 %v5758
        %v7218 = vpop.f32.mrb[0].mxu0
        %v7219 = vadd.f32 %v6752, %v7218
        %v7220 = vpop.f32.mrb[0].mxu0
        %v7221 = vadd.f32 %v6754, %v7220
        %v7222 = vpop.f32.mrb[0].mxu0
        %v7223 = vadd.f32 %v6756, %v7222
        %v7224 = vpop.f32.mrb[0].mxu0
        %v7225 = vadd.f32 %v6758, %v7224
        %7226 = vmatprep.mubr.bf16.mxu0 %v5762
        %7227 = vmatmul.mubr.bf16.gmra.mrb[0].mxu0 %v5761
        %v7228 = vpop.f32.mrb[0].mxu0
        %v7229 = vadd.f32 %v6762, %v7228
        %v7230 = vpop.f32.mrb[0].mxu0
        %v7231 = vadd.f32 %v6764, %v7230
        %v7232 = vpop.f32.mrb[0].mxu0
        %v7233 = vadd.f32 %v6766, %v7232
        %v7234 = vpop.f32.mrb[0].mxu0
        %v7235 = vadd.f32 %v6768, %v7234
        %7236 = vmatprep.mubr.bf16.mxu0 %v5765
        %7237 = vmatmul.mubr.bf16.gmra.mrb[0].mxu0 %v5764
        %v7238 = vpop.f32.mrb[0].mxu0
        %v7239 = vadd.f32 %v6772, %v7238
        %v7240 = vpop.f32.mrb[0].mxu0
        %v7241 = vadd.f32 %v6774, %v7240
        %v7242 = vpop.f32.mrb[0].mxu0
        %v7243 = vadd.f32 %v6776, %v7242
        %v7244 = vpop.f32.mrb[0].mxu0
        %v7245 = vadd.f32 %v6778, %v7244
        %7246 = vmatprep.mubr.bf16.mxu0 %v5768
        %7247 = vmatmul.mubr.bf16.gmra.mrb[0].mxu0 %v5767
        %v7248 = vpop.f32.mrb[0].mxu0
        %v7249 = vadd.f32 %v6782, %v7248
        %v7250 = vpop.f32.mrb[0].mxu0
        %v7251 = vadd.f32 %v6784, %v7250
        %v7252 = vpop.f32.mrb[0].mxu0
        %v7253 = vadd.f32 %v6786, %v7252
        %v7254 = vpop.f32.mrb[0].mxu0
        %v7255 = vadd.f32 %v6788, %v7254
        %7256 = vmatprep.mubr.bf16.mxu0 %v5771
        %7257 = vmatmul.mubr.bf16.gmra.mrb[0].mxu0 %v5770
        %v7258 = vpop.f32.mrb[0].mxu0
        %v7259 = vadd.f32 %v6792, %v7258
        %v7260 = vpop.f32.mrb[0].mxu0
        %v7261 = vadd.f32 %v6794, %v7260
        %v7262 = vpop.f32.mrb[0].mxu0
        %v7263 = vadd.f32 %v6796, %v7262
        %v7264 = vpop.f32.mrb[0].mxu0
        %v7265 = vadd.f32 %v6798, %v7264
        %7266 = vmatprep.mubr.bf16.mxu0 %v5774
        %7267 = vmatmul.mubr.bf16.gmra.mrb[0].mxu0 %v5773
        %v7268 = vpop.f32.mrb[0].mxu0
        %v7269 = vadd.f32 %v6802, %v7268
        %v7270 = vpop.f32.mrb[0].mxu0
        %v7271 = vadd.f32 %v6804, %v7270
        %v7272 = vpop.f32.mrb[0].mxu0
        %v7273 = vadd.f32 %v6806, %v7272
        %v7274 = vpop.f32.mrb[0].mxu0
        %v7275 = vadd.f32 %v6808, %v7274
        %7276 = vmatprep.mubr.bf16.mxu0 %v5777
        %7277 = vmatmul.mubr.bf16.gmra.mrb[0].mxu0 %v5776
        %v7278 = vpop.f32.mrb[0].mxu0
        %v7279 = vadd.f32 %v6812, %v7278
        %v7280 = vpop.f32.mrb[0].mxu0
        %v7281 = vadd.f32 %v6814, %v7280
        %v7282 = vpop.f32.mrb[0].mxu0
        %v7283 = vadd.f32 %v6816, %v7282
        %v7284 = vpop.f32.mrb[0].mxu0
        %v7285 = vadd.f32 %v6818, %v7284
        %7286 = vmatprep.mubr.bf16.mxu0 %v5780
        %7287 = vmatmul.mubr.bf16.gmra.mrb[0].mxu0 %v5779
        %v7288 = vpop.f32.mrb[0].mxu0
        %v7289 = vadd.f32 %v6822, %v7288
        %v7290 = vpop.f32.mrb[0].mxu0
        %v7291 = vadd.f32 %v6824, %v7290
        %v7292 = vpop.f32.mrb[0].mxu0
        %v7293 = vadd.f32 %v6826, %v7292
        %v7294 = vpop.f32.mrb[0].mxu0
        %v7295 = vadd.f32 %v6828, %v7294
        %7296 = vmatprep.mubr.bf16.mxu0 %v5783
        %7297 = vmatmul.mubr.bf16.gmra.mrb[0].mxu0 %v5782
        %v7298 = vpop.f32.mrb[0].mxu0
        %v7299 = vadd.f32 %v6832, %v7298
        %v7300 = vpop.f32.mrb[0].mxu0
        %v7301 = vadd.f32 %v6834, %v7300
        %v7302 = vpop.f32.mrb[0].mxu0
        %v7303 = vadd.f32 %v6836, %v7302
        %v7304 = vpop.f32.mrb[0].mxu0
        %v7305 = vadd.f32 %v6838, %v7304
        %7306 = vmatprep.mubr.bf16.mxu0 %v5786
        %7307 = vmatmul.mubr.bf16.gmra.mrb[0].mxu0 %v5785
        %v7308 = vpop.f32.mrb[0].mxu0
        %v7309 = vadd.f32 %v6842, %v7308
        %v7310 = vpop.f32.mrb[0].mxu0
        %v7311 = vadd.f32 %v6844, %v7310
        %v7312 = vpop.f32.mrb[0].mxu0
        %v7313 = vadd.f32 %v6846, %v7312
        %v7314 = vpop.f32.mrb[0].mxu0
        %v7315 = vadd.f32 %v6848, %v7314
        %7316 = vmatprep.mubr.bf16.mxu0 %v5789
        %7317 = vmatmul.mubr.bf16.gmra.mrb[0].mxu0 %v5788
        %v7318 = vpop.f32.mrb[0].mxu0
        %v7319 = vadd.f32 %v6852, %v7318
        %v7320 = vpop.f32.mrb[0].mxu0
        %v7321 = vadd.f32 %v6854, %v7320
        %v7322 = vpop.f32.mrb[0].mxu0
        %v7323 = vadd.f32 %v6856, %v7322
        %v7324 = vpop.f32.mrb[0].mxu0
        %v7325 = vadd.f32 %v6858, %v7324
        %7326 = vmatprep.mubr.bf16.mxu0 %v5792
        %7327 = vmatmul.mubr.bf16.gmra.mrb[0].mxu0 %v5791
        %v7328 = vpop.f32.mrb[0].mxu0
        %v7329 = vadd.f32 %v6862, %v7328
        %v7330 = vpop.f32.mrb[0].mxu0
        %v7331 = vadd.f32 %v6864, %v7330
        %v7332 = vpop.f32.mrb[0].mxu0
        %v7333 = vadd.f32 %v6866, %v7332
        %v7334 = vpop.f32.mrb[0].mxu0
        %v7335 = vadd.f32 %v6868, %v7334
        %7336 = vdwg.mxu0
        %7337 = vmatprep.subr.bf16.mxu0 %v7061
        %7338 = vmatpush1.bf16.msra.mxu0 %v7060
        %7339 = vmatprep.subr.bf16.mxu0 %v7063
        %7340 = vmatpush1.bf16.msra.mxu0 %v7062
        %7341 = vmatprep.subr.bf16.mxu0 %v7065
        %7342 = vmatpush1.bf16.msra.mxu0 %v7064
        %7343 = vmatprep.subr.bf16.mxu0 %v7067
        %7344 = vmatpush1.bf16.msra.mxu0 %v7066
        %7345 = vmatprep.subr.bf16.mxu0 %v7069
        %7346 = vmatpush1.bf16.msra.mxu0 %v7068
        %7347 = vmatprep.subr.bf16.mxu0 0
        %7348 = vmatpush1.bf16.msra.mxu0 0
        %7349 = vmatprep.subr.bf16.mxu0 0
        %7350 = vmatpush1.bf16.msra.mxu0 0
        %7351 = vmatprep.subr.bf16.mxu0 0
        %7352 = vmatpush1.bf16.msra.mxu0 0
        %7353 = vmatprep.subr.bf16.mxu0 0
        %7354 = vmatpush1.bf16.msra.mxu0 0
        %7355 = vmatprep.subr.bf16.mxu0 0
        %7356 = vmatpush1.bf16.msra.mxu0 0
        %7357 = vmatprep.subr.bf16.mxu0 0
        %7358 = vmatpush1.bf16.msra.mxu0 0
        %7359 = vmatprep.subr.bf16.mxu0 0
        %7360 = vmatpush1.bf16.msra.mxu0 0
        %7361 = vmatprep.subr.bf16.mxu0 0
        %7362 = vmatpush1.bf16.msra.mxu0 0
        %7363 = vmatprep.subr.bf16.mxu0 0
        %7364 = vmatpush1.bf16.msra.mxu0 0
        %7365 = vmatprep.subr.bf16.mxu0 0
        %7366 = vmatpush1.bf16.msra.mxu0 0
        %7367 = vmatprep.subr.bf16.mxu0 0
        %7368 = vmatpush1.bf16.msra.mxu0 0
        %7369 = vmatprep.mubr.bf16.mxu0 0
        %7370 = vmatmul.mubr.bf16.gmra.mrb[0].mxu0 %v7112
        %v7371 = vpop.f32.mrb[0].mxu0
        %v7372 = vadd.f32 %v7179, %v7371
        %v7373 = vpop.f32.mrb[0].mxu0
        %v7374 = vadd.f32 %v7181, %v7373
        %v7375 = vpop.f32.mrb[0].mxu0
        %v7376 = vadd.f32 %v7183, %v7375
        %v7377 = vpop.f32.mrb[0].mxu0
        %v7378 = vadd.f32 %v7185, %v7377
        %7379 = vmatprep.mubr.bf16.mxu0 0
        %7380 = vmatmul.mubr.bf16.gmra.mrb[0].mxu0 %v7114
        %v7381 = vpop.f32.mrb[0].mxu0
        %v7382 = vadd.f32 %v7189, %v7381
        %v7383 = vpop.f32.mrb[0].mxu0
        %v7384 = vadd.f32 %v7191, %v7383
        %v7385 = vpop.f32.mrb[0].mxu0
        %v7386 = vadd.f32 %v7193, %v7385
        %v7387 = vpop.f32.mrb[0].mxu0
        %v7388 = vadd.f32 %v7195, %v7387
        %7389 = vmatprep.mubr.bf16.mxu0 0
        %7390 = vmatmul.mubr.bf16.gmra.mrb[0].mxu0 %v7116
        %v7391 = vpop.f32.mrb[0].mxu0
        %v7392 = vadd.f32 %v7199, %v7391
        %v7393 = vpop.f32.mrb[0].mxu0
        %v7394 = vadd.f32 %v7201, %v7393
        %v7395 = vpop.f32.mrb[0].mxu0
        %v7396 = vadd.f32 %v7203, %v7395
        %v7397 = vpop.f32.mrb[0].mxu0
        %v7398 = vadd.f32 %v7205, %v7397
        %7399 = vmatprep.mubr.bf16.mxu0 0
        %7400 = vmatmul.mubr.bf16.gmra.mrb[0].mxu0 %v7118
        %v7401 = vpop.f32.mrb[0].mxu0
        %v7402 = vadd.f32 %v7209, %v7401
        %v7403 = vpop.f32.mrb[0].mxu0
        %v7404 = vadd.f32 %v7211, %v7403
        %v7405 = vpop.f32.mrb[0].mxu0
        %v7406 = vadd.f32 %v7213, %v7405
        %v7407 = vpop.f32.mrb[0].mxu0
        %v7408 = vadd.f32 %v7215, %v7407
        %7409 = vmatprep.mubr.bf16.mxu0 0
        %7410 = vmatmul.mubr.bf16.gmra.mrb[0].mxu0 %v7120
        %v7411 = vpop.f32.mrb[0].mxu0
        %v7412 = vadd.f32 %v7219, %v7411
        %v7413 = vpop.f32.mrb[0].mxu0
        %v7414 = vadd.f32 %v7221, %v7413
        %v7415 = vpop.f32.mrb[0].mxu0
        %v7416 = vadd.f32 %v7223, %v7415
        %v7417 = vpop.f32.mrb[0].mxu0
        %v7418 = vadd.f32 %v7225, %v7417
        %7419 = vmatprep.mubr.bf16.mxu0 0
        %7420 = vmatmul.mubr.bf16.gmra.mrb[0].mxu0 %v7122
        %v7421 = vpop.f32.mrb[0].mxu0
        %v7422 = vadd.f32 %v7229, %v7421
        %v7423 = vpop.f32.mrb[0].mxu0
        %v7424 = vadd.f32 %v7231, %v7423
        %v7425 = vpop.f32.mrb[0].mxu0
        %v7426 = vadd.f32 %v7233, %v7425
        %v7427 = vpop.f32.mrb[0].mxu0
        %v7428 = vadd.f32 %v7235, %v7427
        %7429 = vmatprep.mubr.bf16.mxu0 0
        %7430 = vmatmul.mubr.bf16.gmra.mrb[0].mxu0 %v7124
        %v7431 = vpop.f32.mrb[0].mxu0
        %v7432 = vadd.f32 %v7239, %v7431
        %v7433 = vpop.f32.mrb[0].mxu0
        %v7434 = vadd.f32 %v7241, %v7433
        %v7435 = vpop.f32.mrb[0].mxu0
        %v7436 = vadd.f32 %v7243, %v7435
        %v7437 = vpop.f32.mrb[0].mxu0
        %v7438 = vadd.f32 %v7245, %v7437
        %7439 = vmatprep.mubr.bf16.mxu0 0
        %7440 = vmatmul.mubr.bf16.gmra.mrb[0].mxu0 %v7126
        %v7441 = vpop.f32.mrb[0].mxu0
        %v7442 = vadd.f32 %v7249, %v7441
        %v7443 = vpop.f32.mrb[0].mxu0
        %v7444 = vadd.f32 %v7251, %v7443
        %v7445 = vpop.f32.mrb[0].mxu0
        %v7446 = vadd.f32 %v7253, %v7445
        %v7447 = vpop.f32.mrb[0].mxu0
        %v7448 = vadd.f32 %v7255, %v7447
        %7449 = vmatprep.mubr.bf16.mxu0 0
        %7450 = vmatmul.mubr.bf16.gmra.mrb[0].mxu0 %v7128
        %v7451 = vpop.f32.mrb[0].mxu0
        %v7452 = vadd.f32 %v7259, %v7451
        %v7453 = vpop.f32.mrb[0].mxu0
        %v7454 = vadd.f32 %v7261, %v7453
        %v7455 = vpop.f32.mrb[0].mxu0
        %v7456 = vadd.f32 %v7263, %v7455
        %v7457 = vpop.f32.mrb[0].mxu0
        %v7458 = vadd.f32 %v7265, %v7457
        %7459 = vmatprep.mubr.bf16.mxu0 0
        %7460 = vmatmul.mubr.bf16.gmra.mrb[0].mxu0 %v7130
        %v7461 = vpop.f32.mrb[0].mxu0
        %v7462 = vadd.f32 %v7269, %v7461
        %v7463 = vpop.f32.mrb[0].mxu0
        %v7464 = vadd.f32 %v7271, %v7463
        %v7465 = vpop.f32.mrb[0].mxu0
        %v7466 = vadd.f32 %v7273, %v7465
        %v7467 = vpop.f32.mrb[0].mxu0
        %v7468 = vadd.f32 %v7275, %v7467
        %7469 = vmatprep.mubr.bf16.mxu0 0
        %7470 = vmatmul.mubr.bf16.gmra.mrb[0].mxu0 %v7132
        %v7471 = vpop.f32.mrb[0].mxu0
        %v7472 = vadd.f32 %v7279, %v7471
        %v7473 = vpop.f32.mrb[0].mxu0
        %v7474 = vadd.f32 %v7281, %v7473
        %v7475 = vpop.f32.mrb[0].mxu0
        %v7476 = vadd.f32 %v7283, %v7475
        %v7477 = vpop.f32.mrb[0].mxu0
        %v7478 = vadd.f32 %v7285, %v7477
        %7479 = vmatprep.mubr.bf16.mxu0 0
        %7480 = vmatmul.mubr.bf16.gmra.mrb[0].mxu0 %v7134
        %v7481 = vpop.f32.mrb[0].mxu0
        %v7482 = vadd.f32 %v7289, %v7481
        %v7483 = vpop.f32.mrb[0].mxu0
        %v7484 = vadd.f32 %v7291, %v7483
        %v7485 = vpop.f32.mrb[0].mxu0
        %v7486 = vadd.f32 %v7293, %v7485
        %v7487 = vpop.f32.mrb[0].mxu0
        %v7488 = vadd.f32 %v7295, %v7487
        %7489 = vmatprep.mubr.bf16.mxu0 0
        %7490 = vmatmul.mubr.bf16.gmra.mrb[0].mxu0 %v7136
        %v7491 = vpop.f32.mrb[0].mxu0
        %v7492 = vadd.f32 %v7299, %v7491
        %v7493 = vpop.f32.mrb[0].mxu0
        %v7494 = vadd.f32 %v7301, %v7493
        %v7495 = vpop.f32.mrb[0].mxu0
        %v7496 = vadd.f32 %v7303, %v7495
        %v7497 = vpop.f32.mrb[0].mxu0
        %v7498 = vadd.f32 %v7305, %v7497
        %7499 = vmatprep.mubr.bf16.mxu0 0
        %7500 = vmatmul.mubr.bf16.gmra.mrb[0].mxu0 %v7138
        %v7501 = vpop.f32.mrb[0].mxu0
        %v7502 = vadd.f32 %v7309, %v7501
        %v7503 = vpop.f32.mrb[0].mxu0
        %v7504 = vadd.f32 %v7311, %v7503
        %v7505 = vpop.f32.mrb[0].mxu0
        %v7506 = vadd.f32 %v7313, %v7505
        %v7507 = vpop.f32.mrb[0].mxu0
        %v7508 = vadd.f32 %v7315, %v7507
        %7509 = vmatprep.mubr.bf16.mxu0 0
        %7510 = vmatmul.mubr.bf16.gmra.mrb[0].mxu0 %v7140
        %v7511 = vpop.f32.mrb[0].mxu0
        %v7512 = vadd.f32 %v7319, %v7511
        %v7513 = vpop.f32.mrb[0].mxu0
        %v7514 = vadd.f32 %v7321, %v7513
        %v7515 = vpop.f32.mrb[0].mxu0
        %v7516 = vadd.f32 %v7323, %v7515
        %v7517 = vpop.f32.mrb[0].mxu0
        %v7518 = vadd.f32 %v7325, %v7517
        %7519 = vmatprep.mubr.bf16.mxu0 0
        %7520 = vmatmul.mubr.bf16.gmra.mrb[0].mxu0 %v7142
        %v7521 = vpop.f32.mrb[0].mxu0
        %v7522 = vadd.f32 %v7329, %v7521
        %v7523 = vpop.f32.mrb[0].mxu0
        %v7524 = vadd.f32 %v7331, %v7523
        %v7525 = vpop.f32.mrb[0].mxu0
        %v7526 = vadd.f32 %v7333, %v7525
        %v7527 = vpop.f32.mrb[0].mxu0
        %v7528 = vadd.f32 %v7335, %v7527
        %7529 = vdwg.mxu0
        %v7530 = vld [vmem:[#allocation4] sm:$0xee]
        %v7531 = vld [vmem:[#allocation4 + $0x8] sm:$0xe]
        %s7532 = scalar_lea.vmem [#allocation8], 672
        %v7533 = vld [vmem:[%s7532] sm:$0xff]
        %v7534 = vld [vmem:[%s7532 + $0x8] sm:$0xff]
        %v7535 = vld [vmem:[%s7532 + $0x10] sm:$0xff]
        %v7536 = vld [vmem:[%s7532 + $0x18] sm:$0xff]
        %v7537 = vld [vmem:[%s7532 + $0x20] sm:$0xff]
        %v7538 = vld [vmem:[%s7532 + $0x28] sm:$0xff]
        %v7539 = vld [vmem:[%s7532 + $0x30] sm:$0xff]
        %v7540 = vld [vmem:[%s7532 + $0x38] sm:$0xff]
        %v7541 = vld [vmem:[%s7532 + $0x40] sm:$0xff]
        %v7542 = vld [vmem:[%s7532 + $0x48] sm:$0xff]
        %v7543 = vld [vmem:[%s7532 + $0x50] sm:$0xff]
        %v7544 = vld [vmem:[%s7532 + $0x58] sm:$0xff]
        %v7545 = vld [vmem:[%s7532 + $0x60] sm:$0xff]
        %v7546 = vld [vmem:[%s7532 + $0x68] sm:$0xff]
        %v7547 = vld [vmem:[%s7532 + $0x70] sm:$0xff]
        %v7548 = vld [vmem:[%s7532 + $0x78] sm:$0xff]
        %v7549 = vld [vmem:[%s7532 + $0x80] sm:$0xff]
        %v7550 = vld [vmem:[%s7532 + $0x88] sm:$0xff]
        %v7551 = vld [vmem:[%s7532 + $0x90] sm:$0xff]
        %v7552 = vld [vmem:[%s7532 + $0x98] sm:$0xff]
        %v7553 = vld [vmem:[%s7532 + $0xa0] sm:$0xff]
        %v7554 = vld [vmem:[%s7532 + $0xa8] sm:$0xff]
        %v7555 = vld [vmem:[%s7532 + $0xb0] sm:$0xff]
        %v7556 = vld [vmem:[%s7532 + $0xb8] sm:$0xff]
        %v7557 = vld [vmem:[%s7532 + $0xc0] sm:$0xff]
        %v7558 = vld [vmem:[%s7532 + $0xc8] sm:$0xff]
        %v7559 = vld [vmem:[%s7532 + $0xd0] sm:$0xff]
        %v7560 = vld [vmem:[%s7532 + $0xd8] sm:$0xff]
        %v7561 = vld [vmem:[%s7532 + $0xe0] sm:$0xff]
        %v7562 = vld [vmem:[%s7532 + $0xe8] sm:$0xff]
        %v7563 = vld [vmem:[%s7532 + $0xf0] sm:$0xff]
        %v7564 = vld [vmem:[%s7532 + $0xf8] sm:$0xff]
        %v7565 = vld [vmem:[%s7532 + $0x100] sm:$0xff]
        %v7566 = vld [vmem:[%s7532 + $0x108] sm:$0xff]
        %v7567 = vld [vmem:[%s7532 + $0x110] sm:$0xff]
        %v7568 = vld [vmem:[%s7532 + $0x118] sm:$0xff]
        %v7569 = vld [vmem:[%s7532 + $0x120] sm:$0xff]
        %v7570 = vld [vmem:[%s7532 + $0x128] sm:$0xff]
        %v7571 = vld [vmem:[%s7532 + $0x130] sm:$0xff]
        %v7572 = vld [vmem:[%s7532 + $0x138] sm:$0xff]
        %v7573 = vld [vmem:[%s7532 + $0x140] sm:$0xff]
        %v7574 = vld [vmem:[%s7532 + $0x148] sm:$0xff]
        %v7577 = vunpack.c.l.b16 %v7530
        %v7578 = vunpack.c.h.b16 %v7530
        %v7579 = vunpack.c.l.b16 %v7531
        %v7580 = vpack.c.b16 %v5650, %v7577
        %v7581 = vpack.c.b16 %v5651, %v7578
        %v7582 = vpack.c.b16 %v5652, %v7579
        %v7583 = vrot.slane %v7580, 1
        %v7584 = vrot.slane %v5749, 1
        %v7585 = vsel %vm1507, %v7583, %v7584
        %v7586 = vrot.slane %v7581, 1
        %v7587 = vrot.slane %v5750, 1
        %v7588 = vsel %vm1507, %v7586, %v7587
        %v7589 = vrot.slane %v7582, 1
        %v7590 = vrot.slane %v5751, 1
        %v7591 = vsel %vm1507, %v7589, %v7590
        %v7592 = vrot.slane %v5752, 1
        %v7593 = vsel %vm1507, %v7584, %v7592
        %v7594 = vrot.slane %v5753, 1
        %v7595 = vsel %vm1507, %v7587, %v7594
        %v7596 = vrot.slane %v5754, 1
        %v7597 = vsel %vm1507, %v7590, %v7596
        %v7598 = vrot.slane %v5755, 1
        %v7599 = vsel %vm1507, %v7592, %v7598
        %v7600 = vrot.slane %v5756, 1
        %v7601 = vsel %vm1507, %v7594, %v7600
        %v7602 = vrot.slane %v5757, 1
        %v7603 = vsel %vm1507, %v7596, %v7602
        %v7604 = vrot.slane %v5758, 1
        %v7605 = vsel %vm1507, %v7598, %v7604
        %v7606 = vrot.slane %v5759, 1
        %v7607 = vsel %vm1507, %v7600, %v7606
        %v7608 = vrot.slane %v5760, 1
        %v7609 = vsel %vm1507, %v7602, %v7608
        %v7610 = vrot.slane %v5761, 1
        %v7611 = vsel %vm1507, %v7604, %v7610
        %v7612 = vrot.slane %v5762, 1
        %v7613 = vsel %vm1507, %v7606, %v7612
        %v7614 = vrot.slane %v5763, 1
        %v7615 = vsel %vm1507, %v7608, %v7614
        %v7616 = vrot.slane %v5764, 1
        %v7617 = vsel %vm1507, %v7610, %v7616
        %v7618 = vrot.slane %v5765, 1
        %v7619 = vsel %vm1507, %v7612, %v7618
        %v7620 = vrot.slane %v5766, 1
        %v7621 = vsel %vm1507, %v7614, %v7620
        %v7622 = vrot.slane %v5767, 1
        %v7623 = vsel %vm1507, %v7616, %v7622
        %v7624 = vrot.slane %v5768, 1
        %v7625 = vsel %vm1507, %v7618, %v7624
        %v7626 = vrot.slane %v5769, 1
        %v7627 = vsel %vm1507, %v7620, %v7626
        %v7628 = vrot.slane %v5770, 1
        %v7629 = vsel %vm1507, %v7622, %v7628
        %v7630 = vrot.slane %v5771, 1
        %v7631 = vsel %vm1507, %v7624, %v7630
        %v7632 = vrot.slane %v5772, 1
        %v7633 = vsel %vm1507, %v7626, %v7632
        %v7634 = vrot.slane %v5773, 1
        %v7635 = vsel %vm1507, %v7628, %v7634
        %v7636 = vrot.slane %v5774, 1
        %v7637 = vsel %vm1507, %v7630, %v7636
        %v7638 = vrot.slane %v5775, 1
        %v7639 = vsel %vm1507, %v7632, %v7638
        %v7640 = vrot.slane %v5776, 1
        %v7641 = vsel %vm1507, %v7634, %v7640
        %v7642 = vrot.slane %v5777, 1
        %v7643 = vsel %vm1507, %v7636, %v7642
        %v7644 = vrot.slane %v5778, 1
        %v7645 = vsel %vm1507, %v7638, %v7644
        %v7646 = vrot.slane %v5779, 1
        %v7647 = vsel %vm1507, %v7640, %v7646
        %v7648 = vrot.slane %v5780, 1
        %v7649 = vsel %vm1507, %v7642, %v7648
        %v7650 = vrot.slane %v5781, 1
        %v7651 = vsel %vm1507, %v7644, %v7650
        %v7652 = vrot.slane %v5782, 1
        %v7653 = vsel %vm1507, %v7646, %v7652
        %v7654 = vrot.slane %v5783, 1
        %v7655 = vsel %vm1507, %v7648, %v7654
        %v7656 = vrot.slane %v5784, 1
        %v7657 = vsel %vm1507, %v7650, %v7656
        %v7658 = vrot.slane %v5785, 1
        %v7659 = vsel %vm1507, %v7652, %v7658
        %v7660 = vrot.slane %v5786, 1
        %v7661 = vsel %vm1507, %v7654, %v7660
        %v7662 = vrot.slane %v5787, 1
        %v7663 = vsel %vm1507, %v7656, %v7662
        %v7664 = vrot.slane %v5788, 1
        %v7665 = vsel %vm1507, %v7658, %v7664
        %v7666 = vrot.slane %v5789, 1
        %v7667 = vsel %vm1507, %v7660, %v7666
        %v7668 = vrot.slane %v5790, 1
        %v7669 = vsel %vm1507, %v7662, %v7668
        %v7670 = vrot.slane %v5791, 1
        %v7671 = vsel %vm1507, %v7664, %v7670
        %v7672 = vrot.slane %v5792, 1
        %v7673 = vsel %vm1507, %v7666, %v7672
        %v7674 = vrot.slane %v5793, 1
        %v7675 = vsel %vm1507, %v7668, %v7674
        %v7676 = vrot.slane %v5794, 1
        %v7677 = vsel %vm1507, %v7670, %v7676
        %v7678 = vrot.slane %v5795, 1
        %v7679 = vsel %vm1507, %v7672, %v7678
        %v7680 = vrot.slane %v5796, 1
        %v7681 = vsel %vm1507, %v7674, %v7680
        %v7756 = vunpack.c.l.b16 %v7533
        %v7757 = vunpack.c.h.b16 %v7533
        %v7758 = vunpack.c.l.b16 %v7534
        %v7759 = vunpack.c.h.b16 %v7534
        %v7760 = vunpack.c.l.b16 %v7535
        %v7761 = vunpack.c.h.b16 %v7535
        %v7762 = vunpack.c.l.b16 %v7536
        %v7763 = vunpack.c.h.b16 %v7536
        %v7764 = vunpack.c.l.b16 %v7537
        %v7765 = vunpack.c.h.b16 %v7537
        %v7766 = vunpack.c.l.b16 %v7538
        %v7767 = vunpack.c.h.b16 %v7538
        %v7768 = vunpack.c.l.b16 %v7539
        %v7769 = vunpack.c.h.b16 %v7539
        %v7770 = vunpack.c.l.b16 %v7540
        %v7771 = vunpack.c.h.b16 %v7540
        %v7772 = vunpack.c.l.b16 %v7541
        %v7773 = vunpack.c.h.b16 %v7541
        %v7774 = vunpack.c.l.b16 %v7542
        %v7775 = vunpack.c.h.b16 %v7542
        %v7776 = vunpack.c.l.b16 %v7543
        %v7777 = vunpack.c.h.b16 %v7543
        %v7778 = vunpack.c.l.b16 %v7544
        %v7779 = vunpack.c.h.b16 %v7544
        %v7780 = vunpack.c.l.b16 %v7545
        %v7781 = vunpack.c.h.b16 %v7545
        %v7782 = vunpack.c.l.b16 %v7546
        %v7783 = vunpack.c.h.b16 %v7546
        %v7784 = vunpack.c.l.b16 %v7547
        %v7785 = vunpack.c.h.b16 %v7547
        %v7786 = vunpack.c.l.b16 %v7548
        %v7787 = vunpack.c.h.b16 %v7548
        %v7788 = vunpack.c.l.b16 %v7549
        %v7789 = vunpack.c.h.b16 %v7549
        %v7790 = vunpack.c.l.b16 %v7550
        %v7791 = vunpack.c.h.b16 %v7550
        %v7792 = vunpack.c.l.b16 %v7551
        %v7793 = vunpack.c.h.b16 %v7551
        %v7794 = vunpack.c.l.b16 %v7552
        %v7795 = vunpack.c.h.b16 %v7552
        %v7796 = vunpack.c.l.b16 %v7553
        %v7797 = vunpack.c.h.b16 %v7553
        %v7798 = vunpack.c.l.b16 %v7554
        %v7799 = vunpack.c.h.b16 %v7554
        %v7800 = vunpack.c.l.b16 %v7555
        %v7801 = vunpack.c.h.b16 %v7555
        %v7802 = vunpack.c.l.b16 %v7556
        %v7803 = vunpack.c.h.b16 %v7556
        %v7804 = vunpack.c.l.b16 %v7557
        %v7805 = vunpack.c.h.b16 %v7557
        %v7806 = vunpack.c.l.b16 %v7558
        %v7807 = vunpack.c.h.b16 %v7558
        %v7808 = vunpack.c.l.b16 %v7559
        %v7809 = vunpack.c.h.b16 %v7559
        %v7810 = vunpack.c.l.b16 %v7560
        %v7811 = vunpack.c.h.b16 %v7560
        %v7812 = vunpack.c.l.b16 %v7561
        %v7813 = vunpack.c.h.b16 %v7561
        %v7814 = vunpack.c.l.b16 %v7562
        %v7815 = vunpack.c.h.b16 %v7562
        %v7816 = vunpack.c.l.b16 %v7563
        %v7817 = vunpack.c.h.b16 %v7563
        %v7818 = vunpack.c.l.b16 %v7564
        %v7819 = vunpack.c.h.b16 %v7564
        %v7820 = vunpack.c.l.b16 %v7565
        %v7821 = vunpack.c.h.b16 %v7565
        %v7822 = vunpack.c.l.b16 %v7566
        %v7823 = vunpack.c.h.b16 %v7566
        %v7824 = vunpack.c.l.b16 %v7567
        %v7825 = vunpack.c.h.b16 %v7567
        %v7826 = vunpack.c.l.b16 %v7568
        %v7827 = vunpack.c.h.b16 %v7568
        %v7828 = vunpack.c.l.b16 %v7569
        %v7829 = vunpack.c.h.b16 %v7569
        %v7830 = vunpack.c.l.b16 %v7570
        %v7831 = vunpack.c.h.b16 %v7570
        %v7832 = vunpack.c.l.b16 %v7571
        %v7833 = vunpack.c.h.b16 %v7571
        %v7834 = vunpack.c.l.b16 %v7572
        %v7835 = vunpack.c.h.b16 %v7572
        %v7836 = vunpack.c.l.b16 %v7573
        %v7837 = vunpack.c.h.b16 %v7573
        %v7838 = vunpack.c.l.b16 %v7574
        %v7839 = vunpack.c.h.b16 %v7574
        %v7840 = vpack.c.b16 %v7758, %v7756
        %v7841 = vpack.c.b16 %v7759, %v7757
        %v7842 = vpack.c.b16 %v7762, %v7760
        %v7843 = vpack.c.b16 %v7763, %v7761
        %v7844 = vpack.c.b16 %v7766, %v7764
        %v7845 = vpack.c.b16 %v7767, %v7765
        %v7846 = vpack.c.b16 %v7770, %v7768
        %v7847 = vpack.c.b16 %v7771, %v7769
        %v7848 = vpack.c.b16 %v7774, %v7772
        %v7849 = vpack.c.b16 %v7775, %v7773
        %v7850 = vpack.c.b16 %v7778, %v7776
        %v7851 = vpack.c.b16 %v7779, %v7777
        %v7852 = vpack.c.b16 %v7782, %v7780
        %v7853 = vpack.c.b16 %v7783, %v7781
        %v7854 = vpack.c.b16 %v7786, %v7784
        %v7855 = vpack.c.b16 %v7787, %v7785
        %v7856 = vpack.c.b16 %v7790, %v7788
        %v7857 = vpack.c.b16 %v7791, %v7789
        %v7858 = vpack.c.b16 %v7794, %v7792
        %v7859 = vpack.c.b16 %v7795, %v7793
        %v7860 = vpack.c.b16 %v7798, %v7796
        %v7861 = vpack.c.b16 %v7799, %v7797
        %v7862 = vpack.c.b16 %v7802, %v7800
        %v7863 = vpack.c.b16 %v7803, %v7801
        %v7864 = vpack.c.b16 %v7806, %v7804
        %v7865 = vpack.c.b16 %v7807, %v7805
        %v7866 = vpack.c.b16 %v7810, %v7808
        %v7867 = vpack.c.b16 %v7811, %v7809
        %v7868 = vpack.c.b16 %v7814, %v7812
        %v7869 = vpack.c.b16 %v7815, %v7813
        %v7870 = vpack.c.b16 %v7818, %v7816
        %v7871 = vpack.c.b16 %v7819, %v7817
        %v7872 = vpack.c.b16 %v7822, %v7820
        %v7873 = vpack.c.b16 %v7823, %v7821
        %v7874 = vpack.c.b16 %v7826, %v7824
        %v7875 = vpack.c.b16 %v7827, %v7825
        %v7876 = vpack.c.b16 %v7830, %v7828
        %v7877 = vpack.c.b16 %v7831, %v7829
        %v7878 = vpack.c.b16 %v7834, %v7832
        %v7879 = vpack.c.b16 %v7835, %v7833
        %v7880 = vpack.c.b16 %v7838, %v7836
        %v7881 = vpack.c.b16 %v7839, %v7837
        %v7925 = vsel %vm6435, %v7591, 0
        %v7928 = vsel %vm6435, %v7597, 0
        %v7931 = vsel %vm6435, %v7603, 0
        %v7934 = vsel %vm6435, %v7609, 0
        %v7937 = vsel %vm6435, %v7615, 0
        %v7940 = vsel %vm6435, %v7621, 0
        %v7943 = vsel %vm6435, %v7627, 0
        %v7946 = vsel %vm6435, %v7633, 0
        %v7949 = vsel %vm6435, %v7639, 0
        %v7952 = vsel %vm6435, %v7645, 0
        %v7955 = vsel %vm6435, %v7651, 0
        %v7958 = vsel %vm6435, %v7657, 0
        %v7961 = vsel %vm6435, %v7663, 0
        %v7964 = vsel %vm6435, %v7669, 0
        %v7967 = vsel %vm6435, %v7675, 0
        %v7970 = vsel %vm6435, %v7681, 0
        %7972 = vmatprep.subr.bf16.mxu0 %v7841
        %7973 = vmatpush1.bf16.msra.mxu0 %v7840
        %7974 = vmatprep.subr.bf16.mxu0 %v7843
        %7975 = vmatpush1.bf16.msra.mxu0 %v7842
        %7976 = vmatprep.subr.bf16.mxu0 %v7845
        %7977 = vmatpush1.bf16.msra.mxu0 %v7844
        %7978 = vmatprep.subr.bf16.mxu0 %v7847
        %7979 = vmatpush1.bf16.msra.mxu0 %v7846
        %7980 = vmatprep.subr.bf16.mxu0 %v7849
        %7981 = vmatpush1.bf16.msra.mxu0 %v7848
        %7982 = vmatprep.subr.bf16.mxu0 %v7851
        %7983 = vmatpush1.bf16.msra.mxu0 %v7850
        %7984 = vmatprep.subr.bf16.mxu0 %v7853
        %7985 = vmatpush1.bf16.msra.mxu0 %v7852
        %7986 = vmatprep.subr.bf16.mxu0 %v7855
        %7987 = vmatpush1.bf16.msra.mxu0 %v7854
        %7988 = vmatprep.subr.bf16.mxu0 %v7857
        %7989 = vmatpush1.bf16.msra.mxu0 %v7856
        %7990 = vmatprep.subr.bf16.mxu0 %v7859
        %7991 = vmatpush1.bf16.msra.mxu0 %v7858
        %7992 = vmatprep.subr.bf16.mxu0 %v7861
        %7993 = vmatpush1.bf16.msra.mxu0 %v7860
        %7994 = vmatprep.subr.bf16.mxu0 %v7863
        %7995 = vmatpush1.bf16.msra.mxu0 %v7862
        %7996 = vmatprep.subr.bf16.mxu0 %v7865
        %7997 = vmatpush1.bf16.msra.mxu0 %v7864
        %7998 = vmatprep.subr.bf16.mxu0 %v7867
        %7999 = vmatpush1.bf16.msra.mxu0 %v7866
        %8000 = vmatprep.subr.bf16.mxu0 %v7869
        %8001 = vmatpush1.bf16.msra.mxu0 %v7868
        %8002 = vmatprep.subr.bf16.mxu0 %v7871
        %8003 = vmatpush1.bf16.msra.mxu0 %v7870
        %8004 = vmatprep.mubr.bf16.mxu0 %v7588
        %8005 = vmatmul.mubr.bf16.gmra.mrb[0].mxu0 %v7585
        %v8006 = vpop.f32.mrb[0].mxu0
        %v8007 = vadd.f32 0.0, %v8006
        %v8008 = vpop.f32.mrb[0].mxu0
        %v8009 = vadd.f32 0.0, %v8008
        %v8010 = vpop.f32.mrb[0].mxu0
        %v8011 = vadd.f32 0.0, %v8010
        %v8012 = vpop.f32.mrb[0].mxu0
        %v8013 = vadd.f32 0.0, %v8012
        %8014 = vmatprep.mubr.bf16.mxu0 %v7595
        %8015 = vmatmul.mubr.bf16.gmra.mrb[0].mxu0 %v7593
        %v8016 = vpop.f32.mrb[0].mxu0
        %v8017 = vadd.f32 0.0, %v8016
        %v8018 = vpop.f32.mrb[0].mxu0
        %v8019 = vadd.f32 0.0, %v8018
        %v8020 = vpop.f32.mrb[0].mxu0
        %v8021 = vadd.f32 0.0, %v8020
        %v8022 = vpop.f32.mrb[0].mxu0
        %v8023 = vadd.f32 0.0, %v8022
        %8024 = vmatprep.mubr.bf16.mxu0 %v7601
        %8025 = vmatmul.mubr.bf16.gmra.mrb[0].mxu0 %v7599
        %v8026 = vpop.f32.mrb[0].mxu0
        %v8027 = vadd.f32 0.0, %v8026
        %v8028 = vpop.f32.mrb[0].mxu0
        %v8029 = vadd.f32 0.0, %v8028
        %v8030 = vpop.f32.mrb[0].mxu0
        %v8031 = vadd.f32 0.0, %v8030
        %v8032 = vpop.f32.mrb[0].mxu0
        %v8033 = vadd.f32 0.0, %v8032
        %8034 = vmatprep.mubr.bf16.mxu0 %v7607
        %8035 = vmatmul.mubr.bf16.gmra.mrb[0].mxu0 %v7605
        %v8036 = vpop.f32.mrb[0].mxu0
        %v8037 = vadd.f32 0.0, %v8036
        %v8038 = vpop.f32.mrb[0].mxu0
        %v8039 = vadd.f32 0.0, %v8038
        %v8040 = vpop.f32.mrb[0].mxu0
        %v8041 = vadd.f32 0.0, %v8040
        %v8042 = vpop.f32.mrb[0].mxu0
        %v8043 = vadd.f32 0.0, %v8042
        %8044 = vmatprep.mubr.bf16.mxu0 %v7613
        %8045 = vmatmul.mubr.bf16.gmra.mrb[0].mxu0 %v7611
        %v8046 = vpop.f32.mrb[0].mxu0
        %v8047 = vadd.f32 0.0, %v8046
        %v8048 = vpop.f32.mrb[0].mxu0
        %v8049 = vadd.f32 0.0, %v8048
        %v8050 = vpop.f32.mrb[0].mxu0
        %v8051 = vadd.f32 0.0, %v8050
        %v8052 = vpop.f32.mrb[0].mxu0
        %v8053 = vadd.f32 0.0, %v8052
        %8054 = vmatprep.mubr.bf16.mxu0 %v7619
        %8055 = vmatmul.mubr.bf16.gmra.mrb[0].mxu0 %v7617
        %v8056 = vpop.f32.mrb[0].mxu0
        %v8057 = vadd.f32 0.0, %v8056
        %v8058 = vpop.f32.mrb[0].mxu0
        %v8059 = vadd.f32 0.0, %v8058
        %v8060 = vpop.f32.mrb[0].mxu0
        %v8061 = vadd.f32 0.0, %v8060
        %v8062 = vpop.f32.mrb[0].mxu0
        %v8063 = vadd.f32 0.0, %v8062
        %8064 = vmatprep.mubr.bf16.mxu0 %v7625
        %8065 = vmatmul.mubr.bf16.gmra.mrb[0].mxu0 %v7623
        %v8066 = vpop.f32.mrb[0].mxu0
        %v8067 = vadd.f32 0.0, %v8066
        %v8068 = vpop.f32.mrb[0].mxu0
        %v8069 = vadd.f32 0.0, %v8068
        %v8070 = vpop.f32.mrb[0].mxu0
        %v8071 = vadd.f32 0.0, %v8070
        %v8072 = vpop.f32.mrb[0].mxu0
        %v8073 = vadd.f32 0.0, %v8072
        %8074 = vmatprep.mubr.bf16.mxu0 %v7631
        %8075 = vmatmul.mubr.bf16.gmra.mrb[0].mxu0 %v7629
        %v8076 = vpop.f32.mrb[0].mxu0
        %v8077 = vadd.f32 0.0, %v8076
        %v8078 = vpop.f32.mrb[0].mxu0
        %v8079 = vadd.f32 0.0, %v8078
        %v8080 = vpop.f32.mrb[0].mxu0
        %v8081 = vadd.f32 0.0, %v8080
        %v8082 = vpop.f32.mrb[0].mxu0
        %v8083 = vadd.f32 0.0, %v8082
        %8084 = vmatprep.mubr.bf16.mxu0 %v7637
        %8085 = vmatmul.mubr.bf16.gmra.mrb[0].mxu0 %v7635
        %v8086 = vpop.f32.mrb[0].mxu0
        %v8087 = vadd.f32 0.0, %v8086
        %v8088 = vpop.f32.mrb[0].mxu0
        %v8089 = vadd.f32 0.0, %v8088
        %v8090 = vpop.f32.mrb[0].mxu0
        %v8091 = vadd.f32 0.0, %v8090
        %v8092 = vpop.f32.mrb[0].mxu0
        %v8093 = vadd.f32 0.0, %v8092
        %8094 = vmatprep.mubr.bf16.mxu0 %v7643
        %8095 = vmatmul.mubr.bf16.gmra.mrb[0].mxu0 %v7641
        %v8096 = vpop.f32.mrb[0].mxu0
        %v8097 = vadd.f32 0.0, %v8096
        %v8098 = vpop.f32.mrb[0].mxu0
        %v8099 = vadd.f32 0.0, %v8098
        %v8100 = vpop.f32.mrb[0].mxu0
        %v8101 = vadd.f32 0.0, %v8100
        %v8102 = vpop.f32.mrb[0].mxu0
        %v8103 = vadd.f32 0.0, %v8102
        %8104 = vmatprep.mubr.bf16.mxu0 %v7649
        %8105 = vmatmul.mubr.bf16.gmra.mrb[0].mxu0 %v7647
        %v8106 = vpop.f32.mrb[0].mxu0
        %v8107 = vadd.f32 0.0, %v8106
        %v8108 = vpop.f32.mrb[0].mxu0
        %v8109 = vadd.f32 0.0, %v8108
        %v8110 = vpop.f32.mrb[0].mxu0
        %v8111 = vadd.f32 0.0, %v8110
        %v8112 = vpop.f32.mrb[0].mxu0
        %v8113 = vadd.f32 0.0, %v8112
        %8114 = vmatprep.mubr.bf16.mxu0 %v7655
        %8115 = vmatmul.mubr.bf16.gmra.mrb[0].mxu0 %v7653
        %v8116 = vpop.f32.mrb[0].mxu0
        %v8117 = vadd.f32 0.0, %v8116
        %v8118 = vpop.f32.mrb[0].mxu0
        %v8119 = vadd.f32 0.0, %v8118
        %v8120 = vpop.f32.mrb[0].mxu0
        %v8121 = vadd.f32 0.0, %v8120
        %v8122 = vpop.f32.mrb[0].mxu0
        %v8123 = vadd.f32 0.0, %v8122
        %8124 = vmatprep.mubr.bf16.mxu0 %v7661
        %8125 = vmatmul.mubr.bf16.gmra.mrb[0].mxu0 %v7659
        %v8126 = vpop.f32.mrb[0].mxu0
        %v8127 = vadd.f32 0.0, %v8126
        %v8128 = vpop.f32.mrb[0].mxu0
        %v8129 = vadd.f32 0.0, %v8128
        %v8130 = vpop.f32.mrb[0].mxu0
        %v8131 = vadd.f32 0.0, %v8130
        %v8132 = vpop.f32.mrb[0].mxu0
        %v8133 = vadd.f32 0.0, %v8132
        %8134 = vmatprep.mubr.bf16.mxu0 %v7667
        %8135 = vmatmul.mubr.bf16.gmra.mrb[0].mxu0 %v7665
        %v8136 = vpop.f32.mrb[0].mxu0
        %v8137 = vadd.f32 0.0, %v8136
        %v8138 = vpop.f32.mrb[0].mxu0
        %v8139 = vadd.f32 0.0, %v8138
        %v8140 = vpop.f32.mrb[0].mxu0
        %v8141 = vadd.f32 0.0, %v8140
        %v8142 = vpop.f32.mrb[0].mxu0
        %v8143 = vadd.f32 0.0, %v8142
        %8144 = vmatprep.mubr.bf16.mxu0 %v7673
        %8145 = vmatmul.mubr.bf16.gmra.mrb[0].mxu0 %v7671
        %v8146 = vpop.f32.mrb[0].mxu0
        %v8147 = vadd.f32 0.0, %v8146
        %v8148 = vpop.f32.mrb[0].mxu0
        %v8149 = vadd.f32 0.0, %v8148
        %v8150 = vpop.f32.mrb[0].mxu0
        %v8151 = vadd.f32 0.0, %v8150
        %v8152 = vpop.f32.mrb[0].mxu0
        %v8153 = vadd.f32 0.0, %v8152
        %8154 = vmatprep.mubr.bf16.mxu0 %v7679
        %8155 = vmatmul.mubr.bf16.gmra.mrb[0].mxu0 %v7677
        %v8156 = vpop.f32.mrb[0].mxu0
        %v8157 = vadd.f32 0.0, %v8156
        %v8158 = vpop.f32.mrb[0].mxu0
        %v8159 = vadd.f32 0.0, %v8158
        %v8160 = vpop.f32.mrb[0].mxu0
        %v8161 = vadd.f32 0.0, %v8160
        %v8162 = vpop.f32.mrb[0].mxu0
        %v8163 = vadd.f32 0.0, %v8162
        %8164 = vdwg.mxu0
        %8165 = vmatprep.subr.bf16.mxu0 %v7873
        %8166 = vmatpush1.bf16.msra.mxu0 %v7872
        %8167 = vmatprep.subr.bf16.mxu0 %v7875
        %8168 = vmatpush1.bf16.msra.mxu0 %v7874
        %8169 = vmatprep.subr.bf16.mxu0 %v7877
        %8170 = vmatpush1.bf16.msra.mxu0 %v7876
        %8171 = vmatprep.subr.bf16.mxu0 %v7879
        %8172 = vmatpush1.bf16.msra.mxu0 %v7878
        %8173 = vmatprep.subr.bf16.mxu0 %v7881
        %8174 = vmatpush1.bf16.msra.mxu0 %v7880
        %8175 = vmatprep.subr.bf16.mxu0 0
        %8176 = vmatpush1.bf16.msra.mxu0 0
        %8177 = vmatprep.subr.bf16.mxu0 0
        %8178 = vmatpush1.bf16.msra.mxu0 0
        %8179 = vmatprep.subr.bf16.mxu0 0
        %8180 = vmatpush1.bf16.msra.mxu0 0
        %8181 = vmatprep.subr.bf16.mxu0 0
        %8182 = vmatpush1.bf16.msra.mxu0 0
        %8183 = vmatprep.subr.bf16.mxu0 0
        %8184 = vmatpush1.bf16.msra.mxu0 0
        %8185 = vmatprep.subr.bf16.mxu0 0
        %8186 = vmatpush1.bf16.msra.mxu0 0
        %8187 = vmatprep.subr.bf16.mxu0 0
        %8188 = vmatpush1.bf16.msra.mxu0 0
        %8189 = vmatprep.subr.bf16.mxu0 0
        %8190 = vmatpush1.bf16.msra.mxu0 0
        %8191 = vmatprep.subr.bf16.mxu0 0
        %8192 = vmatpush1.bf16.msra.mxu0 0
        %8193 = vmatprep.subr.bf16.mxu0 0
        %8194 = vmatpush1.bf16.msra.mxu0 0
        %8195 = vmatprep.subr.bf16.mxu0 0
        %8196 = vmatpush1.bf16.msra.mxu0 0
        %8197 = vmatprep.mubr.bf16.mxu0 0
        %8198 = vmatmul.mubr.bf16.gmra.mrb[0].mxu0 %v7925
        %v8199 = vpop.f32.mrb[0].mxu0
        %v8200 = vadd.f32 %v8007, %v8199
        %v8201 = vpop.f32.mrb[0].mxu0
        %v8202 = vadd.f32 %v8009, %v8201
        %v8203 = vpop.f32.mrb[0].mxu0
        %v8204 = vadd.f32 %v8011, %v8203
        %v8205 = vpop.f32.mrb[0].mxu0
        %v8206 = vadd.f32 %v8013, %v8205
        %8207 = vmatprep.mubr.bf16.mxu0 0
        %8208 = vmatmul.mubr.bf16.gmra.mrb[0].mxu0 %v7928
        %v8209 = vpop.f32.mrb[0].mxu0
        %v8210 = vadd.f32 %v8017, %v8209
        %v8211 = vpop.f32.mrb[0].mxu0
        %v8212 = vadd.f32 %v8019, %v8211
        %v8213 = vpop.f32.mrb[0].mxu0
        %v8214 = vadd.f32 %v8021, %v8213
        %v8215 = vpop.f32.mrb[0].mxu0
        %v8216 = vadd.f32 %v8023, %v8215
        %8217 = vmatprep.mubr.bf16.mxu0 0
        %8218 = vmatmul.mubr.bf16.gmra.mrb[0].mxu0 %v7931
        %v8219 = vpop.f32.mrb[0].mxu0
        %v8220 = vadd.f32 %v8027, %v8219
        %v8221 = vpop.f32.mrb[0].mxu0
        %v8222 = vadd.f32 %v8029, %v8221
        %v8223 = vpop.f32.mrb[0].mxu0
        %v8224 = vadd.f32 %v8031, %v8223
        %v8225 = vpop.f32.mrb[0].mxu0
        %v8226 = vadd.f32 %v8033, %v8225
        %8227 = vmatprep.mubr.bf16.mxu0 0
        %8228 = vmatmul.mubr.bf16.gmra.mrb[0].mxu0 %v7934
        %v8229 = vpop.f32.mrb[0].mxu0
        %v8230 = vadd.f32 %v8037, %v8229
        %v8231 = vpop.f32.mrb[0].mxu0
        %v8232 = vadd.f32 %v8039, %v8231
        %v8233 = vpop.f32.mrb[0].mxu0
        %v8234 = vadd.f32 %v8041, %v8233
        %v8235 = vpop.f32.mrb[0].mxu0
        %v8236 = vadd.f32 %v8043, %v8235
        %8237 = vmatprep.mubr.bf16.mxu0 0
        %8238 = vmatmul.mubr.bf16.gmra.mrb[0].mxu0 %v7937
        %v8239 = vpop.f32.mrb[0].mxu0
        %v8240 = vadd.f32 %v8047, %v8239
        %v8241 = vpop.f32.mrb[0].mxu0
        %v8242 = vadd.f32 %v8049, %v8241
        %v8243 = vpop.f32.mrb[0].mxu0
        %v8244 = vadd.f32 %v8051, %v8243
        %v8245 = vpop.f32.mrb[0].mxu0
        %v8246 = vadd.f32 %v8053, %v8245
        %8247 = vmatprep.mubr.bf16.mxu0 0
        %8248 = vmatmul.mubr.bf16.gmra.mrb[0].mxu0 %v7940
        %v8249 = vpop.f32.mrb[0].mxu0
        %v8250 = vadd.f32 %v8057, %v8249
        %v8251 = vpop.f32.mrb[0].mxu0
        %v8252 = vadd.f32 %v8059, %v8251
        %v8253 = vpop.f32.mrb[0].mxu0
        %v8254 = vadd.f32 %v8061, %v8253
        %v8255 = vpop.f32.mrb[0].mxu0
        %v8256 = vadd.f32 %v8063, %v8255
        %8257 = vmatprep.mubr.bf16.mxu0 0
        %8258 = vmatmul.mubr.bf16.gmra.mrb[0].mxu0 %v7943
        %v8259 = vpop.f32.mrb[0].mxu0
        %v8260 = vadd.f32 %v8067, %v8259
        %v8261 = vpop.f32.mrb[0].mxu0
        %v8262 = vadd.f32 %v8069, %v8261
        %v8263 = vpop.f32.mrb[0].mxu0
        %v8264 = vadd.f32 %v8071, %v8263
        %v8265 = vpop.f32.mrb[0].mxu0
        %v8266 = vadd.f32 %v8073, %v8265
        %8267 = vmatprep.mubr.bf16.mxu0 0
        %8268 = vmatmul.mubr.bf16.gmra.mrb[0].mxu0 %v7946
        %v8269 = vpop.f32.mrb[0].mxu0
        %v8270 = vadd.f32 %v8077, %v8269
        %v8271 = vpop.f32.mrb[0].mxu0
        %v8272 = vadd.f32 %v8079, %v8271
        %v8273 = vpop.f32.mrb[0].mxu0
        %v8274 = vadd.f32 %v8081, %v8273
        %v8275 = vpop.f32.mrb[0].mxu0
        %v8276 = vadd.f32 %v8083, %v8275
        %8277 = vmatprep.mubr.bf16.mxu0 0
        %8278 = vmatmul.mubr.bf16.gmra.mrb[0].mxu0 %v7949
        %v8279 = vpop.f32.mrb[0].mxu0
        %v8280 = vadd.f32 %v8087, %v8279
        %v8281 = vpop.f32.mrb[0].mxu0
        %v8282 = vadd.f32 %v8089, %v8281
        %v8283 = vpop.f32.mrb[0].mxu0
        %v8284 = vadd.f32 %v8091, %v8283
        %v8285 = vpop.f32.mrb[0].mxu0
        %v8286 = vadd.f32 %v8093, %v8285
        %8287 = vmatprep.mubr.bf16.mxu0 0
        %8288 = vmatmul.mubr.bf16.gmra.mrb[0].mxu0 %v7952
        %v8289 = vpop.f32.mrb[0].mxu0
        %v8290 = vadd.f32 %v8097, %v8289
        %v8291 = vpop.f32.mrb[0].mxu0
        %v8292 = vadd.f32 %v8099, %v8291
        %v8293 = vpop.f32.mrb[0].mxu0
        %v8294 = vadd.f32 %v8101, %v8293
        %v8295 = vpop.f32.mrb[0].mxu0
        %v8296 = vadd.f32 %v8103, %v8295
        %8297 = vmatprep.mubr.bf16.mxu0 0
        %8298 = vmatmul.mubr.bf16.gmra.mrb[0].mxu0 %v7955
        %v8299 = vpop.f32.mrb[0].mxu0
        %v8300 = vadd.f32 %v8107, %v8299
        %v8301 = vpop.f32.mrb[0].mxu0
        %v8302 = vadd.f32 %v8109, %v8301
        %v8303 = vpop.f32.mrb[0].mxu0
        %v8304 = vadd.f32 %v8111, %v8303
        %v8305 = vpop.f32.mrb[0].mxu0
        %v8306 = vadd.f32 %v8113, %v8305
        %8307 = vmatprep.mubr.bf16.mxu0 0
        %8308 = vmatmul.mubr.bf16.gmra.mrb[0].mxu0 %v7958
        %v8309 = vpop.f32.mrb[0].mxu0
        %v8310 = vadd.f32 %v8117, %v8309
        %v8311 = vpop.f32.mrb[0].mxu0
        %v8312 = vadd.f32 %v8119, %v8311
        %v8313 = vpop.f32.mrb[0].mxu0
        %v8314 = vadd.f32 %v8121, %v8313
        %v8315 = vpop.f32.mrb[0].mxu0
        %v8316 = vadd.f32 %v8123, %v8315
        %8317 = vmatprep.mubr.bf16.mxu0 0
        %8318 = vmatmul.mubr.bf16.gmra.mrb[0].mxu0 %v7961
        %v8319 = vpop.f32.mrb[0].mxu0
        %v8320 = vadd.f32 %v8127, %v8319
        %v8321 = vpop.f32.mrb[0].mxu0
        %v8322 = vadd.f32 %v8129, %v8321
        %v8323 = vpop.f32.mrb[0].mxu0
        %v8324 = vadd.f32 %v8131, %v8323
        %v8325 = vpop.f32.mrb[0].mxu0
        %v8326 = vadd.f32 %v8133, %v8325
        %8327 = vmatprep.mubr.bf16.mxu0 0
        %8328 = vmatmul.mubr.bf16.gmra.mrb[0].mxu0 %v7964
        %v8329 = vpop.f32.mrb[0].mxu0
        %v8330 = vadd.f32 %v8137, %v8329
        %v8331 = vpop.f32.mrb[0].mxu0
        %v8332 = vadd.f32 %v8139, %v8331
        %v8333 = vpop.f32.mrb[0].mxu0
        %v8334 = vadd.f32 %v8141, %v8333
        %v8335 = vpop.f32.mrb[0].mxu0
        %v8336 = vadd.f32 %v8143, %v8335
        %8337 = vmatprep.mubr.bf16.mxu0 0
        %8338 = vmatmul.mubr.bf16.gmra.mrb[0].mxu0 %v7967
        %v8339 = vpop.f32.mrb[0].mxu0
        %v8340 = vadd.f32 %v8147, %v8339
        %v8341 = vpop.f32.mrb[0].mxu0
        %v8342 = vadd.f32 %v8149, %v8341
        %v8343 = vpop.f32.mrb[0].mxu0
        %v8344 = vadd.f32 %v8151, %v8343
        %v8345 = vpop.f32.mrb[0].mxu0
        %v8346 = vadd.f32 %v8153, %v8345
        %8347 = vmatprep.mubr.bf16.mxu0 0
        %8348 = vmatmul.mubr.bf16.gmra.mrb[0].mxu0 %v7970
        %v8349 = vpop.f32.mrb[0].mxu0
        %v8350 = vadd.f32 %v8157, %v8349
        %v8351 = vpop.f32.mrb[0].mxu0
        %v8352 = vadd.f32 %v8159, %v8351
        %v8353 = vpop.f32.mrb[0].mxu0
        %v8354 = vadd.f32 %v8161, %v8353
        %v8355 = vpop.f32.mrb[0].mxu0
        %v8356 = vadd.f32 %v8163, %v8355
        %8357 = vdwg.mxu0
        %v8358 = vadd.f32 %v7372, %v8200
        %v8359 = vadd.f32 %v7374, %v8202
        %v8360 = vadd.f32 %v7376, %v8204
        %v8361 = vadd.f32 %v7378, %v8206
        %v8362 = vadd.f32 %v7382, %v8210
        %v8363 = vadd.f32 %v7384, %v8212
        %v8364 = vadd.f32 %v7386, %v8214
        %v8365 = vadd.f32 %v7388, %v8216
        %v8366 = vadd.f32 %v7392, %v8220
        %v8367 = vadd.f32 %v7394, %v8222
        %v8368 = vadd.f32 %v7396, %v8224
        %v8369 = vadd.f32 %v7398, %v8226
        %v8370 = vadd.f32 %v7402, %v8230
        %v8371 = vadd.f32 %v7404, %v8232
        %v8372 = vadd.f32 %v7406, %v8234
        %v8373 = vadd.f32 %v7408, %v8236
        %v8374 = vadd.f32 %v7412, %v8240
        %v8375 = vadd.f32 %v7414, %v8242
        %v8376 = vadd.f32 %v7416, %v8244
        %v8377 = vadd.f32 %v7418, %v8246
        %v8378 = vadd.f32 %v7422, %v8250
        %v8379 = vadd.f32 %v7424, %v8252
        %v8380 = vadd.f32 %v7426, %v8254
        %v8381 = vadd.f32 %v7428, %v8256
        %v8382 = vadd.f32 %v7432, %v8260
        %v8383 = vadd.f32 %v7434, %v8262
        %v8384 = vadd.f32 %v7436, %v8264
        %v8385 = vadd.f32 %v7438, %v8266
        %v8386 = vadd.f32 %v7442, %v8270
        %v8387 = vadd.f32 %v7444, %v8272
        %v8388 = vadd.f32 %v7446, %v8274
        %v8389 = vadd.f32 %v7448, %v8276
        %v8390 = vadd.f32 %v7452, %v8280
        %v8391 = vadd.f32 %v7454, %v8282
        %v8392 = vadd.f32 %v7456, %v8284
        %v8393 = vadd.f32 %v7458, %v8286
        %v8394 = vadd.f32 %v7462, %v8290
        %v8395 = vadd.f32 %v7464, %v8292
        %v8396 = vadd.f32 %v7466, %v8294
        %v8397 = vadd.f32 %v7468, %v8296
        %v8398 = vadd.f32 %v7472, %v8300
        %v8399 = vadd.f32 %v7474, %v8302
        %v8400 = vadd.f32 %v7476, %v8304
        %v8401 = vadd.f32 %v7478, %v8306
        %v8402 = vadd.f32 %v7482, %v8310
        %v8403 = vadd.f32 %v7484, %v8312
        %v8404 = vadd.f32 %v7486, %v8314
        %v8405 = vadd.f32 %v7488, %v8316
        %v8406 = vadd.f32 %v7492, %v8320
        %v8407 = vadd.f32 %v7494, %v8322
        %v8408 = vadd.f32 %v7496, %v8324
        %v8409 = vadd.f32 %v7498, %v8326
        %v8410 = vadd.f32 %v7502, %v8330
        %v8411 = vadd.f32 %v7504, %v8332
        %v8412 = vadd.f32 %v7506, %v8334
        %v8413 = vadd.f32 %v7508, %v8336
        %v8414 = vadd.f32 %v7512, %v8340
        %v8415 = vadd.f32 %v7514, %v8342
        %v8416 = vadd.f32 %v7516, %v8344
        %v8417 = vadd.f32 %v7518, %v8346
        %v8418 = vadd.f32 %v7522, %v8350
        %v8419 = vadd.f32 %v7524, %v8352
        %v8420 = vadd.f32 %v7526, %v8354
        %v8421 = vadd.f32 %v7528, %v8356
        %v8422 = vld [vmem:[%s6] sm:$0x3]
        %v8424 = vlaneseq
        %v8425 = vshrl.u32 %v8424, 7
        %v8426 = vsub.s32 0, %v8425
        %v8427 = vrot.slane %v8422, %v8426
        %v8428 = vlaneseq
        %v8429 = vshrl.u32 %v8428, 7
        %v8430 = vsub.s32 1, %v8429
        %v8431 = vrot.slane %v8422, %v8430
        %v8434 = vadd.f32 %v8358, %v8427
        %v8435 = vadd.f32 %v8359, %v8431
        %v8436 = vadd.f32 %v8360, %v8427
        %v8437 = vadd.f32 %v8361, %v8431
        %v8438 = vadd.f32 %v8362, %v8427
        %v8439 = vadd.f32 %v8363, %v8431
        %v8440 = vadd.f32 %v8364, %v8427
        %v8441 = vadd.f32 %v8365, %v8431
        %v8442 = vadd.f32 %v8366, %v8427
        %v8443 = vadd.f32 %v8367, %v8431
        %v8444 = vadd.f32 %v8368, %v8427
        %v8445 = vadd.f32 %v8369, %v8431
        %v8446 = vadd.f32 %v8370, %v8427
        %v8447 = vadd.f32 %v8371, %v8431
        %v8448 = vadd.f32 %v8372, %v8427
        %v8449 = vadd.f32 %v8373, %v8431
        %v8450 = vadd.f32 %v8374, %v8427
        %v8451 = vadd.f32 %v8375, %v8431
        %v8452 = vadd.f32 %v8376, %v8427
        %v8453 = vadd.f32 %v8377, %v8431
        %v8454 = vadd.f32 %v8378, %v8427
        %v8455 = vadd.f32 %v8379, %v8431
        %v8456 = vadd.f32 %v8380, %v8427
        %v8457 = vadd.f32 %v8381, %v8431
        %v8458 = vadd.f32 %v8382, %v8427
        %v8459 = vadd.f32 %v8383, %v8431
        %v8460 = vadd.f32 %v8384, %v8427
        %v8461 = vadd.f32 %v8385, %v8431
        %v8462 = vadd.f32 %v8386, %v8427
        %v8463 = vadd.f32 %v8387, %v8431
        %v8464 = vadd.f32 %v8388, %v8427
        %v8465 = vadd.f32 %v8389, %v8431
        %v8466 = vadd.f32 %v8390, %v8427
        %v8467 = vadd.f32 %v8391, %v8431
        %v8468 = vadd.f32 %v8392, %v8427
        %v8469 = vadd.f32 %v8393, %v8431
        %v8470 = vadd.f32 %v8394, %v8427
        %v8471 = vadd.f32 %v8395, %v8431
        %v8472 = vadd.f32 %v8396, %v8427
        %v8473 = vadd.f32 %v8397, %v8431
        %v8474 = vadd.f32 %v8398, %v8427
        %v8475 = vadd.f32 %v8399, %v8431
        %v8476 = vadd.f32 %v8400, %v8427
        %v8477 = vadd.f32 %v8401, %v8431
        %v8478 = vadd.f32 %v8402, %v8427
        %v8479 = vadd.f32 %v8403, %v8431
        %v8480 = vadd.f32 %v8404, %v8427
        %v8481 = vadd.f32 %v8405, %v8431
        %v8482 = vadd.f32 %v8406, %v8427
        %v8483 = vadd.f32 %v8407, %v8431
        %v8484 = vadd.f32 %v8408, %v8427
        %v8485 = vadd.f32 %v8409, %v8431
        %v8486 = vadd.f32 %v8410, %v8427
        %v8487 = vadd.f32 %v8411, %v8431
        %v8488 = vadd.f32 %v8412, %v8427
        %v8489 = vadd.f32 %v8413, %v8431
        %v8490 = vadd.f32 %v8414, %v8427
        %v8491 = vadd.f32 %v8415, %v8431
        %v8492 = vadd.f32 %v8416, %v8427
        %v8493 = vadd.f32 %v8417, %v8431
        %v8494 = vadd.f32 %v8418, %v8427
        %v8495 = vadd.f32 %v8419, %v8431
        %v8496 = vadd.f32 %v8420, %v8427
        %v8497 = vadd.f32 %v8421, %v8431
        %v8498 = vmax.f32 %v8434, 0.0
        %v8499 = vmax.f32 %v8435, 0.0
        %v8500 = vmax.f32 %v8436, 0.0
        %v8501 = vmax.f32 %v8437, 0.0
        %v8502 = vmax.f32 %v8438, 0.0
        %v8503 = vmax.f32 %v8439, 0.0
        %v8504 = vmax.f32 %v8440, 0.0
        %v8505 = vmax.f32 %v8441, 0.0
        %v8506 = vmax.f32 %v8442, 0.0
        %v8507 = vmax.f32 %v8443, 0.0
        %v8508 = vmax.f32 %v8444, 0.0
        %v8509 = vmax.f32 %v8445, 0.0
        %v8510 = vmax.f32 %v8446, 0.0
        %v8511 = vmax.f32 %v8447, 0.0
        %v8512 = vmax.f32 %v8448, 0.0
        %v8513 = vmax.f32 %v8449, 0.0
        %v8514 = vmax.f32 %v8450, 0.0
        %v8515 = vmax.f32 %v8451, 0.0
        %v8516 = vmax.f32 %v8452, 0.0
        %v8517 = vmax.f32 %v8453, 0.0
        %v8518 = vmax.f32 %v8454, 0.0
        %v8519 = vmax.f32 %v8455, 0.0
        %v8520 = vmax.f32 %v8456, 0.0
        %v8521 = vmax.f32 %v8457, 0.0
        %v8522 = vmax.f32 %v8458, 0.0
        %v8523 = vmax.f32 %v8459, 0.0
        %v8524 = vmax.f32 %v8460, 0.0
        %v8525 = vmax.f32 %v8461, 0.0
        %v8526 = vmax.f32 %v8462, 0.0
        %v8527 = vmax.f32 %v8463, 0.0
        %v8528 = vmax.f32 %v8464, 0.0
        %v8529 = vmax.f32 %v8465, 0.0
        %v8530 = vmax.f32 %v8466, 0.0
        %v8531 = vmax.f32 %v8467, 0.0
        %v8532 = vmax.f32 %v8468, 0.0
        %v8533 = vmax.f32 %v8469, 0.0
        %v8534 = vmax.f32 %v8470, 0.0
        %v8535 = vmax.f32 %v8471, 0.0
        %v8536 = vmax.f32 %v8472, 0.0
        %v8537 = vmax.f32 %v8473, 0.0
        %v8538 = vmax.f32 %v8474, 0.0
        %v8539 = vmax.f32 %v8475, 0.0
        %v8540 = vmax.f32 %v8476, 0.0
        %v8541 = vmax.f32 %v8477, 0.0
        %v8542 = vmax.f32 %v8478, 0.0
        %v8543 = vmax.f32 %v8479, 0.0
        %v8544 = vmax.f32 %v8480, 0.0
        %v8545 = vmax.f32 %v8481, 0.0
        %v8546 = vmax.f32 %v8482, 0.0
        %v8547 = vmax.f32 %v8483, 0.0
        %v8548 = vmax.f32 %v8484, 0.0
        %v8549 = vmax.f32 %v8485, 0.0
        %v8550 = vmax.f32 %v8486, 0.0
        %v8551 = vmax.f32 %v8487, 0.0
        %v8552 = vmax.f32 %v8488, 0.0
        %v8553 = vmax.f32 %v8489, 0.0
        %v8554 = vmax.f32 %v8490, 0.0
        %v8555 = vmax.f32 %v8491, 0.0
        %v8556 = vmax.f32 %v8492, 0.0
        %v8557 = vmax.f32 %v8493, 0.0
        %v8558 = vmax.f32 %v8494, 0.0
        %v8559 = vmax.f32 %v8495, 0.0
        %v8560 = vmax.f32 %v8496, 0.0
        %v8561 = vmax.f32 %v8497, 0.0
        %v8562 = vmax.f32 %v8498, %v8499
        %v8563 = vmax.f32 %v8500, %v8501
        %v8564 = vmax.f32 %v8502, %v8503
        %v8565 = vmax.f32 %v8504, %v8505
        %v8566 = vmax.f32 %v8506, %v8507
        %v8567 = vmax.f32 %v8508, %v8509
        %v8568 = vmax.f32 %v8510, %v8511
        %v8569 = vmax.f32 %v8512, %v8513
        %v8570 = vmax.f32 %v8514, %v8515
        %v8571 = vmax.f32 %v8516, %v8517
        %v8572 = vmax.f32 %v8518, %v8519
        %v8573 = vmax.f32 %v8520, %v8521
        %v8574 = vmax.f32 %v8522, %v8523
        %v8575 = vmax.f32 %v8524, %v8525
        %v8576 = vmax.f32 %v8526, %v8527
        %v8577 = vmax.f32 %v8528, %v8529
        %v8578 = vmax.f32 %v8530, %v8531
        %v8579 = vmax.f32 %v8532, %v8533
        %v8580 = vmax.f32 %v8534, %v8535
        %v8581 = vmax.f32 %v8536, %v8537
        %v8582 = vmax.f32 %v8538, %v8539
        %v8583 = vmax.f32 %v8540, %v8541
        %v8584 = vmax.f32 %v8542, %v8543
        %v8585 = vmax.f32 %v8544, %v8545
        %v8586 = vmax.f32 %v8546, %v8547
        %v8587 = vmax.f32 %v8548, %v8549
        %v8588 = vmax.f32 %v8550, %v8551
        %v8589 = vmax.f32 %v8552, %v8553
        %v8590 = vmax.f32 %v8554, %v8555
        %v8591 = vmax.f32 %v8556, %v8557
        %v8592 = vmax.f32 %v8558, %v8559
        %v8593 = vmax.f32 %v8560, %v8561
        %8594 = vst [vmem:[#allocation5] sm:$0xff] %v8562
        %8595 = vst [vmem:[#allocation5 + $0x8] sm:$0xff] %v8563
        %8596 = vst [vmem:[#allocation5 + $0x10] sm:$0xff] %v8564
        %8597 = vst [vmem:[#allocation5 + $0x18] sm:$0xff] %v8565
        %8598 = vst [vmem:[#allocation5 + $0x20] sm:$0xff] %v8566
        %8599 = vst [vmem:[#allocation5 + $0x28] sm:$0xff] %v8567
        %8600 = vst [vmem:[#allocation5 + $0x30] sm:$0xff] %v8568
        %8601 = vst [vmem:[#allocation5 + $0x38] sm:$0xff] %v8569
        %8602 = vst [vmem:[#allocation5 + $0x40] sm:$0xff] %v8570
        %8603 = vst [vmem:[#allocation5 + $0x48] sm:$0xff] %v8571
        %8604 = vst [vmem:[#allocation5 + $0x50] sm:$0xff] %v8572
        %8605 = vst [vmem:[#allocation5 + $0x58] sm:$0xff] %v8573
        %8606 = vst [vmem:[#allocation5 + $0x60] sm:$0xff] %v8574
        %8607 = vst [vmem:[#allocation5 + $0x68] sm:$0xff] %v8575
        %8608 = vst [vmem:[#allocation5 + $0x70] sm:$0xff] %v8576
        %8609 = vst [vmem:[#allocation5 + $0x78] sm:$0xff] %v8577
        %8610 = vst [vmem:[#allocation5 + $0x80] sm:$0xff] %v8578
        %8611 = vst [vmem:[#allocation5 + $0x88] sm:$0xff] %v8579
        %8612 = vst [vmem:[#allocation5 + $0x90] sm:$0xff] %v8580
        %8613 = vst [vmem:[#allocation5 + $0x98] sm:$0xff] %v8581
        %8614 = vst [vmem:[#allocation5 + $0xa0] sm:$0xff] %v8582
        %8615 = vst [vmem:[#allocation5 + $0xa8] sm:$0xff] %v8583
        %8616 = vst [vmem:[#allocation5 + $0xb0] sm:$0xff] %v8584
        %8617 = vst [vmem:[#allocation5 + $0xb8] sm:$0xff] %v8585
        %8618 = vst [vmem:[#allocation5 + $0xc0] sm:$0xff] %v8586
        %8619 = vst [vmem:[#allocation5 + $0xc8] sm:$0xff] %v8587
        %8620 = vst [vmem:[#allocation5 + $0xd0] sm:$0xff] %v8588
        %8621 = vst [vmem:[#allocation5 + $0xd8] sm:$0xff] %v8589
        %8622 = vst [vmem:[#allocation5 + $0xe0] sm:$0xff] %v8590
        %8623 = vst [vmem:[#allocation5 + $0xe8] sm:$0xff] %v8591
        %8624 = vst [vmem:[#allocation5 + $0xf0] sm:$0xff] %v8592
        %8625 = vst [vmem:[#allocation5 + $0xf8] sm:$0xff] %v8593
        %v8626 = vld [vmem:[#allocation5] ss:$2 sm:$0xff]
        %s8627 = scalar_lea.vmem [#allocation5], 16
        %v8628 = vld [vmem:[%s8627] ss:$2 sm:$0xff]
        %s8629 = scalar_lea.vmem [#allocation5], 32
        %v8630 = vld [vmem:[%s8629] ss:$2 sm:$0xff]
        %s8631 = scalar_lea.vmem [#allocation5], 48
        %v8632 = vld [vmem:[%s8631] ss:$2 sm:$0xff]
        %s8633 = scalar_lea.vmem [#allocation5], 64
        %v8634 = vld [vmem:[%s8633] ss:$2 sm:$0xff]
        %s8635 = scalar_lea.vmem [#allocation5], 80
        %v8636 = vld [vmem:[%s8635] ss:$2 sm:$0xff]
        %s8637 = scalar_lea.vmem [#allocation5], 96
        %v8638 = vld [vmem:[%s8637] ss:$2 sm:$0xff]
        %s8639 = scalar_lea.vmem [#allocation5], 112
        %v8640 = vld [vmem:[%s8639] ss:$2 sm:$0xff]
        %s8641 = scalar_lea.vmem [#allocation5], 128
        %v8642 = vld [vmem:[%s8641] ss:$2 sm:$0xff]
        %s8643 = scalar_lea.vmem [#allocation5], 144
        %v8644 = vld [vmem:[%s8643] ss:$2 sm:$0xff]
        %s8645 = scalar_lea.vmem [#allocation5], 160
        %v8646 = vld [vmem:[%s8645] ss:$2 sm:$0xff]
        %s8647 = scalar_lea.vmem [#allocation5], 176
        %v8648 = vld [vmem:[%s8647] ss:$2 sm:$0xff]
        %s8649 = scalar_lea.vmem [#allocation5], 192
        %v8650 = vld [vmem:[%s8649] ss:$2 sm:$0xff]
        %s8651 = scalar_lea.vmem [#allocation5], 208
        %v8652 = vld [vmem:[%s8651] ss:$2 sm:$0xff]
        %s8653 = scalar_lea.vmem [#allocation5], 224
        %v8654 = vld [vmem:[%s8653] ss:$2 sm:$0xff]
        %s8655 = scalar_lea.vmem [#allocation5], 240
        %v8656 = vld [vmem:[%s8655] ss:$2 sm:$0xff]
        %s8657 = scalar_lea.vmem [#allocation5], 1
        %v8658 = vld [vmem:[%s8657] ss:$2 sm:$0xff]
        %s8659 = scalar_lea.vmem [#allocation5], 17
        %v8660 = vld [vmem:[%s8659] ss:$2 sm:$0xff]
        %s8661 = scalar_lea.vmem [#allocation5], 33
        %v8662 = vld [vmem:[%s8661] ss:$2 sm:$0xff]
        %s8663 = scalar_lea.vmem [#allocation5], 49
        %v8664 = vld [vmem:[%s8663] ss:$2 sm:$0xff]
        %s8665 = scalar_lea.vmem [#allocation5], 65
        %v8666 = vld [vmem:[%s8665] ss:$2 sm:$0xff]
        %s8667 = scalar_lea.vmem [#allocation5], 81
        %v8668 = vld [vmem:[%s8667] ss:$2 sm:$0xff]
        %s8669 = scalar_lea.vmem [#allocation5], 97
        %v8670 = vld [vmem:[%s8669] ss:$2 sm:$0xff]
        %s8671 = scalar_lea.vmem [#allocation5], 113
        %v8672 = vld [vmem:[%s8671] ss:$2 sm:$0xff]
        %s8673 = scalar_lea.vmem [#allocation5], 129
        %v8674 = vld [vmem:[%s8673] ss:$2 sm:$0xff]
        %s8675 = scalar_lea.vmem [#allocation5], 145
        %v8676 = vld [vmem:[%s8675] ss:$2 sm:$0xff]
        %s8677 = scalar_lea.vmem [#allocation5], 161
        %v8678 = vld [vmem:[%s8677] ss:$2 sm:$0xff]
        %s8679 = scalar_lea.vmem [#allocation5], 177
        %v8680 = vld [vmem:[%s8679] ss:$2 sm:$0xff]
        %s8681 = scalar_lea.vmem [#allocation5], 193
        %v8682 = vld [vmem:[%s8681] ss:$2 sm:$0xff]
        %s8683 = scalar_lea.vmem [#allocation5], 209
        %v8684 = vld [vmem:[%s8683] ss:$2 sm:$0xff]
        %s8685 = scalar_lea.vmem [#allocation5], 225
        %v8686 = vld [vmem:[%s8685] ss:$2 sm:$0xff]
        %s8687 = scalar_lea.vmem [#allocation5], 241
        %v8688 = vld [vmem:[%s8687] ss:$2 sm:$0xff]
        %v8689 = vmax.f32 %v8626, %v8658
        %v8690 = vmax.f32 %v8628, %v8660
        %v8691 = vmax.f32 %v8630, %v8662
        %v8692 = vmax.f32 %v8632, %v8664
        %v8693 = vmax.f32 %v8634, %v8666
        %v8694 = vmax.f32 %v8636, %v8668
        %v8695 = vmax.f32 %v8638, %v8670
        %v8696 = vmax.f32 %v8640, %v8672
        %v8697 = vmax.f32 %v8642, %v8674
        %v8698 = vmax.f32 %v8644, %v8676
        %v8699 = vmax.f32 %v8646, %v8678
        %v8700 = vmax.f32 %v8648, %v8680
        %v8701 = vmax.f32 %v8650, %v8682
        %v8702 = vmax.f32 %v8652, %v8684
        %v8703 = vmax.f32 %v8654, %v8686
        %v8704 = vmax.f32 %v8656, %v8688
        %v8705 = vpack.c.bf16 %v8690, %v8689
        %v8706 = vpack.c.bf16 %v8692, %v8691
        %v8707 = vpack.c.bf16 %v8694, %v8693
        %v8708 = vpack.c.bf16 %v8696, %v8695
        %v8709 = vpack.c.bf16 %v8698, %v8697
        %v8710 = vpack.c.bf16 %v8700, %v8699
        %v8711 = vpack.c.bf16 %v8702, %v8701
        %v8712 = vpack.c.bf16 %v8704, %v8703
        %v8713 = vld [vmem:[%s7] sm:$0xf]
        %v8714 = vld [vmem:[%s7 + $0x4] sm:$0xf]
        %v8715 = vld [vmem:[%s7 + $0x8] sm:$0xf]
        %v8716 = vld [vmem:[%s7 + $0xc] sm:$0xf]
        %v8717 = vld [vmem:[%s7 + $0x10] sm:$0xf]
        %v8718 = vld [vmem:[%s7 + $0x14] sm:$0xf]
        %v8719 = vld [vmem:[%s7 + $0x18] sm:$0xf]
        %v8720 = vld [vmem:[%s7 + $0x1c] sm:$0xf]
        %v8721 = vld [vmem:[%s7 + $0x20] sm:$0xf]
        %v8722 = vld [vmem:[%s7 + $0x24] sm:$0xf]
        %v8723 = vld [vmem:[%s7 + $0x28] sm:$0xf]
        %v8724 = vld [vmem:[%s7 + $0x2c] sm:$0xf]
        %v8725 = vld [vmem:[%s7 + $0x30] sm:$0xf]
        %v8726 = vld [vmem:[%s7 + $0x34] sm:$0xf]
        %v8727 = vld [vmem:[%s7 + $0x38] sm:$0xf]
        %v8728 = vld [vmem:[%s7 + $0x3c] sm:$0xf]
        %v8729 = vld [vmem:[%s8] sm:$0x1]
        %v8731 = vlaneseq
        %v8732 = vshrl.u32 %v8731, 7
        %v8733 = vsub.s32 0, %v8732
        %v8734 = vrot.slane %v8729, %v8733
        %v8752 = vunpack.c.l.b16 %v8713
        %v8753 = vunpack.c.l.b16 %v8714
        %v8754 = vunpack.c.l.b16 %v8715
        %v8755 = vunpack.c.l.b16 %v8716
        %v8756 = vunpack.c.l.b16 %v8717
        %v8757 = vunpack.c.l.b16 %v8718
        %v8758 = vunpack.c.l.b16 %v8719
        %v8759 = vunpack.c.l.b16 %v8720
        %v8760 = vunpack.c.l.b16 %v8721
        %v8761 = vunpack.c.l.b16 %v8722
        %v8762 = vunpack.c.l.b16 %v8723
        %v8763 = vunpack.c.l.b16 %v8724
        %v8764 = vunpack.c.l.b16 %v8725
        %v8765 = vunpack.c.l.b16 %v8726
        %v8766 = vunpack.c.l.b16 %v8727
        %v8767 = vunpack.c.l.b16 %v8728
        %v8768 = vpack.c.b16 %v8753, %v8752
        %v8769 = vpack.c.b16 %v8755, %v8754
        %v8770 = vpack.c.b16 %v8757, %v8756
        %v8771 = vpack.c.b16 %v8759, %v8758
        %v8772 = vpack.c.b16 %v8761, %v8760
        %v8773 = vpack.c.b16 %v8763, %v8762
        %v8774 = vpack.c.b16 %v8765, %v8764
        %v8775 = vpack.c.b16 %v8767, %v8766
        %8784 = vmatprep.subr.bf16.mxu0 0
        %8785 = vmatpush1.bf16.msra.mxu0 %v8768
        %8786 = vmatprep.subr.bf16.mxu0 0
        %8787 = vmatpush1.bf16.msra.mxu0 %v8769
        %8788 = vmatprep.subr.bf16.mxu0 0
        %8789 = vmatpush1.bf16.msra.mxu0 %v8770
        %8790 = vmatprep.subr.bf16.mxu0 0
        %8791 = vmatpush1.bf16.msra.mxu0 %v8771
        %8792 = vmatprep.subr.bf16.mxu0 0
        %8793 = vmatpush1.bf16.msra.mxu0 %v8772
        %8794 = vmatprep.subr.bf16.mxu0 0
        %8795 = vmatpush1.bf16.msra.mxu0 %v8773
        %8796 = vmatprep.subr.bf16.mxu0 0
        %8797 = vmatpush1.bf16.msra.mxu0 %v8774
        %8798 = vmatprep.subr.bf16.mxu0 0
        %8799 = vmatpush1.bf16.msra.mxu0 %v8775
        %8800 = vmatprep.subr.bf16.mxu0 0
        %8801 = vmatpush1.bf16.msra.mxu0 0
        %8802 = vmatprep.subr.bf16.mxu0 0
        %8803 = vmatpush1.bf16.msra.mxu0 0
        %8804 = vmatprep.subr.bf16.mxu0 0
        %8805 = vmatpush1.bf16.msra.mxu0 0
        %8806 = vmatprep.subr.bf16.mxu0 0
        %8807 = vmatpush1.bf16.msra.mxu0 0
        %8808 = vmatprep.subr.bf16.mxu0 0
        %8809 = vmatpush1.bf16.msra.mxu0 0
        %8810 = vmatprep.subr.bf16.mxu0 0
        %8811 = vmatpush1.bf16.msra.mxu0 0
        %8812 = vmatprep.subr.bf16.mxu0 0
        %8813 = vmatpush1.bf16.msra.mxu0 0
        %8814 = vmatprep.subr.bf16.mxu0 0
        %8815 = vmatpush1.bf16.msra.mxu0 0
        %8816 = vmatprep.mubr.bf16.mxu0 0
        %8817 = vmatmul.mubr.bf16.gmra.mrb[0].mxu0 %v8705
        %v8818 = vpop.f32.mrb[0].mxu0
        %v8819 = vadd.f32 %v8734, %v8818
        %v8820 = vpop.f32.mrb[0].mxu0
        %v8821 = vpop.f32.mrb[0].mxu0
        %v8822 = vadd.f32 %v8734, %v8821
        %v8823 = vpop.f32.mrb[0].mxu0
        %8824 = vmatprep.mubr.bf16.mxu0 0
        %8825 = vmatmul.mubr.bf16.gmra.mrb[0].mxu0 %v8706
        %v8826 = vpop.f32.mrb[0].mxu0
        %v8827 = vadd.f32 %v8734, %v8826
        %v8828 = vpop.f32.mrb[0].mxu0
        %v8829 = vpop.f32.mrb[0].mxu0
        %v8830 = vadd.f32 %v8734, %v8829
        %v8831 = vpop.f32.mrb[0].mxu0
        %8832 = vmatprep.mubr.bf16.mxu0 0
        %8833 = vmatmul.mubr.bf16.gmra.mrb[0].mxu0 %v8707
        %v8834 = vpop.f32.mrb[0].mxu0
        %v8835 = vadd.f32 %v8734, %v8834
        %v8836 = vpop.f32.mrb[0].mxu0
        %v8837 = vpop.f32.mrb[0].mxu0
        %v8838 = vadd.f32 %v8734, %v8837
        %v8839 = vpop.f32.mrb[0].mxu0
        %8840 = vmatprep.mubr.bf16.mxu0 0
        %8841 = vmatmul.mubr.bf16.gmra.mrb[0].mxu0 %v8708
        %v8842 = vpop.f32.mrb[0].mxu0
        %v8843 = vadd.f32 %v8734, %v8842
        %v8844 = vpop.f32.mrb[0].mxu0
        %v8845 = vpop.f32.mrb[0].mxu0
        %v8846 = vadd.f32 %v8734, %v8845
        %v8847 = vpop.f32.mrb[0].mxu0
        %8848 = vmatprep.mubr.bf16.mxu0 0
        %8849 = vmatmul.mubr.bf16.gmra.mrb[0].mxu0 %v8709
        %v8850 = vpop.f32.mrb[0].mxu0
        %v8851 = vadd.f32 %v8734, %v8850
        %v8852 = vpop.f32.mrb[0].mxu0
        %v8853 = vpop.f32.mrb[0].mxu0
        %v8854 = vadd.f32 %v8734, %v8853
        %v8855 = vpop.f32.mrb[0].mxu0
        %8856 = vmatprep.mubr.bf16.mxu0 0
        %8857 = vmatmul.mubr.bf16.gmra.mrb[0].mxu0 %v8710
        %v8858 = vpop.f32.mrb[0].mxu0
        %v8859 = vadd.f32 %v8734, %v8858
        %v8860 = vpop.f32.mrb[0].mxu0
        %v8861 = vpop.f32.mrb[0].mxu0
        %v8862 = vadd.f32 %v8734, %v8861
        %v8863 = vpop.f32.mrb[0].mxu0
        %8864 = vmatprep.mubr.bf16.mxu0 0
        %8865 = vmatmul.mubr.bf16.gmra.mrb[0].mxu0 %v8711
        %v8866 = vpop.f32.mrb[0].mxu0
        %v8867 = vadd.f32 %v8734, %v8866
        %v8868 = vpop.f32.mrb[0].mxu0
        %v8869 = vpop.f32.mrb[0].mxu0
        %v8870 = vadd.f32 %v8734, %v8869
        %v8871 = vpop.f32.mrb[0].mxu0
        %8872 = vmatprep.mubr.bf16.mxu0 0
        %8873 = vmatmul.mubr.bf16.gmra.mrb[0].mxu0 %v8712
        %v8874 = vpop.f32.mrb[0].mxu0
        %v8875 = vadd.f32 %v8734, %v8874
        %v8876 = vpop.f32.mrb[0].mxu0
        %v8877 = vpop.f32.mrb[0].mxu0
        %v8878 = vadd.f32 %v8734, %v8877
        %v8879 = vpop.f32.mrb[0].mxu0
        %8880 = vdwg.mxu0
        %v8881 = vmax.f32 %v8819, 0.0
        %v8882 = vmax.f32 %v8822, 0.0
        %v8883 = vmax.f32 %v8827, 0.0
        %v8884 = vmax.f32 %v8830, 0.0
        %v8885 = vmax.f32 %v8835, 0.0
        %v8886 = vmax.f32 %v8838, 0.0
        %v8887 = vmax.f32 %v8843, 0.0
        %v8888 = vmax.f32 %v8846, 0.0
        %v8889 = vmax.f32 %v8851, 0.0
        %v8890 = vmax.f32 %v8854, 0.0
        %v8891 = vmax.f32 %v8859, 0.0
        %v8892 = vmax.f32 %v8862, 0.0
        %v8893 = vmax.f32 %v8867, 0.0
        %v8894 = vmax.f32 %v8870, 0.0
        %v8895 = vmax.f32 %v8875, 0.0
        %v8896 = vmax.f32 %v8878, 0.0
        %v8897 = vpack.c.bf16 %v8882, %v8881
        %v8898 = vpack.c.bf16 %v8884, %v8883
        %v8899 = vpack.c.bf16 %v8886, %v8885
        %v8900 = vpack.c.bf16 %v8888, %v8887
        %v8901 = vpack.c.bf16 %v8890, %v8889
        %v8902 = vpack.c.bf16 %v8892, %v8891
        %v8903 = vpack.c.bf16 %v8894, %v8893
        %v8904 = vpack.c.bf16 %v8896, %v8895
        %v8913 = vunpack.c.l.b16 %v8897
        %v8914 = vunpack.c.h.b16 %v8897
        %v8915 = vunpack.c.l.b16 %v8898
        %v8916 = vunpack.c.h.b16 %v8898
        %v8917 = vunpack.c.l.b16 %v8899
        %v8918 = vunpack.c.h.b16 %v8899
        %v8919 = vunpack.c.l.b16 %v8900
        %v8920 = vunpack.c.h.b16 %v8900
        %v8921 = vunpack.c.l.b16 %v8901
        %v8922 = vunpack.c.h.b16 %v8901
        %v8923 = vunpack.c.l.b16 %v8902
        %v8924 = vunpack.c.h.b16 %v8902
        %v8925 = vunpack.c.l.b16 %v8903
        %v8926 = vunpack.c.h.b16 %v8903
        %v8927 = vunpack.c.l.b16 %v8904
        %v8928 = vunpack.c.h.b16 %v8904
        %v8929 = vpack.c.b16 %v8913, %v8913
        %v8930 = vpack.c.b16 %v8914, %v8914
        %v8931 = vpack.c.b16 %v8915, %v8915
        %v8932 = vpack.c.b16 %v8916, %v8916
        %v8933 = vpack.c.b16 %v8917, %v8917
        %v8934 = vpack.c.b16 %v8918, %v8918
        %v8935 = vpack.c.b16 %v8919, %v8919
        %v8936 = vpack.c.b16 %v8920, %v8920
        %v8937 = vpack.c.b16 %v8921, %v8921
        %v8938 = vpack.c.b16 %v8922, %v8922
        %v8939 = vpack.c.b16 %v8923, %v8923
        %v8940 = vpack.c.b16 %v8924, %v8924
        %v8941 = vpack.c.b16 %v8925, %v8925
        %v8942 = vpack.c.b16 %v8926, %v8926
        %v8943 = vpack.c.b16 %v8927, %v8927
        %v8944 = vpack.c.b16 %v8928, %v8928
        %8961 = vst.msk [vmem:[#allocation6] sm:$0xf] %vm565, %v8929
        %8962 = vst.msk [vmem:[#allocation6 + $0x4] sm:$0xf] %vm565, %v8930
        %8963 = vst.msk [vmem:[#allocation6 + $0x8] sm:$0xf] %vm565, %v8931
        %8964 = vst.msk [vmem:[#allocation6 + $0xc] sm:$0xf] %vm565, %v8932
        %8965 = vst.msk [vmem:[#allocation6 + $0x10] sm:$0xf] %vm565, %v8933
        %8966 = vst.msk [vmem:[#allocation6 + $0x14] sm:$0xf] %vm565, %v8934
        %8967 = vst.msk [vmem:[#allocation6 + $0x18] sm:$0xf] %vm565, %v8935
        %8968 = vst.msk [vmem:[#allocation6 + $0x1c] sm:$0xf] %vm565, %v8936
        %8969 = vst.msk [vmem:[#allocation6 + $0x20] sm:$0xf] %vm565, %v8937
        %8970 = vst.msk [vmem:[#allocation6 + $0x24] sm:$0xf] %vm565, %v8938
        %8971 = vst.msk [vmem:[#allocation6 + $0x28] sm:$0xf] %vm565, %v8939
        %8972 = vst.msk [vmem:[#allocation6 + $0x2c] sm:$0xf] %vm565, %v8940
        %8973 = vst.msk [vmem:[#allocation6 + $0x30] sm:$0xf] %vm565, %v8941
        %8974 = vst.msk [vmem:[#allocation6 + $0x34] sm:$0xf] %vm565, %v8942
        %8975 = vst.msk [vmem:[#allocation6 + $0x38] sm:$0xf] %vm565, %v8943
        %8976 = vst.msk [vmem:[#allocation6 + $0x3c] sm:$0xf] %vm565, %v8944
        %v8977 = vld [vmem:[#allocation6] sm:$0xf]
        %v8978 = vld [vmem:[#allocation6 + $0x4] sm:$0xf]
        %v8979 = vld [vmem:[#allocation6 + $0x8] sm:$0xf]
        %v8980 = vld [vmem:[#allocation6 + $0xc] sm:$0xf]
        %v8981 = vld [vmem:[#allocation6 + $0x10] sm:$0xf]
        %v8982 = vld [vmem:[#allocation6 + $0x14] sm:$0xf]
        %v8983 = vld [vmem:[#allocation6 + $0x18] sm:$0xf]
        %v8984 = vld [vmem:[#allocation6 + $0x1c] sm:$0xf]
        %v8985 = vld [vmem:[#allocation6 + $0x20] sm:$0xf]
        %v8986 = vld [vmem:[#allocation6 + $0x24] sm:$0xf]
        %v8987 = vld [vmem:[#allocation6 + $0x28] sm:$0xf]
        %v8988 = vld [vmem:[#allocation6 + $0x2c] sm:$0xf]
        %v8989 = vld [vmem:[#allocation6 + $0x30] sm:$0xf]
        %v8990 = vld [vmem:[#allocation6 + $0x34] sm:$0xf]
        %v8991 = vld [vmem:[#allocation6 + $0x38] sm:$0xf]
        %v8992 = vld [vmem:[#allocation6 + $0x3c] sm:$0xf]
        %v8993 = vld [vmem:[#allocation10] sm:$0xf]
        %v8994 = vld [vmem:[#allocation10 + $0x4] sm:$0xf]
        %v8995 = vld [vmem:[#allocation10 + $0x8] sm:$0xf]
        %v8996 = vld [vmem:[#allocation10 + $0xc] sm:$0xf]
        %v8997 = vld [vmem:[#allocation10 + $0x10] sm:$0xf]
        %v8998 = vld [vmem:[#allocation10 + $0x14] sm:$0xf]
        %v8999 = vld [vmem:[#allocation10 + $0x18] sm:$0x1]
        %v9000 = vld [vmem:[#allocation6 + $0x40] sm:$0x1]
        %s9001 = scalar_lea.vmem [#allocation10], 28
        %v9002 = vld [vmem:[%s9001] sm:$0xf]
        %v9003 = vld [vmem:[%s9001 + $0x4] sm:$0xf]
        %v9004 = vld [vmem:[%s9001 + $0x8] sm:$0xf]
        %v9005 = vld [vmem:[%s9001 + $0xc] sm:$0xf]
        %v9006 = vld [vmem:[%s9001 + $0x10] sm:$0xf]
        %v9007 = vld [vmem:[%s9001 + $0x14] sm:$0xf]
        %v9008 = vld [vmem:[%s9001 + $0x18] sm:$0x1]
        %v9026 = vunpack.c.l.b16 %v8977
        %v9027 = vunpack.c.l.b16 %v8978
        %v9028 = vunpack.c.l.b16 %v8979
        %v9029 = vunpack.c.l.b16 %v8980
        %v9030 = vunpack.c.l.b16 %v8981
        %v9031 = vunpack.c.l.b16 %v8982
        %v9032 = vunpack.c.l.b16 %v8983
        %v9033 = vunpack.c.l.b16 %v8984
        %v9034 = vunpack.c.l.b16 %v8985
        %v9035 = vunpack.c.l.b16 %v8986
        %v9036 = vunpack.c.l.b16 %v8987
        %v9037 = vunpack.c.l.b16 %v8988
        %v9038 = vunpack.c.l.b16 %v8989
        %v9039 = vunpack.c.l.b16 %v8990
        %v9040 = vunpack.c.l.b16 %v8991
        %v9041 = vunpack.c.l.b16 %v8992
        %v9042 = vunpack.c.l.b16 %v9000
        %v9043 = vpack.c.b16 %v9027, %v9026
        %v9044 = vpack.c.b16 %v9029, %v9028
        %v9045 = vpack.c.b16 %v9031, %v9030
        %v9046 = vpack.c.b16 %v9033, %v9032
        %v9047 = vpack.c.b16 %v9035, %v9034
        %v9048 = vpack.c.b16 %v9037, %v9036
        %v9049 = vpack.c.b16 %v9039, %v9038
        %v9050 = vpack.c.b16 %v9041, %v9040
        %v9051 = vpack.c.b16 %v9042, %v9042
        %v9053 = vshrl.u32 %v9043, 16
        %v9055 = vshll.u32 %v9043, 16
        %v9057 = vrot.slane %v9055, 1
        %v9058 = vor.u32 %v9053, %v9057
        %v9060 = vshll.u32 %v9044, 16
        %v9062 = vrot.slane %v9060, 1
        %v9063 = vsel %vm880, %v9058, %v9062
        %v9064 = vshrl.u32 %v9044, 16
        %v9066 = vor.u32 %v9064, %v9062
        %v9068 = vshll.u32 %v9045, 16
        %v9070 = vrot.slane %v9068, 1
        %v9071 = vsel %vm880, %v9066, %v9070
        %v9072 = vshrl.u32 %v9045, 16
        %v9074 = vor.u32 %v9072, %v9070
        %v9076 = vshll.u32 %v9046, 16
        %v9078 = vrot.slane %v9076, 1
        %v9079 = vsel %vm880, %v9074, %v9078
        %v9080 = vshrl.u32 %v9046, 16
        %v9082 = vor.u32 %v9080, %v9078
        %v9084 = vshll.u32 %v9047, 16
        %v9086 = vrot.slane %v9084, 1
        %v9087 = vsel %vm880, %v9082, %v9086
        %v9088 = vshrl.u32 %v9047, 16
        %v9090 = vor.u32 %v9088, %v9086
        %v9092 = vshll.u32 %v9048, 16
        %v9094 = vrot.slane %v9092, 1
        %v9095 = vsel %vm880, %v9090, %v9094
        %v9096 = vshrl.u32 %v9048, 16
        %v9098 = vor.u32 %v9096, %v9094
        %v9100 = vshll.u32 %v9049, 16
        %v9102 = vrot.slane %v9100, 1
        %v9103 = vsel %vm880, %v9098, %v9102
        %v9104 = vshrl.u32 %v9049, 16
        %v9106 = vor.u32 %v9104, %v9102
        %v9108 = vshll.u32 %v9050, 16
        %v9110 = vrot.slane %v9108, 1
        %v9111 = vsel %vm880, %v9106, %v9110
        %v9112 = vshrl.u32 %v9050, 16
        %v9114 = vor.u32 %v9112, %v9110
        %v9116 = vshll.u32 %v9051, 16
        %v9118 = vrot.slane %v9116, 1
        %v9119 = vsel %vm880, %v9114, %v9118
        %v9127 = vunpack.c.l.b16 %v9002
        %v9128 = vunpack.c.l.b16 %v9003
        %v9129 = vunpack.c.l.b16 %v9004
        %v9130 = vunpack.c.l.b16 %v9005
        %v9131 = vunpack.c.l.b16 %v9006
        %v9132 = vunpack.c.l.b16 %v9007
        %v9133 = vunpack.c.l.b16 %v9008
        %v9134 = vpack.c.b16 %v9128, %v9127
        %v9135 = vpack.c.b16 %v9130, %v9129
        %v9136 = vpack.c.b16 %v9132, %v9131
        %v9137 = vpack.c.b16 %v9133, %v9133
        %vm9141 = vcmask 408576
        %v9143 = vsel %vm9141, %v9063, 0
        %v9146 = vsel %vm9141, %v9071, 0
        %v9149 = vsel %vm9141, %v9079, 0
        %v9152 = vsel %vm9141, %v9087, 0
        %v9155 = vsel %vm9141, %v9095, 0
        %v9158 = vsel %vm9141, %v9103, 0
        %v9161 = vsel %vm9141, %v9111, 0
        %v9164 = vsel %vm9141, %v9119, 0
        %vm9166 = vcmask 1040384
        %v9168 = vsel %vm9166, %v9137, 0
        %9170 = vmatprep.subr.bf16.mxu0 0
        %9171 = vmatpush1.bf16.msra.mxu0 %v9134
        %9172 = vmatprep.subr.bf16.mxu0 0
        %9173 = vmatpush1.bf16.msra.mxu0 %v9135
        %9174 = vmatprep.subr.bf16.mxu0 0
        %9175 = vmatpush1.bf16.msra.mxu0 %v9136
        %9176 = vmatprep.subr.bf16.mxu0 0
        %9177 = vmatpush1.bf16.msra.mxu0 %v9168
        %9178 = vmatprep.subr.bf16.mxu0 0
        %9179 = vmatpush1.bf16.msra.mxu0 0
        %9180 = vmatprep.subr.bf16.mxu0 0
        %9181 = vmatpush1.bf16.msra.mxu0 0
        %9182 = vmatprep.subr.bf16.mxu0 0
        %9183 = vmatpush1.bf16.msra.mxu0 0
        %9184 = vmatprep.subr.bf16.mxu0 0
        %9185 = vmatpush1.bf16.msra.mxu0 0
        %9186 = vmatprep.subr.bf16.mxu0 0
        %9187 = vmatpush1.bf16.msra.mxu0 0
        %9188 = vmatprep.subr.bf16.mxu0 0
        %9189 = vmatpush1.bf16.msra.mxu0 0
        %9190 = vmatprep.subr.bf16.mxu0 0
        %9191 = vmatpush1.bf16.msra.mxu0 0
        %9192 = vmatprep.subr.bf16.mxu0 0
        %9193 = vmatpush1.bf16.msra.mxu0 0
        %9194 = vmatprep.subr.bf16.mxu0 0
        %9195 = vmatpush1.bf16.msra.mxu0 0
        %9196 = vmatprep.subr.bf16.mxu0 0
        %9197 = vmatpush1.bf16.msra.mxu0 0
        %9198 = vmatprep.subr.bf16.mxu0 0
        %9199 = vmatpush1.bf16.msra.mxu0 0
        %9200 = vmatprep.subr.bf16.mxu0 0
        %9201 = vmatpush1.bf16.msra.mxu0 0
        %9202 = vmatprep.mubr.bf16.mxu0 0
        %9203 = vmatmul.mubr.bf16.gmra.mrb[0].mxu0 %v9143
        %v9204 = vpop.f32.mrb[0].mxu0
        %v9205 = vadd.f32 0.0, %v9204
        %v9206 = vpop.f32.mrb[0].mxu0
        %v9207 = vpop.f32.mrb[0].mxu0
        %v9208 = vadd.f32 0.0, %v9207
        %v9209 = vpop.f32.mrb[0].mxu0
        %9210 = vmatprep.mubr.bf16.mxu0 0
        %9211 = vmatmul.mubr.bf16.gmra.mrb[0].mxu0 %v9146
        %v9212 = vpop.f32.mrb[0].mxu0
        %v9213 = vadd.f32 0.0, %v9212
        %v9214 = vpop.f32.mrb[0].mxu0
        %v9215 = vpop.f32.mrb[0].mxu0
        %v9216 = vadd.f32 0.0, %v9215
        %v9217 = vpop.f32.mrb[0].mxu0
        %9218 = vmatprep.mubr.bf16.mxu0 0
        %9219 = vmatmul.mubr.bf16.gmra.mrb[0].mxu0 %v9149
        %v9220 = vpop.f32.mrb[0].mxu0
        %v9221 = vadd.f32 0.0, %v9220
        %v9222 = vpop.f32.mrb[0].mxu0
        %v9223 = vpop.f32.mrb[0].mxu0
        %v9224 = vadd.f32 0.0, %v9223
        %v9225 = vpop.f32.mrb[0].mxu0
        %9226 = vmatprep.mubr.bf16.mxu0 0
        %9227 = vmatmul.mubr.bf16.gmra.mrb[0].mxu0 %v9152
        %v9228 = vpop.f32.mrb[0].mxu0
        %v9229 = vadd.f32 0.0, %v9228
        %v9230 = vpop.f32.mrb[0].mxu0
        %v9231 = vpop.f32.mrb[0].mxu0
        %v9232 = vadd.f32 0.0, %v9231
        %v9233 = vpop.f32.mrb[0].mxu0
        %9234 = vmatprep.mubr.bf16.mxu0 0
        %9235 = vmatmul.mubr.bf16.gmra.mrb[0].mxu0 %v9155
        %v9236 = vpop.f32.mrb[0].mxu0
        %v9237 = vadd.f32 0.0, %v9236
        %v9238 = vpop.f32.mrb[0].mxu0
        %v9239 = vpop.f32.mrb[0].mxu0
        %v9240 = vadd.f32 0.0, %v9239
        %v9241 = vpop.f32.mrb[0].mxu0
        %9242 = vmatprep.mubr.bf16.mxu0 0
        %9243 = vmatmul.mubr.bf16.gmra.mrb[0].mxu0 %v9158
        %v9244 = vpop.f32.mrb[0].mxu0
        %v9245 = vadd.f32 0.0, %v9244
        %v9246 = vpop.f32.mrb[0].mxu0
        %v9247 = vpop.f32.mrb[0].mxu0
        %v9248 = vadd.f32 0.0, %v9247
        %v9249 = vpop.f32.mrb[0].mxu0
        %9250 = vmatprep.mubr.bf16.mxu0 0
        %9251 = vmatmul.mubr.bf16.gmra.mrb[0].mxu0 %v9161
        %v9252 = vpop.f32.mrb[0].mxu0
        %v9253 = vadd.f32 0.0, %v9252
        %v9254 = vpop.f32.mrb[0].mxu0
        %v9255 = vpop.f32.mrb[0].mxu0
        %v9256 = vadd.f32 0.0, %v9255
        %v9257 = vpop.f32.mrb[0].mxu0
        %9258 = vmatprep.mubr.bf16.mxu0 0
        %9259 = vmatmul.mubr.bf16.gmra.mrb[0].mxu0 %v9164
        %v9260 = vpop.f32.mrb[0].mxu0
        %v9261 = vadd.f32 0.0, %v9260
        %v9262 = vpop.f32.mrb[0].mxu0
        %v9263 = vpop.f32.mrb[0].mxu0
        %v9264 = vadd.f32 0.0, %v9263
        %v9265 = vpop.f32.mrb[0].mxu0
        %9266 = vdwg.mxu0
        %v9274 = vunpack.c.l.b16 %v8993
        %v9275 = vunpack.c.l.b16 %v8994
        %v9276 = vunpack.c.l.b16 %v8995
        %v9277 = vunpack.c.l.b16 %v8996
        %v9278 = vunpack.c.l.b16 %v8997
        %v9279 = vunpack.c.l.b16 %v8998
        %v9280 = vunpack.c.l.b16 %v8999
        %v9281 = vpack.c.b16 %v9275, %v9274
        %v9282 = vpack.c.b16 %v9277, %v9276
        %v9283 = vpack.c.b16 %v9279, %v9278
        %v9284 = vpack.c.b16 %v9280, %v9280
        %v9288 = vsel %vm9141, %v9043, 0
        %v9290 = vsel %vm9141, %v9044, 0
        %v9292 = vsel %vm9141, %v9045, 0
        %v9294 = vsel %vm9141, %v9046, 0
        %v9296 = vsel %vm9141, %v9047, 0
        %v9298 = vsel %vm9141, %v9048, 0
        %v9300 = vsel %vm9141, %v9049, 0
        %v9302 = vsel %vm9141, %v9050, 0
        %v9305 = vsel %vm9166, %v9284, 0
        %9307 = vmatprep.subr.bf16.mxu0 0
        %9308 = vmatpush1.bf16.msra.mxu0 %v9281
        %9309 = vmatprep.subr.bf16.mxu0 0
        %9310 = vmatpush1.bf16.msra.mxu0 %v9282
        %9311 = vmatprep.subr.bf16.mxu0 0
        %9312 = vmatpush1.bf16.msra.mxu0 %v9283
        %9313 = vmatprep.subr.bf16.mxu0 0
        %9314 = vmatpush1.bf16.msra.mxu0 %v9305
        %9315 = vmatprep.subr.bf16.mxu0 0
        %9316 = vmatpush1.bf16.msra.mxu0 0
        %9317 = vmatprep.subr.bf16.mxu0 0
        %9318 = vmatpush1.bf16.msra.mxu0 0
        %9319 = vmatprep.subr.bf16.mxu0 0
        %9320 = vmatpush1.bf16.msra.mxu0 0
        %9321 = vmatprep.subr.bf16.mxu0 0
        %9322 = vmatpush1.bf16.msra.mxu0 0
        %9323 = vmatprep.subr.bf16.mxu0 0
        %9324 = vmatpush1.bf16.msra.mxu0 0
        %9325 = vmatprep.subr.bf16.mxu0 0
        %9326 = vmatpush1.bf16.msra.mxu0 0
        %9327 = vmatprep.subr.bf16.mxu0 0
        %9328 = vmatpush1.bf16.msra.mxu0 0
        %9329 = vmatprep.subr.bf16.mxu0 0
        %9330 = vmatpush1.bf16.msra.mxu0 0
        %9331 = vmatprep.subr.bf16.mxu0 0
        %9332 = vmatpush1.bf16.msra.mxu0 0
        %9333 = vmatprep.subr.bf16.mxu0 0
        %9334 = vmatpush1.bf16.msra.mxu0 0
        %9335 = vmatprep.subr.bf16.mxu0 0
        %9336 = vmatpush1.bf16.msra.mxu0 0
        %9337 = vmatprep.subr.bf16.mxu0 0
        %9338 = vmatpush1.bf16.msra.mxu0 0
        %9339 = vmatprep.mubr.bf16.mxu0 0
        %9340 = vmatmul.mubr.bf16.gmra.mrb[0].mxu0 %v9288
        %v9341 = vpop.f32.mrb[0].mxu0
        %v9342 = vadd.f32 %v9205, %v9341
        %v9343 = vpop.f32.mrb[0].mxu0
        %v9344 = vpop.f32.mrb[0].mxu0
        %v9345 = vadd.f32 %v9208, %v9344
        %v9346 = vpop.f32.mrb[0].mxu0
        %9347 = vmatprep.mubr.bf16.mxu0 0
        %9348 = vmatmul.mubr.bf16.gmra.mrb[0].mxu0 %v9290
        %v9349 = vpop.f32.mrb[0].mxu0
        %v9350 = vadd.f32 %v9213, %v9349
        %v9351 = vpop.f32.mrb[0].mxu0
        %v9352 = vpop.f32.mrb[0].mxu0
        %v9353 = vadd.f32 %v9216, %v9352
        %v9354 = vpop.f32.mrb[0].mxu0
        %9355 = vmatprep.mubr.bf16.mxu0 0
        %9356 = vmatmul.mubr.bf16.gmra.mrb[0].mxu0 %v9292
        %v9357 = vpop.f32.mrb[0].mxu0
        %v9358 = vadd.f32 %v9221, %v9357
        %v9359 = vpop.f32.mrb[0].mxu0
        %v9360 = vpop.f32.mrb[0].mxu0
        %v9361 = vadd.f32 %v9224, %v9360
        %v9362 = vpop.f32.mrb[0].mxu0
        %9363 = vmatprep.mubr.bf16.mxu0 0
        %9364 = vmatmul.mubr.bf16.gmra.mrb[0].mxu0 %v9294
        %v9365 = vpop.f32.mrb[0].mxu0
        %v9366 = vadd.f32 %v9229, %v9365
        %v9367 = vpop.f32.mrb[0].mxu0
        %v9368 = vpop.f32.mrb[0].mxu0
        %v9369 = vadd.f32 %v9232, %v9368
        %v9370 = vpop.f32.mrb[0].mxu0
        %9371 = vmatprep.mubr.bf16.mxu0 0
        %9372 = vmatmul.mubr.bf16.gmra.mrb[0].mxu0 %v9296
        %v9373 = vpop.f32.mrb[0].mxu0
        %v9374 = vadd.f32 %v9237, %v9373
        %v9375 = vpop.f32.mrb[0].mxu0
        %v9376 = vpop.f32.mrb[0].mxu0
        %v9377 = vadd.f32 %v9240, %v9376
        %v9378 = vpop.f32.mrb[0].mxu0
        %9379 = vmatprep.mubr.bf16.mxu0 0
        %9380 = vmatmul.mubr.bf16.gmra.mrb[0].mxu0 %v9298
        %v9381 = vpop.f32.mrb[0].mxu0
        %v9382 = vadd.f32 %v9245, %v9381
        %v9383 = vpop.f32.mrb[0].mxu0
        %v9384 = vpop.f32.mrb[0].mxu0
        %v9385 = vadd.f32 %v9248, %v9384
        %v9386 = vpop.f32.mrb[0].mxu0
        %9387 = vmatprep.mubr.bf16.mxu0 0
        %9388 = vmatmul.mubr.bf16.gmra.mrb[0].mxu0 %v9300
        %v9389 = vpop.f32.mrb[0].mxu0
        %v9390 = vadd.f32 %v9253, %v9389
        %v9391 = vpop.f32.mrb[0].mxu0
        %v9392 = vpop.f32.mrb[0].mxu0
        %v9393 = vadd.f32 %v9256, %v9392
        %v9394 = vpop.f32.mrb[0].mxu0
        %9395 = vmatprep.mubr.bf16.mxu0 0
        %9396 = vmatmul.mubr.bf16.gmra.mrb[0].mxu0 %v9302
        %v9397 = vpop.f32.mrb[0].mxu0
        %v9398 = vadd.f32 %v9261, %v9397
        %v9399 = vpop.f32.mrb[0].mxu0
        %v9400 = vpop.f32.mrb[0].mxu0
        %v9401 = vadd.f32 %v9264, %v9400
        %v9402 = vpop.f32.mrb[0].mxu0
        %9403 = vdwg.mxu0
        %v9404 = vld [vmem:[#allocation6] sm:$0xe]
        %s9405 = scalar_lea.vmem [#allocation10], 56
        %v9406 = vld [vmem:[%s9405] sm:$0xf]
        %v9407 = vld [vmem:[%s9405 + $0x4] sm:$0xf]
        %v9408 = vld [vmem:[%s9405 + $0x8] sm:$0xf]
        %v9409 = vld [vmem:[%s9405 + $0xc] sm:$0xf]
        %v9410 = vld [vmem:[%s9405 + $0x10] sm:$0xf]
        %v9411 = vld [vmem:[%s9405 + $0x14] sm:$0xf]
        %v9412 = vld [vmem:[%s9405 + $0x18] sm:$0x1]
        %v9414 = vunpack.c.l.b16 %v9404
        %v9415 = vpack.c.b16 %v9027, %v9414
        %v9416 = vrot.slane %v9415, 1
        %v9417 = vrot.slane %v9044, 1
        %v9418 = vsel %vm1507, %v9416, %v9417
        %v9419 = vrot.slane %v9045, 1
        %v9420 = vsel %vm1507, %v9417, %v9419
        %v9421 = vrot.slane %v9046, 1
        %v9422 = vsel %vm1507, %v9419, %v9421
        %v9423 = vrot.slane %v9047, 1
        %v9424 = vsel %vm1507, %v9421, %v9423
        %v9425 = vrot.slane %v9048, 1
        %v9426 = vsel %vm1507, %v9423, %v9425
        %v9427 = vrot.slane %v9049, 1
        %v9428 = vsel %vm1507, %v9425, %v9427
        %v9429 = vrot.slane %v9050, 1
        %v9430 = vsel %vm1507, %v9427, %v9429
        %v9431 = vrot.slane %v9051, 1
        %v9432 = vsel %vm1507, %v9429, %v9431
        %v9440 = vunpack.c.l.b16 %v9406
        %v9441 = vunpack.c.l.b16 %v9407
        %v9442 = vunpack.c.l.b16 %v9408
        %v9443 = vunpack.c.l.b16 %v9409
        %v9444 = vunpack.c.l.b16 %v9410
        %v9445 = vunpack.c.l.b16 %v9411
        %v9446 = vunpack.c.l.b16 %v9412
        %v9447 = vpack.c.b16 %v9441, %v9440
        %v9448 = vpack.c.b16 %v9443, %v9442
        %v9449 = vpack.c.b16 %v9445, %v9444
        %v9450 = vpack.c.b16 %v9446, %v9446
        %v9455 = vsel %vm9141, %v9418, 0
        %v9458 = vsel %vm9141, %v9420, 0
        %v9461 = vsel %vm9141, %v9422, 0
        %v9464 = vsel %vm9141, %v9424, 0
        %v9467 = vsel %vm9141, %v9426, 0
        %v9470 = vsel %vm9141, %v9428, 0
        %v9473 = vsel %vm9141, %v9430, 0
        %v9476 = vsel %vm9141, %v9432, 0
        %v9479 = vsel %vm9166, %v9450, 0
        %9481 = vmatprep.subr.bf16.mxu0 0
        %9482 = vmatpush1.bf16.msra.mxu0 %v9447
        %9483 = vmatprep.subr.bf16.mxu0 0
        %9484 = vmatpush1.bf16.msra.mxu0 %v9448
        %9485 = vmatprep.subr.bf16.mxu0 0
        %9486 = vmatpush1.bf16.msra.mxu0 %v9449
        %9487 = vmatprep.subr.bf16.mxu0 0
        %9488 = vmatpush1.bf16.msra.mxu0 %v9479
        %9489 = vmatprep.subr.bf16.mxu0 0
        %9490 = vmatpush1.bf16.msra.mxu0 0
        %9491 = vmatprep.subr.bf16.mxu0 0
        %9492 = vmatpush1.bf16.msra.mxu0 0
        %9493 = vmatprep.subr.bf16.mxu0 0
        %9494 = vmatpush1.bf16.msra.mxu0 0
        %9495 = vmatprep.subr.bf16.mxu0 0
        %9496 = vmatpush1.bf16.msra.mxu0 0
        %9497 = vmatprep.subr.bf16.mxu0 0
        %9498 = vmatpush1.bf16.msra.mxu0 0
        %9499 = vmatprep.subr.bf16.mxu0 0
        %9500 = vmatpush1.bf16.msra.mxu0 0
        %9501 = vmatprep.subr.bf16.mxu0 0
        %9502 = vmatpush1.bf16.msra.mxu0 0
        %9503 = vmatprep.subr.bf16.mxu0 0
        %9504 = vmatpush1.bf16.msra.mxu0 0
        %9505 = vmatprep.subr.bf16.mxu0 0
        %9506 = vmatpush1.bf16.msra.mxu0 0
        %9507 = vmatprep.subr.bf16.mxu0 0
        %9508 = vmatpush1.bf16.msra.mxu0 0
        %9509 = vmatprep.subr.bf16.mxu0 0
        %9510 = vmatpush1.bf16.msra.mxu0 0
        %9511 = vmatprep.subr.bf16.mxu0 0
        %9512 = vmatpush1.bf16.msra.mxu0 0
        %9513 = vmatprep.mubr.bf16.mxu0 0
        %9514 = vmatmul.mubr.bf16.gmra.mrb[0].mxu0 %v9455
        %v9515 = vpop.f32.mrb[0].mxu0
        %v9516 = vadd.f32 0.0, %v9515
        %v9517 = vpop.f32.mrb[0].mxu0
        %v9518 = vpop.f32.mrb[0].mxu0
        %v9519 = vadd.f32 0.0, %v9518
        %v9520 = vpop.f32.mrb[0].mxu0
        %9521 = vmatprep.mubr.bf16.mxu0 0
        %9522 = vmatmul.mubr.bf16.gmra.mrb[0].mxu0 %v9458
        %v9523 = vpop.f32.mrb[0].mxu0
        %v9524 = vadd.f32 0.0, %v9523
        %v9525 = vpop.f32.mrb[0].mxu0
        %v9526 = vpop.f32.mrb[0].mxu0
        %v9527 = vadd.f32 0.0, %v9526
        %v9528 = vpop.f32.mrb[0].mxu0
        %9529 = vmatprep.mubr.bf16.mxu0 0
        %9530 = vmatmul.mubr.bf16.gmra.mrb[0].mxu0 %v9461
        %v9531 = vpop.f32.mrb[0].mxu0
        %v9532 = vadd.f32 0.0, %v9531
        %v9533 = vpop.f32.mrb[0].mxu0
        %v9534 = vpop.f32.mrb[0].mxu0
        %v9535 = vadd.f32 0.0, %v9534
        %v9536 = vpop.f32.mrb[0].mxu0
        %9537 = vmatprep.mubr.bf16.mxu0 0
        %9538 = vmatmul.mubr.bf16.gmra.mrb[0].mxu0 %v9464
        %v9539 = vpop.f32.mrb[0].mxu0
        %v9540 = vadd.f32 0.0, %v9539
        %v9541 = vpop.f32.mrb[0].mxu0
        %v9542 = vpop.f32.mrb[0].mxu0
        %v9543 = vadd.f32 0.0, %v9542
        %v9544 = vpop.f32.mrb[0].mxu0
        %9545 = vmatprep.mubr.bf16.mxu0 0
        %9546 = vmatmul.mubr.bf16.gmra.mrb[0].mxu0 %v9467
        %v9547 = vpop.f32.mrb[0].mxu0
        %v9548 = vadd.f32 0.0, %v9547
        %v9549 = vpop.f32.mrb[0].mxu0
        %v9550 = vpop.f32.mrb[0].mxu0
        %v9551 = vadd.f32 0.0, %v9550
        %v9552 = vpop.f32.mrb[0].mxu0
        %9553 = vmatprep.mubr.bf16.mxu0 0
        %9554 = vmatmul.mubr.bf16.gmra.mrb[0].mxu0 %v9470
        %v9555 = vpop.f32.mrb[0].mxu0
        %v9556 = vadd.f32 0.0, %v9555
        %v9557 = vpop.f32.mrb[0].mxu0
        %v9558 = vpop.f32.mrb[0].mxu0
        %v9559 = vadd.f32 0.0, %v9558
        %v9560 = vpop.f32.mrb[0].mxu0
        %9561 = vmatprep.mubr.bf16.mxu0 0
        %9562 = vmatmul.mubr.bf16.gmra.mrb[0].mxu0 %v9473
        %v9563 = vpop.f32.mrb[0].mxu0
        %v9564 = vadd.f32 0.0, %v9563
        %v9565 = vpop.f32.mrb[0].mxu0
        %v9566 = vpop.f32.mrb[0].mxu0
        %v9567 = vadd.f32 0.0, %v9566
        %v9568 = vpop.f32.mrb[0].mxu0
        %9569 = vmatprep.mubr.bf16.mxu0 0
        %9570 = vmatmul.mubr.bf16.gmra.mrb[0].mxu0 %v9476
        %v9571 = vpop.f32.mrb[0].mxu0
        %v9572 = vadd.f32 0.0, %v9571
        %v9573 = vpop.f32.mrb[0].mxu0
        %v9574 = vpop.f32.mrb[0].mxu0
        %v9575 = vadd.f32 0.0, %v9574
        %v9576 = vpop.f32.mrb[0].mxu0
        %9577 = vdwg.mxu0
        %v9578 = vadd.f32 %v9342, %v9516
        %v9579 = vadd.f32 %v9345, %v9519
        %v9580 = vadd.f32 %v9350, %v9524
        %v9581 = vadd.f32 %v9353, %v9527
        %v9582 = vadd.f32 %v9358, %v9532
        %v9583 = vadd.f32 %v9361, %v9535
        %v9584 = vadd.f32 %v9366, %v9540
        %v9585 = vadd.f32 %v9369, %v9543
        %v9586 = vadd.f32 %v9374, %v9548
        %v9587 = vadd.f32 %v9377, %v9551
        %v9588 = vadd.f32 %v9382, %v9556
        %v9589 = vadd.f32 %v9385, %v9559
        %v9590 = vadd.f32 %v9390, %v9564
        %v9591 = vadd.f32 %v9393, %v9567
        %v9592 = vadd.f32 %v9398, %v9572
        %v9593 = vadd.f32 %v9401, %v9575
        %v9594 = vld [vmem:[%s10] sm:$0x1]
        %v9596 = vlaneseq
        %v9597 = vshrl.u32 %v9596, 7
        %v9598 = vsub.s32 0, %v9597
        %v9599 = vrot.slane %v9594, %v9598
        %v9601 = vadd.f32 %v9578, %v9599
        %v9602 = vadd.f32 %v9579, %v9599
        %v9603 = vadd.f32 %v9580, %v9599
        %v9604 = vadd.f32 %v9581, %v9599
        %v9605 = vadd.f32 %v9582, %v9599
        %v9606 = vadd.f32 %v9583, %v9599
        %v9607 = vadd.f32 %v9584, %v9599
        %v9608 = vadd.f32 %v9585, %v9599
        %v9609 = vadd.f32 %v9586, %v9599
        %v9610 = vadd.f32 %v9587, %v9599
        %v9611 = vadd.f32 %v9588, %v9599
        %v9612 = vadd.f32 %v9589, %v9599
        %v9613 = vadd.f32 %v9590, %v9599
        %v9614 = vadd.f32 %v9591, %v9599
        %v9615 = vadd.f32 %v9592, %v9599
        %v9616 = vadd.f32 %v9593, %v9599
        %v9617 = vmax.f32 %v9601, 0.0
        %v9618 = vmax.f32 %v9602, 0.0
        %v9619 = vmax.f32 %v9603, 0.0
        %v9620 = vmax.f32 %v9604, 0.0
        %v9621 = vmax.f32 %v9605, 0.0
        %v9622 = vmax.f32 %v9606, 0.0
        %v9623 = vmax.f32 %v9607, 0.0
        %v9624 = vmax.f32 %v9608, 0.0
        %v9625 = vmax.f32 %v9609, 0.0
        %v9626 = vmax.f32 %v9610, 0.0
        %v9627 = vmax.f32 %v9611, 0.0
        %v9628 = vmax.f32 %v9612, 0.0
        %v9629 = vmax.f32 %v9613, 0.0
        %v9630 = vmax.f32 %v9614, 0.0
        %v9631 = vmax.f32 %v9615, 0.0
        %v9632 = vmax.f32 %v9616, 0.0
        %vm9633 = vcmask 490496
        %9634 = vst.msk [vmem:[#allocation7] sm:$0xff] %vm9633, %v9617
        %9635 = vst.msk [vmem:[#allocation7 + $0x8] sm:$0xff] %vm9633, %v9618
        %9636 = vst.msk [vmem:[#allocation7 + $0x10] sm:$0xff] %vm9633, %v9619
        %9637 = vst.msk [vmem:[#allocation7 + $0x18] sm:$0xff] %vm9633, %v9620
        %9638 = vst.msk [vmem:[#allocation7 + $0x20] sm:$0xff] %vm9633, %v9621
        %9639 = vst.msk [vmem:[#allocation7 + $0x28] sm:$0xff] %vm9633, %v9622
        %9640 = vst.msk [vmem:[#allocation7 + $0x30] sm:$0xff] %vm9633, %v9623
        %9641 = vst.msk [vmem:[#allocation7 + $0x38] sm:$0xff] %vm9633, %v9624
        %9642 = vst.msk [vmem:[#allocation7 + $0x40] sm:$0xff] %vm9633, %v9625
        %9643 = vst.msk [vmem:[#allocation7 + $0x48] sm:$0xff] %vm9633, %v9626
        %9644 = vst.msk [vmem:[#allocation7 + $0x50] sm:$0xff] %vm9633, %v9627
        %9645 = vst.msk [vmem:[#allocation7 + $0x58] sm:$0xff] %vm9633, %v9628
        %9646 = vst.msk [vmem:[#allocation7 + $0x60] sm:$0xff] %vm9633, %v9629
        %9647 = vst.msk [vmem:[#allocation7 + $0x68] sm:$0xff] %vm9633, %v9630
        %9648 = vst.msk [vmem:[#allocation7 + $0x70] sm:$0xff] %vm9633, %v9631
        %9649 = vst.msk [vmem:[#allocation7 + $0x78] sm:$0xff] %vm9633, %v9632
        %v9650 = vld [vmem:[#allocation7] ss:$8 sm:$0xf]
        %v9651 = vld [vmem:[#allocation7] ss:$8 sm:$0xf0]
        %v9652 = vor.u32 %v9650, %v9651
        %s9653 = scalar_lea.vmem [#allocation7], 64
        %v9654 = vld [vmem:[%s9653] ss:$8 sm:$0xf]
        %v9655 = vld [vmem:[%s9653] ss:$8 sm:$0xf0]
        %v9656 = vor.u32 %v9654, %v9655
        %v9657 = vpack.c.bf16 %v9656, %v9652
        %v9658 = vld [vmem:[%s11] sm:$0xf]
        %v9659 = vld [vmem:[%s11 + $0x4] sm:$0xf]
        %v9660 = vld [vmem:[%s11 + $0x8] sm:$0xf]
        %v9661 = vld [vmem:[%s11 + $0xc] sm:$0xf]
        %v9662 = vld [vmem:[%s11 + $0x10] sm:$0xf]
        %v9663 = vld [vmem:[%s11 + $0x14] sm:$0xf]
        %v9664 = vld [vmem:[%s11 + $0x18] sm:$0xf]
        %v9665 = vld [vmem:[%s11 + $0x1c] sm:$0x3]
        %s9666 = scalar_lea.vmem [#allocation7], 1
        %v9667 = vld [vmem:[%s9666] ss:$8 sm:$0xf]
        %v9668 = vld [vmem:[%s9666] ss:$8 sm:$0xf0]
        %v9669 = vor.u32 %v9667, %v9668
        %s9670 = scalar_lea.vmem [#allocation7], 65
        %v9671 = vld [vmem:[%s9670] ss:$8 sm:$0xf]
        %v9672 = vld [vmem:[%s9670] ss:$8 sm:$0xf0]
        %v9673 = vor.u32 %v9671, %v9672
        %v9674 = vpack.c.bf16 %v9673, %v9669
        %s9675 = scalar_lea.vmem %s11, 32
        %v9676 = vld [vmem:[%s9675] sm:$0xf]
        %v9677 = vld [vmem:[%s9675 + $0x4] sm:$0xf]
        %v9678 = vld [vmem:[%s9675 + $0x8] sm:$0xf]
        %v9679 = vld [vmem:[%s9675 + $0xc] sm:$0xf]
        %v9680 = vld [vmem:[%s9675 + $0x10] sm:$0xf]
        %v9681 = vld [vmem:[%s9675 + $0x14] sm:$0xf]
        %v9682 = vld [vmem:[%s9675 + $0x18] sm:$0xf]
        %v9683 = vld [vmem:[%s9675 + $0x1c] sm:$0x3]
        %v9692 = vunpack.c.l.b16 %v9676
        %v9693 = vunpack.c.l.b16 %v9677
        %v9694 = vunpack.c.l.b16 %v9678
        %v9695 = vunpack.c.l.b16 %v9679
        %v9696 = vunpack.c.l.b16 %v9680
        %v9697 = vunpack.c.l.b16 %v9681
        %v9698 = vunpack.c.l.b16 %v9682
        %v9699 = vunpack.c.l.b16 %v9683
        %v9700 = vpack.c.b16 %v9693, %v9692
        %v9701 = vpack.c.b16 %v9695, %v9694
        %v9702 = vpack.c.b16 %v9697, %v9696
        %v9703 = vpack.c.b16 %v9699, %v9698
        %v9708 = vsel %vm9633, %v9674, 0
        %vm9710 = vcmask 1045504
        %v9712 = vsel %vm9710, %v9703, 0
        %9714 = vmatprep.subr.bf16.mxu0 0
        %9715 = vmatpush1.bf16.msra.mxu0 %v9700
        %9716 = vmatprep.subr.bf16.mxu0 0
        %9717 = vmatpush1.bf16.msra.mxu0 %v9701
        %9718 = vmatprep.subr.bf16.mxu0 0
        %9719 = vmatpush1.bf16.msra.mxu0 %v9702
        %9720 = vmatprep.subr.bf16.mxu0 0
        %9721 = vmatpush1.bf16.msra.mxu0 %v9712
        %9722 = vmatprep.subr.bf16.mxu0 0
        %9723 = vmatpush1.bf16.msra.mxu0 0
        %9724 = vmatprep.subr.bf16.mxu0 0
        %9725 = vmatpush1.bf16.msra.mxu0 0
        %9726 = vmatprep.subr.bf16.mxu0 0
        %9727 = vmatpush1.bf16.msra.mxu0 0
        %9728 = vmatprep.subr.bf16.mxu0 0
        %9729 = vmatpush1.bf16.msra.mxu0 0
        %9730 = vmatprep.subr.bf16.mxu0 0
        %9731 = vmatpush1.bf16.msra.mxu0 0
        %9732 = vmatprep.subr.bf16.mxu0 0
        %9733 = vmatpush1.bf16.msra.mxu0 0
        %9734 = vmatprep.subr.bf16.mxu0 0
        %9735 = vmatpush1.bf16.msra.mxu0 0
        %9736 = vmatprep.subr.bf16.mxu0 0
        %9737 = vmatpush1.bf16.msra.mxu0 0
        %9738 = vmatprep.subr.bf16.mxu0 0
        %9739 = vmatpush1.bf16.msra.mxu0 0
        %9740 = vmatprep.subr.bf16.mxu0 0
        %9741 = vmatpush1.bf16.msra.mxu0 0
        %9742 = vmatprep.subr.bf16.mxu0 0
        %9743 = vmatpush1.bf16.msra.mxu0 0
        %9744 = vmatprep.subr.bf16.mxu0 0
        %9745 = vmatpush1.bf16.msra.mxu0 0
        %9746 = vmatprep.mubr.bf16.mxu0 0
        %9747 = vmatmul.mubr.bf16.gmra.mrb[0].mxu0 %v9708
        %v9748 = vpop.f32.mrb[0].mxu0
        %v9749 = vadd.f32 0.0, %v9748
        %v9750 = vpop.f32.mrb[0].mxu0
        %v9751 = vpop.f32.mrb[0].mxu0
        %v9752 = vadd.f32 0.0, %v9751
        %v9753 = vpop.f32.mrb[0].mxu0
        %9754 = vdwg.mxu0
        %v9763 = vunpack.c.l.b16 %v9658
        %v9764 = vunpack.c.l.b16 %v9659
        %v9765 = vunpack.c.l.b16 %v9660
        %v9766 = vunpack.c.l.b16 %v9661
        %v9767 = vunpack.c.l.b16 %v9662
        %v9768 = vunpack.c.l.b16 %v9663
        %v9769 = vunpack.c.l.b16 %v9664
        %v9770 = vunpack.c.l.b16 %v9665
        %v9771 = vpack.c.b16 %v9764, %v9763
        %v9772 = vpack.c.b16 %v9766, %v9765
        %v9773 = vpack.c.b16 %v9768, %v9767
        %v9774 = vpack.c.b16 %v9770, %v9769
        %v9779 = vsel %vm9633, %v9657, 0
        %v9782 = vsel %vm9710, %v9774, 0
        %9784 = vmatprep.subr.bf16.mxu0 0
        %9785 = vmatpush1.bf16.msra.mxu0 %v9771
        %9786 = vmatprep.subr.bf16.mxu0 0
        %9787 = vmatpush1.bf16.msra.mxu0 %v9772
        %9788 = vmatprep.subr.bf16.mxu0 0
        %9789 = vmatpush1.bf16.msra.mxu0 %v9773
        %9790 = vmatprep.subr.bf16.mxu0 0
        %9791 = vmatpush1.bf16.msra.mxu0 %v9782
        %9792 = vmatprep.subr.bf16.mxu0 0
        %9793 = vmatpush1.bf16.msra.mxu0 0
        %9794 = vmatprep.subr.bf16.mxu0 0
        %9795 = vmatpush1.bf16.msra.mxu0 0
        %9796 = vmatprep.subr.bf16.mxu0 0
        %9797 = vmatpush1.bf16.msra.mxu0 0
        %9798 = vmatprep.subr.bf16.mxu0 0
        %9799 = vmatpush1.bf16.msra.mxu0 0
        %9800 = vmatprep.subr.bf16.mxu0 0
        %9801 = vmatpush1.bf16.msra.mxu0 0
        %9802 = vmatprep.subr.bf16.mxu0 0
        %9803 = vmatpush1.bf16.msra.mxu0 0
        %9804 = vmatprep.subr.bf16.mxu0 0
        %9805 = vmatpush1.bf16.msra.mxu0 0
        %9806 = vmatprep.subr.bf16.mxu0 0
        %9807 = vmatpush1.bf16.msra.mxu0 0
        %9808 = vmatprep.subr.bf16.mxu0 0
        %9809 = vmatpush1.bf16.msra.mxu0 0
        %9810 = vmatprep.subr.bf16.mxu0 0
        %9811 = vmatpush1.bf16.msra.mxu0 0
        %9812 = vmatprep.subr.bf16.mxu0 0
        %9813 = vmatpush1.bf16.msra.mxu0 0
        %9814 = vmatprep.subr.bf16.mxu0 0
        %9815 = vmatpush1.bf16.msra.mxu0 0
        %9816 = vmatprep.mubr.bf16.mxu0 0
        %9817 = vmatmul.mubr.bf16.gmra.mrb[0].mxu0 %v9779
        %v9818 = vpop.f32.mrb[0].mxu0
        %v9819 = vadd.f32 %v9749, %v9818
        %v9820 = vpop.f32.mrb[0].mxu0
        %v9821 = vpop.f32.mrb[0].mxu0
        %v9822 = vadd.f32 %v9752, %v9821
        %v9823 = vpop.f32.mrb[0].mxu0
        %9824 = vdwg.mxu0
        %s9825 = scalar_lea.vmem [#allocation7], 2
        %v9826 = vld [vmem:[%s9825] ss:$8 sm:$0xf]
        %v9827 = vld [vmem:[%s9825] ss:$8 sm:$0xf0]
        %v9828 = vor.u32 %v9826, %v9827
        %s9829 = scalar_lea.vmem [#allocation7], 66
        %v9830 = vld [vmem:[%s9829] ss:$8 sm:$0xf]
        %v9831 = vld [vmem:[%s9829] ss:$8 sm:$0xf0]
        %v9832 = vor.u32 %v9830, %v9831
        %v9833 = vpack.c.bf16 %v9832, %v9828
        %s9834 = scalar_lea.vmem %s11, 64
        %v9835 = vld [vmem:[%s9834] sm:$0xf]
        %v9836 = vld [vmem:[%s9834 + $0x4] sm:$0xf]
        %v9837 = vld [vmem:[%s9834 + $0x8] sm:$0xf]
        %v9838 = vld [vmem:[%s9834 + $0xc] sm:$0xf]
        %v9839 = vld [vmem:[%s9834 + $0x10] sm:$0xf]
        %v9840 = vld [vmem:[%s9834 + $0x14] sm:$0xf]
        %v9841 = vld [vmem:[%s9834 + $0x18] sm:$0xf]
        %v9842 = vld [vmem:[%s9834 + $0x1c] sm:$0x3]
        %v9851 = vunpack.c.l.b16 %v9835
        %v9852 = vunpack.c.l.b16 %v9836
        %v9853 = vunpack.c.l.b16 %v9837
        %v9854 = vunpack.c.l.b16 %v9838
        %v9855 = vunpack.c.l.b16 %v9839
        %v9856 = vunpack.c.l.b16 %v9840
        %v9857 = vunpack.c.l.b16 %v9841
        %v9858 = vunpack.c.l.b16 %v9842
        %v9859 = vpack.c.b16 %v9852, %v9851
        %v9860 = vpack.c.b16 %v9854, %v9853
        %v9861 = vpack.c.b16 %v9856, %v9855
        %v9862 = vpack.c.b16 %v9858, %v9857
        %v9867 = vsel %vm9633, %v9833, 0
        %v9870 = vsel %vm9710, %v9862, 0
        %9872 = vmatprep.subr.bf16.mxu0 0
        %9873 = vmatpush1.bf16.msra.mxu0 %v9859
        %9874 = vmatprep.subr.bf16.mxu0 0
        %9875 = vmatpush1.bf16.msra.mxu0 %v9860
        %9876 = vmatprep.subr.bf16.mxu0 0
        %9877 = vmatpush1.bf16.msra.mxu0 %v9861
        %9878 = vmatprep.subr.bf16.mxu0 0
        %9879 = vmatpush1.bf16.msra.mxu0 %v9870
        %9880 = vmatprep.subr.bf16.mxu0 0
        %9881 = vmatpush1.bf16.msra.mxu0 0
        %9882 = vmatprep.subr.bf16.mxu0 0
        %9883 = vmatpush1.bf16.msra.mxu0 0
        %9884 = vmatprep.subr.bf16.mxu0 0
        %9885 = vmatpush1.bf16.msra.mxu0 0
        %9886 = vmatprep.subr.bf16.mxu0 0
        %9887 = vmatpush1.bf16.msra.mxu0 0
        %9888 = vmatprep.subr.bf16.mxu0 0
        %9889 = vmatpush1.bf16.msra.mxu0 0
        %9890 = vmatprep.subr.bf16.mxu0 0
        %9891 = vmatpush1.bf16.msra.mxu0 0
        %9892 = vmatprep.subr.bf16.mxu0 0
        %9893 = vmatpush1.bf16.msra.mxu0 0
        %9894 = vmatprep.subr.bf16.mxu0 0
        %9895 = vmatpush1.bf16.msra.mxu0 0
        %9896 = vmatprep.subr.bf16.mxu0 0
        %9897 = vmatpush1.bf16.msra.mxu0 0
        %9898 = vmatprep.subr.bf16.mxu0 0
        %9899 = vmatpush1.bf16.msra.mxu0 0
        %9900 = vmatprep.subr.bf16.mxu0 0
        %9901 = vmatpush1.bf16.msra.mxu0 0
        %9902 = vmatprep.subr.bf16.mxu0 0
        %9903 = vmatpush1.bf16.msra.mxu0 0
        %9904 = vmatprep.mubr.bf16.mxu0 0
        %9905 = vmatmul.mubr.bf16.gmra.mrb[0].mxu0 %v9867
        %v9906 = vpop.f32.mrb[0].mxu0
        %v9907 = vadd.f32 0.0, %v9906
        %v9908 = vpop.f32.mrb[0].mxu0
        %v9909 = vpop.f32.mrb[0].mxu0
        %v9910 = vadd.f32 0.0, %v9909
        %v9911 = vpop.f32.mrb[0].mxu0
        %9912 = vdwg.mxu0
        %v9913 = vadd.f32 %v9819, %v9907
        %v9914 = vadd.f32 %v9822, %v9910
        %v9915 = vld [vmem:[%s12] sm:$0x1]
        %v9917 = vlaneseq
        %v9918 = vshrl.u32 %v9917, 7
        %v9919 = vsub.s32 0, %v9918
        %v9920 = vrot.slane %v9915, %v9919
        %v9922 = vadd.f32 %v9913, %v9920
        %v9923 = vadd.f32 %v9914, %v9920
        %v9924 = vmax.f32 %v9922, 0.0
        %v9925 = vmax.f32 %v9923, 0.0
        %v9926 = vpack.c.bf16 %v9925, %v9924
        %v9927 = vld [vmem:[%s13] sm:$0xf]
        %v9928 = vld [vmem:[%s13 + $0x4] sm:$0xf]
        %v9929 = vld [vmem:[%s13 + $0x8] sm:$0x3]
        %v9933 = vunpack.c.l.b16 %v9927
        %v9934 = vunpack.c.l.b16 %v9928
        %v9935 = vunpack.c.l.b16 %v9929
        %v9936 = vpack.c.b16 %v9934, %v9933
        %v9937 = vpack.c.b16 %v9935, %v9935
        %vm9939 = vcmask 162816
        %v9941 = vsel %vm9939, %v9926, 0
        %v9944 = vsel %vm3016, %v9937, 0
        %9946 = vmatprep.subr.bf16.mxu0 0
        %9947 = vmatpush1.bf16.msra.mxu0 %v9936
        %9948 = vmatprep.subr.bf16.mxu0 0
        %9949 = vmatpush1.bf16.msra.mxu0 %v9944
        %9950 = vmatprep.subr.bf16.mxu0 0
        %9951 = vmatpush1.bf16.msra.mxu0 0
        %9952 = vmatprep.subr.bf16.mxu0 0
        %9953 = vmatpush1.bf16.msra.mxu0 0
        %9954 = vmatprep.subr.bf16.mxu0 0
        %9955 = vmatpush1.bf16.msra.mxu0 0
        %9956 = vmatprep.subr.bf16.mxu0 0
        %9957 = vmatpush1.bf16.msra.mxu0 0
        %9958 = vmatprep.subr.bf16.mxu0 0
        %9959 = vmatpush1.bf16.msra.mxu0 0
        %9960 = vmatprep.subr.bf16.mxu0 0
        %9961 = vmatpush1.bf16.msra.mxu0 0
        %9962 = vmatprep.subr.bf16.mxu0 0
        %9963 = vmatpush1.bf16.msra.mxu0 0
        %9964 = vmatprep.subr.bf16.mxu0 0
        %9965 = vmatpush1.bf16.msra.mxu0 0
        %9966 = vmatprep.subr.bf16.mxu0 0
        %9967 = vmatpush1.bf16.msra.mxu0 0
        %9968 = vmatprep.subr.bf16.mxu0 0
        %9969 = vmatpush1.bf16.msra.mxu0 0
        %9970 = vmatprep.subr.bf16.mxu0 0
        %9971 = vmatpush1.bf16.msra.mxu0 0
        %9972 = vmatprep.subr.bf16.mxu0 0
        %9973 = vmatpush1.bf16.msra.mxu0 0
        %9974 = vmatprep.subr.bf16.mxu0 0
        %9975 = vmatpush1.bf16.msra.mxu0 0
        %9976 = vmatprep.subr.bf16.mxu0 0
        %9977 = vmatpush1.bf16.msra.mxu0 0
        %9978 = vmatprep.mubr.bf16.mxu0 0
        %9979 = vmatmul.mubr.bf16.gmra.mrb[0].mxu0 %v9941
        %v9980 = vpop.f32.mrb[0].mxu0
        %v9981 = vadd.f32 0.0, %v9980
        %v9982 = vpop.f32.mrb[0].mxu0
        %v9983 = vpop.f32.mrb[0].mxu0
        %v9984 = vadd.f32 0.0, %v9983
        %v9985 = vpop.f32.mrb[0].mxu0
        %9986 = vdwg.mxu0
        %v9987 = vmax.f32 %v9981, 0.0
        %v9988 = vmax.f32 %v9984, 0.0
        %v9989 = vld [vmem:[%s14] sm:$0xff]
        %v9990 = vld [vmem:[%s14 + $0x8] sm:$0x3]
        %v9991 = vld [vmem:[%s15] sm:$0x1]
        %v9993 = vlaneseq
        %v9994 = vshrl.u32 %v9993, 7
        %v9995 = vsub.s32 0, %v9994
        %v9996 = vrot.slane %v9991, %v9995
        %vm9998 = vcmask 80896
        %v10000 = vsel %vm9998, %v9987, 0
        %v10003 = vsel %vm9998, %v9988, 0
        %v10006 = vsel %vm3016, %v9990, 0
        %10008 = vmatprep.subr.mxu0 0.0
        %10009 = vmatpush1.msra.mxu0 %v9989
        %10010 = vmatprep.subr.mxu0 0.0
        %10011 = vmatpush1.msra.mxu0 %v10006
        %10012 = vmatprep.subr.mxu0 0.0
        %10013 = vmatpush1.msra.mxu0 0.0
        %10014 = vmatprep.subr.mxu0 0.0
        %10015 = vmatpush1.msra.mxu0 0.0
        %10016 = vmatprep.subr.mxu0 0.0
        %10017 = vmatpush1.msra.mxu0 0.0
        %10018 = vmatprep.subr.mxu0 0.0
        %10019 = vmatpush1.msra.mxu0 0.0
        %10020 = vmatprep.subr.mxu0 0.0
        %10021 = vmatpush1.msra.mxu0 0.0
        %10022 = vmatprep.subr.mxu0 0.0
        %10023 = vmatpush1.msra.mxu0 0.0
        %10024 = vmatprep.subr.mxu0 0.0
        %10025 = vmatpush1.msra.mxu0 0.0
        %10026 = vmatprep.subr.mxu0 0.0
        %10027 = vmatpush1.msra.mxu0 0.0
        %10028 = vmatprep.subr.mxu0 0.0
        %10029 = vmatpush1.msra.mxu0 0.0
        %10030 = vmatprep.subr.mxu0 0.0
        %10031 = vmatpush1.msra.mxu0 0.0
        %10032 = vmatprep.subr.mxu0 0.0
        %10033 = vmatpush1.msra.mxu0 0.0
        %10034 = vmatprep.subr.mxu0 0.0
        %10035 = vmatpush1.msra.mxu0 0.0
        %10036 = vmatprep.subr.mxu0 0.0
        %10037 = vmatpush1.msra.mxu0 0.0
        %10038 = vmatprep.subr.mxu0 0.0
        %10039 = vmatpush1.msra.mxu0 0.0
        %10040 = vmatprep.subr.mxu0 0.0
        %10041 = vmatpush1.msra.mxu0 0.0
        %10042 = vmatprep.subr.mxu0 0.0
        %10043 = vmatpush1.msra.mxu0 0.0
        %10044 = vmatprep.subr.mxu0 0.0
        %10045 = vmatpush1.msra.mxu0 0.0
        %10046 = vmatprep.subr.mxu0 0.0
        %10047 = vmatpush1.msra.mxu0 0.0
        %10048 = vmatprep.subr.mxu0 0.0
        %10049 = vmatpush1.msra.mxu0 0.0
        %10050 = vmatprep.subr.mxu0 0.0
        %10051 = vmatpush1.msra.mxu0 0.0
        %10052 = vmatprep.subr.mxu0 0.0
        %10053 = vmatpush1.msra.mxu0 0.0
        %10054 = vmatprep.subr.mxu0 0.0
        %10055 = vmatpush1.msra.mxu0 0.0
        %10056 = vmatprep.subr.mxu0 0.0
        %10057 = vmatpush1.msra.mxu0 0.0
        %10058 = vmatprep.subr.mxu0 0.0
        %10059 = vmatpush1.msra.mxu0 0.0
        %10060 = vmatprep.subr.mxu0 0.0
        %10061 = vmatpush1.msra.mxu0 0.0
        %10062 = vmatprep.subr.mxu0 0.0
        %10063 = vmatpush1.msra.mxu0 0.0
        %10064 = vmatprep.subr.mxu0 0.0
        %10065 = vmatpush1.msra.mxu0 0.0
        %10066 = vmatprep.subr.mxu0 0.0
        %10067 = vmatpush1.msra.mxu0 0.0
        %10068 = vmatprep.subr.mxu0 0.0
        %10069 = vmatpush1.msra.mxu0 0.0
        %10070 = vmatprep.subr.mxu0 0.0
        %10071 = vmatpush1.msra.mxu0 0.0
        %10072 = vmatprep.mubr.f32.mxu0 0.0
        %10073 = vmatmul.mubr.f32.gmra.mrb[0].mxu0 %v10000
        %v10074 = vpop.f32.mrb[0].mxu0
        %v10075 = vadd.f32 %v9996, %v10074
        %v10076 = vpop.f32.mrb[0].mxu0
        %10077 = vmatprep.mubr.f32.mxu0 0.0
        %10078 = vmatmul.mubr.f32.gmra.mrb[0].mxu0 %v10003
        %v10079 = vpop.f32.mrb[0].mxu0
        %v10080 = vadd.f32 %v9996, %v10079
        %v10081 = vpop.f32.mrb[0].mxu0
        %10082 = vdwg.mxu0
        %v10083 = vsel %vm9998, %v10075, -inf
        %10084 = vmax.xlane.f32.xlu0 %v10083
        %v10085 = vpop.xlane.xlu0 %10084
        %v10086 = vsel %vm9998, %v10080, -inf
        %10087 = vmax.xlane.f32.xlu0 %v10086
        %v10088 = vpop.xlane.xlu0 %10087
        %v10089 = vsub.f32 %v10075, %v10085
        %v10090 = vsub.f32 %v10080, %v10088
        %v10091 = vmul.f32 %v10089, 1.442695
        %v10092 = vpow.pop %v10091
        %v10093 = vmul.f32 %v10090, 1.442695
        %v10094 = vpow.pop %v10093
        %v10095 = vsel %vm9998, %v10092, 0.0
        %10096 = vadd.xlane.f32.xlu0 %v10095
        %v10097 = vpop.xlane.xlu0 %10096
        %v10098 = vsel %vm9998, %v10094, 0.0
        %10099 = vadd.xlane.f32.xlu0 %v10098
        %v10100 = vpop.xlane.xlu0 %10099
        %v10101 = vlog2.pop %v10097
        %v10102 = vmul.f32 %v10101, 0.6931472
        %v10103 = vlog2.pop %v10100
        %v10104 = vmul.f32 %v10103, 0.6931472
        %v10105 = vadd.f32 %v10102, %v10085
        %v10106 = vadd.f32 %v10104, %v10088
        %v10107 = vsub.f32 %v10075, %v10105
        %v10108 = vsub.f32 %v10080, %v10106
        %10109 = vst.msk [vmem:[%s553] sm:$0xff] %vm9998, %v10107
        %10110 = vst.msk [vmem:[%s553 + $0x8] sm:$0xff] %vm9998, %v10108
        %s10111 = smul.u32 2, %s29
        %p10112 = scmp.lt.s32.totalorder %s10111, 3
        %s10113 = scalar_select %p10112, %s10111, 3
        %s10114 = smul.addr %s10113, 8
        %s10115 = scalar_lea.vmem %s16, %s10114
        // Predicated region
        $region93: #{netv2_forward.1} parent=83 // pred_check
          %p10116 = pneg %p388
        $region94: #{netv2_forward.1} parent=83 // pred_check_branch
          %10118 = sbr.rel (%p10116) target = $region96
        $region95: #{netv2_forward.1} parent=83 // pred_region
          %s10119 = smul.u32 2, %s29
        $region96: #{netv2_forward.1} parent=83 // pred_fallthru
          _
      $region84: #{netv2_forward.1} parent=5 // pred_fallthru
        _
      %p10120 = scmp.le.s32.totalorder 2, %s24
      // Predicated region
      $region97: #{netv2_forward.1} parent=5 // pred_check
        %p10121 = pneg %p10120
      $region98: #{netv2_forward.1} parent=5 // pred_check_branch
        %10123 = sbr.rel (%p10121) target = $region100
      $region99: #{netv2_forward.1} parent=5 // pred_region
        %s10124 = ssub.s32 %s24, 2
        // Predicated region
        $region101: #{netv2_forward.1} parent=99 // pred_check
          %p10125 = pneg %p394
        $region102: #{netv2_forward.1} parent=99 // pred_check_branch
          %10127 = sbr.rel (%p10125) target = $region104
        $region103: #{netv2_forward.1} parent=99 // pred_region
          %s10128 = smul.u32 2, %s30
          %p10129 = scmp.lt.s32.totalorder %s10128, 3
          %s10130 = scalar_select %p10129, %s10128, 3
          %s10131 = smul.addr %s10130, 8
          %s10132 = scalar_lea.vmem %s16, %s10131
        $region104: #{netv2_forward.1} parent=99 // pred_fallthru
          _
      $region100: #{netv2_forward.1} parent=5 // pred_fallthru
        _
    $region6: #{netv2_forward.1} parent=1 // loop_footer
      %s28 = sadd.s32 1, %s24
    $region7: #{netv2_forward.1} parent=1 // loop_footer_branch
      %23 = sbr.rel target = $region3
    $region8: #{netv2_forward.1} parent=1 // loop_exit
      _
    %10133 = vsyncpa [#allocation9], 1
    %s10134 = scalar_lea.sflag [#allocation9], 1
    %10135 = vsyncpa %s10134, 1
    %10136 = vsyncpa [#allocation11], 1

</llo_original>
